<compile_context>
chip_gen: v5e
topology: v5e:2x2
jax: 0.10.0
libtpu: 0.0.40
codegen_flags: <defaults>
</compile_context>

<pallas_src>
import functools

import jax
import jax.numpy as jnp
from jax.experimental import pallas as pl
from jax.experimental.pallas import tpu as pltpu

TAP_SLOT = 128  # lane-aligned channel slot per 3x3 tap in the im2col patch


# ----------------------------------------------------------------------------
# Fused kernel: whole forward pass for one image per grid step.
# ----------------------------------------------------------------------------
def _fused_cnn_kernel(x_ref, w1_ref, b1_ref, w2_ref, b2_ref, w3_ref, b3_ref,
                      wfc1_ref, bfc1_ref, wfc2_ref, bfc2_ref,
                      o_ref,
                      pad1, pad2, pad3, patch,
                      *, H, W):
    # Zero the padded staging buffers (halo stays zero) and the im2col patch
    # (unused lanes multiply zero weight rows, but must hold finite values).
    pad1[...] = jnp.zeros_like(pad1)
    pad2[...] = jnp.zeros_like(pad2)
    pad3[...] = jnp.zeros_like(pad3)
    patch[...] = jnp.zeros_like(patch)

    def conv_relu_pool(pad_ref, w_ref, b_ref, h, w):
        cin = pad_ref.shape[-1]
        hw = h * w
        # im2col: each tap goes into its own 128-wide, lane-aligned slot so
        # the whole conv is a single MXU matmul with K = 9*128.
        for dy in range(3):
            for dx in range(3):
                tap = pad_ref[dy:dy + h, dx:dx + w, :].reshape(hw, cin)
                base = (dy * 3 + dx) * TAP_SLOT
                patch[0:hw, base:base + cin] = tap
        y = jnp.dot(patch[0:hw, :].astype(jnp.bfloat16), w_ref[...],
                    preferred_element_type=jnp.float32)
        y = jnp.maximum(y + b_ref[...], 0.0)                     # (hw, cout) f32
        cout = y.shape[-1]
        y = y.reshape(h, w, cout)
        y = jnp.max(y.reshape(h // 2, 2, w, cout), axis=1)       # pool rows
        y = jnp.max(y.reshape(h // 2, w // 2, 2, cout), axis=2)  # pool cols
        return y                                                 # (h/2, w/2, cout)

    # conv1 + ReLU + pool
    pad1[1:H + 1, 1:W + 1, :] = x_ref[0]
    y = conv_relu_pool(pad1, w1_ref, b1_ref, H, W)               # (H/2, W/2, 32)
    # conv2 + ReLU + pool
    pad2[1:H // 2 + 1, 1:W // 2 + 1, :] = y
    y = conv_relu_pool(pad2, w2_ref, b2_ref, H // 2, W // 2)     # (H/4, W/4, 64)
    # conv3 + ReLU + pool
    pad3[1:H // 4 + 1, 1:W // 4 + 1, :] = y
    y = conv_relu_pool(pad3, w3_ref, b3_ref, H // 4, W // 4)     # (H/8, W/8, 128)

    # FC head.  PyTorch's NCHW flatten order is baked into wfc1_ref's layout
    # (one (128,128) slab per spatial position), so no transpose is needed.
    # Dropout(0.2) is the identity at inference time.
    p = (H // 8) * (W // 8)
    f = y.reshape(p, 128)
    h_fc = bfc1_ref[...]                                         # (1, 128) f32
    for r in range(p):
        h_fc = h_fc + jnp.dot(f[r:r + 1, :].astype(jnp.bfloat16), wfc1_ref[r],
                              preferred_element_type=jnp.float32)
    h_fc = jnp.maximum(h_fc, 0.0)
    out = jnp.dot(h_fc.astype(jnp.bfloat16), wfc2_ref[...],
                  preferred_element_type=jnp.float32) + bfc2_ref[...]
    o_ref[...] = out.reshape(o_ref.shape)


# ----------------------------------------------------------------------------
# Wrapper: one pallas_call for the whole network.
# ----------------------------------------------------------------------------
def simple_cnn_forward(packed, x_nchw):
    x = jnp.transpose(x_nchw, (0, 2, 3, 1)).astype(jnp.float32)  # NCHW -> NHWC
    N, H, W, C = x.shape
    nc = packed["bfc2"].shape[-1]
    p = (H // 8) * (W // 8)
    kernel = functools.partial(_fused_cnn_kernel, H=H, W=W)

    out = pl.pallas_call(
        kernel,
        out_shape=jax.ShapeDtypeStruct((N, 1, nc), jnp.float32),
        grid=(N,),
        in_specs=[
            pl.BlockSpec((1, H, W, C), lambda n: (n, 0, 0, 0)),      # image
            pl.BlockSpec((9 * TAP_SLOT, 32), lambda n: (0, 0)),      # w1
            pl.BlockSpec((1, 32), lambda n: (0, 0)),                 # b1
            pl.BlockSpec((9 * TAP_SLOT, 64), lambda n: (0, 0)),      # w2
            pl.BlockSpec((1, 64), lambda n: (0, 0)),                 # b2
            pl.BlockSpec((9 * TAP_SLOT, 128), lambda n: (0, 0)),     # w3
            pl.BlockSpec((1, 128), lambda n: (0, 0)),                # b3
            pl.BlockSpec((p, 128, 128), lambda n: (0, 0, 0)),        # wfc1
            pl.BlockSpec((1, 128), lambda n: (0, 0)),                # bfc1
            pl.BlockSpec((128, nc), lambda n: (0, 0)),               # wfc2
            pl.BlockSpec((1, nc), lambda n: (0, 0)),                 # bfc2
        ],
        out_specs=pl.BlockSpec((1, 1, nc), lambda n: (n, 0, 0)),
        scratch_shapes=[
            pltpu.VMEM((H + 2, W + 2, C), jnp.float32),              # pad1
            pltpu.VMEM((H // 2 + 2, W // 2 + 2, 32), jnp.float32),   # pad2
            pltpu.VMEM((H // 4 + 2, W // 4 + 2, 64), jnp.float32),   # pad3
            pltpu.VMEM((H * W, 9 * TAP_SLOT), jnp.float32),          # im2col patch
        ],
        compiler_params=pltpu.CompilerParams(
            dimension_semantics=("parallel",)),  # batch axis -> both TCs on v7x
    )(x, packed["w1"], packed["b1"], packed["w2"], packed["b2"],
      packed["w3"], packed["b3"], packed["wfc1"], packed["bfc1"],
      packed["wfc2"], packed["bfc2"])
    return out[:, 0, :]


# ----------------------------------------------------------------------------
# Parameters: synthetic init in PyTorch-equivalent layouts + one-time repack.
# ----------------------------------------------------------------------------
def init_params(key, *, channels, img_hw, num_classes):
    H, W = img_hw
    fc_in = 128 * (H // 8) * (W // 8)
    ks = jax.random.split(key, 8)
    s = 0.05
    return {
        "w1": s * jax.random.normal(ks[0], (3, 3, channels, 32), jnp.float32),
        "b1": s * jax.random.normal(ks[1], (32,), jnp.float32),
        "w2": s * jax.random.normal(ks[2], (3, 3, 32, 64), jnp.float32),
        "b2": s * jax.random.normal(ks[3], (64,), jnp.float32),
        "w3": s * jax.random.normal(ks[4], (3, 3, 64, 128), jnp.float32),
        "b3": s * jax.random.normal(ks[5], (128,), jnp.float32),
        # wfc1 rows are in PyTorch's NCHW flatten order (c*HW + h*W + w).
        "wfc1": s * jax.random.normal(ks[6], (fc_in, 128), jnp.float32),
        "bfc1": jnp.zeros((128,), jnp.float32),
        "wfc2": s * jax.random.normal(ks[7], (128, num_classes), jnp.float32),
        "bfc2": jnp.zeros((num_classes,), jnp.float32),
    }


def _pack_conv_weight(w_hwio):
    """(3,3,Cin,Cout) -> (9*TAP_SLOT, Cout) bf16 with each tap zero-padded to
    a 128-row slot, matching the lane-aligned im2col patch layout."""
    kh, kw, cin, cout = w_hwio.shape
    wp = jnp.zeros((kh * kw, TAP_SLOT, cout), jnp.float32)
    wp = wp.at[:, :cin, :].set(w_hwio.reshape(kh * kw, cin, cout))
    return wp.reshape(kh * kw * TAP_SLOT, cout).astype(jnp.bfloat16)


def prepare_params(params, *, img_hw):
    """One-time host-side repack: bf16 MXU operands, zero-padded conv weights,
    and the PyTorch flatten-order permutation folded into wfc1."""
    H, W = img_hw
    hp, wp = H // 8, W // 8
    p = hp * wp
    wfc1 = (params["wfc1"].reshape(128, hp, wp, 128)
            .transpose(1, 2, 0, 3)
            .reshape(p, 128, 128)
            .astype(jnp.bfloat16))
    return {
        "w1": _pack_conv_weight(params["w1"]),
        "b1": params["b1"].reshape(1, -1).astype(jnp.float32),
        "w2": _pack_conv_weight(params["w2"]),
        "b2": params["b2"].reshape(1, -1).astype(jnp.float32),
        "w3": _pack_conv_weight(params["w3"]),
        "b3": params["b3"].reshape(1, -1).astype(jnp.float32),
        "wfc1": wfc1,
        "bfc1": params["bfc1"].reshape(1, -1).astype(jnp.float32),
        "wfc2": params["wfc2"].astype(jnp.bfloat16),
        "bfc2": params["bfc2"].reshape(1, -1).astype(jnp.float32),
    }


# ----------------------------------------------------------------------------
# Pure-JAX/XLA reference (same bf16-rounded weights, f32 math) for checking.
# ----------------------------------------------------------------------------
def reference_forward(params, x_nchw):
    bf = lambda a: a.astype(jnp.bfloat16).astype(jnp.float32)
    x = jnp.transpose(x_nchw, (0, 2, 3, 1)).astype(jnp.float32)

    def block(x, w, b):
        y = jax.lax.conv_general_dilated(
            x, bf(w), window_strides=(1, 1), padding="SAME",
            dimension_numbers=("NHWC", "HWIO", "NHWC"))
        y = jnp.maximum(y + b, 0.0)
        n, hh, ww, c = y.shape
        return y.reshape(n, hh // 2, 2, ww // 2, 2, c).max(axis=(2, 4))

    x = block(x, params["w1"], params["b1"])
    x = block(x, params["w2"], params["b2"])
    x = block(x, params["w3"], params["b3"])
    n = x.shape[0]
    feat = jnp.transpose(x, (0, 3, 1, 2)).reshape(n, -1)  # NCHW flatten order
    h = jnp.maximum(feat @ bf(params["wfc1"]) + params["bfc1"], 0.0)
    return h @ bf(params["wfc2"]) + params["bfc2"]


if __name__ == "__main__":
    # Small shapes consistent with the module: batch=2, channels=3,
    # spatial=16x16 (fc input = 128 * (16//8) * (16//8) = 512), 5 classes.
    batch, channels, H, W = 2, 3, 16, 16
    num_classes = 5

    key = jax.random.PRNGKey(0)
    k_params, k_x = jax.random.split(key)
    params = init_params(k_params, channels=channels, img_hw=(H, W),
                         num_classes=num_classes)
    packed = prepare_params(params, img_hw=(H, W))
    x = jax.random.normal(k_x, (batch, channels, H, W), jnp.float32)

    logits = jax.jit(simple_cnn_forward)(packed, x)
    jax.block_until_ready(logits)
    assert logits.shape == (batch, num_classes)

    # Numerical check against a plain-XLA reference using the same bf16 weights.
    ref = reference_forward(params, x)
    err = float(jnp.max(jnp.abs(logits - ref)))
    assert err < 2e-2, f"kernel/reference mismatch: max abs err = {err}"

    print("KERNEL_OK")
</pallas_src>

<mosaic_0001>
module attributes {stable_mosaic.version = 11 : i64} {
  func.func @_fused_cnn_kernel(%arg0: i32, %arg1: memref<1x16x16x3xf32, #tpu.memory_space<vmem>>, %arg2: memref<1152x32xbf16, #tpu.memory_space<vmem>>, %arg3: memref<1x32xf32, #tpu.memory_space<vmem>>, %arg4: memref<1152x64xbf16, #tpu.memory_space<vmem>>, %arg5: memref<1x64xf32, #tpu.memory_space<vmem>>, %arg6: memref<1152x128xbf16, #tpu.memory_space<vmem>>, %arg7: memref<1x128xf32, #tpu.memory_space<vmem>>, %arg8: memref<4x128x128xbf16, #tpu.memory_space<vmem>>, %arg9: memref<1x128xf32, #tpu.memory_space<vmem>>, %arg10: memref<128x5xbf16, #tpu.memory_space<vmem>>, %arg11: memref<1x5xf32, #tpu.memory_space<vmem>>, %arg12: memref<1x1x5xf32, #tpu.memory_space<vmem>>, %arg13: memref<18x18x3xf32, #tpu.memory_space<vmem>>, %arg14: memref<10x10x32xf32, #tpu.memory_space<vmem>>, %arg15: memref<6x6x64xf32, #tpu.memory_space<vmem>>, %arg16: memref<256x1152xf32, #tpu.memory_space<vmem>>) attributes {dimension_semantics = [#tpu.dimension_semantics<parallel>], iteration_bounds = array<i64: 2>, scalar_prefetch = 0 : i64, scratch_operands = 4 : i64, tpu.core_type = #tpu.core_type<tc>, window_params = [{transform_indices = @transform_0, window_bounds = array<i64: 1, 16, 16, 3>}, {pipeline_mode = #tpu.pipeline_mode<synchronous>, transform_indices = @transform_1, window_bounds = array<i64: 1152, 32>}, {pipeline_mode = #tpu.pipeline_mode<synchronous>, transform_indices = @transform_2, window_bounds = array<i64: 1, 32>}, {pipeline_mode = #tpu.pipeline_mode<synchronous>, transform_indices = @transform_3, window_bounds = array<i64: 1152, 64>}, {pipeline_mode = #tpu.pipeline_mode<synchronous>, transform_indices = @transform_4, window_bounds = array<i64: 1, 64>}, {pipeline_mode = #tpu.pipeline_mode<synchronous>, transform_indices = @transform_5, window_bounds = array<i64: 1152, 128>}, {pipeline_mode = #tpu.pipeline_mode<synchronous>, transform_indices = @transform_6, window_bounds = array<i64: 1, 128>}, {pipeline_mode = #tpu.pipeline_mode<synchronous>, transform_indices = @transform_7, window_bounds = array<i64: 4, 128, 128>}, {pipeline_mode = #tpu.pipeline_mode<synchronous>, transform_indices = @transform_8, window_bounds = array<i64: 1, 128>}, {pipeline_mode = #tpu.pipeline_mode<synchronous>, transform_indices = @transform_9, window_bounds = array<i64: 128, 5>}, {pipeline_mode = #tpu.pipeline_mode<synchronous>, transform_indices = @transform_10, window_bounds = array<i64: 1, 5>}, {transform_indices = @transform_11, window_bounds = array<i64: 1, 1, 5>}]} {
    %cst = arith.constant 0.000000e+00 : f32
    %0 = vector.broadcast %cst : f32 to vector<18x18x3xf32>
    %c0 = arith.constant 0 : index
    %c0_0 = arith.constant 0 : index
    %c0_1 = arith.constant 0 : index
    %1 = vector.load %arg13[%c0, %c0_0, %c0_1] : memref<18x18x3xf32, #tpu.memory_space<vmem>>, vector<18x18x3xf32>
    tpu.vector_store %arg13[%c0, %c0_0, %c0_1], %0 {strides = array<i32>} : memref<18x18x3xf32, #tpu.memory_space<vmem>>, vector<18x18x3xf32>,
    %cst_2 = arith.constant 0.000000e+00 : f32
    %2 = vector.broadcast %cst_2 : f32 to vector<10x10x32xf32>
    %c0_3 = arith.constant 0 : index
    %c0_4 = arith.constant 0 : index
    %c0_5 = arith.constant 0 : index
    %3 = vector.load %arg14[%c0_3, %c0_4, %c0_5] : memref<10x10x32xf32, #tpu.memory_space<vmem>>, vector<10x10x32xf32>
    tpu.vector_store %arg14[%c0_3, %c0_4, %c0_5], %2 {strides = array<i32>} : memref<10x10x32xf32, #tpu.memory_space<vmem>>, vector<10x10x32xf32>,
    %cst_6 = arith.constant 0.000000e+00 : f32
    %4 = vector.broadcast %cst_6 : f32 to vector<6x6x64xf32>
    %c0_7 = arith.constant 0 : index
    %c0_8 = arith.constant 0 : index
    %c0_9 = arith.constant 0 : index
    %5 = vector.load %arg15[%c0_7, %c0_8, %c0_9] : memref<6x6x64xf32, #tpu.memory_space<vmem>>, vector<6x6x64xf32>
    tpu.vector_store %arg15[%c0_7, %c0_8, %c0_9], %4 {strides = array<i32>} : memref<6x6x64xf32, #tpu.memory_space<vmem>>, vector<6x6x64xf32>,
    %cst_10 = arith.constant 0.000000e+00 : f32
    %6 = vector.broadcast %cst_10 : f32 to vector<256x1152xf32>
    %c0_11 = arith.constant 0 : index
    %c0_12 = arith.constant 0 : index
    %7 = vector.load %arg16[%c0_11, %c0_12] : memref<256x1152xf32, #tpu.memory_space<vmem>>, vector<256x1152xf32>
    tpu.vector_store %arg16[%c0_11, %c0_12], %6 {strides = array<i32>} : memref<256x1152xf32, #tpu.memory_space<vmem>>, vector<256x1152xf32>,
    %c0_13 = arith.constant 0 : index
    %c0_14 = arith.constant 0 : index
    %c0_15 = arith.constant 0 : index
    %c0_16 = arith.constant 0 : index
    %8 = vector.load %arg1[%c0_13, %c0_14, %c0_15, %c0_16] : memref<1x16x16x3xf32, #tpu.memory_space<vmem>>, vector<1x16x16x3xf32>
    %9 = vector.shape_cast %8 : vector<1x16x16x3xf32> to vector<16x16x3xf32>
    %c1 = arith.constant 1 : index
    %c1_17 = arith.constant 1 : index
    %c0_18 = arith.constant 0 : index
    %10 = vector.load %arg13[%c1, %c1_17, %c0_18] : memref<18x18x3xf32, #tpu.memory_space<vmem>>, vector<16x16x3xf32>
    tpu.vector_store %arg13[%c1, %c1_17, %c0_18], %9 {strides = array<i32>} : memref<18x18x3xf32, #tpu.memory_space<vmem>>, vector<16x16x3xf32>,
    %c0_19 = arith.constant 0 : index
    %c0_20 = arith.constant 0 : index
    %c0_21 = arith.constant 0 : index
    %11 = vector.load %arg13[%c0_19, %c0_20, %c0_21] : memref<18x18x3xf32, #tpu.memory_space<vmem>>, vector<16x16x3xf32>
    %12 = vector.shape_cast %11 : vector<16x16x3xf32> to vector<256x3xf32>
    %c0_22 = arith.constant 0 : index
    %c0_23 = arith.constant 0 : index
    %13 = vector.load %arg16[%c0_22, %c0_23] : memref<256x1152xf32, #tpu.memory_space<vmem>>, vector<256x3xf32>
    tpu.vector_store %arg16[%c0_22, %c0_23], %12 {strides = array<i32>} : memref<256x1152xf32, #tpu.memory_space<vmem>>, vector<256x3xf32>,
    %c0_24 = arith.constant 0 : index
    %c1_25 = arith.constant 1 : index
    %c0_26 = arith.constant 0 : index
    %14 = vector.load %arg13[%c0_24, %c1_25, %c0_26] : memref<18x18x3xf32, #tpu.memory_space<vmem>>, vector<16x16x3xf32>
    %15 = vector.shape_cast %14 : vector<16x16x3xf32> to vector<256x3xf32>
    %c0_27 = arith.constant 0 : index
    %c128 = arith.constant 128 : index
    %16 = vector.load %arg16[%c0_27, %c128] : memref<256x1152xf32, #tpu.memory_space<vmem>>, vector<256x3xf32>
    tpu.vector_store %arg16[%c0_27, %c128], %15 {strides = array<i32>} : memref<256x1152xf32, #tpu.memory_space<vmem>>, vector<256x3xf32>,
    %c0_28 = arith.constant 0 : index
    %c2 = arith.constant 2 : index
    %c0_29 = arith.constant 0 : index
    %17 = vector.load %arg13[%c0_28, %c2, %c0_29] : memref<18x18x3xf32, #tpu.memory_space<vmem>>, vector<16x16x3xf32>
    %18 = vector.shape_cast %17 : vector<16x16x3xf32> to vector<256x3xf32>
    %c0_30 = arith.constant 0 : index
    %c256 = arith.constant 256 : index
    %19 = vector.load %arg16[%c0_30, %c256] : memref<256x1152xf32, #tpu.memory_space<vmem>>, vector<256x3xf32>
    tpu.vector_store %arg16[%c0_30, %c256], %18 {strides = array<i32>} : memref<256x1152xf32, #tpu.memory_space<vmem>>, vector<256x3xf32>,
    %c1_31 = arith.constant 1 : index
    %c0_32 = arith.constant 0 : index
    %c0_33 = arith.constant 0 : index
    %20 = vector.load %arg13[%c1_31, %c0_32, %c0_33] : memref<18x18x3xf32, #tpu.memory_space<vmem>>, vector<16x16x3xf32>
    %21 = vector.shape_cast %20 : vector<16x16x3xf32> to vector<256x3xf32>
    %c0_34 = arith.constant 0 : index
    %c384 = arith.constant 384 : index
    %22 = vector.load %arg16[%c0_34, %c384] : memref<256x1152xf32, #tpu.memory_space<vmem>>, vector<256x3xf32>
    tpu.vector_store %arg16[%c0_34, %c384], %21 {strides = array<i32>} : memref<256x1152xf32, #tpu.memory_space<vmem>>, vector<256x3xf32>,
    %c1_35 = arith.constant 1 : index
    %c1_36 = arith.constant 1 : index
    %c0_37 = arith.constant 0 : index
    %23 = vector.load %arg13[%c1_35, %c1_36, %c0_37] : memref<18x18x3xf32, #tpu.memory_space<vmem>>, vector<16x16x3xf32>
    %24 = vector.shape_cast %23 : vector<16x16x3xf32> to vector<256x3xf32>
    %c0_38 = arith.constant 0 : index
    %c512 = arith.constant 512 : index
    %25 = vector.load %arg16[%c0_38, %c512] : memref<256x1152xf32, #tpu.memory_space<vmem>>, vector<256x3xf32>
    tpu.vector_store %arg16[%c0_38, %c512], %24 {strides = array<i32>} : memref<256x1152xf32, #tpu.memory_space<vmem>>, vector<256x3xf32>,
    %c1_39 = arith.constant 1 : index
    %c2_40 = arith.constant 2 : index
    %c0_41 = arith.constant 0 : index
    %26 = vector.load %arg13[%c1_39, %c2_40, %c0_41] : memref<18x18x3xf32, #tpu.memory_space<vmem>>, vector<16x16x3xf32>
    %27 = vector.shape_cast %26 : vector<16x16x3xf32> to vector<256x3xf32>
    %c0_42 = arith.constant 0 : index
    %c640 = arith.constant 640 : index
    %28 = vector.load %arg16[%c0_42, %c640] : memref<256x1152xf32, #tpu.memory_space<vmem>>, vector<256x3xf32>
    tpu.vector_store %arg16[%c0_42, %c640], %27 {strides = array<i32>} : memref<256x1152xf32, #tpu.memory_space<vmem>>, vector<256x3xf32>,
    %c2_43 = arith.constant 2 : index
    %c0_44 = arith.constant 0 : index
    %c0_45 = arith.constant 0 : index
    %29 = vector.load %arg13[%c2_43, %c0_44, %c0_45] : memref<18x18x3xf32, #tpu.memory_space<vmem>>, vector<16x16x3xf32>
    %30 = vector.shape_cast %29 : vector<16x16x3xf32> to vector<256x3xf32>
    %c0_46 = arith.constant 0 : index
    %c768 = arith.constant 768 : index
    %31 = vector.load %arg16[%c0_46, %c768] : memref<256x1152xf32, #tpu.memory_space<vmem>>, vector<256x3xf32>
    tpu.vector_store %arg16[%c0_46, %c768], %30 {strides = array<i32>} : memref<256x1152xf32, #tpu.memory_space<vmem>>, vector<256x3xf32>,
    %c2_47 = arith.constant 2 : index
    %c1_48 = arith.constant 1 : index
    %c0_49 = arith.constant 0 : index
    %32 = vector.load %arg13[%c2_47, %c1_48, %c0_49] : memref<18x18x3xf32, #tpu.memory_space<vmem>>, vector<16x16x3xf32>
    %33 = vector.shape_cast %32 : vector<16x16x3xf32> to vector<256x3xf32>
    %c0_50 = arith.constant 0 : index
    %c896 = arith.constant 896 : index
    %34 = vector.load %arg16[%c0_50, %c896] : memref<256x1152xf32, #tpu.memory_space<vmem>>, vector<256x3xf32>
    tpu.vector_store %arg16[%c0_50, %c896], %33 {strides = array<i32>} : memref<256x1152xf32, #tpu.memory_space<vmem>>, vector<256x3xf32>,
    %c2_51 = arith.constant 2 : index
    %c2_52 = arith.constant 2 : index
    %c0_53 = arith.constant 0 : index
    %35 = vector.load %arg13[%c2_51, %c2_52, %c0_53] : memref<18x18x3xf32, #tpu.memory_space<vmem>>, vector<16x16x3xf32>
    %36 = vector.shape_cast %35 : vector<16x16x3xf32> to vector<256x3xf32>
    %c0_54 = arith.constant 0 : index
    %c1024 = arith.constant 1024 : index
    %37 = vector.load %arg16[%c0_54, %c1024] : memref<256x1152xf32, #tpu.memory_space<vmem>>, vector<256x3xf32>
    tpu.vector_store %arg16[%c0_54, %c1024], %36 {strides = array<i32>} : memref<256x1152xf32, #tpu.memory_space<vmem>>, vector<256x3xf32>,
    %c0_55 = arith.constant 0 : index
    %c0_56 = arith.constant 0 : index
    %38 = vector.load %arg16[%c0_55, %c0_56] : memref<256x1152xf32, #tpu.memory_space<vmem>>, vector<256x1152xf32>
    %39 = arith.truncf %38 : vector<256x1152xf32> to vector<256x1152xbf16>
    %c0_57 = arith.constant 0 : index
    %c0_58 = arith.constant 0 : index
    %40 = vector.load %arg2[%c0_57, %c0_58] : memref<1152x32xbf16, #tpu.memory_space<vmem>>, vector<1152x32xbf16>
    %cst_59 = arith.constant dense<0.000000e+00> : vector<256x32xf32>
    %41 = tpu.matmul %39, %40, %cst_59 {dimension_numbers = #tpu.dot_dimension_numbers<[1], [0], [0], [1], [0, 0, 1, 1], [], []>} : vector<256x1152xbf16>, vector<1152x32xbf16>, vector<256x32xf32> -> vector<256x32xf32>
    %c0_60 = arith.constant 0 : index
    %c0_61 = arith.constant 0 : index
    %42 = vector.load %arg3[%c0_60, %c0_61] : memref<1x32xf32, #tpu.memory_space<vmem>>, vector<1x32xf32>
    %43 = vector.broadcast %42 : vector<1x32xf32> to vector<256x32xf32>
    %44 = arith.addf %41, %43 : vector<256x32xf32>
    %cst_62 = arith.constant 0.000000e+00 : f32
    %45 = vector.broadcast %cst_62 : f32 to vector<256x32xf32>
    %46 = arith.maximumf %44, %45 : vector<256x32xf32>
    %47 = vector.shape_cast %46 : vector<256x32xf32> to vector<16x16x32xf32>
    %48 = vector.shape_cast %47 : vector<16x16x32xf32> to vector<8x2x16x32xf32>
    %cst_63 = arith.constant dense<0xFF800000> : vector<8x16x32xf32>
    %49 = vector.multi_reduction <maximumf>, %48, %cst_63 [1] : vector<8x2x16x32xf32> to vector<8x16x32xf32>
    %50 = vector.shape_cast %49 : vector<8x16x32xf32> to vector<8x8x2x32xf32>
    %cst_64 = arith.constant dense<0xFF800000> : vector<8x8x32xf32>
    %51 = vector.multi_reduction <maximumf>, %50, %cst_64 [2] : vector<8x8x2x32xf32> to vector<8x8x32xf32>
    %c1_65 = arith.constant 1 : index
    %c1_66 = arith.constant 1 : index
    %c0_67 = arith.constant 0 : index
    %52 = vector.load %arg14[%c1_65, %c1_66, %c0_67] : memref<10x10x32xf32, #tpu.memory_space<vmem>>, vector<8x8x32xf32>
    tpu.vector_store %arg14[%c1_65, %c1_66, %c0_67], %51 {strides = array<i32>} : memref<10x10x32xf32, #tpu.memory_space<vmem>>, vector<8x8x32xf32>,
    %c0_68 = arith.constant 0 : index
    %c0_69 = arith.constant 0 : index
    %c0_70 = arith.constant 0 : index
    %53 = vector.load %arg14[%c0_68, %c0_69, %c0_70] : memref<10x10x32xf32, #tpu.memory_space<vmem>>, vector<8x8x32xf32>
    %54 = vector.shape_cast %53 : vector<8x8x32xf32> to vector<64x32xf32>
    %c0_71 = arith.constant 0 : index
    %c0_72 = arith.constant 0 : index
    %55 = vector.load %arg16[%c0_71, %c0_72] : memref<256x1152xf32, #tpu.memory_space<vmem>>, vector<64x32xf32>
    tpu.vector_store %arg16[%c0_71, %c0_72], %54 {strides = array<i32>} : memref<256x1152xf32, #tpu.memory_space<vmem>>, vector<64x32xf32>,
    %c0_73 = arith.constant 0 : index
    %c1_74 = arith.constant 1 : index
    %c0_75 = arith.constant 0 : index
    %56 = vector.load %arg14[%c0_73, %c1_74, %c0_75] : memref<10x10x32xf32, #tpu.memory_space<vmem>>, vector<8x8x32xf32>
    %57 = vector.shape_cast %56 : vector<8x8x32xf32> to vector<64x32xf32>
    %c0_76 = arith.constant 0 : index
    %c128_77 = arith.constant 128 : index
    %58 = vector.load %arg16[%c0_76, %c128_77] : memref<256x1152xf32, #tpu.memory_space<vmem>>, vector<64x32xf32>
    tpu.vector_store %arg16[%c0_76, %c128_77], %57 {strides = array<i32>} : memref<256x1152xf32, #tpu.memory_space<vmem>>, vector<64x32xf32>,
    %c0_78 = arith.constant 0 : index
    %c2_79 = arith.constant 2 : index
    %c0_80 = arith.constant 0 : index
    %59 = vector.load %arg14[%c0_78, %c2_79, %c0_80] : memref<10x10x32xf32, #tpu.memory_space<vmem>>, vector<8x8x32xf32>
    %60 = vector.shape_cast %59 : vector<8x8x32xf32> to vector<64x32xf32>
    %c0_81 = arith.constant 0 : index
    %c256_82 = arith.constant 256 : index
    %61 = vector.load %arg16[%c0_81, %c256_82] : memref<256x1152xf32, #tpu.memory_space<vmem>>, vector<64x32xf32>
    tpu.vector_store %arg16[%c0_81, %c256_82], %60 {strides = array<i32>} : memref<256x1152xf32, #tpu.memory_space<vmem>>, vector<64x32xf32>,
    %c1_83 = arith.constant 1 : index
    %c0_84 = arith.constant 0 : index
    %c0_85 = arith.constant 0 : index
    %62 = vector.load %arg14[%c1_83, %c0_84, %c0_85] : memref<10x10x32xf32, #tpu.memory_space<vmem>>, vector<8x8x32xf32>
    %63 = vector.shape_cast %62 : vector<8x8x32xf32> to vector<64x32xf32>
    %c0_86 = arith.constant 0 : index
    %c384_87 = arith.constant 384 : index
    %64 = vector.load %arg16[%c0_86, %c384_87] : memref<256x1152xf32, #tpu.memory_space<vmem>>, vector<64x32xf32>
    tpu.vector_store %arg16[%c0_86, %c384_87], %63 {strides = array<i32>} : memref<256x1152xf32, #tpu.memory_space<vmem>>, vector<64x32xf32>,
    %c1_88 = arith.constant 1 : index
    %c1_89 = arith.constant 1 : index
    %c0_90 = arith.constant 0 : index
    %65 = vector.load %arg14[%c1_88, %c1_89, %c0_90] : memref<10x10x32xf32, #tpu.memory_space<vmem>>, vector<8x8x32xf32>
    %66 = vector.shape_cast %65 : vector<8x8x32xf32> to vector<64x32xf32>
    %c0_91 = arith.constant 0 : index
    %c512_92 = arith.constant 512 : index
    %67 = vector.load %arg16[%c0_91, %c512_92] : memref<256x1152xf32, #tpu.memory_space<vmem>>, vector<64x32xf32>
    tpu.vector_store %arg16[%c0_91, %c512_92], %66 {strides = array<i32>} : memref<256x1152xf32, #tpu.memory_space<vmem>>, vector<64x32xf32>,
    %c1_93 = arith.constant 1 : index
    %c2_94 = arith.constant 2 : index
    %c0_95 = arith.constant 0 : index
    %68 = vector.load %arg14[%c1_93, %c2_94, %c0_95] : memref<10x10x32xf32, #tpu.memory_space<vmem>>, vector<8x8x32xf32>
    %69 = vector.shape_cast %68 : vector<8x8x32xf32> to vector<64x32xf32>
    %c0_96 = arith.constant 0 : index
    %c640_97 = arith.constant 640 : index
    %70 = vector.load %arg16[%c0_96, %c640_97] : memref<256x1152xf32, #tpu.memory_space<vmem>>, vector<64x32xf32>
    tpu.vector_store %arg16[%c0_96, %c640_97], %69 {strides = array<i32>} : memref<256x1152xf32, #tpu.memory_space<vmem>>, vector<64x32xf32>,
    %c2_98 = arith.constant 2 : index
    %c0_99 = arith.constant 0 : index
    %c0_100 = arith.constant 0 : index
    %71 = vector.load %arg14[%c2_98, %c0_99, %c0_100] : memref<10x10x32xf32, #tpu.memory_space<vmem>>, vector<8x8x32xf32>
    %72 = vector.shape_cast %71 : vector<8x8x32xf32> to vector<64x32xf32>
    %c0_101 = arith.constant 0 : index
    %c768_102 = arith.constant 768 : index
    %73 = vector.load %arg16[%c0_101, %c768_102] : memref<256x1152xf32, #tpu.memory_space<vmem>>, vector<64x32xf32>
    tpu.vector_store %arg16[%c0_101, %c768_102], %72 {strides = array<i32>} : memref<256x1152xf32, #tpu.memory_space<vmem>>, vector<64x32xf32>,
    %c2_103 = arith.constant 2 : index
    %c1_104 = arith.constant 1 : index
    %c0_105 = arith.constant 0 : index
    %74 = vector.load %arg14[%c2_103, %c1_104, %c0_105] : memref<10x10x32xf32, #tpu.memory_space<vmem>>, vector<8x8x32xf32>
    %75 = vector.shape_cast %74 : vector<8x8x32xf32> to vector<64x32xf32>
    %c0_106 = arith.constant 0 : index
    %c896_107 = arith.constant 896 : index
    %76 = vector.load %arg16[%c0_106, %c896_107] : memref<256x1152xf32, #tpu.memory_space<vmem>>, vector<64x32xf32>
    tpu.vector_store %arg16[%c0_106, %c896_107], %75 {strides = array<i32>} : memref<256x1152xf32, #tpu.memory_space<vmem>>, vector<64x32xf32>,
    %c2_108 = arith.constant 2 : index
    %c2_109 = arith.constant 2 : index
    %c0_110 = arith.constant 0 : index
    %77 = vector.load %arg14[%c2_108, %c2_109, %c0_110] : memref<10x10x32xf32, #tpu.memory_space<vmem>>, vector<8x8x32xf32>
    %78 = vector.shape_cast %77 : vector<8x8x32xf32> to vector<64x32xf32>
    %c0_111 = arith.constant 0 : index
    %c1024_112 = arith.constant 1024 : index
    %79 = vector.load %arg16[%c0_111, %c1024_112] : memref<256x1152xf32, #tpu.memory_space<vmem>>, vector<64x32xf32>
    tpu.vector_store %arg16[%c0_111, %c1024_112], %78 {strides = array<i32>} : memref<256x1152xf32, #tpu.memory_space<vmem>>, vector<64x32xf32>,
    %c0_113 = arith.constant 0 : index
    %c0_114 = arith.constant 0 : index
    %80 = vector.load %arg16[%c0_113, %c0_114] : memref<256x1152xf32, #tpu.memory_space<vmem>>, vector<64x1152xf32>
    %81 = arith.truncf %80 : vector<64x1152xf32> to vector<64x1152xbf16>
    %c0_115 = arith.constant 0 : index
    %c0_116 = arith.constant 0 : index
    %82 = vector.load %arg4[%c0_115, %c0_116] : memref<1152x64xbf16, #tpu.memory_space<vmem>>, vector<1152x64xbf16>
    %cst_117 = arith.constant dense<0.000000e+00> : vector<64x64xf32>
    %83 = tpu.matmul %81, %82, %cst_117 {dimension_numbers = #tpu.dot_dimension_numbers<[1], [0], [0], [1], [0, 0, 1, 1], [], []>} : vector<64x1152xbf16>, vector<1152x64xbf16>, vector<64x64xf32> -> vector<64x64xf32>
    %c0_118 = arith.constant 0 : index
    %c0_119 = arith.constant 0 : index
    %84 = vector.load %arg5[%c0_118, %c0_119] : memref<1x64xf32, #tpu.memory_space<vmem>>, vector<1x64xf32>
    %85 = vector.broadcast %84 : vector<1x64xf32> to vector<64x64xf32>
    %86 = arith.addf %83, %85 : vector<64x64xf32>
    %cst_120 = arith.constant 0.000000e+00 : f32
    %87 = vector.broadcast %cst_120 : f32 to vector<64x64xf32>
    %88 = arith.maximumf %86, %87 : vector<64x64xf32>
    %89 = vector.shape_cast %88 : vector<64x64xf32> to vector<8x8x64xf32>
    %90 = vector.shape_cast %89 : vector<8x8x64xf32> to vector<4x2x8x64xf32>
    %cst_121 = arith.constant dense<0xFF800000> : vector<4x8x64xf32>
    %91 = vector.multi_reduction <maximumf>, %90, %cst_121 [1] : vector<4x2x8x64xf32> to vector<4x8x64xf32>
    %92 = vector.shape_cast %91 : vector<4x8x64xf32> to vector<4x4x2x64xf32>
    %cst_122 = arith.constant dense<0xFF800000> : vector<4x4x64xf32>
    %93 = vector.multi_reduction <maximumf>, %92, %cst_122 [2] : vector<4x4x2x64xf32> to vector<4x4x64xf32>
    %c1_123 = arith.constant 1 : index
    %c1_124 = arith.constant 1 : index
    %c0_125 = arith.constant 0 : index
    %94 = vector.load %arg15[%c1_123, %c1_124, %c0_125] : memref<6x6x64xf32, #tpu.memory_space<vmem>>, vector<4x4x64xf32>
    tpu.vector_store %arg15[%c1_123, %c1_124, %c0_125], %93 {strides = array<i32>} : memref<6x6x64xf32, #tpu.memory_space<vmem>>, vector<4x4x64xf32>,
    %c0_126 = arith.constant 0 : index
    %c0_127 = arith.constant 0 : index
    %c0_128 = arith.constant 0 : index
    %95 = vector.load %arg15[%c0_126, %c0_127, %c0_128] : memref<6x6x64xf32, #tpu.memory_space<vmem>>, vector<4x4x64xf32>
    %96 = vector.shape_cast %95 : vector<4x4x64xf32> to vector<16x64xf32>
    %c0_129 = arith.constant 0 : index
    %c0_130 = arith.constant 0 : index
    %97 = vector.load %arg16[%c0_129, %c0_130] : memref<256x1152xf32, #tpu.memory_space<vmem>>, vector<16x64xf32>
    tpu.vector_store %arg16[%c0_129, %c0_130], %96 {strides = array<i32>} : memref<256x1152xf32, #tpu.memory_space<vmem>>, vector<16x64xf32>,
    %c0_131 = arith.constant 0 : index
    %c1_132 = arith.constant 1 : index
    %c0_133 = arith.constant 0 : index
    %98 = vector.load %arg15[%c0_131, %c1_132, %c0_133] : memref<6x6x64xf32, #tpu.memory_space<vmem>>, vector<4x4x64xf32>
    %99 = vector.shape_cast %98 : vector<4x4x64xf32> to vector<16x64xf32>
    %c0_134 = arith.constant 0 : index
    %c128_135 = arith.constant 128 : index
    %100 = vector.load %arg16[%c0_134, %c128_135] : memref<256x1152xf32, #tpu.memory_space<vmem>>, vector<16x64xf32>
    tpu.vector_store %arg16[%c0_134, %c128_135], %99 {strides = array<i32>} : memref<256x1152xf32, #tpu.memory_space<vmem>>, vector<16x64xf32>,
    %c0_136 = arith.constant 0 : index
    %c2_137 = arith.constant 2 : index
    %c0_138 = arith.constant 0 : index
    %101 = vector.load %arg15[%c0_136, %c2_137, %c0_138] : memref<6x6x64xf32, #tpu.memory_space<vmem>>, vector<4x4x64xf32>
    %102 = vector.shape_cast %101 : vector<4x4x64xf32> to vector<16x64xf32>
    %c0_139 = arith.constant 0 : index
    %c256_140 = arith.constant 256 : index
    %103 = vector.load %arg16[%c0_139, %c256_140] : memref<256x1152xf32, #tpu.memory_space<vmem>>, vector<16x64xf32>
    tpu.vector_store %arg16[%c0_139, %c256_140], %102 {strides = array<i32>} : memref<256x1152xf32, #tpu.memory_space<vmem>>, vector<16x64xf32>,
    %c1_141 = arith.constant 1 : index
    %c0_142 = arith.constant 0 : index
    %c0_143 = arith.constant 0 : index
    %104 = vector.load %arg15[%c1_141, %c0_142, %c0_143] : memref<6x6x64xf32, #tpu.memory_space<vmem>>, vector<4x4x64xf32>
    %105 = vector.shape_cast %104 : vector<4x4x64xf32> to vector<16x64xf32>
    %c0_144 = arith.constant 0 : index
    %c384_145 = arith.constant 384 : index
    %106 = vector.load %arg16[%c0_144, %c384_145] : memref<256x1152xf32, #tpu.memory_space<vmem>>, vector<16x64xf32>
    tpu.vector_store %arg16[%c0_144, %c384_145], %105 {strides = array<i32>} : memref<256x1152xf32, #tpu.memory_space<vmem>>, vector<16x64xf32>,
    %c1_146 = arith.constant 1 : index
    %c1_147 = arith.constant 1 : index
    %c0_148 = arith.constant 0 : index
    %107 = vector.load %arg15[%c1_146, %c1_147, %c0_148] : memref<6x6x64xf32, #tpu.memory_space<vmem>>, vector<4x4x64xf32>
    %108 = vector.shape_cast %107 : vector<4x4x64xf32> to vector<16x64xf32>
    %c0_149 = arith.constant 0 : index
    %c512_150 = arith.constant 512 : index
    %109 = vector.load %arg16[%c0_149, %c512_150] : memref<256x1152xf32, #tpu.memory_space<vmem>>, vector<16x64xf32>
    tpu.vector_store %arg16[%c0_149, %c512_150], %108 {strides = array<i32>} : memref<256x1152xf32, #tpu.memory_space<vmem>>, vector<16x64xf32>,
    %c1_151 = arith.constant 1 : index
    %c2_152 = arith.constant 2 : index
    %c0_153 = arith.constant 0 : index
    %110 = vector.load %arg15[%c1_151, %c2_152, %c0_153] : memref<6x6x64xf32, #tpu.memory_space<vmem>>, vector<4x4x64xf32>
    %111 = vector.shape_cast %110 : vector<4x4x64xf32> to vector<16x64xf32>
    %c0_154 = arith.constant 0 : index
    %c640_155 = arith.constant 640 : index
    %112 = vector.load %arg16[%c0_154, %c640_155] : memref<256x1152xf32, #tpu.memory_space<vmem>>, vector<16x64xf32>
    tpu.vector_store %arg16[%c0_154, %c640_155], %111 {strides = array<i32>} : memref<256x1152xf32, #tpu.memory_space<vmem>>, vector<16x64xf32>,
    %c2_156 = arith.constant 2 : index
    %c0_157 = arith.constant 0 : index
    %c0_158 = arith.constant 0 : index
    %113 = vector.load %arg15[%c2_156, %c0_157, %c0_158] : memref<6x6x64xf32, #tpu.memory_space<vmem>>, vector<4x4x64xf32>
    %114 = vector.shape_cast %113 : vector<4x4x64xf32> to vector<16x64xf32>
    %c0_159 = arith.constant 0 : index
    %c768_160 = arith.constant 768 : index
    %115 = vector.load %arg16[%c0_159, %c768_160] : memref<256x1152xf32, #tpu.memory_space<vmem>>, vector<16x64xf32>
    tpu.vector_store %arg16[%c0_159, %c768_160], %114 {strides = array<i32>} : memref<256x1152xf32, #tpu.memory_space<vmem>>, vector<16x64xf32>,
    %c2_161 = arith.constant 2 : index
    %c1_162 = arith.constant 1 : index
    %c0_163 = arith.constant 0 : index
    %116 = vector.load %arg15[%c2_161, %c1_162, %c0_163] : memref<6x6x64xf32, #tpu.memory_space<vmem>>, vector<4x4x64xf32>
    %117 = vector.shape_cast %116 : vector<4x4x64xf32> to vector<16x64xf32>
    %c0_164 = arith.constant 0 : index
    %c896_165 = arith.constant 896 : index
    %118 = vector.load %arg16[%c0_164, %c896_165] : memref<256x1152xf32, #tpu.memory_space<vmem>>, vector<16x64xf32>
    tpu.vector_store %arg16[%c0_164, %c896_165], %117 {strides = array<i32>} : memref<256x1152xf32, #tpu.memory_space<vmem>>, vector<16x64xf32>,
    %c2_166 = arith.constant 2 : index
    %c2_167 = arith.constant 2 : index
    %c0_168 = arith.constant 0 : index
    %119 = vector.load %arg15[%c2_166, %c2_167, %c0_168] : memref<6x6x64xf32, #tpu.memory_space<vmem>>, vector<4x4x64xf32>
    %120 = vector.shape_cast %119 : vector<4x4x64xf32> to vector<16x64xf32>
    %c0_169 = arith.constant 0 : index
    %c1024_170 = arith.constant 1024 : index
    %121 = vector.load %arg16[%c0_169, %c1024_170] : memref<256x1152xf32, #tpu.memory_space<vmem>>, vector<16x64xf32>
    tpu.vector_store %arg16[%c0_169, %c1024_170], %120 {strides = array<i32>} : memref<256x1152xf32, #tpu.memory_space<vmem>>, vector<16x64xf32>,
    %c0_171 = arith.constant 0 : index
    %c0_172 = arith.constant 0 : index
    %122 = vector.load %arg16[%c0_171, %c0_172] : memref<256x1152xf32, #tpu.memory_space<vmem>>, vector<16x1152xf32>
    %123 = arith.truncf %122 : vector<16x1152xf32> to vector<16x1152xbf16>
    %c0_173 = arith.constant 0 : index
    %c0_174 = arith.constant 0 : index
    %124 = vector.load %arg6[%c0_173, %c0_174] : memref<1152x128xbf16, #tpu.memory_space<vmem>>, vector<1152x128xbf16>
    %cst_175 = arith.constant dense<0.000000e+00> : vector<16x128xf32>
    %125 = tpu.matmul %123, %124, %cst_175 {dimension_numbers = #tpu.dot_dimension_numbers<[1], [0], [0], [1], [0, 0, 1, 1], [], []>} : vector<16x1152xbf16>, vector<1152x128xbf16>, vector<16x128xf32> -> vector<16x128xf32>
    %c0_176 = arith.constant 0 : index
    %c0_177 = arith.constant 0 : index
    %126 = vector.load %arg7[%c0_176, %c0_177] : memref<1x128xf32, #tpu.memory_space<vmem>>, vector<1x128xf32>
    %127 = vector.broadcast %126 : vector<1x128xf32> to vector<16x128xf32>
    %128 = arith.addf %125, %127 : vector<16x128xf32>
    %cst_178 = arith.constant 0.000000e+00 : f32
    %129 = vector.broadcast %cst_178 : f32 to vector<16x128xf32>
    %130 = arith.maximumf %128, %129 : vector<16x128xf32>
    %131 = vector.shape_cast %130 : vector<16x128xf32> to vector<4x4x128xf32>
    %132 = vector.shape_cast %131 : vector<4x4x128xf32> to vector<2x2x4x128xf32>
    %cst_179 = arith.constant dense<0xFF800000> : vector<2x4x128xf32>
    %133 = vector.multi_reduction <maximumf>, %132, %cst_179 [1] : vector<2x2x4x128xf32> to vector<2x4x128xf32>
    %134 = vector.shape_cast %133 : vector<2x4x128xf32> to vector<2x2x2x128xf32>
    %cst_180 = arith.constant dense<0xFF800000> : vector<2x2x128xf32>
    %135 = vector.multi_reduction <maximumf>, %134, %cst_180 [2] : vector<2x2x2x128xf32> to vector<2x2x128xf32>
    %136 = vector.shape_cast %135 : vector<2x2x128xf32> to vector<4x128xf32>
    %c0_181 = arith.constant 0 : index
    %c0_182 = arith.constant 0 : index
    %137 = vector.load %arg9[%c0_181, %c0_182] : memref<1x128xf32, #tpu.memory_space<vmem>>, vector<1x128xf32>
    %138 = vector.extract_strided_slice %136 {offsets = [0, 0], sizes = [1, 128], strides = [1, 1]} : vector<4x128xf32> to vector<1x128xf32>
    %139 = arith.truncf %138 : vector<1x128xf32> to vector<1x128xbf16>
    %c0_183 = arith.constant 0 : index
    %c0_184 = arith.constant 0 : index
    %c0_185 = arith.constant 0 : index
    %140 = vector.load %arg8[%c0_183, %c0_184, %c0_185] : memref<4x128x128xbf16, #tpu.memory_space<vmem>>, vector<1x128x128xbf16>
    %141 = vector.shape_cast %140 : vector<1x128x128xbf16> to vector<128x128xbf16>
    %cst_186 = arith.constant dense<0.000000e+00> : vector<1x128xf32>
    %142 = tpu.matmul %139, %141, %cst_186 {dimension_numbers = #tpu.dot_dimension_numbers<[1], [0], [0], [1], [0, 0, 1, 1], [], []>} : vector<1x128xbf16>, vector<128x128xbf16>, vector<1x128xf32> -> vector<1x128xf32>
    %143 = arith.addf %137, %142 : vector<1x128xf32>
    %144 = vector.extract_strided_slice %136 {offsets = [1, 0], sizes = [1, 128], strides = [1, 1]} : vector<4x128xf32> to vector<1x128xf32>
    %145 = arith.truncf %144 : vector<1x128xf32> to vector<1x128xbf16>
    %c1_187 = arith.constant 1 : index
    %c0_188 = arith.constant 0 : index
    %c0_189 = arith.constant 0 : index
    %146 = vector.load %arg8[%c1_187, %c0_188, %c0_189] : memref<4x128x128xbf16, #tpu.memory_space<vmem>>, vector<1x128x128xbf16>
    %147 = vector.shape_cast %146 : vector<1x128x128xbf16> to vector<128x128xbf16>
    %cst_190 = arith.constant dense<0.000000e+00> : vector<1x128xf32>
    %148 = tpu.matmul %145, %147, %cst_190 {dimension_numbers = #tpu.dot_dimension_numbers<[1], [0], [0], [1], [0, 0, 1, 1], [], []>} : vector<1x128xbf16>, vector<128x128xbf16>, vector<1x128xf32> -> vector<1x128xf32>
    %149 = arith.addf %143, %148 : vector<1x128xf32>
    %150 = vector.extract_strided_slice %136 {offsets = [2, 0], sizes = [1, 128], strides = [1, 1]} : vector<4x128xf32> to vector<1x128xf32>
    %151 = arith.truncf %150 : vector<1x128xf32> to vector<1x128xbf16>
    %c2_191 = arith.constant 2 : index
    %c0_192 = arith.constant 0 : index
    %c0_193 = arith.constant 0 : index
    %152 = vector.load %arg8[%c2_191, %c0_192, %c0_193] : memref<4x128x128xbf16, #tpu.memory_space<vmem>>, vector<1x128x128xbf16>
    %153 = vector.shape_cast %152 : vector<1x128x128xbf16> to vector<128x128xbf16>
    %cst_194 = arith.constant dense<0.000000e+00> : vector<1x128xf32>
    %154 = tpu.matmul %151, %153, %cst_194 {dimension_numbers = #tpu.dot_dimension_numbers<[1], [0], [0], [1], [0, 0, 1, 1], [], []>} : vector<1x128xbf16>, vector<128x128xbf16>, vector<1x128xf32> -> vector<1x128xf32>
    %155 = arith.addf %149, %154 : vector<1x128xf32>
    %156 = vector.extract_strided_slice %136 {offsets = [3, 0], sizes = [1, 128], strides = [1, 1]} : vector<4x128xf32> to vector<1x128xf32>
    %157 = arith.truncf %156 : vector<1x128xf32> to vector<1x128xbf16>
    %c3 = arith.constant 3 : index
    %c0_195 = arith.constant 0 : index
    %c0_196 = arith.constant 0 : index
    %158 = vector.load %arg8[%c3, %c0_195, %c0_196] : memref<4x128x128xbf16, #tpu.memory_space<vmem>>, vector<1x128x128xbf16>
    %159 = vector.shape_cast %158 : vector<1x128x128xbf16> to vector<128x128xbf16>
    %cst_197 = arith.constant dense<0.000000e+00> : vector<1x128xf32>
    %160 = tpu.matmul %157, %159, %cst_197 {dimension_numbers = #tpu.dot_dimension_numbers<[1], [0], [0], [1], [0, 0, 1, 1], [], []>} : vector<1x128xbf16>, vector<128x128xbf16>, vector<1x128xf32> -> vector<1x128xf32>
    %161 = arith.addf %155, %160 : vector<1x128xf32>
    %cst_198 = arith.constant 0.000000e+00 : f32
    %162 = vector.broadcast %cst_198 : f32 to vector<1x128xf32>
    %163 = arith.maximumf %161, %162 : vector<1x128xf32>
    %164 = arith.truncf %163 : vector<1x128xf32> to vector<1x128xbf16>
    %c0_199 = arith.constant 0 : index
    %c0_200 = arith.constant 0 : index
    %165 = vector.load %arg10[%c0_199, %c0_200] : memref<128x5xbf16, #tpu.memory_space<vmem>>, vector<128x5xbf16>
    %cst_201 = arith.constant dense<0.000000e+00> : vector<1x5xf32>
    %166 = tpu.matmul %164, %165, %cst_201 {dimension_numbers = #tpu.dot_dimension_numbers<[1], [0], [0], [1], [0, 0, 1, 1], [], []>} : vector<1x128xbf16>, vector<128x5xbf16>, vector<1x5xf32> -> vector<1x5xf32>
    %c0_202 = arith.constant 0 : index
    %c0_203 = arith.constant 0 : index
    %167 = vector.load %arg11[%c0_202, %c0_203] : memref<1x5xf32, #tpu.memory_space<vmem>>, vector<1x5xf32>
    %168 = arith.addf %166, %167 : vector<1x5xf32>
    %169 = vector.shape_cast %168 : vector<1x5xf32> to vector<1x1x5xf32>
    %c0_204 = arith.constant 0 : index
    %c0_205 = arith.constant 0 : index
    %c0_206 = arith.constant 0 : index
    %170 = vector.load %arg12[%c0_204, %c0_205, %c0_206] : memref<1x1x5xf32, #tpu.memory_space<vmem>>, vector<1x1x5xf32>
    tpu.vector_store %arg12[%c0_204, %c0_205, %c0_206], %169 {strides = array<i32>} : memref<1x1x5xf32, #tpu.memory_space<vmem>>, vector<1x1x5xf32>,
    return
  }
  func.func @transform_0(%arg0: i32) -> (i32, i32, i32, i32) {
    %c0_i32 = arith.constant 0 : i32
    %c0_i32_0 = arith.constant 0 : i32
    %c0_i32_1 = arith.constant 0 : i32
    %c0_i32_2 = arith.constant 0 : i32
    return %arg0, %c0_i32, %c0_i32_0, %c0_i32_1 : i32, i32, i32, i32
  }
  func.func @transform_1(%arg0: i32) -> (i32, i32) {
    %c0_i32 = arith.constant 0 : i32
    %c0_i32_0 = arith.constant 0 : i32
    %c0_i32_1 = arith.constant 0 : i32
    return %c0_i32, %c0_i32_0 : i32, i32
  }
  func.func @transform_2(%arg0: i32) -> (i32, i32) {
    %c0_i32 = arith.constant 0 : i32
    %c0_i32_0 = arith.constant 0 : i32
    %c0_i32_1 = arith.constant 0 : i32
    return %c0_i32, %c0_i32_0 : i32, i32
  }
  func.func @transform_3(%arg0: i32) -> (i32, i32) {
    %c0_i32 = arith.constant 0 : i32
    %c0_i32_0 = arith.constant 0 : i32
    %c0_i32_1 = arith.constant 0 : i32
    return %c0_i32, %c0_i32_0 : i32, i32
  }
  func.func @transform_4(%arg0: i32) -> (i32, i32) {
    %c0_i32 = arith.constant 0 : i32
    %c0_i32_0 = arith.constant 0 : i32
    %c0_i32_1 = arith.constant 0 : i32
    return %c0_i32, %c0_i32_0 : i32, i32
  }
  func.func @transform_5(%arg0: i32) -> (i32, i32) {
    %c0_i32 = arith.constant 0 : i32
    %c0_i32_0 = arith.constant 0 : i32
    %c0_i32_1 = arith.constant 0 : i32
    return %c0_i32, %c0_i32_0 : i32, i32
  }
  func.func @transform_6(%arg0: i32) -> (i32, i32) {
    %c0_i32 = arith.constant 0 : i32
    %c0_i32_0 = arith.constant 0 : i32
    %c0_i32_1 = arith.constant 0 : i32
    return %c0_i32, %c0_i32_0 : i32, i32
  }
  func.func @transform_7(%arg0: i32) -> (i32, i32, i32) {
    %c0_i32 = arith.constant 0 : i32
    %c0_i32_0 = arith.constant 0 : i32
    %c0_i32_1 = arith.constant 0 : i32
    %c0_i32_2 = arith.constant 0 : i32
    return %c0_i32, %c0_i32_0, %c0_i32_1 : i32, i32, i32
  }
  func.func @transform_8(%arg0: i32) -> (i32, i32) {
    %c0_i32 = arith.constant 0 : i32
    %c0_i32_0 = arith.constant 0 : i32
    %c0_i32_1 = arith.constant 0 : i32
    return %c0_i32, %c0_i32_0 : i32, i32
  }
  func.func @transform_9(%arg0: i32) -> (i32, i32) {
    %c0_i32 = arith.constant 0 : i32
    %c0_i32_0 = arith.constant 0 : i32
    %c0_i32_1 = arith.constant 0 : i32
    return %c0_i32, %c0_i32_0 : i32, i32
  }
  func.func @transform_10(%arg0: i32) -> (i32, i32) {
    %c0_i32 = arith.constant 0 : i32
    %c0_i32_0 = arith.constant 0 : i32
    %c0_i32_1 = arith.constant 0 : i32
    return %c0_i32, %c0_i32_0 : i32, i32
  }
  func.func @transform_11(%arg0: i32) -> (i32, i32, i32) {
    %c0_i32 = arith.constant 0 : i32
    %c0_i32_0 = arith.constant 0 : i32
    %c0_i32_1 = arith.constant 0 : i32
    return %arg0, %c0_i32, %c0_i32_0 : i32, i32, i32
  }
}

</mosaic_0001>

<llo_original>
// kernel: simple_cnn_forward.1
$region0: #{simple_cnn_forward.1}
  #allocation0 [shape = 'u32[]', space=smem, size = 0x4, offset = 0x4, fixed_abs, tag = 'smem constant byte address 0x4 - core index']
  #allocation1 [shape = 'u32[72,128]{1,0:T(1,128)}', space=vmem, size = 0x9000, scoped, tag = 'internal scratch']
  #allocation2 [shape = 'f32[18,18,3]{2,1,0:T(8,128)}', space=vmem, size = 0x36000, scoped, tag = 'scratch operand']
  #allocation3 [shape = 'f32[10,10,32]{2,1,0:T(8,128)}', space=vmem, size = 0x14000, scoped, tag = 'scratch operand']
  #allocation4 [shape = 'f32[6,6,64]{2,1,0:T(8,128)}', space=vmem, size = 0x6000, scoped, tag = 'scratch operand']
  #allocation5 [shape = 'f32[256,1152]{1,0:T(8,128)}', space=vmem, size = 0x120000, scoped, tag = 'scratch operand']
  %s0 = inlined_call_operand.vmem [shape: f32[2,16,16,3], index: 0, kind: input, shape index: {}]
  %s1 = inlined_call_operand.vmem [shape: bf16[1152,32], index: 1, kind: input, shape index: {}]
  %s2 = inlined_call_operand.vmem [shape: f32[1,32], index: 2, kind: input, shape index: {}]
  %s3 = inlined_call_operand.vmem [shape: bf16[1152,64], index: 3, kind: input, shape index: {}]
  %s4 = inlined_call_operand.vmem [shape: f32[1,64], index: 4, kind: input, shape index: {}]
  %s5 = inlined_call_operand.vmem [shape: bf16[1152,128], index: 5, kind: input, shape index: {}]
  %s6 = inlined_call_operand.vmem [shape: f32[1,128], index: 6, kind: input, shape index: {}]
  %s7 = inlined_call_operand.vmem [shape: bf16[4,128,128], index: 7, kind: input, shape index: {}]
  %s8 = inlined_call_operand.vmem [shape: f32[1,128], index: 8, kind: input, shape index: {}]
  %s9 = inlined_call_operand.vmem [shape: bf16[128,5], index: 9, kind: input, shape index: {}]
  %s10 = inlined_call_operand.vmem [shape: f32[1,5], index: 10, kind: input, shape index: {}]
  %s11 = inlined_call_operand.hbm [shape: f32[2,1,5], index: 11, kind: output, shape index: {}]
  %s12 = sld [smem:[#allocation0]]
  $region77: #{simple_cnn_forward.1} parent=0
    _
  %s14 = ssub.s32 1, %s12
  %s15 = scalar_select 0, %s14, %s12
  $region1: #{simple_cnn_forward.1} parent=0
    #allocation6 [shape = 'u8[1024]{0}', space=vmem, size = 0x400, scoped, tag = 'output window, operand 0']
    #allocation7 [shape = 's32[2]{0}', space=sflag, size = 0x8, scoped, tag = 'scoped memory for simple_cnn_forward.1']
    %16 = vsyncpa [#allocation7], 0
    %s17 = scalar_lea.sflag [#allocation7], 1
    %18 = vsyncpa %s17, 0
    loop: start=0, step=1, limit=4
    $region2: #{simple_cnn_forward.1} parent=1 // loop_pre_header
      _
    $region3: #{simple_cnn_forward.1} parent=1 // loop_header
      %s20 = sphi 0, %s24
      %p21 = scmp.ge.s32.totalorder %s20, 4
      %s30 = sphi 0, %s32
      %s33 = sphi 0, %s30
      %s34 = sphi 0, %s33
      %s50 = sphi 0, %s34
      %s54 = sphi 0, %s54
      %s56 = sphi 0, %s54
      %s57 = sphi 0, %s56
      %s71 = sphi 0, %s57
      %s75 = sphi 0, %s75
      %s77 = sphi 0, %s75
      %s78 = sphi 0, %s77
      %s92 = sphi 0, %s78
      %s96 = sphi 0, %s96
      %s98 = sphi 0, %s96
      %s99 = sphi 0, %s98
      %s113 = sphi 0, %s99
      %s117 = sphi 0, %s117
      %s119 = sphi 0, %s117
      %s120 = sphi 0, %s119
      %s134 = sphi 0, %s120
      %s138 = sphi 0, %s138
      %s140 = sphi 0, %s138
      %s141 = sphi 0, %s140
      %s155 = sphi 0, %s141
      %s159 = sphi 0, %s159
      %s161 = sphi 0, %s159
      %s162 = sphi 0, %s161
      %s176 = sphi 0, %s162
      %s180 = sphi 0, %s180
      %s182 = sphi 0, %s180
      %s183 = sphi 0, %s182
      %s197 = sphi 0, %s183
      %s201 = sphi 0, %s201
      %s203 = sphi 0, %s201
      %s204 = sphi 0, %s203
      %s218 = sphi 0, %s204
      %s222 = sphi 0, %s222
      %s224 = sphi 0, %s222
      %s225 = sphi 0, %s224
      %s239 = sphi 0, %s225
      %s243 = sphi 0, %s243
      %s245 = sphi 0, %s243
      %s246 = sphi 0, %s245
      %s260 = sphi 0, %s246
      %s266 = sphi 0, %s268
      %s269 = sphi 0, %s266
      %s270 = sphi 0, %s269
      %s286 = sphi 0, %s270
    $region4: #{simple_cnn_forward.1} parent=1 // loop_header_branch
      %23 = sbr.rel (%p21) target = $region8
    $region5: #{simple_cnn_forward.1} parent=1 // loop_body
      %s25 = ssub.s32 %s20, 1
      %s26 = ssub.s32 %s20, 2
      %s27 = sadd.s32 %s20, 1
      %s28 = ssub.s32 %s20, %s27
      %p29 = scmp.eq.s32.totalorder %s28, 0
      %s31 = sadd.s32 %s30, 1
      %s32 = scalar_select %p29, %s30, %s31
      %p35 = pneg %p29
      %p36 = scmp.eq.s32.totalorder %s20, 1
      %p37 = por %p35, %p36
      %p38 = scmp.ne.s32.totalorder %s30, %s33
      %p39 = scmp.eq.s32.totalorder %s20, 0
      %p40 = por %p38, %p39
      %p41 = scmp.ne.s32.totalorder %s30, %s33
      %p42 = scmp.eq.s32.totalorder %s25, 1
      %p43 = por %p41, %p42
      %p44 = scmp.ne.s32.totalorder %s33, %s34
      %p45 = scmp.eq.s32.totalorder %s25, 0
      %p46 = por %p44, %p45
      %p47 = scmp.ne.s32.totalorder %s33, %s34
      %p48 = scmp.eq.s32.totalorder %s26, 1
      %p49 = por %p47, %p48
      %p51 = scmp.ne.s32.totalorder %s34, %s50
      %p52 = scmp.eq.s32.totalorder %s26, 0
      %p53 = por %p51, %p52
      %s55 = sadd.s32 %s54, 1
      %p58 = scmp.eq.s32.totalorder %s20, 1
      %p59 = scmp.ne.s32.totalorder %s54, %s56
      %p60 = scmp.eq.s32.totalorder %s20, 0
      %p61 = por %p59, %p60
      %p62 = scmp.ne.s32.totalorder %s54, %s56
      %p63 = scmp.eq.s32.totalorder %s25, 1
      %p64 = por %p62, %p63
      %p65 = scmp.ne.s32.totalorder %s56, %s57
      %p66 = scmp.eq.s32.totalorder %s25, 0
      %p67 = por %p65, %p66
      %p68 = scmp.ne.s32.totalorder %s56, %s57
      %p69 = scmp.eq.s32.totalorder %s26, 1
      %p70 = por %p68, %p69
      %p72 = scmp.ne.s32.totalorder %s57, %s71
      %p73 = scmp.eq.s32.totalorder %s26, 0
      %p74 = por %p72, %p73
      %s76 = sadd.s32 %s75, 1
      %p79 = scmp.eq.s32.totalorder %s20, 1
      %p80 = scmp.ne.s32.totalorder %s75, %s77
      %p81 = scmp.eq.s32.totalorder %s20, 0
      %p82 = por %p80, %p81
      %p83 = scmp.ne.s32.totalorder %s75, %s77
      %p84 = scmp.eq.s32.totalorder %s25, 1
      %p85 = por %p83, %p84
      %p86 = scmp.ne.s32.totalorder %s77, %s78
      %p87 = scmp.eq.s32.totalorder %s25, 0
      %p88 = por %p86, %p87
      %p89 = scmp.ne.s32.totalorder %s77, %s78
      %p90 = scmp.eq.s32.totalorder %s26, 1
      %p91 = por %p89, %p90
      %p93 = scmp.ne.s32.totalorder %s78, %s92
      %p94 = scmp.eq.s32.totalorder %s26, 0
      %p95 = por %p93, %p94
      %s97 = sadd.s32 %s96, 1
      %p100 = scmp.eq.s32.totalorder %s20, 1
      %p101 = scmp.ne.s32.totalorder %s96, %s98
      %p102 = scmp.eq.s32.totalorder %s20, 0
      %p103 = por %p101, %p102
      %p104 = scmp.ne.s32.totalorder %s96, %s98
      %p105 = scmp.eq.s32.totalorder %s25, 1
      %p106 = por %p104, %p105
      %p107 = scmp.ne.s32.totalorder %s98, %s99
      %p108 = scmp.eq.s32.totalorder %s25, 0
      %p109 = por %p107, %p108
      %p110 = scmp.ne.s32.totalorder %s98, %s99
      %p111 = scmp.eq.s32.totalorder %s26, 1
      %p112 = por %p110, %p111
      %p114 = scmp.ne.s32.totalorder %s99, %s113
      %p115 = scmp.eq.s32.totalorder %s26, 0
      %p116 = por %p114, %p115
      %s118 = sadd.s32 %s117, 1
      %p121 = scmp.eq.s32.totalorder %s20, 1
      %p122 = scmp.ne.s32.totalorder %s117, %s119
      %p123 = scmp.eq.s32.totalorder %s20, 0
      %p124 = por %p122, %p123
      %p125 = scmp.ne.s32.totalorder %s117, %s119
      %p126 = scmp.eq.s32.totalorder %s25, 1
      %p127 = por %p125, %p126
      %p128 = scmp.ne.s32.totalorder %s119, %s120
      %p129 = scmp.eq.s32.totalorder %s25, 0
      %p130 = por %p128, %p129
      %p131 = scmp.ne.s32.totalorder %s119, %s120
      %p132 = scmp.eq.s32.totalorder %s26, 1
      %p133 = por %p131, %p132
      %p135 = scmp.ne.s32.totalorder %s120, %s134
      %p136 = scmp.eq.s32.totalorder %s26, 0
      %p137 = por %p135, %p136
      %s139 = sadd.s32 %s138, 1
      %p142 = scmp.eq.s32.totalorder %s20, 1
      %p143 = scmp.ne.s32.totalorder %s138, %s140
      %p144 = scmp.eq.s32.totalorder %s20, 0
      %p145 = por %p143, %p144
      %p146 = scmp.ne.s32.totalorder %s138, %s140
      %p147 = scmp.eq.s32.totalorder %s25, 1
      %p148 = por %p146, %p147
      %p149 = scmp.ne.s32.totalorder %s140, %s141
      %p150 = scmp.eq.s32.totalorder %s25, 0
      %p151 = por %p149, %p150
      %p152 = scmp.ne.s32.totalorder %s140, %s141
      %p153 = scmp.eq.s32.totalorder %s26, 1
      %p154 = por %p152, %p153
      %p156 = scmp.ne.s32.totalorder %s141, %s155
      %p157 = scmp.eq.s32.totalorder %s26, 0
      %p158 = por %p156, %p157
      %s160 = sadd.s32 %s159, 1
      %p163 = scmp.eq.s32.totalorder %s20, 1
      %p164 = scmp.ne.s32.totalorder %s159, %s161
      %p165 = scmp.eq.s32.totalorder %s20, 0
      %p166 = por %p164, %p165
      %p167 = scmp.ne.s32.totalorder %s159, %s161
      %p168 = scmp.eq.s32.totalorder %s25, 1
      %p169 = por %p167, %p168
      %p170 = scmp.ne.s32.totalorder %s161, %s162
      %p171 = scmp.eq.s32.totalorder %s25, 0
      %p172 = por %p170, %p171
      %p173 = scmp.ne.s32.totalorder %s161, %s162
      %p174 = scmp.eq.s32.totalorder %s26, 1
      %p175 = por %p173, %p174
      %p177 = scmp.ne.s32.totalorder %s162, %s176
      %p178 = scmp.eq.s32.totalorder %s26, 0
      %p179 = por %p177, %p178
      %s181 = sadd.s32 %s180, 1
      %p184 = scmp.eq.s32.totalorder %s20, 1
      %p185 = scmp.ne.s32.totalorder %s180, %s182
      %p186 = scmp.eq.s32.totalorder %s20, 0
      %p187 = por %p185, %p186
      %p188 = scmp.ne.s32.totalorder %s180, %s182
      %p189 = scmp.eq.s32.totalorder %s25, 1
      %p190 = por %p188, %p189
      %p191 = scmp.ne.s32.totalorder %s182, %s183
      %p192 = scmp.eq.s32.totalorder %s25, 0
      %p193 = por %p191, %p192
      %p194 = scmp.ne.s32.totalorder %s182, %s183
      %p195 = scmp.eq.s32.totalorder %s26, 1
      %p196 = por %p194, %p195
      %p198 = scmp.ne.s32.totalorder %s183, %s197
      %p199 = scmp.eq.s32.totalorder %s26, 0
      %p200 = por %p198, %p199
      %s202 = sadd.s32 %s201, 1
      %p205 = scmp.eq.s32.totalorder %s20, 1
      %p206 = scmp.ne.s32.totalorder %s201, %s203
      %p207 = scmp.eq.s32.totalorder %s20, 0
      %p208 = por %p206, %p207
      %p209 = scmp.ne.s32.totalorder %s201, %s203
      %p210 = scmp.eq.s32.totalorder %s25, 1
      %p211 = por %p209, %p210
      %p212 = scmp.ne.s32.totalorder %s203, %s204
      %p213 = scmp.eq.s32.totalorder %s25, 0
      %p214 = por %p212, %p213
      %p215 = scmp.ne.s32.totalorder %s203, %s204
      %p216 = scmp.eq.s32.totalorder %s26, 1
      %p217 = por %p215, %p216
      %p219 = scmp.ne.s32.totalorder %s204, %s218
      %p220 = scmp.eq.s32.totalorder %s26, 0
      %p221 = por %p219, %p220
      %s223 = sadd.s32 %s222, 1
      %p226 = scmp.eq.s32.totalorder %s20, 1
      %p227 = scmp.ne.s32.totalorder %s222, %s224
      %p228 = scmp.eq.s32.totalorder %s20, 0
      %p229 = por %p227, %p228
      %p230 = scmp.ne.s32.totalorder %s222, %s224
      %p231 = scmp.eq.s32.totalorder %s25, 1
      %p232 = por %p230, %p231
      %p233 = scmp.ne.s32.totalorder %s224, %s225
      %p234 = scmp.eq.s32.totalorder %s25, 0
      %p235 = por %p233, %p234
      %p236 = scmp.ne.s32.totalorder %s224, %s225
      %p237 = scmp.eq.s32.totalorder %s26, 1
      %p238 = por %p236, %p237
      %p240 = scmp.ne.s32.totalorder %s225, %s239
      %p241 = scmp.eq.s32.totalorder %s26, 0
      %p242 = por %p240, %p241
      %s244 = sadd.s32 %s243, 1
      %p247 = scmp.eq.s32.totalorder %s20, 1
      %p248 = scmp.ne.s32.totalorder %s243, %s245
      %p249 = scmp.eq.s32.totalorder %s20, 0
      %p250 = por %p248, %p249
      %p251 = scmp.ne.s32.totalorder %s243, %s245
      %p252 = scmp.eq.s32.totalorder %s25, 1
      %p253 = por %p251, %p252
      %p254 = scmp.ne.s32.totalorder %s245, %s246
      %p255 = scmp.eq.s32.totalorder %s25, 0
      %p256 = por %p254, %p255
      %p257 = scmp.ne.s32.totalorder %s245, %s246
      %p258 = scmp.eq.s32.totalorder %s26, 1
      %p259 = por %p257, %p258
      %p261 = scmp.ne.s32.totalorder %s246, %s260
      %p262 = scmp.eq.s32.totalorder %s26, 0
      %p263 = por %p261, %p262
      %s264 = ssub.s32 %s20, %s27
      %p265 = scmp.eq.s32.totalorder %s264, 0
      %s267 = sadd.s32 %s266, 1
      %s268 = scalar_select %p265, %s266, %s267
      %p271 = pneg %p265
      %p272 = scmp.eq.s32.totalorder %s20, 1
      %p273 = por %p271, %p272
      %p274 = scmp.ne.s32.totalorder %s266, %s269
      %p275 = scmp.eq.s32.totalorder %s20, 0
      %p276 = por %p274, %p275
      %p277 = scmp.ne.s32.totalorder %s266, %s269
      %p278 = scmp.eq.s32.totalorder %s25, 1
      %p279 = por %p277, %p278
      %p280 = scmp.ne.s32.totalorder %s269, %s270
      %p281 = scmp.eq.s32.totalorder %s25, 0
      %p282 = por %p280, %p281
      %p283 = scmp.ne.s32.totalorder %s269, %s270
      %p284 = scmp.eq.s32.totalorder %s26, 1
      %p285 = por %p283, %p284
      %p287 = scmp.ne.s32.totalorder %s270, %s286
      %p288 = scmp.eq.s32.totalorder %s26, 0
      %p289 = por %p287, %p288
      %p290 = scmp.le.s32.totalorder 1, %s20
      %p291 = scmp.lt.s32.totalorder %s20, 3
      %p292 = pnand %p290, %p291
      %p293 = pneg %p292
      // Predicated region
      $region9: #{simple_cnn_forward.1} parent=5 // pred_check
        _
      $region10: #{simple_cnn_forward.1} parent=5 // pred_check_branch
        %295 = sbr.rel (%p292) target = $region12
      $region11: #{simple_cnn_forward.1} parent=5 // pred_region
        %s296 = ssub.s32 %s20, 1
        // Predicated region
        $region13: #{simple_cnn_forward.1} parent=11 // pred_check
          %p297 = pneg %p67
        $region14: #{simple_cnn_forward.1} parent=11 // pred_check_branch
          %299 = sbr.rel (%p297) target = $region16
        $region15: #{simple_cnn_forward.1} parent=11 // pred_region
          _
        $region16: #{simple_cnn_forward.1} parent=11 // pred_fallthru
          _
        // Predicated region
        $region17: #{simple_cnn_forward.1} parent=11 // pred_check
          %p300 = pneg %p88
        $region18: #{simple_cnn_forward.1} parent=11 // pred_check_branch
          %302 = sbr.rel (%p300) target = $region20
        $region19: #{simple_cnn_forward.1} parent=11 // pred_region
          _
        $region20: #{simple_cnn_forward.1} parent=11 // pred_fallthru
          _
        // Predicated region
        $region21: #{simple_cnn_forward.1} parent=11 // pred_check
          %p303 = pneg %p109
        $region22: #{simple_cnn_forward.1} parent=11 // pred_check_branch
          %305 = sbr.rel (%p303) target = $region24
        $region23: #{simple_cnn_forward.1} parent=11 // pred_region
          _
        $region24: #{simple_cnn_forward.1} parent=11 // pred_fallthru
          _
        // Predicated region
        $region25: #{simple_cnn_forward.1} parent=11 // pred_check
          %p306 = pneg %p130
        $region26: #{simple_cnn_forward.1} parent=11 // pred_check_branch
          %308 = sbr.rel (%p306) target = $region28
        $region27: #{simple_cnn_forward.1} parent=11 // pred_region
          _
        $region28: #{simple_cnn_forward.1} parent=11 // pred_fallthru
          _
        // Predicated region
        $region29: #{simple_cnn_forward.1} parent=11 // pred_check
          %p309 = pneg %p151
        $region30: #{simple_cnn_forward.1} parent=11 // pred_check_branch
          %311 = sbr.rel (%p309) target = $region32
        $region31: #{simple_cnn_forward.1} parent=11 // pred_region
          _
        $region32: #{simple_cnn_forward.1} parent=11 // pred_fallthru
          _
        // Predicated region
        $region33: #{simple_cnn_forward.1} parent=11 // pred_check
          %p312 = pneg %p172
        $region34: #{simple_cnn_forward.1} parent=11 // pred_check_branch
          %314 = sbr.rel (%p312) target = $region36
        $region35: #{simple_cnn_forward.1} parent=11 // pred_region
          _
        $region36: #{simple_cnn_forward.1} parent=11 // pred_fallthru
          _
        // Predicated region
        $region37: #{simple_cnn_forward.1} parent=11 // pred_check
          %p315 = pneg %p193
        $region38: #{simple_cnn_forward.1} parent=11 // pred_check_branch
          %317 = sbr.rel (%p315) target = $region40
        $region39: #{simple_cnn_forward.1} parent=11 // pred_region
          _
        $region40: #{simple_cnn_forward.1} parent=11 // pred_fallthru
          _
        // Predicated region
        $region41: #{simple_cnn_forward.1} parent=11 // pred_check
          %p318 = pneg %p214
        $region42: #{simple_cnn_forward.1} parent=11 // pred_check_branch
          %320 = sbr.rel (%p318) target = $region44
        $region43: #{simple_cnn_forward.1} parent=11 // pred_region
          _
        $region44: #{simple_cnn_forward.1} parent=11 // pred_fallthru
          _
        // Predicated region
        $region45: #{simple_cnn_forward.1} parent=11 // pred_check
          %p321 = pneg %p235
        $region46: #{simple_cnn_forward.1} parent=11 // pred_check_branch
          %323 = sbr.rel (%p321) target = $region48
        $region47: #{simple_cnn_forward.1} parent=11 // pred_region
          _
        $region48: #{simple_cnn_forward.1} parent=11 // pred_fallthru
          _
        // Predicated region
        $region49: #{simple_cnn_forward.1} parent=11 // pred_check
          %p324 = pneg %p256
        $region50: #{simple_cnn_forward.1} parent=11 // pred_check_branch
          %326 = sbr.rel (%p324) target = $region52
        $region51: #{simple_cnn_forward.1} parent=11 // pred_region
          _
        $region52: #{simple_cnn_forward.1} parent=11 // pred_fallthru
          _
      $region12: #{simple_cnn_forward.1} parent=5 // pred_fallthru
        _
      %p327 = scmp.lt.s32.totalorder %s20, 2
      // Predicated region
      $region53: #{simple_cnn_forward.1} parent=5 // pred_check
        %p328 = pneg %p327
      $region54: #{simple_cnn_forward.1} parent=5 // pred_check_branch
        %330 = sbr.rel (%p328) target = $region56
      $region55: #{simple_cnn_forward.1} parent=5 // pred_region
        // Predicated region
        $region57: #{simple_cnn_forward.1} parent=55 // pred_check
          %p331 = pneg %p40
        $region58: #{simple_cnn_forward.1} parent=55 // pred_check_branch
          %333 = sbr.rel (%p331) target = $region60
        $region59: #{simple_cnn_forward.1} parent=55 // pred_region
          %p334 = scmp.lt.s32.totalorder %s20, 1
          %s335 = scalar_select %p334, %s20, 1
          %s336 = smul.addr %s335, 32
          %s337 = smul.addr %s336, 8
          %s338 = scalar_lea.vmem %s0, %s337
        $region60: #{simple_cnn_forward.1} parent=55 // pred_fallthru
          _
      $region56: #{simple_cnn_forward.1} parent=5 // pred_fallthru
        _
      %p339 = scmp.le.s32.totalorder 1, %s20
      %p340 = scmp.lt.s32.totalorder %s20, 3
      %p341 = pnand %p339, %p340
      %p342 = pneg %p341
      // Predicated region
      $region61: #{simple_cnn_forward.1} parent=5 // pred_check
        _
      $region62: #{simple_cnn_forward.1} parent=5 // pred_check_branch
        %344 = sbr.rel (%p341) target = $region64
      $region63: #{simple_cnn_forward.1} parent=5 // pred_region
        %s345 = ssub.s32 %s20, 1
        %p346 = scmp.lt.s32.totalorder %s25, 1
        %s347 = scalar_select %p346, %s25, 1
        %s348 = smul.addr %s347, 32
        %s349 = smul.addr %s348, 8
        %s350 = scalar_lea.vmem %s0, %s349
        %p351 = pneg %p46
        %p352 = pneg %p43
        %p353 = pneg %p67
        %p354 = pneg %p64
        %p355 = pneg %p88
        %p356 = pneg %p85
        %p357 = pneg %p109
        %p358 = pneg %p106
        %p359 = pneg %p130
        %p360 = pneg %p127
        %p361 = pneg %p151
        %p362 = pneg %p148
        %p363 = pneg %p172
        %p364 = pneg %p169
        %p365 = pneg %p193
        %p366 = pneg %p190
        %p367 = pneg %p214
        %p368 = pneg %p211
        %p369 = pneg %p235
        %p370 = pneg %p232
        %p371 = pneg %p256
        %p372 = pneg %p253
        %p373 = pneg %p282
        %p374 = pneg %p279
        %s375 = sand.u32 %s269, 1
        %s376 = scalar_lea.sflag [#allocation7], %s375
        %s377 = sand.u32 %s269, 1
        %s378 = scalar_lea.vmem [#allocation6], %s377
        %p379 = scmp.lt.s32.totalorder %s25, 1
        %s380 = scalar_select %p379, %s25, 1
        %s381 = smul.addr %s380, 32
        %s382 = smul.addr %s381, 8
        %s383 = scalar_lea.vmem %s0, %s382
        %vm384 = vcmask 23552
        %385 = vst.msk [vmem:[#allocation2] sm:$0xff] %vm384, 0.0
        %386 = vst.msk [vmem:[#allocation2 + $0x8] sm:$0xff] %vm384, 0.0
        %vm387 = vcmask 17408
        %388 = vst.msk [vmem:[#allocation2 + $0x10] sm:$0x3] %vm387, 0.0
        %389 = vst.msk [vmem:[#allocation2 + $0x18] sm:$0xff] %vm384, 0.0
        %390 = vst.msk [vmem:[#allocation2 + $0x20] sm:$0xff] %vm384, 0.0
        %391 = vst.msk [vmem:[#allocation2 + $0x28] sm:$0x3] %vm387, 0.0
        %392 = vst.msk [vmem:[#allocation2 + $0x30] sm:$0xff] %vm384, 0.0
        %393 = vst.msk [vmem:[#allocation2 + $0x38] sm:$0xff] %vm384, 0.0
        %394 = vst.msk [vmem:[#allocation2 + $0x40] sm:$0x3] %vm387, 0.0
        %395 = vst.msk [vmem:[#allocation2 + $0x48] sm:$0xff] %vm384, 0.0
        %396 = vst.msk [vmem:[#allocation2 + $0x50] sm:$0xff] %vm384, 0.0
        %397 = vst.msk [vmem:[#allocation2 + $0x58] sm:$0x3] %vm387, 0.0
        %398 = vst.msk [vmem:[#allocation2 + $0x60] sm:$0xff] %vm384, 0.0
        %399 = vst.msk [vmem:[#allocation2 + $0x68] sm:$0xff] %vm384, 0.0
        %400 = vst.msk [vmem:[#allocation2 + $0x70] sm:$0x3] %vm387, 0.0
        %401 = vst.msk [vmem:[#allocation2 + $0x78] sm:$0xff] %vm384, 0.0
        %402 = vst.msk [vmem:[#allocation2 + $0x80] sm:$0xff] %vm384, 0.0
        %403 = vst.msk [vmem:[#allocation2 + $0x88] sm:$0x3] %vm387, 0.0
        %404 = vst.msk [vmem:[#allocation2 + $0x90] sm:$0xff] %vm384, 0.0
        %405 = vst.msk [vmem:[#allocation2 + $0x98] sm:$0xff] %vm384, 0.0
        %406 = vst.msk [vmem:[#allocation2 + $0xa0] sm:$0x3] %vm387, 0.0
        %407 = vst.msk [vmem:[#allocation2 + $0xa8] sm:$0xff] %vm384, 0.0
        %408 = vst.msk [vmem:[#allocation2 + $0xb0] sm:$0xff] %vm384, 0.0
        %409 = vst.msk [vmem:[#allocation2 + $0xb8] sm:$0x3] %vm387, 0.0
        %410 = vst.msk [vmem:[#allocation2 + $0xc0] sm:$0xff] %vm384, 0.0
        %411 = vst.msk [vmem:[#allocation2 + $0xc8] sm:$0xff] %vm384, 0.0
        %412 = vst.msk [vmem:[#allocation2 + $0xd0] sm:$0x3] %vm387, 0.0
        %413 = vst.msk [vmem:[#allocation2 + $0xd8] sm:$0xff] %vm384, 0.0
        %414 = vst.msk [vmem:[#allocation2 + $0xe0] sm:$0xff] %vm384, 0.0
        %415 = vst.msk [vmem:[#allocation2 + $0xe8] sm:$0x3] %vm387, 0.0
        %416 = vst.msk [vmem:[#allocation2 + $0xf0] sm:$0xff] %vm384, 0.0
        %417 = vst.msk [vmem:[#allocation2 + $0xf8] sm:$0xff] %vm384, 0.0
        %418 = vst.msk [vmem:[#allocation2 + $0x100] sm:$0x3] %vm387, 0.0
        %419 = vst.msk [vmem:[#allocation2 + $0x108] sm:$0xff] %vm384, 0.0
        %420 = vst.msk [vmem:[#allocation2 + $0x110] sm:$0xff] %vm384, 0.0
        %421 = vst.msk [vmem:[#allocation2 + $0x118] sm:$0x3] %vm387, 0.0
        %422 = vst.msk [vmem:[#allocation2 + $0x120] sm:$0xff] %vm384, 0.0
        %423 = vst.msk [vmem:[#allocation2 + $0x128] sm:$0xff] %vm384, 0.0
        %424 = vst.msk [vmem:[#allocation2 + $0x130] sm:$0x3] %vm387, 0.0
        %425 = vst.msk [vmem:[#allocation2 + $0x138] sm:$0xff] %vm384, 0.0
        %426 = vst.msk [vmem:[#allocation2 + $0x140] sm:$0xff] %vm384, 0.0
        %427 = vst.msk [vmem:[#allocation2 + $0x148] sm:$0x3] %vm387, 0.0
        %428 = vst.msk [vmem:[#allocation2 + $0x150] sm:$0xff] %vm384, 0.0
        %429 = vst.msk [vmem:[#allocation2 + $0x158] sm:$0xff] %vm384, 0.0
        %430 = vst.msk [vmem:[#allocation2 + $0x160] sm:$0x3] %vm387, 0.0
        %431 = vst.msk [vmem:[#allocation2 + $0x168] sm:$0xff] %vm384, 0.0
        %432 = vst.msk [vmem:[#allocation2 + $0x170] sm:$0xff] %vm384, 0.0
        %433 = vst.msk [vmem:[#allocation2 + $0x178] sm:$0x3] %vm387, 0.0
        %434 = vst.msk [vmem:[#allocation2 + $0x180] sm:$0xff] %vm384, 0.0
        %435 = vst.msk [vmem:[#allocation2 + $0x188] sm:$0xff] %vm384, 0.0
        %436 = vst.msk [vmem:[#allocation2 + $0x190] sm:$0x3] %vm387, 0.0
        %437 = vst.msk [vmem:[#allocation2 + $0x198] sm:$0xff] %vm384, 0.0
        %438 = vst.msk [vmem:[#allocation2 + $0x1a0] sm:$0xff] %vm384, 0.0
        %439 = vst.msk [vmem:[#allocation2 + $0x1a8] sm:$0x3] %vm387, 0.0
        %vm440 = vcmask 261120
        %441 = vst.msk [vmem:[#allocation3] sm:$0xff] %vm440, 0.0
        %vm442 = vcmask 254976
        %443 = vst.msk [vmem:[#allocation3 + $0x8] sm:$0x3] %vm442, 0.0
        %444 = vst.msk [vmem:[#allocation3 + $0x10] sm:$0xff] %vm440, 0.0
        %445 = vst.msk [vmem:[#allocation3 + $0x18] sm:$0x3] %vm442, 0.0
        %446 = vst.msk [vmem:[#allocation3 + $0x20] sm:$0xff] %vm440, 0.0
        %447 = vst.msk [vmem:[#allocation3 + $0x28] sm:$0x3] %vm442, 0.0
        %448 = vst.msk [vmem:[#allocation3 + $0x30] sm:$0xff] %vm440, 0.0
        %449 = vst.msk [vmem:[#allocation3 + $0x38] sm:$0x3] %vm442, 0.0
        %450 = vst.msk [vmem:[#allocation3 + $0x40] sm:$0xff] %vm440, 0.0
        %451 = vst.msk [vmem:[#allocation3 + $0x48] sm:$0x3] %vm442, 0.0
        %452 = vst.msk [vmem:[#allocation3 + $0x50] sm:$0xff] %vm440, 0.0
        %453 = vst.msk [vmem:[#allocation3 + $0x58] sm:$0x3] %vm442, 0.0
        %454 = vst.msk [vmem:[#allocation3 + $0x60] sm:$0xff] %vm440, 0.0
        %455 = vst.msk [vmem:[#allocation3 + $0x68] sm:$0x3] %vm442, 0.0
        %456 = vst.msk [vmem:[#allocation3 + $0x70] sm:$0xff] %vm440, 0.0
        %457 = vst.msk [vmem:[#allocation3 + $0x78] sm:$0x3] %vm442, 0.0
        %458 = vst.msk [vmem:[#allocation3 + $0x80] sm:$0xff] %vm440, 0.0
        %459 = vst.msk [vmem:[#allocation3 + $0x88] sm:$0x3] %vm442, 0.0
        %460 = vst.msk [vmem:[#allocation3 + $0x90] sm:$0xff] %vm440, 0.0
        %461 = vst.msk [vmem:[#allocation3 + $0x98] sm:$0x3] %vm442, 0.0
        %vm462 = vcmask 521216
        %463 = vst.msk [vmem:[#allocation4] sm:$0x3f] %vm462, 0.0
        %464 = vst.msk [vmem:[#allocation4 + $0x8] sm:$0x3f] %vm462, 0.0
        %465 = vst.msk [vmem:[#allocation4 + $0x10] sm:$0x3f] %vm462, 0.0
        %466 = vst.msk [vmem:[#allocation4 + $0x18] sm:$0x3f] %vm462, 0.0
        %467 = vst.msk [vmem:[#allocation4 + $0x20] sm:$0x3f] %vm462, 0.0
        %468 = vst.msk [vmem:[#allocation4 + $0x28] sm:$0x3f] %vm462, 0.0
        %469 = vst [vmem:[#allocation5] sm:$0xff] 0.0
        %470 = vst [vmem:[#allocation5 + $0x8] sm:$0xff] 0.0
        %471 = vst [vmem:[#allocation5 + $0x10] sm:$0xff] 0.0
        %472 = vst [vmem:[#allocation5 + $0x18] sm:$0xff] 0.0
        %473 = vst [vmem:[#allocation5 + $0x20] sm:$0xff] 0.0
        %474 = vst [vmem:[#allocation5 + $0x28] sm:$0xff] 0.0
        %475 = vst [vmem:[#allocation5 + $0x30] sm:$0xff] 0.0
        %476 = vst [vmem:[#allocation5 + $0x38] sm:$0xff] 0.0
        %477 = vst [vmem:[#allocation5 + $0x40] sm:$0xff] 0.0
        %478 = vst [vmem:[#allocation5 + $0x48] sm:$0xff] 0.0
        %479 = vst [vmem:[#allocation5 + $0x50] sm:$0xff] 0.0
        %480 = vst [vmem:[#allocation5 + $0x58] sm:$0xff] 0.0
        %481 = vst [vmem:[#allocation5 + $0x60] sm:$0xff] 0.0
        %482 = vst [vmem:[#allocation5 + $0x68] sm:$0xff] 0.0
        %483 = vst [vmem:[#allocation5 + $0x70] sm:$0xff] 0.0
        %484 = vst [vmem:[#allocation5 + $0x78] sm:$0xff] 0.0
        %485 = vst [vmem:[#allocation5 + $0x80] sm:$0xff] 0.0
        %486 = vst [vmem:[#allocation5 + $0x88] sm:$0xff] 0.0
        %487 = vst [vmem:[#allocation5 + $0x90] sm:$0xff] 0.0
        %488 = vst [vmem:[#allocation5 + $0x98] sm:$0xff] 0.0
        %489 = vst [vmem:[#allocation5 + $0xa0] sm:$0xff] 0.0
        %490 = vst [vmem:[#allocation5 + $0xa8] sm:$0xff] 0.0
        %491 = vst [vmem:[#allocation5 + $0xb0] sm:$0xff] 0.0
        %492 = vst [vmem:[#allocation5 + $0xb8] sm:$0xff] 0.0
        %493 = vst [vmem:[#allocation5 + $0xc0] sm:$0xff] 0.0
        %494 = vst [vmem:[#allocation5 + $0xc8] sm:$0xff] 0.0
        %495 = vst [vmem:[#allocation5 + $0xd0] sm:$0xff] 0.0
        %496 = vst [vmem:[#allocation5 + $0xd8] sm:$0xff] 0.0
        %497 = vst [vmem:[#allocation5 + $0xe0] sm:$0xff] 0.0
        %498 = vst [vmem:[#allocation5 + $0xe8] sm:$0xff] 0.0
        %499 = vst [vmem:[#allocation5 + $0xf0] sm:$0xff] 0.0
        %500 = vst [vmem:[#allocation5 + $0xf8] sm:$0xff] 0.0
        %501 = vst [vmem:[#allocation5 + $0x100] sm:$0xff] 0.0
        %502 = vst [vmem:[#allocation5 + $0x108] sm:$0xff] 0.0
        %503 = vst [vmem:[#allocation5 + $0x110] sm:$0xff] 0.0
        %504 = vst [vmem:[#allocation5 + $0x118] sm:$0xff] 0.0
        %505 = vst [vmem:[#allocation5 + $0x120] sm:$0xff] 0.0
        %506 = vst [vmem:[#allocation5 + $0x128] sm:$0xff] 0.0
        %507 = vst [vmem:[#allocation5 + $0x130] sm:$0xff] 0.0
        %508 = vst [vmem:[#allocation5 + $0x138] sm:$0xff] 0.0
        %509 = vst [vmem:[#allocation5 + $0x140] sm:$0xff] 0.0
        %510 = vst [vmem:[#allocation5 + $0x148] sm:$0xff] 0.0
        %511 = vst [vmem:[#allocation5 + $0x150] sm:$0xff] 0.0
        %512 = vst [vmem:[#allocation5 + $0x158] sm:$0xff] 0.0
        %513 = vst [vmem:[#allocation5 + $0x160] sm:$0xff] 0.0
        %514 = vst [vmem:[#allocation5 + $0x168] sm:$0xff] 0.0
        %515 = vst [vmem:[#allocation5 + $0x170] sm:$0xff] 0.0
        %516 = vst [vmem:[#allocation5 + $0x178] sm:$0xff] 0.0
        %517 = vst [vmem:[#allocation5 + $0x180] sm:$0xff] 0.0
        %518 = vst [vmem:[#allocation5 + $0x188] sm:$0xff] 0.0
        %519 = vst [vmem:[#allocation5 + $0x190] sm:$0xff] 0.0
        %520 = vst [vmem:[#allocation5 + $0x198] sm:$0xff] 0.0
        %521 = vst [vmem:[#allocation5 + $0x1a0] sm:$0xff] 0.0
        %522 = vst [vmem:[#allocation5 + $0x1a8] sm:$0xff] 0.0
        %523 = vst [vmem:[#allocation5 + $0x1b0] sm:$0xff] 0.0
        %524 = vst [vmem:[#allocation5 + $0x1b8] sm:$0xff] 0.0
        %525 = vst [vmem:[#allocation5 + $0x1c0] sm:$0xff] 0.0
        %526 = vst [vmem:[#allocation5 + $0x1c8] sm:$0xff] 0.0
        %527 = vst [vmem:[#allocation5 + $0x1d0] sm:$0xff] 0.0
        %528 = vst [vmem:[#allocation5 + $0x1d8] sm:$0xff] 0.0
        %529 = vst [vmem:[#allocation5 + $0x1e0] sm:$0xff] 0.0
        %530 = vst [vmem:[#allocation5 + $0x1e8] sm:$0xff] 0.0
        %531 = vst [vmem:[#allocation5 + $0x1f0] sm:$0xff] 0.0
        %532 = vst [vmem:[#allocation5 + $0x1f8] sm:$0xff] 0.0
        %533 = vst [vmem:[#allocation5 + $0x200] sm:$0xff] 0.0
        %534 = vst [vmem:[#allocation5 + $0x208] sm:$0xff] 0.0
        %535 = vst [vmem:[#allocation5 + $0x210] sm:$0xff] 0.0
        %536 = vst [vmem:[#allocation5 + $0x218] sm:$0xff] 0.0
        %537 = vst [vmem:[#allocation5 + $0x220] sm:$0xff] 0.0
        %538 = vst [vmem:[#allocation5 + $0x228] sm:$0xff] 0.0
        %539 = vst [vmem:[#allocation5 + $0x230] sm:$0xff] 0.0
        %540 = vst [vmem:[#allocation5 + $0x238] sm:$0xff] 0.0
        %541 = vst [vmem:[#allocation5 + $0x240] sm:$0xff] 0.0
        %542 = vst [vmem:[#allocation5 + $0x248] sm:$0xff] 0.0
        %543 = vst [vmem:[#allocation5 + $0x250] sm:$0xff] 0.0
        %544 = vst [vmem:[#allocation5 + $0x258] sm:$0xff] 0.0
        %545 = vst [vmem:[#allocation5 + $0x260] sm:$0xff] 0.0
        %546 = vst [vmem:[#allocation5 + $0x268] sm:$0xff] 0.0
        %547 = vst [vmem:[#allocation5 + $0x270] sm:$0xff] 0.0
        %548 = vst [vmem:[#allocation5 + $0x278] sm:$0xff] 0.0
        %549 = vst [vmem:[#allocation5 + $0x280] sm:$0xff] 0.0
        %550 = vst [vmem:[#allocation5 + $0x288] sm:$0xff] 0.0
        %551 = vst [vmem:[#allocation5 + $0x290] sm:$0xff] 0.0
        %552 = vst [vmem:[#allocation5 + $0x298] sm:$0xff] 0.0
        %553 = vst [vmem:[#allocation5 + $0x2a0] sm:$0xff] 0.0
        %554 = vst [vmem:[#allocation5 + $0x2a8] sm:$0xff] 0.0
        %555 = vst [vmem:[#allocation5 + $0x2b0] sm:$0xff] 0.0
        %556 = vst [vmem:[#allocation5 + $0x2b8] sm:$0xff] 0.0
        %557 = vst [vmem:[#allocation5 + $0x2c0] sm:$0xff] 0.0
        %558 = vst [vmem:[#allocation5 + $0x2c8] sm:$0xff] 0.0
        %559 = vst [vmem:[#allocation5 + $0x2d0] sm:$0xff] 0.0
        %560 = vst [vmem:[#allocation5 + $0x2d8] sm:$0xff] 0.0
        %561 = vst [vmem:[#allocation5 + $0x2e0] sm:$0xff] 0.0
        %562 = vst [vmem:[#allocation5 + $0x2e8] sm:$0xff] 0.0
        %563 = vst [vmem:[#allocation5 + $0x2f0] sm:$0xff] 0.0
        %564 = vst [vmem:[#allocation5 + $0x2f8] sm:$0xff] 0.0
        %565 = vst [vmem:[#allocation5 + $0x300] sm:$0xff] 0.0
        %566 = vst [vmem:[#allocation5 + $0x308] sm:$0xff] 0.0
        %567 = vst [vmem:[#allocation5 + $0x310] sm:$0xff] 0.0
        %568 = vst [vmem:[#allocation5 + $0x318] sm:$0xff] 0.0
        %569 = vst [vmem:[#allocation5 + $0x320] sm:$0xff] 0.0
        %570 = vst [vmem:[#allocation5 + $0x328] sm:$0xff] 0.0
        %571 = vst [vmem:[#allocation5 + $0x330] sm:$0xff] 0.0
        %572 = vst [vmem:[#allocation5 + $0x338] sm:$0xff] 0.0
        %573 = vst [vmem:[#allocation5 + $0x340] sm:$0xff] 0.0
        %574 = vst [vmem:[#allocation5 + $0x348] sm:$0xff] 0.0
        %575 = vst [vmem:[#allocation5 + $0x350] sm:$0xff] 0.0
        %576 = vst [vmem:[#allocation5 + $0x358] sm:$0xff] 0.0
        %577 = vst [vmem:[#allocation5 + $0x360] sm:$0xff] 0.0
        %578 = vst [vmem:[#allocation5 + $0x368] sm:$0xff] 0.0
        %579 = vst [vmem:[#allocation5 + $0x370] sm:$0xff] 0.0
        %580 = vst [vmem:[#allocation5 + $0x378] sm:$0xff] 0.0
        %581 = vst [vmem:[#allocation5 + $0x380] sm:$0xff] 0.0
        %582 = vst [vmem:[#allocation5 + $0x388] sm:$0xff] 0.0
        %583 = vst [vmem:[#allocation5 + $0x390] sm:$0xff] 0.0
        %584 = vst [vmem:[#allocation5 + $0x398] sm:$0xff] 0.0
        %585 = vst [vmem:[#allocation5 + $0x3a0] sm:$0xff] 0.0
        %586 = vst [vmem:[#allocation5 + $0x3a8] sm:$0xff] 0.0
        %587 = vst [vmem:[#allocation5 + $0x3b0] sm:$0xff] 0.0
        %588 = vst [vmem:[#allocation5 + $0x3b8] sm:$0xff] 0.0
        %589 = vst [vmem:[#allocation5 + $0x3c0] sm:$0xff] 0.0
        %590 = vst [vmem:[#allocation5 + $0x3c8] sm:$0xff] 0.0
        %591 = vst [vmem:[#allocation5 + $0x3d0] sm:$0xff] 0.0
        %592 = vst [vmem:[#allocation5 + $0x3d8] sm:$0xff] 0.0
        %593 = vst [vmem:[#allocation5 + $0x3e0] sm:$0xff] 0.0
        %594 = vst [vmem:[#allocation5 + $0x3e8] sm:$0xff] 0.0
        %595 = vst [vmem:[#allocation5 + $0x3f0] sm:$0xff] 0.0
        %596 = vst [vmem:[#allocation5 + $0x3f8] sm:$0xff] 0.0
        %597 = vst [vmem:[#allocation5 + $0x400] sm:$0xff] 0.0
        %598 = vst [vmem:[#allocation5 + $0x408] sm:$0xff] 0.0
        %599 = vst [vmem:[#allocation5 + $0x410] sm:$0xff] 0.0
        %600 = vst [vmem:[#allocation5 + $0x418] sm:$0xff] 0.0
        %601 = vst [vmem:[#allocation5 + $0x420] sm:$0xff] 0.0
        %602 = vst [vmem:[#allocation5 + $0x428] sm:$0xff] 0.0
        %603 = vst [vmem:[#allocation5 + $0x430] sm:$0xff] 0.0
        %604 = vst [vmem:[#allocation5 + $0x438] sm:$0xff] 0.0
        %605 = vst [vmem:[#allocation5 + $0x440] sm:$0xff] 0.0
        %606 = vst [vmem:[#allocation5 + $0x448] sm:$0xff] 0.0
        %607 = vst [vmem:[#allocation5 + $0x450] sm:$0xff] 0.0
        %608 = vst [vmem:[#allocation5 + $0x458] sm:$0xff] 0.0
        %609 = vst [vmem:[#allocation5 + $0x460] sm:$0xff] 0.0
        %610 = vst [vmem:[#allocation5 + $0x468] sm:$0xff] 0.0
        %611 = vst [vmem:[#allocation5 + $0x470] sm:$0xff] 0.0
        %612 = vst [vmem:[#allocation5 + $0x478] sm:$0xff] 0.0
        %613 = vst [vmem:[#allocation5 + $0x480] sm:$0xff] 0.0
        %614 = vst [vmem:[#allocation5 + $0x488] sm:$0xff] 0.0
        %615 = vst [vmem:[#allocation5 + $0x490] sm:$0xff] 0.0
        %616 = vst [vmem:[#allocation5 + $0x498] sm:$0xff] 0.0
        %617 = vst [vmem:[#allocation5 + $0x4a0] sm:$0xff] 0.0
        %618 = vst [vmem:[#allocation5 + $0x4a8] sm:$0xff] 0.0
        %619 = vst [vmem:[#allocation5 + $0x4b0] sm:$0xff] 0.0
        %620 = vst [vmem:[#allocation5 + $0x4b8] sm:$0xff] 0.0
        %621 = vst [vmem:[#allocation5 + $0x4c0] sm:$0xff] 0.0
        %622 = vst [vmem:[#allocation5 + $0x4c8] sm:$0xff] 0.0
        %623 = vst [vmem:[#allocation5 + $0x4d0] sm:$0xff] 0.0
        %624 = vst [vmem:[#allocation5 + $0x4d8] sm:$0xff] 0.0
        %625 = vst [vmem:[#allocation5 + $0x4e0] sm:$0xff] 0.0
        %626 = vst [vmem:[#allocation5 + $0x4e8] sm:$0xff] 0.0
        %627 = vst [vmem:[#allocation5 + $0x4f0] sm:$0xff] 0.0
        %628 = vst [vmem:[#allocation5 + $0x4f8] sm:$0xff] 0.0
        %629 = vst [vmem:[#allocation5 + $0x500] sm:$0xff] 0.0
        %630 = vst [vmem:[#allocation5 + $0x508] sm:$0xff] 0.0
        %631 = vst [vmem:[#allocation5 + $0x510] sm:$0xff] 0.0
        %632 = vst [vmem:[#allocation5 + $0x518] sm:$0xff] 0.0
        %633 = vst [vmem:[#allocation5 + $0x520] sm:$0xff] 0.0
        %634 = vst [vmem:[#allocation5 + $0x528] sm:$0xff] 0.0
        %635 = vst [vmem:[#allocation5 + $0x530] sm:$0xff] 0.0
        %636 = vst [vmem:[#allocation5 + $0x538] sm:$0xff] 0.0
        %637 = vst [vmem:[#allocation5 + $0x540] sm:$0xff] 0.0
        %638 = vst [vmem:[#allocation5 + $0x548] sm:$0xff] 0.0
        %639 = vst [vmem:[#allocation5 + $0x550] sm:$0xff] 0.0
        %640 = vst [vmem:[#allocation5 + $0x558] sm:$0xff] 0.0
        %641 = vst [vmem:[#allocation5 + $0x560] sm:$0xff] 0.0
        %642 = vst [vmem:[#allocation5 + $0x568] sm:$0xff] 0.0
        %643 = vst [vmem:[#allocation5 + $0x570] sm:$0xff] 0.0
        %644 = vst [vmem:[#allocation5 + $0x578] sm:$0xff] 0.0
        %645 = vst [vmem:[#allocation5 + $0x580] sm:$0xff] 0.0
        %646 = vst [vmem:[#allocation5 + $0x588] sm:$0xff] 0.0
        %647 = vst [vmem:[#allocation5 + $0x590] sm:$0xff] 0.0
        %648 = vst [vmem:[#allocation5 + $0x598] sm:$0xff] 0.0
        %649 = vst [vmem:[#allocation5 + $0x5a0] sm:$0xff] 0.0
        %650 = vst [vmem:[#allocation5 + $0x5a8] sm:$0xff] 0.0
        %651 = vst [vmem:[#allocation5 + $0x5b0] sm:$0xff] 0.0
        %652 = vst [vmem:[#allocation5 + $0x5b8] sm:$0xff] 0.0
        %653 = vst [vmem:[#allocation5 + $0x5c0] sm:$0xff] 0.0
        %654 = vst [vmem:[#allocation5 + $0x5c8] sm:$0xff] 0.0
        %655 = vst [vmem:[#allocation5 + $0x5d0] sm:$0xff] 0.0
        %656 = vst [vmem:[#allocation5 + $0x5d8] sm:$0xff] 0.0
        %657 = vst [vmem:[#allocation5 + $0x5e0] sm:$0xff] 0.0
        %658 = vst [vmem:[#allocation5 + $0x5e8] sm:$0xff] 0.0
        %659 = vst [vmem:[#allocation5 + $0x5f0] sm:$0xff] 0.0
        %660 = vst [vmem:[#allocation5 + $0x5f8] sm:$0xff] 0.0
        %661 = vst [vmem:[#allocation5 + $0x600] sm:$0xff] 0.0
        %662 = vst [vmem:[#allocation5 + $0x608] sm:$0xff] 0.0
        %663 = vst [vmem:[#allocation5 + $0x610] sm:$0xff] 0.0
        %664 = vst [vmem:[#allocation5 + $0x618] sm:$0xff] 0.0
        %665 = vst [vmem:[#allocation5 + $0x620] sm:$0xff] 0.0
        %666 = vst [vmem:[#allocation5 + $0x628] sm:$0xff] 0.0
        %667 = vst [vmem:[#allocation5 + $0x630] sm:$0xff] 0.0
        %668 = vst [vmem:[#allocation5 + $0x638] sm:$0xff] 0.0
        %669 = vst [vmem:[#allocation5 + $0x640] sm:$0xff] 0.0
        %670 = vst [vmem:[#allocation5 + $0x648] sm:$0xff] 0.0
        %671 = vst [vmem:[#allocation5 + $0x650] sm:$0xff] 0.0
        %672 = vst [vmem:[#allocation5 + $0x658] sm:$0xff] 0.0
        %673 = vst [vmem:[#allocation5 + $0x660] sm:$0xff] 0.0
        %674 = vst [vmem:[#allocation5 + $0x668] sm:$0xff] 0.0
        %675 = vst [vmem:[#allocation5 + $0x670] sm:$0xff] 0.0
        %676 = vst [vmem:[#allocation5 + $0x678] sm:$0xff] 0.0
        %677 = vst [vmem:[#allocation5 + $0x680] sm:$0xff] 0.0
        %678 = vst [vmem:[#allocation5 + $0x688] sm:$0xff] 0.0
        %679 = vst [vmem:[#allocation5 + $0x690] sm:$0xff] 0.0
        %680 = vst [vmem:[#allocation5 + $0x698] sm:$0xff] 0.0
        %681 = vst [vmem:[#allocation5 + $0x6a0] sm:$0xff] 0.0
        %682 = vst [vmem:[#allocation5 + $0x6a8] sm:$0xff] 0.0
        %683 = vst [vmem:[#allocation5 + $0x6b0] sm:$0xff] 0.0
        %684 = vst [vmem:[#allocation5 + $0x6b8] sm:$0xff] 0.0
        %685 = vst [vmem:[#allocation5 + $0x6c0] sm:$0xff] 0.0
        %686 = vst [vmem:[#allocation5 + $0x6c8] sm:$0xff] 0.0
        %687 = vst [vmem:[#allocation5 + $0x6d0] sm:$0xff] 0.0
        %688 = vst [vmem:[#allocation5 + $0x6d8] sm:$0xff] 0.0
        %689 = vst [vmem:[#allocation5 + $0x6e0] sm:$0xff] 0.0
        %690 = vst [vmem:[#allocation5 + $0x6e8] sm:$0xff] 0.0
        %691 = vst [vmem:[#allocation5 + $0x6f0] sm:$0xff] 0.0
        %692 = vst [vmem:[#allocation5 + $0x6f8] sm:$0xff] 0.0
        %693 = vst [vmem:[#allocation5 + $0x700] sm:$0xff] 0.0
        %694 = vst [vmem:[#allocation5 + $0x708] sm:$0xff] 0.0
        %695 = vst [vmem:[#allocation5 + $0x710] sm:$0xff] 0.0
        %696 = vst [vmem:[#allocation5 + $0x718] sm:$0xff] 0.0
        %697 = vst [vmem:[#allocation5 + $0x720] sm:$0xff] 0.0
        %698 = vst [vmem:[#allocation5 + $0x728] sm:$0xff] 0.0
        %699 = vst [vmem:[#allocation5 + $0x730] sm:$0xff] 0.0
        %700 = vst [vmem:[#allocation5 + $0x738] sm:$0xff] 0.0
        %701 = vst [vmem:[#allocation5 + $0x740] sm:$0xff] 0.0
        %702 = vst [vmem:[#allocation5 + $0x748] sm:$0xff] 0.0
        %703 = vst [vmem:[#allocation5 + $0x750] sm:$0xff] 0.0
        %704 = vst [vmem:[#allocation5 + $0x758] sm:$0xff] 0.0
        %705 = vst [vmem:[#allocation5 + $0x760] sm:$0xff] 0.0
        %706 = vst [vmem:[#allocation5 + $0x768] sm:$0xff] 0.0
        %707 = vst [vmem:[#allocation5 + $0x770] sm:$0xff] 0.0
        %708 = vst [vmem:[#allocation5 + $0x778] sm:$0xff] 0.0
        %709 = vst [vmem:[#allocation5 + $0x780] sm:$0xff] 0.0
        %710 = vst [vmem:[#allocation5 + $0x788] sm:$0xff] 0.0
        %711 = vst [vmem:[#allocation5 + $0x790] sm:$0xff] 0.0
        %712 = vst [vmem:[#allocation5 + $0x798] sm:$0xff] 0.0
        %713 = vst [vmem:[#allocation5 + $0x7a0] sm:$0xff] 0.0
        %714 = vst [vmem:[#allocation5 + $0x7a8] sm:$0xff] 0.0
        %715 = vst [vmem:[#allocation5 + $0x7b0] sm:$0xff] 0.0
        %716 = vst [vmem:[#allocation5 + $0x7b8] sm:$0xff] 0.0
        %717 = vst [vmem:[#allocation5 + $0x7c0] sm:$0xff] 0.0
        %718 = vst [vmem:[#allocation5 + $0x7c8] sm:$0xff] 0.0
        %719 = vst [vmem:[#allocation5 + $0x7d0] sm:$0xff] 0.0
        %720 = vst [vmem:[#allocation5 + $0x7d8] sm:$0xff] 0.0
        %721 = vst [vmem:[#allocation5 + $0x7e0] sm:$0xff] 0.0
        %722 = vst [vmem:[#allocation5 + $0x7e8] sm:$0xff] 0.0
        %723 = vst [vmem:[#allocation5 + $0x7f0] sm:$0xff] 0.0
        %724 = vst [vmem:[#allocation5 + $0x7f8] sm:$0xff] 0.0
        %725 = vst [vmem:[#allocation5 + $0x800] sm:$0xff] 0.0
        %726 = vst [vmem:[#allocation5 + $0x808] sm:$0xff] 0.0
        %727 = vst [vmem:[#allocation5 + $0x810] sm:$0xff] 0.0
        %728 = vst [vmem:[#allocation5 + $0x818] sm:$0xff] 0.0
        %729 = vst [vmem:[#allocation5 + $0x820] sm:$0xff] 0.0
        %730 = vst [vmem:[#allocation5 + $0x828] sm:$0xff] 0.0
        %731 = vst [vmem:[#allocation5 + $0x830] sm:$0xff] 0.0
        %732 = vst [vmem:[#allocation5 + $0x838] sm:$0xff] 0.0
        %733 = vst [vmem:[#allocation5 + $0x840] sm:$0xff] 0.0
        %734 = vst [vmem:[#allocation5 + $0x848] sm:$0xff] 0.0
        %735 = vst [vmem:[#allocation5 + $0x850] sm:$0xff] 0.0
        %736 = vst [vmem:[#allocation5 + $0x858] sm:$0xff] 0.0
        %737 = vst [vmem:[#allocation5 + $0x860] sm:$0xff] 0.0
        %738 = vst [vmem:[#allocation5 + $0x868] sm:$0xff] 0.0
        %739 = vst [vmem:[#allocation5 + $0x870] sm:$0xff] 0.0
        %740 = vst [vmem:[#allocation5 + $0x878] sm:$0xff] 0.0
        %741 = vst [vmem:[#allocation5 + $0x880] sm:$0xff] 0.0
        %742 = vst [vmem:[#allocation5 + $0x888] sm:$0xff] 0.0
        %743 = vst [vmem:[#allocation5 + $0x890] sm:$0xff] 0.0
        %744 = vst [vmem:[#allocation5 + $0x898] sm:$0xff] 0.0
        %745 = vst [vmem:[#allocation5 + $0x8a0] sm:$0xff] 0.0
        %746 = vst [vmem:[#allocation5 + $0x8a8] sm:$0xff] 0.0
        %747 = vst [vmem:[#allocation5 + $0x8b0] sm:$0xff] 0.0
        %748 = vst [vmem:[#allocation5 + $0x8b8] sm:$0xff] 0.0
        %749 = vst [vmem:[#allocation5 + $0x8c0] sm:$0xff] 0.0
        %750 = vst [vmem:[#allocation5 + $0x8c8] sm:$0xff] 0.0
        %751 = vst [vmem:[#allocation5 + $0x8d0] sm:$0xff] 0.0
        %752 = vst [vmem:[#allocation5 + $0x8d8] sm:$0xff] 0.0
        %753 = vst [vmem:[#allocation5 + $0x8e0] sm:$0xff] 0.0
        %754 = vst [vmem:[#allocation5 + $0x8e8] sm:$0xff] 0.0
        %755 = vst [vmem:[#allocation5 + $0x8f0] sm:$0xff] 0.0
        %756 = vst [vmem:[#allocation5 + $0x8f8] sm:$0xff] 0.0
        %v757 = vld [vmem:[%s383] sm:$0xff]
        %v758 = vld [vmem:[%s383 + $0x8] sm:$0xff]
        %v759 = vld [vmem:[%s383 + $0x10] sm:$0xff]
        %v760 = vld [vmem:[%s383 + $0x18] sm:$0xff]
        %v761 = vld [vmem:[%s383 + $0x20] sm:$0xff]
        %v762 = vld [vmem:[%s383 + $0x28] sm:$0xff]
        %v763 = vld [vmem:[%s383 + $0x30] sm:$0xff]
        %v764 = vld [vmem:[%s383 + $0x38] sm:$0xff]
        %v765 = vld [vmem:[%s383 + $0x40] sm:$0xff]
        %v766 = vld [vmem:[%s383 + $0x48] sm:$0xff]
        %v767 = vld [vmem:[%s383 + $0x50] sm:$0xff]
        %v768 = vld [vmem:[%s383 + $0x58] sm:$0xff]
        %v769 = vld [vmem:[%s383 + $0x60] sm:$0xff]
        %v770 = vld [vmem:[%s383 + $0x68] sm:$0xff]
        %v771 = vld [vmem:[%s383 + $0x70] sm:$0xff]
        %v772 = vld [vmem:[%s383 + $0x78] sm:$0xff]
        %v773 = vld [vmem:[%s383 + $0x80] sm:$0xff]
        %v774 = vld [vmem:[%s383 + $0x88] sm:$0xff]
        %v775 = vld [vmem:[%s383 + $0x90] sm:$0xff]
        %v776 = vld [vmem:[%s383 + $0x98] sm:$0xff]
        %v777 = vld [vmem:[%s383 + $0xa0] sm:$0xff]
        %v778 = vld [vmem:[%s383 + $0xa8] sm:$0xff]
        %v779 = vld [vmem:[%s383 + $0xb0] sm:$0xff]
        %v780 = vld [vmem:[%s383 + $0xb8] sm:$0xff]
        %v781 = vld [vmem:[%s383 + $0xc0] sm:$0xff]
        %v782 = vld [vmem:[%s383 + $0xc8] sm:$0xff]
        %v783 = vld [vmem:[%s383 + $0xd0] sm:$0xff]
        %v784 = vld [vmem:[%s383 + $0xd8] sm:$0xff]
        %v785 = vld [vmem:[%s383 + $0xe0] sm:$0xff]
        %v786 = vld [vmem:[%s383 + $0xe8] sm:$0xff]
        %v787 = vld [vmem:[%s383 + $0xf0] sm:$0xff]
        %v788 = vld [vmem:[%s383 + $0xf8] sm:$0xff]
        %s789 = scalar_lea.vmem [#allocation2], 24
        %790 = vst.msk [vmem:[%s789 + $0x1] sm:$0xff] %vm384, %v757
        %791 = vst.msk [vmem:[%s789 + $0x9] sm:$0xff] %vm384, %v758
        %792 = vst.msk [vmem:[%s789 + $0x19] sm:$0xff] %vm384, %v759
        %793 = vst.msk [vmem:[%s789 + $0x21] sm:$0xff] %vm384, %v760
        %794 = vst.msk [vmem:[%s789 + $0x31] sm:$0xff] %vm384, %v761
        %795 = vst.msk [vmem:[%s789 + $0x39] sm:$0xff] %vm384, %v762
        %796 = vst.msk [vmem:[%s789 + $0x49] sm:$0xff] %vm384, %v763
        %797 = vst.msk [vmem:[%s789 + $0x51] sm:$0xff] %vm384, %v764
        %798 = vst.msk [vmem:[%s789 + $0x61] sm:$0xff] %vm384, %v765
        %799 = vst.msk [vmem:[%s789 + $0x69] sm:$0xff] %vm384, %v766
        %800 = vst.msk [vmem:[%s789 + $0x79] sm:$0xff] %vm384, %v767
        %801 = vst.msk [vmem:[%s789 + $0x81] sm:$0xff] %vm384, %v768
        %802 = vst.msk [vmem:[%s789 + $0x91] sm:$0xff] %vm384, %v769
        %803 = vst.msk [vmem:[%s789 + $0x99] sm:$0xff] %vm384, %v770
        %804 = vst.msk [vmem:[%s789 + $0xa9] sm:$0xff] %vm384, %v771
        %805 = vst.msk [vmem:[%s789 + $0xb1] sm:$0xff] %vm384, %v772
        %806 = vst.msk [vmem:[%s789 + $0xc1] sm:$0xff] %vm384, %v773
        %807 = vst.msk [vmem:[%s789 + $0xc9] sm:$0xff] %vm384, %v774
        %808 = vst.msk [vmem:[%s789 + $0xd9] sm:$0xff] %vm384, %v775
        %809 = vst.msk [vmem:[%s789 + $0xe1] sm:$0xff] %vm384, %v776
        %810 = vst.msk [vmem:[%s789 + $0xf1] sm:$0xff] %vm384, %v777
        %811 = vst.msk [vmem:[%s789 + $0xf9] sm:$0xff] %vm384, %v778
        %812 = vst.msk [vmem:[%s789 + $0x109] sm:$0xff] %vm384, %v779
        %813 = vst.msk [vmem:[%s789 + $0x111] sm:$0xff] %vm384, %v780
        %814 = vst.msk [vmem:[%s789 + $0x121] sm:$0xff] %vm384, %v781
        %815 = vst.msk [vmem:[%s789 + $0x129] sm:$0xff] %vm384, %v782
        %816 = vst.msk [vmem:[%s789 + $0x139] sm:$0xff] %vm384, %v783
        %817 = vst.msk [vmem:[%s789 + $0x141] sm:$0xff] %vm384, %v784
        %818 = vst.msk [vmem:[%s789 + $0x151] sm:$0xff] %vm384, %v785
        %819 = vst.msk [vmem:[%s789 + $0x159] sm:$0xff] %vm384, %v786
        %820 = vst.msk [vmem:[%s789 + $0x169] sm:$0xff] %vm384, %v787
        %821 = vst.msk [vmem:[%s789 + $0x171] sm:$0xff] %vm384, %v788
        %v822 = vld [vmem:[#allocation2] sm:$0xff]
        %v823 = vld [vmem:[#allocation2 + $0x8] sm:$0xff]
        %v824 = vld [vmem:[#allocation2 + $0x18] sm:$0xff]
        %v825 = vld [vmem:[#allocation2 + $0x20] sm:$0xff]
        %v826 = vld [vmem:[#allocation2 + $0x30] sm:$0xff]
        %v827 = vld [vmem:[#allocation2 + $0x38] sm:$0xff]
        %v828 = vld [vmem:[#allocation2 + $0x48] sm:$0xff]
        %v829 = vld [vmem:[#allocation2 + $0x50] sm:$0xff]
        %v830 = vld [vmem:[#allocation2 + $0x60] sm:$0xff]
        %v831 = vld [vmem:[#allocation2 + $0x68] sm:$0xff]
        %v832 = vld [vmem:[#allocation2 + $0x78] sm:$0xff]
        %v833 = vld [vmem:[#allocation2 + $0x80] sm:$0xff]
        %v834 = vld [vmem:[#allocation2 + $0x90] sm:$0xff]
        %v835 = vld [vmem:[#allocation2 + $0x98] sm:$0xff]
        %v836 = vld [vmem:[#allocation2 + $0xa8] sm:$0xff]
        %v837 = vld [vmem:[#allocation2 + $0xb0] sm:$0xff]
        %v838 = vld [vmem:[#allocation2 + $0xc0] sm:$0xff]
        %v839 = vld [vmem:[#allocation2 + $0xc8] sm:$0xff]
        %v840 = vld [vmem:[#allocation2 + $0xd8] sm:$0xff]
        %v841 = vld [vmem:[#allocation2 + $0xe0] sm:$0xff]
        %v842 = vld [vmem:[#allocation2 + $0xf0] sm:$0xff]
        %v843 = vld [vmem:[#allocation2 + $0xf8] sm:$0xff]
        %v844 = vld [vmem:[#allocation2 + $0x108] sm:$0xff]
        %v845 = vld [vmem:[#allocation2 + $0x110] sm:$0xff]
        %v846 = vld [vmem:[#allocation2 + $0x120] sm:$0xff]
        %v847 = vld [vmem:[#allocation2 + $0x128] sm:$0xff]
        %v848 = vld [vmem:[#allocation2 + $0x138] sm:$0xff]
        %v849 = vld [vmem:[#allocation2 + $0x140] sm:$0xff]
        %v850 = vld [vmem:[#allocation2 + $0x150] sm:$0xff]
        %v851 = vld [vmem:[#allocation2 + $0x158] sm:$0xff]
        %v852 = vld [vmem:[#allocation2 + $0x168] sm:$0xff]
        %v853 = vld [vmem:[#allocation2 + $0x170] sm:$0xff]
        %854 = vst.msk [vmem:[#allocation5] sm:$0xff] %vm384, %v822
        %855 = vst.msk [vmem:[#allocation5 + $0x48] sm:$0xff] %vm384, %v823
        %856 = vst.msk [vmem:[#allocation5 + $0x90] sm:$0xff] %vm384, %v824
        %857 = vst.msk [vmem:[#allocation5 + $0xd8] sm:$0xff] %vm384, %v825
        %858 = vst.msk [vmem:[#allocation5 + $0x120] sm:$0xff] %vm384, %v826
        %859 = vst.msk [vmem:[#allocation5 + $0x168] sm:$0xff] %vm384, %v827
        %860 = vst.msk [vmem:[#allocation5 + $0x1b0] sm:$0xff] %vm384, %v828
        %861 = vst.msk [vmem:[#allocation5 + $0x1f8] sm:$0xff] %vm384, %v829
        %862 = vst.msk [vmem:[#allocation5 + $0x240] sm:$0xff] %vm384, %v830
        %863 = vst.msk [vmem:[#allocation5 + $0x288] sm:$0xff] %vm384, %v831
        %864 = vst.msk [vmem:[#allocation5 + $0x2d0] sm:$0xff] %vm384, %v832
        %865 = vst.msk [vmem:[#allocation5 + $0x318] sm:$0xff] %vm384, %v833
        %866 = vst.msk [vmem:[#allocation5 + $0x360] sm:$0xff] %vm384, %v834
        %867 = vst.msk [vmem:[#allocation5 + $0x3a8] sm:$0xff] %vm384, %v835
        %868 = vst.msk [vmem:[#allocation5 + $0x3f0] sm:$0xff] %vm384, %v836
        %869 = vst.msk [vmem:[#allocation5 + $0x438] sm:$0xff] %vm384, %v837
        %870 = vst.msk [vmem:[#allocation5 + $0x480] sm:$0xff] %vm384, %v838
        %871 = vst.msk [vmem:[#allocation5 + $0x4c8] sm:$0xff] %vm384, %v839
        %872 = vst.msk [vmem:[#allocation5 + $0x510] sm:$0xff] %vm384, %v840
        %873 = vst.msk [vmem:[#allocation5 + $0x558] sm:$0xff] %vm384, %v841
        %874 = vst.msk [vmem:[#allocation5 + $0x5a0] sm:$0xff] %vm384, %v842
        %875 = vst.msk [vmem:[#allocation5 + $0x5e8] sm:$0xff] %vm384, %v843
        %876 = vst.msk [vmem:[#allocation5 + $0x630] sm:$0xff] %vm384, %v844
        %877 = vst.msk [vmem:[#allocation5 + $0x678] sm:$0xff] %vm384, %v845
        %878 = vst.msk [vmem:[#allocation5 + $0x6c0] sm:$0xff] %vm384, %v846
        %879 = vst.msk [vmem:[#allocation5 + $0x708] sm:$0xff] %vm384, %v847
        %880 = vst.msk [vmem:[#allocation5 + $0x750] sm:$0xff] %vm384, %v848
        %881 = vst.msk [vmem:[#allocation5 + $0x798] sm:$0xff] %vm384, %v849
        %882 = vst.msk [vmem:[#allocation5 + $0x7e0] sm:$0xff] %vm384, %v850
        %883 = vst.msk [vmem:[#allocation5 + $0x828] sm:$0xff] %vm384, %v851
        %884 = vst.msk [vmem:[#allocation5 + $0x870] sm:$0xff] %vm384, %v852
        %885 = vst.msk [vmem:[#allocation5 + $0x8b8] sm:$0xff] %vm384, %v853
        %v886 = vld [vmem:[#allocation2 + $0x1] sm:$0xff]
        %v887 = vld [vmem:[#allocation2 + $0x9] sm:$0xff]
        %v888 = vld [vmem:[#allocation2 + $0x19] sm:$0xff]
        %v889 = vld [vmem:[#allocation2 + $0x21] sm:$0xff]
        %v890 = vld [vmem:[#allocation2 + $0x31] sm:$0xff]
        %v891 = vld [vmem:[#allocation2 + $0x39] sm:$0xff]
        %v892 = vld [vmem:[#allocation2 + $0x49] sm:$0xff]
        %v893 = vld [vmem:[#allocation2 + $0x51] sm:$0xff]
        %v894 = vld [vmem:[#allocation2 + $0x61] sm:$0xff]
        %v895 = vld [vmem:[#allocation2 + $0x69] sm:$0xff]
        %v896 = vld [vmem:[#allocation2 + $0x79] sm:$0xff]
        %v897 = vld [vmem:[#allocation2 + $0x81] sm:$0xff]
        %v898 = vld [vmem:[#allocation2 + $0x91] sm:$0xff]
        %v899 = vld [vmem:[#allocation2 + $0x99] sm:$0xff]
        %v900 = vld [vmem:[#allocation2 + $0xa9] sm:$0xff]
        %v901 = vld [vmem:[#allocation2 + $0xb1] sm:$0xff]
        %v902 = vld [vmem:[#allocation2 + $0xc1] sm:$0xff]
        %v903 = vld [vmem:[#allocation2 + $0xc9] sm:$0xff]
        %v904 = vld [vmem:[#allocation2 + $0xd9] sm:$0xff]
        %v905 = vld [vmem:[#allocation2 + $0xe1] sm:$0xff]
        %v906 = vld [vmem:[#allocation2 + $0xf1] sm:$0xff]
        %v907 = vld [vmem:[#allocation2 + $0xf9] sm:$0xff]
        %v908 = vld [vmem:[#allocation2 + $0x109] sm:$0xff]
        %v909 = vld [vmem:[#allocation2 + $0x111] sm:$0xff]
        %v910 = vld [vmem:[#allocation2 + $0x121] sm:$0xff]
        %v911 = vld [vmem:[#allocation2 + $0x129] sm:$0xff]
        %v912 = vld [vmem:[#allocation2 + $0x139] sm:$0xff]
        %v913 = vld [vmem:[#allocation2 + $0x141] sm:$0xff]
        %v914 = vld [vmem:[#allocation2 + $0x151] sm:$0xff]
        %v915 = vld [vmem:[#allocation2 + $0x159] sm:$0xff]
        %v916 = vld [vmem:[#allocation2 + $0x169] sm:$0xff]
        %v917 = vld [vmem:[#allocation2 + $0x171] sm:$0xff]
        %918 = vst.msk [vmem:[#allocation5 + $0x8] sm:$0xff] %vm384, %v886
        %919 = vst.msk [vmem:[#allocation5 + $0x50] sm:$0xff] %vm384, %v887
        %920 = vst.msk [vmem:[#allocation5 + $0x98] sm:$0xff] %vm384, %v888
        %921 = vst.msk [vmem:[#allocation5 + $0xe0] sm:$0xff] %vm384, %v889
        %922 = vst.msk [vmem:[#allocation5 + $0x128] sm:$0xff] %vm384, %v890
        %923 = vst.msk [vmem:[#allocation5 + $0x170] sm:$0xff] %vm384, %v891
        %924 = vst.msk [vmem:[#allocation5 + $0x1b8] sm:$0xff] %vm384, %v892
        %925 = vst.msk [vmem:[#allocation5 + $0x200] sm:$0xff] %vm384, %v893
        %926 = vst.msk [vmem:[#allocation5 + $0x248] sm:$0xff] %vm384, %v894
        %927 = vst.msk [vmem:[#allocation5 + $0x290] sm:$0xff] %vm384, %v895
        %928 = vst.msk [vmem:[#allocation5 + $0x2d8] sm:$0xff] %vm384, %v896
        %929 = vst.msk [vmem:[#allocation5 + $0x320] sm:$0xff] %vm384, %v897
        %930 = vst.msk [vmem:[#allocation5 + $0x368] sm:$0xff] %vm384, %v898
        %931 = vst.msk [vmem:[#allocation5 + $0x3b0] sm:$0xff] %vm384, %v899
        %932 = vst.msk [vmem:[#allocation5 + $0x3f8] sm:$0xff] %vm384, %v900
        %933 = vst.msk [vmem:[#allocation5 + $0x440] sm:$0xff] %vm384, %v901
        %934 = vst.msk [vmem:[#allocation5 + $0x488] sm:$0xff] %vm384, %v902
        %935 = vst.msk [vmem:[#allocation5 + $0x4d0] sm:$0xff] %vm384, %v903
        %936 = vst.msk [vmem:[#allocation5 + $0x518] sm:$0xff] %vm384, %v904
        %937 = vst.msk [vmem:[#allocation5 + $0x560] sm:$0xff] %vm384, %v905
        %938 = vst.msk [vmem:[#allocation5 + $0x5a8] sm:$0xff] %vm384, %v906
        %939 = vst.msk [vmem:[#allocation5 + $0x5f0] sm:$0xff] %vm384, %v907
        %940 = vst.msk [vmem:[#allocation5 + $0x638] sm:$0xff] %vm384, %v908
        %941 = vst.msk [vmem:[#allocation5 + $0x680] sm:$0xff] %vm384, %v909
        %942 = vst.msk [vmem:[#allocation5 + $0x6c8] sm:$0xff] %vm384, %v910
        %943 = vst.msk [vmem:[#allocation5 + $0x710] sm:$0xff] %vm384, %v911
        %944 = vst.msk [vmem:[#allocation5 + $0x758] sm:$0xff] %vm384, %v912
        %945 = vst.msk [vmem:[#allocation5 + $0x7a0] sm:$0xff] %vm384, %v913
        %946 = vst.msk [vmem:[#allocation5 + $0x7e8] sm:$0xff] %vm384, %v914
        %947 = vst.msk [vmem:[#allocation5 + $0x830] sm:$0xff] %vm384, %v915
        %948 = vst.msk [vmem:[#allocation5 + $0x878] sm:$0xff] %vm384, %v916
        %949 = vst.msk [vmem:[#allocation5 + $0x8c0] sm:$0xff] %vm384, %v917
        %v950 = vld [vmem:[#allocation2 + $0x2] sm:$0xff]
        %v951 = vld [vmem:[#allocation2 + $0xa] sm:$0xff]
        %v952 = vld [vmem:[#allocation2 + $0x1a] sm:$0xff]
        %v953 = vld [vmem:[#allocation2 + $0x22] sm:$0xff]
        %v954 = vld [vmem:[#allocation2 + $0x32] sm:$0xff]
        %v955 = vld [vmem:[#allocation2 + $0x3a] sm:$0xff]
        %v956 = vld [vmem:[#allocation2 + $0x4a] sm:$0xff]
        %v957 = vld [vmem:[#allocation2 + $0x52] sm:$0xff]
        %v958 = vld [vmem:[#allocation2 + $0x62] sm:$0xff]
        %v959 = vld [vmem:[#allocation2 + $0x6a] sm:$0xff]
        %v960 = vld [vmem:[#allocation2 + $0x7a] sm:$0xff]
        %v961 = vld [vmem:[#allocation2 + $0x82] sm:$0xff]
        %v962 = vld [vmem:[#allocation2 + $0x92] sm:$0xff]
        %v963 = vld [vmem:[#allocation2 + $0x9a] sm:$0xff]
        %v964 = vld [vmem:[#allocation2 + $0xaa] sm:$0xff]
        %v965 = vld [vmem:[#allocation2 + $0xb2] sm:$0xff]
        %v966 = vld [vmem:[#allocation2 + $0xc2] sm:$0xff]
        %v967 = vld [vmem:[#allocation2 + $0xca] sm:$0xff]
        %v968 = vld [vmem:[#allocation2 + $0xda] sm:$0xff]
        %v969 = vld [vmem:[#allocation2 + $0xe2] sm:$0xff]
        %v970 = vld [vmem:[#allocation2 + $0xf2] sm:$0xff]
        %v971 = vld [vmem:[#allocation2 + $0xfa] sm:$0xff]
        %v972 = vld [vmem:[#allocation2 + $0x10a] sm:$0xff]
        %v973 = vld [vmem:[#allocation2 + $0x112] sm:$0xff]
        %v974 = vld [vmem:[#allocation2 + $0x122] sm:$0xff]
        %v975 = vld [vmem:[#allocation2 + $0x12a] sm:$0xff]
        %v976 = vld [vmem:[#allocation2 + $0x13a] sm:$0xff]
        %v977 = vld [vmem:[#allocation2 + $0x142] sm:$0xff]
        %v978 = vld [vmem:[#allocation2 + $0x152] sm:$0xff]
        %v979 = vld [vmem:[#allocation2 + $0x15a] sm:$0xff]
        %v980 = vld [vmem:[#allocation2 + $0x16a] sm:$0xff]
        %v981 = vld [vmem:[#allocation2 + $0x172] sm:$0xff]
        %982 = vst.msk [vmem:[#allocation5 + $0x10] sm:$0xff] %vm384, %v950
        %983 = vst.msk [vmem:[#allocation5 + $0x58] sm:$0xff] %vm384, %v951
        %984 = vst.msk [vmem:[#allocation5 + $0xa0] sm:$0xff] %vm384, %v952
        %985 = vst.msk [vmem:[#allocation5 + $0xe8] sm:$0xff] %vm384, %v953
        %986 = vst.msk [vmem:[#allocation5 + $0x130] sm:$0xff] %vm384, %v954
        %987 = vst.msk [vmem:[#allocation5 + $0x178] sm:$0xff] %vm384, %v955
        %988 = vst.msk [vmem:[#allocation5 + $0x1c0] sm:$0xff] %vm384, %v956
        %989 = vst.msk [vmem:[#allocation5 + $0x208] sm:$0xff] %vm384, %v957
        %990 = vst.msk [vmem:[#allocation5 + $0x250] sm:$0xff] %vm384, %v958
        %991 = vst.msk [vmem:[#allocation5 + $0x298] sm:$0xff] %vm384, %v959
        %992 = vst.msk [vmem:[#allocation5 + $0x2e0] sm:$0xff] %vm384, %v960
        %993 = vst.msk [vmem:[#allocation5 + $0x328] sm:$0xff] %vm384, %v961
        %994 = vst.msk [vmem:[#allocation5 + $0x370] sm:$0xff] %vm384, %v962
        %995 = vst.msk [vmem:[#allocation5 + $0x3b8] sm:$0xff] %vm384, %v963
        %996 = vst.msk [vmem:[#allocation5 + $0x400] sm:$0xff] %vm384, %v964
        %997 = vst.msk [vmem:[#allocation5 + $0x448] sm:$0xff] %vm384, %v965
        %998 = vst.msk [vmem:[#allocation5 + $0x490] sm:$0xff] %vm384, %v966
        %999 = vst.msk [vmem:[#allocation5 + $0x4d8] sm:$0xff] %vm384, %v967
        %1000 = vst.msk [vmem:[#allocation5 + $0x520] sm:$0xff] %vm384, %v968
        %1001 = vst.msk [vmem:[#allocation5 + $0x568] sm:$0xff] %vm384, %v969
        %1002 = vst.msk [vmem:[#allocation5 + $0x5b0] sm:$0xff] %vm384, %v970
        %1003 = vst.msk [vmem:[#allocation5 + $0x5f8] sm:$0xff] %vm384, %v971
        %1004 = vst.msk [vmem:[#allocation5 + $0x640] sm:$0xff] %vm384, %v972
        %1005 = vst.msk [vmem:[#allocation5 + $0x688] sm:$0xff] %vm384, %v973
        %1006 = vst.msk [vmem:[#allocation5 + $0x6d0] sm:$0xff] %vm384, %v974
        %1007 = vst.msk [vmem:[#allocation5 + $0x718] sm:$0xff] %vm384, %v975
        %1008 = vst.msk [vmem:[#allocation5 + $0x760] sm:$0xff] %vm384, %v976
        %1009 = vst.msk [vmem:[#allocation5 + $0x7a8] sm:$0xff] %vm384, %v977
        %1010 = vst.msk [vmem:[#allocation5 + $0x7f0] sm:$0xff] %vm384, %v978
        %1011 = vst.msk [vmem:[#allocation5 + $0x838] sm:$0xff] %vm384, %v979
        %1012 = vst.msk [vmem:[#allocation5 + $0x880] sm:$0xff] %vm384, %v980
        %1013 = vst.msk [vmem:[#allocation5 + $0x8c8] sm:$0xff] %vm384, %v981
        %v1014 = vld [vmem:[%s789] sm:$0xff]
        %v1015 = vld [vmem:[%s789 + $0x8] sm:$0xff]
        %v1016 = vld [vmem:[%s789 + $0x18] sm:$0xff]
        %v1017 = vld [vmem:[%s789 + $0x20] sm:$0xff]
        %v1018 = vld [vmem:[%s789 + $0x30] sm:$0xff]
        %v1019 = vld [vmem:[%s789 + $0x38] sm:$0xff]
        %v1020 = vld [vmem:[%s789 + $0x48] sm:$0xff]
        %v1021 = vld [vmem:[%s789 + $0x50] sm:$0xff]
        %v1022 = vld [vmem:[%s789 + $0x60] sm:$0xff]
        %v1023 = vld [vmem:[%s789 + $0x68] sm:$0xff]
        %v1024 = vld [vmem:[%s789 + $0x78] sm:$0xff]
        %v1025 = vld [vmem:[%s789 + $0x80] sm:$0xff]
        %v1026 = vld [vmem:[%s789 + $0x90] sm:$0xff]
        %v1027 = vld [vmem:[%s789 + $0x98] sm:$0xff]
        %v1028 = vld [vmem:[%s789 + $0xa8] sm:$0xff]
        %v1029 = vld [vmem:[%s789 + $0xb0] sm:$0xff]
        %v1030 = vld [vmem:[%s789 + $0xc0] sm:$0xff]
        %v1031 = vld [vmem:[%s789 + $0xc8] sm:$0xff]
        %v1032 = vld [vmem:[%s789 + $0xd8] sm:$0xff]
        %v1033 = vld [vmem:[%s789 + $0xe0] sm:$0xff]
        %v1034 = vld [vmem:[%s789 + $0xf0] sm:$0xff]
        %v1035 = vld [vmem:[%s789 + $0xf8] sm:$0xff]
        %v1036 = vld [vmem:[%s789 + $0x108] sm:$0xff]
        %v1037 = vld [vmem:[%s789 + $0x110] sm:$0xff]
        %v1038 = vld [vmem:[%s789 + $0x120] sm:$0xff]
        %v1039 = vld [vmem:[%s789 + $0x128] sm:$0xff]
        %v1040 = vld [vmem:[%s789 + $0x138] sm:$0xff]
        %v1041 = vld [vmem:[%s789 + $0x140] sm:$0xff]
        %v1042 = vld [vmem:[%s789 + $0x150] sm:$0xff]
        %v1043 = vld [vmem:[%s789 + $0x158] sm:$0xff]
        %v1044 = vld [vmem:[%s789 + $0x168] sm:$0xff]
        %v1045 = vld [vmem:[%s789 + $0x170] sm:$0xff]
        %1046 = vst.msk [vmem:[#allocation5 + $0x18] sm:$0xff] %vm384, %v1014
        %1047 = vst.msk [vmem:[#allocation5 + $0x60] sm:$0xff] %vm384, %v1015
        %1048 = vst.msk [vmem:[#allocation5 + $0xa8] sm:$0xff] %vm384, %v1016
        %1049 = vst.msk [vmem:[#allocation5 + $0xf0] sm:$0xff] %vm384, %v1017
        %1050 = vst.msk [vmem:[#allocation5 + $0x138] sm:$0xff] %vm384, %v1018
        %1051 = vst.msk [vmem:[#allocation5 + $0x180] sm:$0xff] %vm384, %v1019
        %1052 = vst.msk [vmem:[#allocation5 + $0x1c8] sm:$0xff] %vm384, %v1020
        %1053 = vst.msk [vmem:[#allocation5 + $0x210] sm:$0xff] %vm384, %v1021
        %1054 = vst.msk [vmem:[#allocation5 + $0x258] sm:$0xff] %vm384, %v1022
        %1055 = vst.msk [vmem:[#allocation5 + $0x2a0] sm:$0xff] %vm384, %v1023
        %1056 = vst.msk [vmem:[#allocation5 + $0x2e8] sm:$0xff] %vm384, %v1024
        %1057 = vst.msk [vmem:[#allocation5 + $0x330] sm:$0xff] %vm384, %v1025
        %1058 = vst.msk [vmem:[#allocation5 + $0x378] sm:$0xff] %vm384, %v1026
        %1059 = vst.msk [vmem:[#allocation5 + $0x3c0] sm:$0xff] %vm384, %v1027
        %1060 = vst.msk [vmem:[#allocation5 + $0x408] sm:$0xff] %vm384, %v1028
        %1061 = vst.msk [vmem:[#allocation5 + $0x450] sm:$0xff] %vm384, %v1029
        %1062 = vst.msk [vmem:[#allocation5 + $0x498] sm:$0xff] %vm384, %v1030
        %1063 = vst.msk [vmem:[#allocation5 + $0x4e0] sm:$0xff] %vm384, %v1031
        %1064 = vst.msk [vmem:[#allocation5 + $0x528] sm:$0xff] %vm384, %v1032
        %1065 = vst.msk [vmem:[#allocation5 + $0x570] sm:$0xff] %vm384, %v1033
        %1066 = vst.msk [vmem:[#allocation5 + $0x5b8] sm:$0xff] %vm384, %v1034
        %1067 = vst.msk [vmem:[#allocation5 + $0x600] sm:$0xff] %vm384, %v1035
        %1068 = vst.msk [vmem:[#allocation5 + $0x648] sm:$0xff] %vm384, %v1036
        %1069 = vst.msk [vmem:[#allocation5 + $0x690] sm:$0xff] %vm384, %v1037
        %1070 = vst.msk [vmem:[#allocation5 + $0x6d8] sm:$0xff] %vm384, %v1038
        %1071 = vst.msk [vmem:[#allocation5 + $0x720] sm:$0xff] %vm384, %v1039
        %1072 = vst.msk [vmem:[#allocation5 + $0x768] sm:$0xff] %vm384, %v1040
        %1073 = vst.msk [vmem:[#allocation5 + $0x7b0] sm:$0xff] %vm384, %v1041
        %1074 = vst.msk [vmem:[#allocation5 + $0x7f8] sm:$0xff] %vm384, %v1042
        %1075 = vst.msk [vmem:[#allocation5 + $0x840] sm:$0xff] %vm384, %v1043
        %1076 = vst.msk [vmem:[#allocation5 + $0x888] sm:$0xff] %vm384, %v1044
        %1077 = vst.msk [vmem:[#allocation5 + $0x8d0] sm:$0xff] %vm384, %v1045
        %v1078 = vld [vmem:[%s789 + $0x1] sm:$0xff]
        %v1079 = vld [vmem:[%s789 + $0x9] sm:$0xff]
        %v1080 = vld [vmem:[%s789 + $0x19] sm:$0xff]
        %v1081 = vld [vmem:[%s789 + $0x21] sm:$0xff]
        %v1082 = vld [vmem:[%s789 + $0x31] sm:$0xff]
        %v1083 = vld [vmem:[%s789 + $0x39] sm:$0xff]
        %v1084 = vld [vmem:[%s789 + $0x49] sm:$0xff]
        %v1085 = vld [vmem:[%s789 + $0x51] sm:$0xff]
        %v1086 = vld [vmem:[%s789 + $0x61] sm:$0xff]
        %v1087 = vld [vmem:[%s789 + $0x69] sm:$0xff]
        %v1088 = vld [vmem:[%s789 + $0x79] sm:$0xff]
        %v1089 = vld [vmem:[%s789 + $0x81] sm:$0xff]
        %v1090 = vld [vmem:[%s789 + $0x91] sm:$0xff]
        %v1091 = vld [vmem:[%s789 + $0x99] sm:$0xff]
        %v1092 = vld [vmem:[%s789 + $0xa9] sm:$0xff]
        %v1093 = vld [vmem:[%s789 + $0xb1] sm:$0xff]
        %v1094 = vld [vmem:[%s789 + $0xc1] sm:$0xff]
        %v1095 = vld [vmem:[%s789 + $0xc9] sm:$0xff]
        %v1096 = vld [vmem:[%s789 + $0xd9] sm:$0xff]
        %v1097 = vld [vmem:[%s789 + $0xe1] sm:$0xff]
        %v1098 = vld [vmem:[%s789 + $0xf1] sm:$0xff]
        %v1099 = vld [vmem:[%s789 + $0xf9] sm:$0xff]
        %v1100 = vld [vmem:[%s789 + $0x109] sm:$0xff]
        %v1101 = vld [vmem:[%s789 + $0x111] sm:$0xff]
        %v1102 = vld [vmem:[%s789 + $0x121] sm:$0xff]
        %v1103 = vld [vmem:[%s789 + $0x129] sm:$0xff]
        %v1104 = vld [vmem:[%s789 + $0x139] sm:$0xff]
        %v1105 = vld [vmem:[%s789 + $0x141] sm:$0xff]
        %v1106 = vld [vmem:[%s789 + $0x151] sm:$0xff]
        %v1107 = vld [vmem:[%s789 + $0x159] sm:$0xff]
        %v1108 = vld [vmem:[%s789 + $0x169] sm:$0xff]
        %v1109 = vld [vmem:[%s789 + $0x171] sm:$0xff]
        %1110 = vst.msk [vmem:[#allocation5 + $0x20] sm:$0xff] %vm384, %v1078
        %1111 = vst.msk [vmem:[#allocation5 + $0x68] sm:$0xff] %vm384, %v1079
        %1112 = vst.msk [vmem:[#allocation5 + $0xb0] sm:$0xff] %vm384, %v1080
        %1113 = vst.msk [vmem:[#allocation5 + $0xf8] sm:$0xff] %vm384, %v1081
        %1114 = vst.msk [vmem:[#allocation5 + $0x140] sm:$0xff] %vm384, %v1082
        %1115 = vst.msk [vmem:[#allocation5 + $0x188] sm:$0xff] %vm384, %v1083
        %1116 = vst.msk [vmem:[#allocation5 + $0x1d0] sm:$0xff] %vm384, %v1084
        %1117 = vst.msk [vmem:[#allocation5 + $0x218] sm:$0xff] %vm384, %v1085
        %1118 = vst.msk [vmem:[#allocation5 + $0x260] sm:$0xff] %vm384, %v1086
        %1119 = vst.msk [vmem:[#allocation5 + $0x2a8] sm:$0xff] %vm384, %v1087
        %1120 = vst.msk [vmem:[#allocation5 + $0x2f0] sm:$0xff] %vm384, %v1088
        %1121 = vst.msk [vmem:[#allocation5 + $0x338] sm:$0xff] %vm384, %v1089
        %1122 = vst.msk [vmem:[#allocation5 + $0x380] sm:$0xff] %vm384, %v1090
        %1123 = vst.msk [vmem:[#allocation5 + $0x3c8] sm:$0xff] %vm384, %v1091
        %1124 = vst.msk [vmem:[#allocation5 + $0x410] sm:$0xff] %vm384, %v1092
        %1125 = vst.msk [vmem:[#allocation5 + $0x458] sm:$0xff] %vm384, %v1093
        %1126 = vst.msk [vmem:[#allocation5 + $0x4a0] sm:$0xff] %vm384, %v1094
        %1127 = vst.msk [vmem:[#allocation5 + $0x4e8] sm:$0xff] %vm384, %v1095
        %1128 = vst.msk [vmem:[#allocation5 + $0x530] sm:$0xff] %vm384, %v1096
        %1129 = vst.msk [vmem:[#allocation5 + $0x578] sm:$0xff] %vm384, %v1097
        %1130 = vst.msk [vmem:[#allocation5 + $0x5c0] sm:$0xff] %vm384, %v1098
        %1131 = vst.msk [vmem:[#allocation5 + $0x608] sm:$0xff] %vm384, %v1099
        %1132 = vst.msk [vmem:[#allocation5 + $0x650] sm:$0xff] %vm384, %v1100
        %1133 = vst.msk [vmem:[#allocation5 + $0x698] sm:$0xff] %vm384, %v1101
        %1134 = vst.msk [vmem:[#allocation5 + $0x6e0] sm:$0xff] %vm384, %v1102
        %1135 = vst.msk [vmem:[#allocation5 + $0x728] sm:$0xff] %vm384, %v1103
        %1136 = vst.msk [vmem:[#allocation5 + $0x770] sm:$0xff] %vm384, %v1104
        %1137 = vst.msk [vmem:[#allocation5 + $0x7b8] sm:$0xff] %vm384, %v1105
        %1138 = vst.msk [vmem:[#allocation5 + $0x800] sm:$0xff] %vm384, %v1106
        %1139 = vst.msk [vmem:[#allocation5 + $0x848] sm:$0xff] %vm384, %v1107
        %1140 = vst.msk [vmem:[#allocation5 + $0x890] sm:$0xff] %vm384, %v1108
        %1141 = vst.msk [vmem:[#allocation5 + $0x8d8] sm:$0xff] %vm384, %v1109
        %v1142 = vld [vmem:[%s789 + $0x2] sm:$0xff]
        %v1143 = vld [vmem:[%s789 + $0xa] sm:$0xff]
        %v1144 = vld [vmem:[%s789 + $0x1a] sm:$0xff]
        %v1145 = vld [vmem:[%s789 + $0x22] sm:$0xff]
        %v1146 = vld [vmem:[%s789 + $0x32] sm:$0xff]
        %v1147 = vld [vmem:[%s789 + $0x3a] sm:$0xff]
        %v1148 = vld [vmem:[%s789 + $0x4a] sm:$0xff]
        %v1149 = vld [vmem:[%s789 + $0x52] sm:$0xff]
        %v1150 = vld [vmem:[%s789 + $0x62] sm:$0xff]
        %v1151 = vld [vmem:[%s789 + $0x6a] sm:$0xff]
        %v1152 = vld [vmem:[%s789 + $0x7a] sm:$0xff]
        %v1153 = vld [vmem:[%s789 + $0x82] sm:$0xff]
        %v1154 = vld [vmem:[%s789 + $0x92] sm:$0xff]
        %v1155 = vld [vmem:[%s789 + $0x9a] sm:$0xff]
        %v1156 = vld [vmem:[%s789 + $0xaa] sm:$0xff]
        %v1157 = vld [vmem:[%s789 + $0xb2] sm:$0xff]
        %v1158 = vld [vmem:[%s789 + $0xc2] sm:$0xff]
        %v1159 = vld [vmem:[%s789 + $0xca] sm:$0xff]
        %v1160 = vld [vmem:[%s789 + $0xda] sm:$0xff]
        %v1161 = vld [vmem:[%s789 + $0xe2] sm:$0xff]
        %v1162 = vld [vmem:[%s789 + $0xf2] sm:$0xff]
        %v1163 = vld [vmem:[%s789 + $0xfa] sm:$0xff]
        %v1164 = vld [vmem:[%s789 + $0x10a] sm:$0xff]
        %v1165 = vld [vmem:[%s789 + $0x112] sm:$0xff]
        %v1166 = vld [vmem:[%s789 + $0x122] sm:$0xff]
        %v1167 = vld [vmem:[%s789 + $0x12a] sm:$0xff]
        %v1168 = vld [vmem:[%s789 + $0x13a] sm:$0xff]
        %v1169 = vld [vmem:[%s789 + $0x142] sm:$0xff]
        %v1170 = vld [vmem:[%s789 + $0x152] sm:$0xff]
        %v1171 = vld [vmem:[%s789 + $0x15a] sm:$0xff]
        %v1172 = vld [vmem:[%s789 + $0x16a] sm:$0xff]
        %v1173 = vld [vmem:[%s789 + $0x172] sm:$0xff]
        %1174 = vst.msk [vmem:[#allocation5 + $0x28] sm:$0xff] %vm384, %v1142
        %1175 = vst.msk [vmem:[#allocation5 + $0x70] sm:$0xff] %vm384, %v1143
        %1176 = vst.msk [vmem:[#allocation5 + $0xb8] sm:$0xff] %vm384, %v1144
        %1177 = vst.msk [vmem:[#allocation5 + $0x100] sm:$0xff] %vm384, %v1145
        %1178 = vst.msk [vmem:[#allocation5 + $0x148] sm:$0xff] %vm384, %v1146
        %1179 = vst.msk [vmem:[#allocation5 + $0x190] sm:$0xff] %vm384, %v1147
        %1180 = vst.msk [vmem:[#allocation5 + $0x1d8] sm:$0xff] %vm384, %v1148
        %1181 = vst.msk [vmem:[#allocation5 + $0x220] sm:$0xff] %vm384, %v1149
        %1182 = vst.msk [vmem:[#allocation5 + $0x268] sm:$0xff] %vm384, %v1150
        %1183 = vst.msk [vmem:[#allocation5 + $0x2b0] sm:$0xff] %vm384, %v1151
        %1184 = vst.msk [vmem:[#allocation5 + $0x2f8] sm:$0xff] %vm384, %v1152
        %1185 = vst.msk [vmem:[#allocation5 + $0x340] sm:$0xff] %vm384, %v1153
        %1186 = vst.msk [vmem:[#allocation5 + $0x388] sm:$0xff] %vm384, %v1154
        %1187 = vst.msk [vmem:[#allocation5 + $0x3d0] sm:$0xff] %vm384, %v1155
        %1188 = vst.msk [vmem:[#allocation5 + $0x418] sm:$0xff] %vm384, %v1156
        %1189 = vst.msk [vmem:[#allocation5 + $0x460] sm:$0xff] %vm384, %v1157
        %1190 = vst.msk [vmem:[#allocation5 + $0x4a8] sm:$0xff] %vm384, %v1158
        %1191 = vst.msk [vmem:[#allocation5 + $0x4f0] sm:$0xff] %vm384, %v1159
        %1192 = vst.msk [vmem:[#allocation5 + $0x538] sm:$0xff] %vm384, %v1160
        %1193 = vst.msk [vmem:[#allocation5 + $0x580] sm:$0xff] %vm384, %v1161
        %1194 = vst.msk [vmem:[#allocation5 + $0x5c8] sm:$0xff] %vm384, %v1162
        %1195 = vst.msk [vmem:[#allocation5 + $0x610] sm:$0xff] %vm384, %v1163
        %1196 = vst.msk [vmem:[#allocation5 + $0x658] sm:$0xff] %vm384, %v1164
        %1197 = vst.msk [vmem:[#allocation5 + $0x6a0] sm:$0xff] %vm384, %v1165
        %1198 = vst.msk [vmem:[#allocation5 + $0x6e8] sm:$0xff] %vm384, %v1166
        %1199 = vst.msk [vmem:[#allocation5 + $0x730] sm:$0xff] %vm384, %v1167
        %1200 = vst.msk [vmem:[#allocation5 + $0x778] sm:$0xff] %vm384, %v1168
        %1201 = vst.msk [vmem:[#allocation5 + $0x7c0] sm:$0xff] %vm384, %v1169
        %1202 = vst.msk [vmem:[#allocation5 + $0x808] sm:$0xff] %vm384, %v1170
        %1203 = vst.msk [vmem:[#allocation5 + $0x850] sm:$0xff] %vm384, %v1171
        %1204 = vst.msk [vmem:[#allocation5 + $0x898] sm:$0xff] %vm384, %v1172
        %1205 = vst.msk [vmem:[#allocation5 + $0x8e0] sm:$0xff] %vm384, %v1173
        %s1206 = scalar_lea.vmem [#allocation2], 48
        %v1207 = vld [vmem:[%s1206] sm:$0xff]
        %v1208 = vld [vmem:[%s1206 + $0x8] sm:$0xff]
        %v1209 = vld [vmem:[%s1206 + $0x18] sm:$0xff]
        %v1210 = vld [vmem:[%s1206 + $0x20] sm:$0xff]
        %v1211 = vld [vmem:[%s1206 + $0x30] sm:$0xff]
        %v1212 = vld [vmem:[%s1206 + $0x38] sm:$0xff]
        %v1213 = vld [vmem:[%s1206 + $0x48] sm:$0xff]
        %v1214 = vld [vmem:[%s1206 + $0x50] sm:$0xff]
        %v1215 = vld [vmem:[%s1206 + $0x60] sm:$0xff]
        %v1216 = vld [vmem:[%s1206 + $0x68] sm:$0xff]
        %v1217 = vld [vmem:[%s1206 + $0x78] sm:$0xff]
        %v1218 = vld [vmem:[%s1206 + $0x80] sm:$0xff]
        %v1219 = vld [vmem:[%s1206 + $0x90] sm:$0xff]
        %v1220 = vld [vmem:[%s1206 + $0x98] sm:$0xff]
        %v1221 = vld [vmem:[%s1206 + $0xa8] sm:$0xff]
        %v1222 = vld [vmem:[%s1206 + $0xb0] sm:$0xff]
        %v1223 = vld [vmem:[%s1206 + $0xc0] sm:$0xff]
        %v1224 = vld [vmem:[%s1206 + $0xc8] sm:$0xff]
        %v1225 = vld [vmem:[%s1206 + $0xd8] sm:$0xff]
        %v1226 = vld [vmem:[%s1206 + $0xe0] sm:$0xff]
        %v1227 = vld [vmem:[%s1206 + $0xf0] sm:$0xff]
        %v1228 = vld [vmem:[%s1206 + $0xf8] sm:$0xff]
        %v1229 = vld [vmem:[%s1206 + $0x108] sm:$0xff]
        %v1230 = vld [vmem:[%s1206 + $0x110] sm:$0xff]
        %v1231 = vld [vmem:[%s1206 + $0x120] sm:$0xff]
        %v1232 = vld [vmem:[%s1206 + $0x128] sm:$0xff]
        %v1233 = vld [vmem:[%s1206 + $0x138] sm:$0xff]
        %v1234 = vld [vmem:[%s1206 + $0x140] sm:$0xff]
        %v1235 = vld [vmem:[%s1206 + $0x150] sm:$0xff]
        %v1236 = vld [vmem:[%s1206 + $0x158] sm:$0xff]
        %v1237 = vld [vmem:[%s1206 + $0x168] sm:$0xff]
        %v1238 = vld [vmem:[%s1206 + $0x170] sm:$0xff]
        %1239 = vst.msk [vmem:[#allocation5 + $0x30] sm:$0xff] %vm384, %v1207
        %1240 = vst.msk [vmem:[#allocation5 + $0x78] sm:$0xff] %vm384, %v1208
        %1241 = vst.msk [vmem:[#allocation5 + $0xc0] sm:$0xff] %vm384, %v1209
        %1242 = vst.msk [vmem:[#allocation5 + $0x108] sm:$0xff] %vm384, %v1210
        %1243 = vst.msk [vmem:[#allocation5 + $0x150] sm:$0xff] %vm384, %v1211
        %1244 = vst.msk [vmem:[#allocation5 + $0x198] sm:$0xff] %vm384, %v1212
        %1245 = vst.msk [vmem:[#allocation5 + $0x1e0] sm:$0xff] %vm384, %v1213
        %1246 = vst.msk [vmem:[#allocation5 + $0x228] sm:$0xff] %vm384, %v1214
        %1247 = vst.msk [vmem:[#allocation5 + $0x270] sm:$0xff] %vm384, %v1215
        %1248 = vst.msk [vmem:[#allocation5 + $0x2b8] sm:$0xff] %vm384, %v1216
        %1249 = vst.msk [vmem:[#allocation5 + $0x300] sm:$0xff] %vm384, %v1217
        %1250 = vst.msk [vmem:[#allocation5 + $0x348] sm:$0xff] %vm384, %v1218
        %1251 = vst.msk [vmem:[#allocation5 + $0x390] sm:$0xff] %vm384, %v1219
        %1252 = vst.msk [vmem:[#allocation5 + $0x3d8] sm:$0xff] %vm384, %v1220
        %1253 = vst.msk [vmem:[#allocation5 + $0x420] sm:$0xff] %vm384, %v1221
        %1254 = vst.msk [vmem:[#allocation5 + $0x468] sm:$0xff] %vm384, %v1222
        %1255 = vst.msk [vmem:[#allocation5 + $0x4b0] sm:$0xff] %vm384, %v1223
        %1256 = vst.msk [vmem:[#allocation5 + $0x4f8] sm:$0xff] %vm384, %v1224
        %1257 = vst.msk [vmem:[#allocation5 + $0x540] sm:$0xff] %vm384, %v1225
        %1258 = vst.msk [vmem:[#allocation5 + $0x588] sm:$0xff] %vm384, %v1226
        %1259 = vst.msk [vmem:[#allocation5 + $0x5d0] sm:$0xff] %vm384, %v1227
        %1260 = vst.msk [vmem:[#allocation5 + $0x618] sm:$0xff] %vm384, %v1228
        %1261 = vst.msk [vmem:[#allocation5 + $0x660] sm:$0xff] %vm384, %v1229
        %1262 = vst.msk [vmem:[#allocation5 + $0x6a8] sm:$0xff] %vm384, %v1230
        %1263 = vst.msk [vmem:[#allocation5 + $0x6f0] sm:$0xff] %vm384, %v1231
        %1264 = vst.msk [vmem:[#allocation5 + $0x738] sm:$0xff] %vm384, %v1232
        %1265 = vst.msk [vmem:[#allocation5 + $0x780] sm:$0xff] %vm384, %v1233
        %1266 = vst.msk [vmem:[#allocation5 + $0x7c8] sm:$0xff] %vm384, %v1234
        %1267 = vst.msk [vmem:[#allocation5 + $0x810] sm:$0xff] %vm384, %v1235
        %1268 = vst.msk [vmem:[#allocation5 + $0x858] sm:$0xff] %vm384, %v1236
        %1269 = vst.msk [vmem:[#allocation5 + $0x8a0] sm:$0xff] %vm384, %v1237
        %1270 = vst.msk [vmem:[#allocation5 + $0x8e8] sm:$0xff] %vm384, %v1238
        %v1271 = vld [vmem:[%s1206 + $0x1] sm:$0xff]
        %v1272 = vld [vmem:[%s1206 + $0x9] sm:$0xff]
        %v1273 = vld [vmem:[%s1206 + $0x19] sm:$0xff]
        %v1274 = vld [vmem:[%s1206 + $0x21] sm:$0xff]
        %v1275 = vld [vmem:[%s1206 + $0x31] sm:$0xff]
        %v1276 = vld [vmem:[%s1206 + $0x39] sm:$0xff]
        %v1277 = vld [vmem:[%s1206 + $0x49] sm:$0xff]
        %v1278 = vld [vmem:[%s1206 + $0x51] sm:$0xff]
        %v1279 = vld [vmem:[%s1206 + $0x61] sm:$0xff]
        %v1280 = vld [vmem:[%s1206 + $0x69] sm:$0xff]
        %v1281 = vld [vmem:[%s1206 + $0x79] sm:$0xff]
        %v1282 = vld [vmem:[%s1206 + $0x81] sm:$0xff]
        %v1283 = vld [vmem:[%s1206 + $0x91] sm:$0xff]
        %v1284 = vld [vmem:[%s1206 + $0x99] sm:$0xff]
        %v1285 = vld [vmem:[%s1206 + $0xa9] sm:$0xff]
        %v1286 = vld [vmem:[%s1206 + $0xb1] sm:$0xff]
        %v1287 = vld [vmem:[%s1206 + $0xc1] sm:$0xff]
        %v1288 = vld [vmem:[%s1206 + $0xc9] sm:$0xff]
        %v1289 = vld [vmem:[%s1206 + $0xd9] sm:$0xff]
        %v1290 = vld [vmem:[%s1206 + $0xe1] sm:$0xff]
        %v1291 = vld [vmem:[%s1206 + $0xf1] sm:$0xff]
        %v1292 = vld [vmem:[%s1206 + $0xf9] sm:$0xff]
        %v1293 = vld [vmem:[%s1206 + $0x109] sm:$0xff]
        %v1294 = vld [vmem:[%s1206 + $0x111] sm:$0xff]
        %v1295 = vld [vmem:[%s1206 + $0x121] sm:$0xff]
        %v1296 = vld [vmem:[%s1206 + $0x129] sm:$0xff]
        %v1297 = vld [vmem:[%s1206 + $0x139] sm:$0xff]
        %v1298 = vld [vmem:[%s1206 + $0x141] sm:$0xff]
        %v1299 = vld [vmem:[%s1206 + $0x151] sm:$0xff]
        %v1300 = vld [vmem:[%s1206 + $0x159] sm:$0xff]
        %v1301 = vld [vmem:[%s1206 + $0x169] sm:$0xff]
        %v1302 = vld [vmem:[%s1206 + $0x171] sm:$0xff]
        %1303 = vst.msk [vmem:[#allocation5 + $0x38] sm:$0xff] %vm384, %v1271
        %1304 = vst.msk [vmem:[#allocation5 + $0x80] sm:$0xff] %vm384, %v1272
        %1305 = vst.msk [vmem:[#allocation5 + $0xc8] sm:$0xff] %vm384, %v1273
        %1306 = vst.msk [vmem:[#allocation5 + $0x110] sm:$0xff] %vm384, %v1274
        %1307 = vst.msk [vmem:[#allocation5 + $0x158] sm:$0xff] %vm384, %v1275
        %1308 = vst.msk [vmem:[#allocation5 + $0x1a0] sm:$0xff] %vm384, %v1276
        %1309 = vst.msk [vmem:[#allocation5 + $0x1e8] sm:$0xff] %vm384, %v1277
        %1310 = vst.msk [vmem:[#allocation5 + $0x230] sm:$0xff] %vm384, %v1278
        %1311 = vst.msk [vmem:[#allocation5 + $0x278] sm:$0xff] %vm384, %v1279
        %1312 = vst.msk [vmem:[#allocation5 + $0x2c0] sm:$0xff] %vm384, %v1280
        %1313 = vst.msk [vmem:[#allocation5 + $0x308] sm:$0xff] %vm384, %v1281
        %1314 = vst.msk [vmem:[#allocation5 + $0x350] sm:$0xff] %vm384, %v1282
        %1315 = vst.msk [vmem:[#allocation5 + $0x398] sm:$0xff] %vm384, %v1283
        %1316 = vst.msk [vmem:[#allocation5 + $0x3e0] sm:$0xff] %vm384, %v1284
        %1317 = vst.msk [vmem:[#allocation5 + $0x428] sm:$0xff] %vm384, %v1285
        %1318 = vst.msk [vmem:[#allocation5 + $0x470] sm:$0xff] %vm384, %v1286
        %1319 = vst.msk [vmem:[#allocation5 + $0x4b8] sm:$0xff] %vm384, %v1287
        %1320 = vst.msk [vmem:[#allocation5 + $0x500] sm:$0xff] %vm384, %v1288
        %1321 = vst.msk [vmem:[#allocation5 + $0x548] sm:$0xff] %vm384, %v1289
        %1322 = vst.msk [vmem:[#allocation5 + $0x590] sm:$0xff] %vm384, %v1290
        %1323 = vst.msk [vmem:[#allocation5 + $0x5d8] sm:$0xff] %vm384, %v1291
        %1324 = vst.msk [vmem:[#allocation5 + $0x620] sm:$0xff] %vm384, %v1292
        %1325 = vst.msk [vmem:[#allocation5 + $0x668] sm:$0xff] %vm384, %v1293
        %1326 = vst.msk [vmem:[#allocation5 + $0x6b0] sm:$0xff] %vm384, %v1294
        %1327 = vst.msk [vmem:[#allocation5 + $0x6f8] sm:$0xff] %vm384, %v1295
        %1328 = vst.msk [vmem:[#allocation5 + $0x740] sm:$0xff] %vm384, %v1296
        %1329 = vst.msk [vmem:[#allocation5 + $0x788] sm:$0xff] %vm384, %v1297
        %1330 = vst.msk [vmem:[#allocation5 + $0x7d0] sm:$0xff] %vm384, %v1298
        %1331 = vst.msk [vmem:[#allocation5 + $0x818] sm:$0xff] %vm384, %v1299
        %1332 = vst.msk [vmem:[#allocation5 + $0x860] sm:$0xff] %vm384, %v1300
        %1333 = vst.msk [vmem:[#allocation5 + $0x8a8] sm:$0xff] %vm384, %v1301
        %1334 = vst.msk [vmem:[#allocation5 + $0x8f0] sm:$0xff] %vm384, %v1302
        %v1335 = vld [vmem:[%s1206 + $0x2] sm:$0xff]
        %v1336 = vld [vmem:[%s1206 + $0xa] sm:$0xff]
        %v1337 = vld [vmem:[%s1206 + $0x1a] sm:$0xff]
        %v1338 = vld [vmem:[%s1206 + $0x22] sm:$0xff]
        %v1339 = vld [vmem:[%s1206 + $0x32] sm:$0xff]
        %v1340 = vld [vmem:[%s1206 + $0x3a] sm:$0xff]
        %v1341 = vld [vmem:[%s1206 + $0x4a] sm:$0xff]
        %v1342 = vld [vmem:[%s1206 + $0x52] sm:$0xff]
        %v1343 = vld [vmem:[%s1206 + $0x62] sm:$0xff]
        %v1344 = vld [vmem:[%s1206 + $0x6a] sm:$0xff]
        %v1345 = vld [vmem:[%s1206 + $0x7a] sm:$0xff]
        %v1346 = vld [vmem:[%s1206 + $0x82] sm:$0xff]
        %v1347 = vld [vmem:[%s1206 + $0x92] sm:$0xff]
        %v1348 = vld [vmem:[%s1206 + $0x9a] sm:$0xff]
        %v1349 = vld [vmem:[%s1206 + $0xaa] sm:$0xff]
        %v1350 = vld [vmem:[%s1206 + $0xb2] sm:$0xff]
        %v1351 = vld [vmem:[%s1206 + $0xc2] sm:$0xff]
        %v1352 = vld [vmem:[%s1206 + $0xca] sm:$0xff]
        %v1353 = vld [vmem:[%s1206 + $0xda] sm:$0xff]
        %v1354 = vld [vmem:[%s1206 + $0xe2] sm:$0xff]
        %v1355 = vld [vmem:[%s1206 + $0xf2] sm:$0xff]
        %v1356 = vld [vmem:[%s1206 + $0xfa] sm:$0xff]
        %v1357 = vld [vmem:[%s1206 + $0x10a] sm:$0xff]
        %v1358 = vld [vmem:[%s1206 + $0x112] sm:$0xff]
        %v1359 = vld [vmem:[%s1206 + $0x122] sm:$0xff]
        %v1360 = vld [vmem:[%s1206 + $0x12a] sm:$0xff]
        %v1361 = vld [vmem:[%s1206 + $0x13a] sm:$0xff]
        %v1362 = vld [vmem:[%s1206 + $0x142] sm:$0xff]
        %v1363 = vld [vmem:[%s1206 + $0x152] sm:$0xff]
        %v1364 = vld [vmem:[%s1206 + $0x15a] sm:$0xff]
        %v1365 = vld [vmem:[%s1206 + $0x16a] sm:$0xff]
        %v1366 = vld [vmem:[%s1206 + $0x172] sm:$0xff]
        %1367 = vst.msk [vmem:[#allocation5 + $0x40] sm:$0xff] %vm384, %v1335
        %1368 = vst.msk [vmem:[#allocation5 + $0x88] sm:$0xff] %vm384, %v1336
        %1369 = vst.msk [vmem:[#allocation5 + $0xd0] sm:$0xff] %vm384, %v1337
        %1370 = vst.msk [vmem:[#allocation5 + $0x118] sm:$0xff] %vm384, %v1338
        %1371 = vst.msk [vmem:[#allocation5 + $0x160] sm:$0xff] %vm384, %v1339
        %1372 = vst.msk [vmem:[#allocation5 + $0x1a8] sm:$0xff] %vm384, %v1340
        %1373 = vst.msk [vmem:[#allocation5 + $0x1f0] sm:$0xff] %vm384, %v1341
        %1374 = vst.msk [vmem:[#allocation5 + $0x238] sm:$0xff] %vm384, %v1342
        %1375 = vst.msk [vmem:[#allocation5 + $0x280] sm:$0xff] %vm384, %v1343
        %1376 = vst.msk [vmem:[#allocation5 + $0x2c8] sm:$0xff] %vm384, %v1344
        %1377 = vst.msk [vmem:[#allocation5 + $0x310] sm:$0xff] %vm384, %v1345
        %1378 = vst.msk [vmem:[#allocation5 + $0x358] sm:$0xff] %vm384, %v1346
        %1379 = vst.msk [vmem:[#allocation5 + $0x3a0] sm:$0xff] %vm384, %v1347
        %1380 = vst.msk [vmem:[#allocation5 + $0x3e8] sm:$0xff] %vm384, %v1348
        %1381 = vst.msk [vmem:[#allocation5 + $0x430] sm:$0xff] %vm384, %v1349
        %1382 = vst.msk [vmem:[#allocation5 + $0x478] sm:$0xff] %vm384, %v1350
        %1383 = vst.msk [vmem:[#allocation5 + $0x4c0] sm:$0xff] %vm384, %v1351
        %1384 = vst.msk [vmem:[#allocation5 + $0x508] sm:$0xff] %vm384, %v1352
        %1385 = vst.msk [vmem:[#allocation5 + $0x550] sm:$0xff] %vm384, %v1353
        %1386 = vst.msk [vmem:[#allocation5 + $0x598] sm:$0xff] %vm384, %v1354
        %1387 = vst.msk [vmem:[#allocation5 + $0x5e0] sm:$0xff] %vm384, %v1355
        %1388 = vst.msk [vmem:[#allocation5 + $0x628] sm:$0xff] %vm384, %v1356
        %1389 = vst.msk [vmem:[#allocation5 + $0x670] sm:$0xff] %vm384, %v1357
        %1390 = vst.msk [vmem:[#allocation5 + $0x6b8] sm:$0xff] %vm384, %v1358
        %1391 = vst.msk [vmem:[#allocation5 + $0x700] sm:$0xff] %vm384, %v1359
        %1392 = vst.msk [vmem:[#allocation5 + $0x748] sm:$0xff] %vm384, %v1360
        %1393 = vst.msk [vmem:[#allocation5 + $0x790] sm:$0xff] %vm384, %v1361
        %1394 = vst.msk [vmem:[#allocation5 + $0x7d8] sm:$0xff] %vm384, %v1362
        %1395 = vst.msk [vmem:[#allocation5 + $0x820] sm:$0xff] %vm384, %v1363
        %1396 = vst.msk [vmem:[#allocation5 + $0x868] sm:$0xff] %vm384, %v1364
        %1397 = vst.msk [vmem:[#allocation5 + $0x8b0] sm:$0xff] %vm384, %v1365
        %1398 = vst.msk [vmem:[#allocation5 + $0x8f8] sm:$0xff] %vm384, %v1366
        %v1399 = vld [vmem:[#allocation5] sm:$0xff]
        %v1400 = vld [vmem:[#allocation5 + $0x8] sm:$0xff]
        %v1401 = vld [vmem:[#allocation5 + $0x10] sm:$0xff]
        %v1402 = vld [vmem:[#allocation5 + $0x18] sm:$0xff]
        %v1403 = vld [vmem:[#allocation5 + $0x20] sm:$0xff]
        %v1404 = vld [vmem:[#allocation5 + $0x28] sm:$0xff]
        %v1405 = vld [vmem:[#allocation5 + $0x30] sm:$0xff]
        %v1406 = vld [vmem:[#allocation5 + $0x38] sm:$0xff]
        %v1407 = vld [vmem:[#allocation5 + $0x40] sm:$0xff]
        %v1408 = vld [vmem:[#allocation5 + $0x48] sm:$0xff]
        %v1409 = vld [vmem:[#allocation5 + $0x50] sm:$0xff]
        %v1410 = vld [vmem:[#allocation5 + $0x58] sm:$0xff]
        %v1411 = vld [vmem:[#allocation5 + $0x60] sm:$0xff]
        %v1412 = vld [vmem:[#allocation5 + $0x68] sm:$0xff]
        %v1413 = vld [vmem:[#allocation5 + $0x70] sm:$0xff]
        %v1414 = vld [vmem:[#allocation5 + $0x78] sm:$0xff]
        %v1415 = vld [vmem:[#allocation5 + $0x80] sm:$0xff]
        %v1416 = vld [vmem:[#allocation5 + $0x88] sm:$0xff]
        %v1417 = vld [vmem:[#allocation5 + $0x90] sm:$0xff]
        %v1418 = vld [vmem:[#allocation5 + $0x98] sm:$0xff]
        %v1419 = vld [vmem:[#allocation5 + $0xa0] sm:$0xff]
        %v1420 = vld [vmem:[#allocation5 + $0xa8] sm:$0xff]
        %v1421 = vld [vmem:[#allocation5 + $0xb0] sm:$0xff]
        %v1422 = vld [vmem:[#allocation5 + $0xb8] sm:$0xff]
        %v1423 = vld [vmem:[#allocation5 + $0xc0] sm:$0xff]
        %v1424 = vld [vmem:[#allocation5 + $0xc8] sm:$0xff]
        %v1425 = vld [vmem:[#allocation5 + $0xd0] sm:$0xff]
        %v1426 = vld [vmem:[#allocation5 + $0xd8] sm:$0xff]
        %v1427 = vld [vmem:[#allocation5 + $0xe0] sm:$0xff]
        %v1428 = vld [vmem:[#allocation5 + $0xe8] sm:$0xff]
        %v1429 = vld [vmem:[#allocation5 + $0xf0] sm:$0xff]
        %v1430 = vld [vmem:[#allocation5 + $0xf8] sm:$0xff]
        %v1431 = vld [vmem:[#allocation5 + $0x100] sm:$0xff]
        %v1432 = vld [vmem:[#allocation5 + $0x108] sm:$0xff]
        %v1433 = vld [vmem:[#allocation5 + $0x110] sm:$0xff]
        %v1434 = vld [vmem:[#allocation5 + $0x118] sm:$0xff]
        %v1435 = vld [vmem:[#allocation5 + $0x120] sm:$0xff]
        %v1436 = vld [vmem:[#allocation5 + $0x128] sm:$0xff]
        %v1437 = vld [vmem:[#allocation5 + $0x130] sm:$0xff]
        %v1438 = vld [vmem:[#allocation5 + $0x138] sm:$0xff]
        %v1439 = vld [vmem:[#allocation5 + $0x140] sm:$0xff]
        %v1440 = vld [vmem:[#allocation5 + $0x148] sm:$0xff]
        %v1441 = vld [vmem:[#allocation5 + $0x150] sm:$0xff]
        %v1442 = vld [vmem:[#allocation5 + $0x158] sm:$0xff]
        %v1443 = vld [vmem:[#allocation5 + $0x160] sm:$0xff]
        %v1444 = vld [vmem:[#allocation5 + $0x168] sm:$0xff]
        %v1445 = vld [vmem:[#allocation5 + $0x170] sm:$0xff]
        %v1446 = vld [vmem:[#allocation5 + $0x178] sm:$0xff]
        %v1447 = vld [vmem:[#allocation5 + $0x180] sm:$0xff]
        %v1448 = vld [vmem:[#allocation5 + $0x188] sm:$0xff]
        %v1449 = vld [vmem:[#allocation5 + $0x190] sm:$0xff]
        %v1450 = vld [vmem:[#allocation5 + $0x198] sm:$0xff]
        %v1451 = vld [vmem:[#allocation5 + $0x1a0] sm:$0xff]
        %v1452 = vld [vmem:[#allocation5 + $0x1a8] sm:$0xff]
        %v1453 = vld [vmem:[#allocation5 + $0x1b0] sm:$0xff]
        %v1454 = vld [vmem:[#allocation5 + $0x1b8] sm:$0xff]
        %v1455 = vld [vmem:[#allocation5 + $0x1c0] sm:$0xff]
        %v1456 = vld [vmem:[#allocation5 + $0x1c8] sm:$0xff]
        %v1457 = vld [vmem:[#allocation5 + $0x1d0] sm:$0xff]
        %v1458 = vld [vmem:[#allocation5 + $0x1d8] sm:$0xff]
        %v1459 = vld [vmem:[#allocation5 + $0x1e0] sm:$0xff]
        %v1460 = vld [vmem:[#allocation5 + $0x1e8] sm:$0xff]
        %v1461 = vld [vmem:[#allocation5 + $0x1f0] sm:$0xff]
        %v1462 = vld [vmem:[#allocation5 + $0x1f8] sm:$0xff]
        %v1463 = vld [vmem:[#allocation5 + $0x200] sm:$0xff]
        %v1464 = vld [vmem:[#allocation5 + $0x208] sm:$0xff]
        %v1465 = vld [vmem:[#allocation5 + $0x210] sm:$0xff]
        %v1466 = vld [vmem:[#allocation5 + $0x218] sm:$0xff]
        %v1467 = vld [vmem:[#allocation5 + $0x220] sm:$0xff]
        %v1468 = vld [vmem:[#allocation5 + $0x228] sm:$0xff]
        %v1469 = vld [vmem:[#allocation5 + $0x230] sm:$0xff]
        %v1470 = vld [vmem:[#allocation5 + $0x238] sm:$0xff]
        %v1471 = vld [vmem:[#allocation5 + $0x240] sm:$0xff]
        %v1472 = vld [vmem:[#allocation5 + $0x248] sm:$0xff]
        %v1473 = vld [vmem:[#allocation5 + $0x250] sm:$0xff]
        %v1474 = vld [vmem:[#allocation5 + $0x258] sm:$0xff]
        %v1475 = vld [vmem:[#allocation5 + $0x260] sm:$0xff]
        %v1476 = vld [vmem:[#allocation5 + $0x268] sm:$0xff]
        %v1477 = vld [vmem:[#allocation5 + $0x270] sm:$0xff]
        %v1478 = vld [vmem:[#allocation5 + $0x278] sm:$0xff]
        %v1479 = vld [vmem:[#allocation5 + $0x280] sm:$0xff]
        %v1480 = vld [vmem:[#allocation5 + $0x288] sm:$0xff]
        %v1481 = vld [vmem:[#allocation5 + $0x290] sm:$0xff]
        %v1482 = vld [vmem:[#allocation5 + $0x298] sm:$0xff]
        %v1483 = vld [vmem:[#allocation5 + $0x2a0] sm:$0xff]
        %v1484 = vld [vmem:[#allocation5 + $0x2a8] sm:$0xff]
        %v1485 = vld [vmem:[#allocation5 + $0x2b0] sm:$0xff]
        %v1486 = vld [vmem:[#allocation5 + $0x2b8] sm:$0xff]
        %v1487 = vld [vmem:[#allocation5 + $0x2c0] sm:$0xff]
        %v1488 = vld [vmem:[#allocation5 + $0x2c8] sm:$0xff]
        %v1489 = vld [vmem:[#allocation5 + $0x2d0] sm:$0xff]
        %v1490 = vld [vmem:[#allocation5 + $0x2d8] sm:$0xff]
        %v1491 = vld [vmem:[#allocation5 + $0x2e0] sm:$0xff]
        %v1492 = vld [vmem:[#allocation5 + $0x2e8] sm:$0xff]
        %v1493 = vld [vmem:[#allocation5 + $0x2f0] sm:$0xff]
        %v1494 = vld [vmem:[#allocation5 + $0x2f8] sm:$0xff]
        %v1495 = vld [vmem:[#allocation5 + $0x300] sm:$0xff]
        %v1496 = vld [vmem:[#allocation5 + $0x308] sm:$0xff]
        %v1497 = vld [vmem:[#allocation5 + $0x310] sm:$0xff]
        %v1498 = vld [vmem:[#allocation5 + $0x318] sm:$0xff]
        %v1499 = vld [vmem:[#allocation5 + $0x320] sm:$0xff]
        %v1500 = vld [vmem:[#allocation5 + $0x328] sm:$0xff]
        %v1501 = vld [vmem:[#allocation5 + $0x330] sm:$0xff]
        %v1502 = vld [vmem:[#allocation5 + $0x338] sm:$0xff]
        %v1503 = vld [vmem:[#allocation5 + $0x340] sm:$0xff]
        %v1504 = vld [vmem:[#allocation5 + $0x348] sm:$0xff]
        %v1505 = vld [vmem:[#allocation5 + $0x350] sm:$0xff]
        %v1506 = vld [vmem:[#allocation5 + $0x358] sm:$0xff]
        %v1507 = vld [vmem:[#allocation5 + $0x360] sm:$0xff]
        %v1508 = vld [vmem:[#allocation5 + $0x368] sm:$0xff]
        %v1509 = vld [vmem:[#allocation5 + $0x370] sm:$0xff]
        %v1510 = vld [vmem:[#allocation5 + $0x378] sm:$0xff]
        %v1511 = vld [vmem:[#allocation5 + $0x380] sm:$0xff]
        %v1512 = vld [vmem:[#allocation5 + $0x388] sm:$0xff]
        %v1513 = vld [vmem:[#allocation5 + $0x390] sm:$0xff]
        %v1514 = vld [vmem:[#allocation5 + $0x398] sm:$0xff]
        %v1515 = vld [vmem:[#allocation5 + $0x3a0] sm:$0xff]
        %v1516 = vld [vmem:[#allocation5 + $0x3a8] sm:$0xff]
        %v1517 = vld [vmem:[#allocation5 + $0x3b0] sm:$0xff]
        %v1518 = vld [vmem:[#allocation5 + $0x3b8] sm:$0xff]
        %v1519 = vld [vmem:[#allocation5 + $0x3c0] sm:$0xff]
        %v1520 = vld [vmem:[#allocation5 + $0x3c8] sm:$0xff]
        %v1521 = vld [vmem:[#allocation5 + $0x3d0] sm:$0xff]
        %v1522 = vld [vmem:[#allocation5 + $0x3d8] sm:$0xff]
        %v1523 = vld [vmem:[#allocation5 + $0x3e0] sm:$0xff]
        %v1524 = vld [vmem:[#allocation5 + $0x3e8] sm:$0xff]
        %v1525 = vld [vmem:[#allocation5 + $0x3f0] sm:$0xff]
        %v1526 = vld [vmem:[#allocation5 + $0x3f8] sm:$0xff]
        %v1527 = vld [vmem:[#allocation5 + $0x400] sm:$0xff]
        %v1528 = vld [vmem:[#allocation5 + $0x408] sm:$0xff]
        %v1529 = vld [vmem:[#allocation5 + $0x410] sm:$0xff]
        %v1530 = vld [vmem:[#allocation5 + $0x418] sm:$0xff]
        %v1531 = vld [vmem:[#allocation5 + $0x420] sm:$0xff]
        %v1532 = vld [vmem:[#allocation5 + $0x428] sm:$0xff]
        %v1533 = vld [vmem:[#allocation5 + $0x430] sm:$0xff]
        %v1534 = vld [vmem:[#allocation5 + $0x438] sm:$0xff]
        %v1535 = vld [vmem:[#allocation5 + $0x440] sm:$0xff]
        %v1536 = vld [vmem:[#allocation5 + $0x448] sm:$0xff]
        %v1537 = vld [vmem:[#allocation5 + $0x450] sm:$0xff]
        %v1538 = vld [vmem:[#allocation5 + $0x458] sm:$0xff]
        %v1539 = vld [vmem:[#allocation5 + $0x460] sm:$0xff]
        %v1540 = vld [vmem:[#allocation5 + $0x468] sm:$0xff]
        %v1541 = vld [vmem:[#allocation5 + $0x470] sm:$0xff]
        %v1542 = vld [vmem:[#allocation5 + $0x478] sm:$0xff]
        %v1543 = vld [vmem:[#allocation5 + $0x480] sm:$0xff]
        %v1544 = vld [vmem:[#allocation5 + $0x488] sm:$0xff]
        %v1545 = vld [vmem:[#allocation5 + $0x490] sm:$0xff]
        %v1546 = vld [vmem:[#allocation5 + $0x498] sm:$0xff]
        %v1547 = vld [vmem:[#allocation5 + $0x4a0] sm:$0xff]
        %v1548 = vld [vmem:[#allocation5 + $0x4a8] sm:$0xff]
        %v1549 = vld [vmem:[#allocation5 + $0x4b0] sm:$0xff]
        %v1550 = vld [vmem:[#allocation5 + $0x4b8] sm:$0xff]
        %v1551 = vld [vmem:[#allocation5 + $0x4c0] sm:$0xff]
        %v1552 = vld [vmem:[#allocation5 + $0x4c8] sm:$0xff]
        %v1553 = vld [vmem:[#allocation5 + $0x4d0] sm:$0xff]
        %v1554 = vld [vmem:[#allocation5 + $0x4d8] sm:$0xff]
        %v1555 = vld [vmem:[#allocation5 + $0x4e0] sm:$0xff]
        %v1556 = vld [vmem:[#allocation5 + $0x4e8] sm:$0xff]
        %v1557 = vld [vmem:[#allocation5 + $0x4f0] sm:$0xff]
        %v1558 = vld [vmem:[#allocation5 + $0x4f8] sm:$0xff]
        %v1559 = vld [vmem:[#allocation5 + $0x500] sm:$0xff]
        %v1560 = vld [vmem:[#allocation5 + $0x508] sm:$0xff]
        %v1561 = vld [vmem:[#allocation5 + $0x510] sm:$0xff]
        %v1562 = vld [vmem:[#allocation5 + $0x518] sm:$0xff]
        %v1563 = vld [vmem:[#allocation5 + $0x520] sm:$0xff]
        %v1564 = vld [vmem:[#allocation5 + $0x528] sm:$0xff]
        %v1565 = vld [vmem:[#allocation5 + $0x530] sm:$0xff]
        %v1566 = vld [vmem:[#allocation5 + $0x538] sm:$0xff]
        %v1567 = vld [vmem:[#allocation5 + $0x540] sm:$0xff]
        %v1568 = vld [vmem:[#allocation5 + $0x548] sm:$0xff]
        %v1569 = vld [vmem:[#allocation5 + $0x550] sm:$0xff]
        %v1570 = vld [vmem:[#allocation5 + $0x558] sm:$0xff]
        %v1571 = vld [vmem:[#allocation5 + $0x560] sm:$0xff]
        %v1572 = vld [vmem:[#allocation5 + $0x568] sm:$0xff]
        %v1573 = vld [vmem:[#allocation5 + $0x570] sm:$0xff]
        %v1574 = vld [vmem:[#allocation5 + $0x578] sm:$0xff]
        %v1575 = vld [vmem:[#allocation5 + $0x580] sm:$0xff]
        %v1576 = vld [vmem:[#allocation5 + $0x588] sm:$0xff]
        %v1577 = vld [vmem:[#allocation5 + $0x590] sm:$0xff]
        %v1578 = vld [vmem:[#allocation5 + $0x598] sm:$0xff]
        %v1579 = vld [vmem:[#allocation5 + $0x5a0] sm:$0xff]
        %v1580 = vld [vmem:[#allocation5 + $0x5a8] sm:$0xff]
        %v1581 = vld [vmem:[#allocation5 + $0x5b0] sm:$0xff]
        %v1582 = vld [vmem:[#allocation5 + $0x5b8] sm:$0xff]
        %v1583 = vld [vmem:[#allocation5 + $0x5c0] sm:$0xff]
        %v1584 = vld [vmem:[#allocation5 + $0x5c8] sm:$0xff]
        %v1585 = vld [vmem:[#allocation5 + $0x5d0] sm:$0xff]
        %v1586 = vld [vmem:[#allocation5 + $0x5d8] sm:$0xff]
        %v1587 = vld [vmem:[#allocation5 + $0x5e0] sm:$0xff]
        %v1588 = vld [vmem:[#allocation5 + $0x5e8] sm:$0xff]
        %v1589 = vld [vmem:[#allocation5 + $0x5f0] sm:$0xff]
        %v1590 = vld [vmem:[#allocation5 + $0x5f8] sm:$0xff]
        %v1591 = vld [vmem:[#allocation5 + $0x600] sm:$0xff]
        %v1592 = vld [vmem:[#allocation5 + $0x608] sm:$0xff]
        %v1593 = vld [vmem:[#allocation5 + $0x610] sm:$0xff]
        %v1594 = vld [vmem:[#allocation5 + $0x618] sm:$0xff]
        %v1595 = vld [vmem:[#allocation5 + $0x620] sm:$0xff]
        %v1596 = vld [vmem:[#allocation5 + $0x628] sm:$0xff]
        %v1597 = vld [vmem:[#allocation5 + $0x630] sm:$0xff]
        %v1598 = vld [vmem:[#allocation5 + $0x638] sm:$0xff]
        %v1599 = vld [vmem:[#allocation5 + $0x640] sm:$0xff]
        %v1600 = vld [vmem:[#allocation5 + $0x648] sm:$0xff]
        %v1601 = vld [vmem:[#allocation5 + $0x650] sm:$0xff]
        %v1602 = vld [vmem:[#allocation5 + $0x658] sm:$0xff]
        %v1603 = vld [vmem:[#allocation5 + $0x660] sm:$0xff]
        %v1604 = vld [vmem:[#allocation5 + $0x668] sm:$0xff]
        %v1605 = vld [vmem:[#allocation5 + $0x670] sm:$0xff]
        %v1606 = vld [vmem:[#allocation5 + $0x678] sm:$0xff]
        %v1607 = vld [vmem:[#allocation5 + $0x680] sm:$0xff]
        %v1608 = vld [vmem:[#allocation5 + $0x688] sm:$0xff]
        %v1609 = vld [vmem:[#allocation5 + $0x690] sm:$0xff]
        %v1610 = vld [vmem:[#allocation5 + $0x698] sm:$0xff]
        %v1611 = vld [vmem:[#allocation5 + $0x6a0] sm:$0xff]
        %v1612 = vld [vmem:[#allocation5 + $0x6a8] sm:$0xff]
        %v1613 = vld [vmem:[#allocation5 + $0x6b0] sm:$0xff]
        %v1614 = vld [vmem:[#allocation5 + $0x6b8] sm:$0xff]
        %v1615 = vld [vmem:[#allocation5 + $0x6c0] sm:$0xff]
        %v1616 = vld [vmem:[#allocation5 + $0x6c8] sm:$0xff]
        %v1617 = vld [vmem:[#allocation5 + $0x6d0] sm:$0xff]
        %v1618 = vld [vmem:[#allocation5 + $0x6d8] sm:$0xff]
        %v1619 = vld [vmem:[#allocation5 + $0x6e0] sm:$0xff]
        %v1620 = vld [vmem:[#allocation5 + $0x6e8] sm:$0xff]
        %v1621 = vld [vmem:[#allocation5 + $0x6f0] sm:$0xff]
        %v1622 = vld [vmem:[#allocation5 + $0x6f8] sm:$0xff]
        %v1623 = vld [vmem:[#allocation5 + $0x700] sm:$0xff]
        %v1624 = vld [vmem:[#allocation5 + $0x708] sm:$0xff]
        %v1625 = vld [vmem:[#allocation5 + $0x710] sm:$0xff]
        %v1626 = vld [vmem:[#allocation5 + $0x718] sm:$0xff]
        %v1627 = vld [vmem:[#allocation5 + $0x720] sm:$0xff]
        %v1628 = vld [vmem:[#allocation5 + $0x728] sm:$0xff]
        %v1629 = vld [vmem:[#allocation5 + $0x730] sm:$0xff]
        %v1630 = vld [vmem:[#allocation5 + $0x738] sm:$0xff]
        %v1631 = vld [vmem:[#allocation5 + $0x740] sm:$0xff]
        %v1632 = vld [vmem:[#allocation5 + $0x748] sm:$0xff]
        %v1633 = vld [vmem:[#allocation5 + $0x750] sm:$0xff]
        %v1634 = vld [vmem:[#allocation5 + $0x758] sm:$0xff]
        %v1635 = vld [vmem:[#allocation5 + $0x760] sm:$0xff]
        %v1636 = vld [vmem:[#allocation5 + $0x768] sm:$0xff]
        %v1637 = vld [vmem:[#allocation5 + $0x770] sm:$0xff]
        %v1638 = vld [vmem:[#allocation5 + $0x778] sm:$0xff]
        %v1639 = vld [vmem:[#allocation5 + $0x780] sm:$0xff]
        %v1640 = vld [vmem:[#allocation5 + $0x788] sm:$0xff]
        %v1641 = vld [vmem:[#allocation5 + $0x790] sm:$0xff]
        %v1642 = vld [vmem:[#allocation5 + $0x798] sm:$0xff]
        %v1643 = vld [vmem:[#allocation5 + $0x7a0] sm:$0xff]
        %v1644 = vld [vmem:[#allocation5 + $0x7a8] sm:$0xff]
        %v1645 = vld [vmem:[#allocation5 + $0x7b0] sm:$0xff]
        %v1646 = vld [vmem:[#allocation5 + $0x7b8] sm:$0xff]
        %v1647 = vld [vmem:[#allocation5 + $0x7c0] sm:$0xff]
        %v1648 = vld [vmem:[#allocation5 + $0x7c8] sm:$0xff]
        %v1649 = vld [vmem:[#allocation5 + $0x7d0] sm:$0xff]
        %v1650 = vld [vmem:[#allocation5 + $0x7d8] sm:$0xff]
        %v1651 = vld [vmem:[#allocation5 + $0x7e0] sm:$0xff]
        %v1652 = vld [vmem:[#allocation5 + $0x7e8] sm:$0xff]
        %v1653 = vld [vmem:[#allocation5 + $0x7f0] sm:$0xff]
        %v1654 = vld [vmem:[#allocation5 + $0x7f8] sm:$0xff]
        %v1655 = vld [vmem:[#allocation5 + $0x800] sm:$0xff]
        %v1656 = vld [vmem:[#allocation5 + $0x808] sm:$0xff]
        %v1657 = vld [vmem:[#allocation5 + $0x810] sm:$0xff]
        %v1658 = vld [vmem:[#allocation5 + $0x818] sm:$0xff]
        %v1659 = vld [vmem:[#allocation5 + $0x820] sm:$0xff]
        %v1660 = vld [vmem:[#allocation5 + $0x828] sm:$0xff]
        %v1661 = vld [vmem:[#allocation5 + $0x830] sm:$0xff]
        %v1662 = vld [vmem:[#allocation5 + $0x838] sm:$0xff]
        %v1663 = vld [vmem:[#allocation5 + $0x840] sm:$0xff]
        %v1664 = vld [vmem:[#allocation5 + $0x848] sm:$0xff]
        %v1665 = vld [vmem:[#allocation5 + $0x850] sm:$0xff]
        %v1666 = vld [vmem:[#allocation5 + $0x858] sm:$0xff]
        %v1667 = vld [vmem:[#allocation5 + $0x860] sm:$0xff]
        %v1668 = vld [vmem:[#allocation5 + $0x868] sm:$0xff]
        %v1669 = vld [vmem:[#allocation5 + $0x870] sm:$0xff]
        %v1670 = vld [vmem:[#allocation5 + $0x878] sm:$0xff]
        %v1671 = vld [vmem:[#allocation5 + $0x880] sm:$0xff]
        %v1672 = vld [vmem:[#allocation5 + $0x888] sm:$0xff]
        %v1673 = vld [vmem:[#allocation5 + $0x890] sm:$0xff]
        %v1674 = vld [vmem:[#allocation5 + $0x898] sm:$0xff]
        %v1675 = vld [vmem:[#allocation5 + $0x8a0] sm:$0xff]
        %v1676 = vld [vmem:[#allocation5 + $0x8a8] sm:$0xff]
        %v1677 = vld [vmem:[#allocation5 + $0x8b0] sm:$0xff]
        %v1678 = vld [vmem:[#allocation5 + $0x8b8] sm:$0xff]
        %v1679 = vld [vmem:[#allocation5 + $0x8c0] sm:$0xff]
        %v1680 = vld [vmem:[#allocation5 + $0x8c8] sm:$0xff]
        %v1681 = vld [vmem:[#allocation5 + $0x8d0] sm:$0xff]
        %v1682 = vld [vmem:[#allocation5 + $0x8d8] sm:$0xff]
        %v1683 = vld [vmem:[#allocation5 + $0x8e0] sm:$0xff]
        %v1684 = vld [vmem:[#allocation5 + $0x8e8] sm:$0xff]
        %v1685 = vld [vmem:[#allocation5 + $0x8f0] sm:$0xff]
        %v1686 = vld [vmem:[#allocation5 + $0x8f8] sm:$0xff]
        %v1687 = vpack.c.bf16 %v1408, %v1399
        %v1688 = vpack.c.bf16 %v1409, %v1400
        %v1689 = vpack.c.bf16 %v1410, %v1401
        %v1690 = vpack.c.bf16 %v1411, %v1402
        %v1691 = vpack.c.bf16 %v1412, %v1403
        %v1692 = vpack.c.bf16 %v1413, %v1404
        %v1693 = vpack.c.bf16 %v1414, %v1405
        %v1694 = vpack.c.bf16 %v1415, %v1406
        %v1695 = vpack.c.bf16 %v1416, %v1407
        %v1696 = vpack.c.bf16 %v1426, %v1417
        %v1697 = vpack.c.bf16 %v1427, %v1418
        %v1698 = vpack.c.bf16 %v1428, %v1419
        %v1699 = vpack.c.bf16 %v1429, %v1420
        %v1700 = vpack.c.bf16 %v1430, %v1421
        %v1701 = vpack.c.bf16 %v1431, %v1422
        %v1702 = vpack.c.bf16 %v1432, %v1423
        %v1703 = vpack.c.bf16 %v1433, %v1424
        %v1704 = vpack.c.bf16 %v1434, %v1425
        %v1705 = vpack.c.bf16 %v1444, %v1435
        %v1706 = vpack.c.bf16 %v1445, %v1436
        %v1707 = vpack.c.bf16 %v1446, %v1437
        %v1708 = vpack.c.bf16 %v1447, %v1438
        %v1709 = vpack.c.bf16 %v1448, %v1439
        %v1710 = vpack.c.bf16 %v1449, %v1440
        %v1711 = vpack.c.bf16 %v1450, %v1441
        %v1712 = vpack.c.bf16 %v1451, %v1442
        %v1713 = vpack.c.bf16 %v1452, %v1443
        %v1714 = vpack.c.bf16 %v1462, %v1453
        %v1715 = vpack.c.bf16 %v1463, %v1454
        %v1716 = vpack.c.bf16 %v1464, %v1455
        %v1717 = vpack.c.bf16 %v1465, %v1456
        %v1718 = vpack.c.bf16 %v1466, %v1457
        %v1719 = vpack.c.bf16 %v1467, %v1458
        %v1720 = vpack.c.bf16 %v1468, %v1459
        %v1721 = vpack.c.bf16 %v1469, %v1460
        %v1722 = vpack.c.bf16 %v1470, %v1461
        %v1723 = vpack.c.bf16 %v1480, %v1471
        %v1724 = vpack.c.bf16 %v1481, %v1472
        %v1725 = vpack.c.bf16 %v1482, %v1473
        %v1726 = vpack.c.bf16 %v1483, %v1474
        %v1727 = vpack.c.bf16 %v1484, %v1475
        %v1728 = vpack.c.bf16 %v1485, %v1476
        %v1729 = vpack.c.bf16 %v1486, %v1477
        %v1730 = vpack.c.bf16 %v1487, %v1478
        %v1731 = vpack.c.bf16 %v1488, %v1479
        %v1732 = vpack.c.bf16 %v1498, %v1489
        %v1733 = vpack.c.bf16 %v1499, %v1490
        %v1734 = vpack.c.bf16 %v1500, %v1491
        %v1735 = vpack.c.bf16 %v1501, %v1492
        %v1736 = vpack.c.bf16 %v1502, %v1493
        %v1737 = vpack.c.bf16 %v1503, %v1494
        %v1738 = vpack.c.bf16 %v1504, %v1495
        %v1739 = vpack.c.bf16 %v1505, %v1496
        %v1740 = vpack.c.bf16 %v1506, %v1497
        %v1741 = vpack.c.bf16 %v1516, %v1507
        %v1742 = vpack.c.bf16 %v1517, %v1508
        %v1743 = vpack.c.bf16 %v1518, %v1509
        %v1744 = vpack.c.bf16 %v1519, %v1510
        %v1745 = vpack.c.bf16 %v1520, %v1511
        %v1746 = vpack.c.bf16 %v1521, %v1512
        %v1747 = vpack.c.bf16 %v1522, %v1513
        %v1748 = vpack.c.bf16 %v1523, %v1514
        %v1749 = vpack.c.bf16 %v1524, %v1515
        %v1750 = vpack.c.bf16 %v1534, %v1525
        %v1751 = vpack.c.bf16 %v1535, %v1526
        %v1752 = vpack.c.bf16 %v1536, %v1527
        %v1753 = vpack.c.bf16 %v1537, %v1528
        %v1754 = vpack.c.bf16 %v1538, %v1529
        %v1755 = vpack.c.bf16 %v1539, %v1530
        %v1756 = vpack.c.bf16 %v1540, %v1531
        %v1757 = vpack.c.bf16 %v1541, %v1532
        %v1758 = vpack.c.bf16 %v1542, %v1533
        %v1759 = vpack.c.bf16 %v1552, %v1543
        %v1760 = vpack.c.bf16 %v1553, %v1544
        %v1761 = vpack.c.bf16 %v1554, %v1545
        %v1762 = vpack.c.bf16 %v1555, %v1546
        %v1763 = vpack.c.bf16 %v1556, %v1547
        %v1764 = vpack.c.bf16 %v1557, %v1548
        %v1765 = vpack.c.bf16 %v1558, %v1549
        %v1766 = vpack.c.bf16 %v1559, %v1550
        %v1767 = vpack.c.bf16 %v1560, %v1551
        %v1768 = vpack.c.bf16 %v1570, %v1561
        %v1769 = vpack.c.bf16 %v1571, %v1562
        %v1770 = vpack.c.bf16 %v1572, %v1563
        %v1771 = vpack.c.bf16 %v1573, %v1564
        %v1772 = vpack.c.bf16 %v1574, %v1565
        %v1773 = vpack.c.bf16 %v1575, %v1566
        %v1774 = vpack.c.bf16 %v1576, %v1567
        %v1775 = vpack.c.bf16 %v1577, %v1568
        %v1776 = vpack.c.bf16 %v1578, %v1569
        %v1777 = vpack.c.bf16 %v1588, %v1579
        %v1778 = vpack.c.bf16 %v1589, %v1580
        %v1779 = vpack.c.bf16 %v1590, %v1581
        %v1780 = vpack.c.bf16 %v1591, %v1582
        %v1781 = vpack.c.bf16 %v1592, %v1583
        %v1782 = vpack.c.bf16 %v1593, %v1584
        %v1783 = vpack.c.bf16 %v1594, %v1585
        %v1784 = vpack.c.bf16 %v1595, %v1586
        %v1785 = vpack.c.bf16 %v1596, %v1587
        %v1786 = vpack.c.bf16 %v1606, %v1597
        %v1787 = vpack.c.bf16 %v1607, %v1598
        %v1788 = vpack.c.bf16 %v1608, %v1599
        %v1789 = vpack.c.bf16 %v1609, %v1600
        %v1790 = vpack.c.bf16 %v1610, %v1601
        %v1791 = vpack.c.bf16 %v1611, %v1602
        %v1792 = vpack.c.bf16 %v1612, %v1603
        %v1793 = vpack.c.bf16 %v1613, %v1604
        %v1794 = vpack.c.bf16 %v1614, %v1605
        %v1795 = vpack.c.bf16 %v1624, %v1615
        %v1796 = vpack.c.bf16 %v1625, %v1616
        %v1797 = vpack.c.bf16 %v1626, %v1617
        %v1798 = vpack.c.bf16 %v1627, %v1618
        %v1799 = vpack.c.bf16 %v1628, %v1619
        %v1800 = vpack.c.bf16 %v1629, %v1620
        %v1801 = vpack.c.bf16 %v1630, %v1621
        %v1802 = vpack.c.bf16 %v1631, %v1622
        %v1803 = vpack.c.bf16 %v1632, %v1623
        %v1804 = vpack.c.bf16 %v1642, %v1633
        %v1805 = vpack.c.bf16 %v1643, %v1634
        %v1806 = vpack.c.bf16 %v1644, %v1635
        %v1807 = vpack.c.bf16 %v1645, %v1636
        %v1808 = vpack.c.bf16 %v1646, %v1637
        %v1809 = vpack.c.bf16 %v1647, %v1638
        %v1810 = vpack.c.bf16 %v1648, %v1639
        %v1811 = vpack.c.bf16 %v1649, %v1640
        %v1812 = vpack.c.bf16 %v1650, %v1641
        %v1813 = vpack.c.bf16 %v1660, %v1651
        %v1814 = vpack.c.bf16 %v1661, %v1652
        %v1815 = vpack.c.bf16 %v1662, %v1653
        %v1816 = vpack.c.bf16 %v1663, %v1654
        %v1817 = vpack.c.bf16 %v1664, %v1655
        %v1818 = vpack.c.bf16 %v1665, %v1656
        %v1819 = vpack.c.bf16 %v1666, %v1657
        %v1820 = vpack.c.bf16 %v1667, %v1658
        %v1821 = vpack.c.bf16 %v1668, %v1659
        %v1822 = vpack.c.bf16 %v1678, %v1669
        %v1823 = vpack.c.bf16 %v1679, %v1670
        %v1824 = vpack.c.bf16 %v1680, %v1671
        %v1825 = vpack.c.bf16 %v1681, %v1672
        %v1826 = vpack.c.bf16 %v1682, %v1673
        %v1827 = vpack.c.bf16 %v1683, %v1674
        %v1828 = vpack.c.bf16 %v1684, %v1675
        %v1829 = vpack.c.bf16 %v1685, %v1676
        %v1830 = vpack.c.bf16 %v1686, %v1677
        %v1831 = vld [vmem:[%s1] sm:$0xf]
        %v1832 = vld [vmem:[%s1 + $0x4] sm:$0xf]
        %v1833 = vld [vmem:[%s1 + $0x8] sm:$0xf]
        %v1834 = vld [vmem:[%s1 + $0xc] sm:$0xf]
        %v1835 = vld [vmem:[%s1 + $0x10] sm:$0xf]
        %v1836 = vld [vmem:[%s1 + $0x14] sm:$0xf]
        %v1837 = vld [vmem:[%s1 + $0x18] sm:$0xf]
        %v1838 = vld [vmem:[%s1 + $0x1c] sm:$0xf]
        %v1839 = vld [vmem:[%s1 + $0x20] sm:$0xf]
        %v1840 = vld [vmem:[%s1 + $0x24] sm:$0xf]
        %v1841 = vld [vmem:[%s1 + $0x28] sm:$0xf]
        %v1842 = vld [vmem:[%s1 + $0x2c] sm:$0xf]
        %v1843 = vld [vmem:[%s1 + $0x30] sm:$0xf]
        %v1844 = vld [vmem:[%s1 + $0x34] sm:$0xf]
        %v1845 = vld [vmem:[%s1 + $0x38] sm:$0xf]
        %v1846 = vld [vmem:[%s1 + $0x3c] sm:$0xf]
        %v1847 = vld [vmem:[%s1 + $0x40] sm:$0xf]
        %v1848 = vld [vmem:[%s1 + $0x44] sm:$0xf]
        %v1849 = vld [vmem:[%s1 + $0x48] sm:$0xf]
        %v1850 = vld [vmem:[%s1 + $0x4c] sm:$0xf]
        %v1851 = vld [vmem:[%s1 + $0x50] sm:$0xf]
        %v1852 = vld [vmem:[%s1 + $0x54] sm:$0xf]
        %v1853 = vld [vmem:[%s1 + $0x58] sm:$0xf]
        %v1854 = vld [vmem:[%s1 + $0x5c] sm:$0xf]
        %v1855 = vld [vmem:[%s1 + $0x60] sm:$0xf]
        %v1856 = vld [vmem:[%s1 + $0x64] sm:$0xf]
        %v1857 = vld [vmem:[%s1 + $0x68] sm:$0xf]
        %v1858 = vld [vmem:[%s1 + $0x6c] sm:$0xf]
        %v1859 = vld [vmem:[%s1 + $0x70] sm:$0xf]
        %v1860 = vld [vmem:[%s1 + $0x74] sm:$0xf]
        %v1861 = vld [vmem:[%s1 + $0x78] sm:$0xf]
        %v1862 = vld [vmem:[%s1 + $0x7c] sm:$0xf]
        %v1863 = vld [vmem:[%s1 + $0x80] sm:$0xf]
        %v1864 = vld [vmem:[%s1 + $0x84] sm:$0xf]
        %v1865 = vld [vmem:[%s1 + $0x88] sm:$0xf]
        %v1866 = vld [vmem:[%s1 + $0x8c] sm:$0xf]
        %v1867 = vld [vmem:[%s1 + $0x90] sm:$0xf]
        %v1868 = vld [vmem:[%s1 + $0x94] sm:$0xf]
        %v1869 = vld [vmem:[%s1 + $0x98] sm:$0xf]
        %v1870 = vld [vmem:[%s1 + $0x9c] sm:$0xf]
        %v1871 = vld [vmem:[%s1 + $0xa0] sm:$0xf]
        %v1872 = vld [vmem:[%s1 + $0xa4] sm:$0xf]
        %v1873 = vld [vmem:[%s1 + $0xa8] sm:$0xf]
        %v1874 = vld [vmem:[%s1 + $0xac] sm:$0xf]
        %v1875 = vld [vmem:[%s1 + $0xb0] sm:$0xf]
        %v1876 = vld [vmem:[%s1 + $0xb4] sm:$0xf]
        %v1877 = vld [vmem:[%s1 + $0xb8] sm:$0xf]
        %v1878 = vld [vmem:[%s1 + $0xbc] sm:$0xf]
        %v1879 = vld [vmem:[%s1 + $0xc0] sm:$0xf]
        %v1880 = vld [vmem:[%s1 + $0xc4] sm:$0xf]
        %v1881 = vld [vmem:[%s1 + $0xc8] sm:$0xf]
        %v1882 = vld [vmem:[%s1 + $0xcc] sm:$0xf]
        %v1883 = vld [vmem:[%s1 + $0xd0] sm:$0xf]
        %v1884 = vld [vmem:[%s1 + $0xd4] sm:$0xf]
        %v1885 = vld [vmem:[%s1 + $0xd8] sm:$0xf]
        %v1886 = vld [vmem:[%s1 + $0xdc] sm:$0xf]
        %v1887 = vld [vmem:[%s1 + $0xe0] sm:$0xf]
        %v1888 = vld [vmem:[%s1 + $0xe4] sm:$0xf]
        %v1889 = vld [vmem:[%s1 + $0xe8] sm:$0xf]
        %v1890 = vld [vmem:[%s1 + $0xec] sm:$0xf]
        %v1891 = vld [vmem:[%s1 + $0xf0] sm:$0xf]
        %v1892 = vld [vmem:[%s1 + $0xf4] sm:$0xf]
        %v1893 = vld [vmem:[%s1 + $0xf8] sm:$0xf]
        %v1894 = vld [vmem:[%s1 + $0xfc] sm:$0xf]
        %v1895 = vld [vmem:[%s1 + $0x100] sm:$0xf]
        %v1896 = vld [vmem:[%s1 + $0x104] sm:$0xf]
        %v1897 = vld [vmem:[%s1 + $0x108] sm:$0xf]
        %v1898 = vld [vmem:[%s1 + $0x10c] sm:$0xf]
        %v1899 = vld [vmem:[%s1 + $0x110] sm:$0xf]
        %v1900 = vld [vmem:[%s1 + $0x114] sm:$0xf]
        %v1901 = vld [vmem:[%s1 + $0x118] sm:$0xf]
        %v1902 = vld [vmem:[%s1 + $0x11c] sm:$0xf]
        %v1903 = vld [vmem:[%s1 + $0x120] sm:$0xf]
        %v1904 = vld [vmem:[%s1 + $0x124] sm:$0xf]
        %v1905 = vld [vmem:[%s1 + $0x128] sm:$0xf]
        %v1906 = vld [vmem:[%s1 + $0x12c] sm:$0xf]
        %v1907 = vld [vmem:[%s1 + $0x130] sm:$0xf]
        %v1908 = vld [vmem:[%s1 + $0x134] sm:$0xf]
        %v1909 = vld [vmem:[%s1 + $0x138] sm:$0xf]
        %v1910 = vld [vmem:[%s1 + $0x13c] sm:$0xf]
        %v1911 = vld [vmem:[%s1 + $0x140] sm:$0xf]
        %v1912 = vld [vmem:[%s1 + $0x144] sm:$0xf]
        %v1913 = vld [vmem:[%s1 + $0x148] sm:$0xf]
        %v1914 = vld [vmem:[%s1 + $0x14c] sm:$0xf]
        %v1915 = vld [vmem:[%s1 + $0x150] sm:$0xf]
        %v1916 = vld [vmem:[%s1 + $0x154] sm:$0xf]
        %v1917 = vld [vmem:[%s1 + $0x158] sm:$0xf]
        %v1918 = vld [vmem:[%s1 + $0x15c] sm:$0xf]
        %v1919 = vld [vmem:[%s1 + $0x160] sm:$0xf]
        %v1920 = vld [vmem:[%s1 + $0x164] sm:$0xf]
        %v1921 = vld [vmem:[%s1 + $0x168] sm:$0xf]
        %v1922 = vld [vmem:[%s1 + $0x16c] sm:$0xf]
        %v1923 = vld [vmem:[%s1 + $0x170] sm:$0xf]
        %v1924 = vld [vmem:[%s1 + $0x174] sm:$0xf]
        %v1925 = vld [vmem:[%s1 + $0x178] sm:$0xf]
        %v1926 = vld [vmem:[%s1 + $0x17c] sm:$0xf]
        %v1927 = vld [vmem:[%s1 + $0x180] sm:$0xf]
        %v1928 = vld [vmem:[%s1 + $0x184] sm:$0xf]
        %v1929 = vld [vmem:[%s1 + $0x188] sm:$0xf]
        %v1930 = vld [vmem:[%s1 + $0x18c] sm:$0xf]
        %v1931 = vld [vmem:[%s1 + $0x190] sm:$0xf]
        %v1932 = vld [vmem:[%s1 + $0x194] sm:$0xf]
        %v1933 = vld [vmem:[%s1 + $0x198] sm:$0xf]
        %v1934 = vld [vmem:[%s1 + $0x19c] sm:$0xf]
        %v1935 = vld [vmem:[%s1 + $0x1a0] sm:$0xf]
        %v1936 = vld [vmem:[%s1 + $0x1a4] sm:$0xf]
        %v1937 = vld [vmem:[%s1 + $0x1a8] sm:$0xf]
        %v1938 = vld [vmem:[%s1 + $0x1ac] sm:$0xf]
        %v1939 = vld [vmem:[%s1 + $0x1b0] sm:$0xf]
        %v1940 = vld [vmem:[%s1 + $0x1b4] sm:$0xf]
        %v1941 = vld [vmem:[%s1 + $0x1b8] sm:$0xf]
        %v1942 = vld [vmem:[%s1 + $0x1bc] sm:$0xf]
        %v1943 = vld [vmem:[%s1 + $0x1c0] sm:$0xf]
        %v1944 = vld [vmem:[%s1 + $0x1c4] sm:$0xf]
        %v1945 = vld [vmem:[%s1 + $0x1c8] sm:$0xf]
        %v1946 = vld [vmem:[%s1 + $0x1cc] sm:$0xf]
        %v1947 = vld [vmem:[%s1 + $0x1d0] sm:$0xf]
        %v1948 = vld [vmem:[%s1 + $0x1d4] sm:$0xf]
        %v1949 = vld [vmem:[%s1 + $0x1d8] sm:$0xf]
        %v1950 = vld [vmem:[%s1 + $0x1dc] sm:$0xf]
        %v1951 = vld [vmem:[%s1 + $0x1e0] sm:$0xf]
        %v1952 = vld [vmem:[%s1 + $0x1e4] sm:$0xf]
        %v1953 = vld [vmem:[%s1 + $0x1e8] sm:$0xf]
        %v1954 = vld [vmem:[%s1 + $0x1ec] sm:$0xf]
        %v1955 = vld [vmem:[%s1 + $0x1f0] sm:$0xf]
        %v1956 = vld [vmem:[%s1 + $0x1f4] sm:$0xf]
        %v1957 = vld [vmem:[%s1 + $0x1f8] sm:$0xf]
        %v1958 = vld [vmem:[%s1 + $0x1fc] sm:$0xf]
        %v1959 = vld [vmem:[%s1 + $0x200] sm:$0xf]
        %v1960 = vld [vmem:[%s1 + $0x204] sm:$0xf]
        %v1961 = vld [vmem:[%s1 + $0x208] sm:$0xf]
        %v1962 = vld [vmem:[%s1 + $0x20c] sm:$0xf]
        %v1963 = vld [vmem:[%s1 + $0x210] sm:$0xf]
        %v1964 = vld [vmem:[%s1 + $0x214] sm:$0xf]
        %v1965 = vld [vmem:[%s1 + $0x218] sm:$0xf]
        %v1966 = vld [vmem:[%s1 + $0x21c] sm:$0xf]
        %v1967 = vld [vmem:[%s1 + $0x220] sm:$0xf]
        %v1968 = vld [vmem:[%s1 + $0x224] sm:$0xf]
        %v1969 = vld [vmem:[%s1 + $0x228] sm:$0xf]
        %v1970 = vld [vmem:[%s1 + $0x22c] sm:$0xf]
        %v1971 = vld [vmem:[%s1 + $0x230] sm:$0xf]
        %v1972 = vld [vmem:[%s1 + $0x234] sm:$0xf]
        %v1973 = vld [vmem:[%s1 + $0x238] sm:$0xf]
        %v1974 = vld [vmem:[%s1 + $0x23c] sm:$0xf]
        %v1975 = vld [vmem:[%s2] sm:$0x1]
        %v1977 = vperm.slane %v1975, 0
        %v2123 = vunpack.c.l.b16 %v1831
        %v2124 = vunpack.c.l.b16 %v1832
        %v2125 = vunpack.c.l.b16 %v1833
        %v2126 = vunpack.c.l.b16 %v1834
        %v2127 = vunpack.c.l.b16 %v1835
        %v2128 = vunpack.c.l.b16 %v1836
        %v2129 = vunpack.c.l.b16 %v1837
        %v2130 = vunpack.c.l.b16 %v1838
        %v2131 = vunpack.c.l.b16 %v1839
        %v2132 = vunpack.c.l.b16 %v1840
        %v2133 = vunpack.c.l.b16 %v1841
        %v2134 = vunpack.c.l.b16 %v1842
        %v2135 = vunpack.c.l.b16 %v1843
        %v2136 = vunpack.c.l.b16 %v1844
        %v2137 = vunpack.c.l.b16 %v1845
        %v2138 = vunpack.c.l.b16 %v1846
        %v2139 = vunpack.c.l.b16 %v1847
        %v2140 = vunpack.c.l.b16 %v1848
        %v2141 = vunpack.c.l.b16 %v1849
        %v2142 = vunpack.c.l.b16 %v1850
        %v2143 = vunpack.c.l.b16 %v1851
        %v2144 = vunpack.c.l.b16 %v1852
        %v2145 = vunpack.c.l.b16 %v1853
        %v2146 = vunpack.c.l.b16 %v1854
        %v2147 = vunpack.c.l.b16 %v1855
        %v2148 = vunpack.c.l.b16 %v1856
        %v2149 = vunpack.c.l.b16 %v1857
        %v2150 = vunpack.c.l.b16 %v1858
        %v2151 = vunpack.c.l.b16 %v1859
        %v2152 = vunpack.c.l.b16 %v1860
        %v2153 = vunpack.c.l.b16 %v1861
        %v2154 = vunpack.c.l.b16 %v1862
        %v2155 = vunpack.c.l.b16 %v1863
        %v2156 = vunpack.c.l.b16 %v1864
        %v2157 = vunpack.c.l.b16 %v1865
        %v2158 = vunpack.c.l.b16 %v1866
        %v2159 = vunpack.c.l.b16 %v1867
        %v2160 = vunpack.c.l.b16 %v1868
        %v2161 = vunpack.c.l.b16 %v1869
        %v2162 = vunpack.c.l.b16 %v1870
        %v2163 = vunpack.c.l.b16 %v1871
        %v2164 = vunpack.c.l.b16 %v1872
        %v2165 = vunpack.c.l.b16 %v1873
        %v2166 = vunpack.c.l.b16 %v1874
        %v2167 = vunpack.c.l.b16 %v1875
        %v2168 = vunpack.c.l.b16 %v1876
        %v2169 = vunpack.c.l.b16 %v1877
        %v2170 = vunpack.c.l.b16 %v1878
        %v2171 = vunpack.c.l.b16 %v1879
        %v2172 = vunpack.c.l.b16 %v1880
        %v2173 = vunpack.c.l.b16 %v1881
        %v2174 = vunpack.c.l.b16 %v1882
        %v2175 = vunpack.c.l.b16 %v1883
        %v2176 = vunpack.c.l.b16 %v1884
        %v2177 = vunpack.c.l.b16 %v1885
        %v2178 = vunpack.c.l.b16 %v1886
        %v2179 = vunpack.c.l.b16 %v1887
        %v2180 = vunpack.c.l.b16 %v1888
        %v2181 = vunpack.c.l.b16 %v1889
        %v2182 = vunpack.c.l.b16 %v1890
        %v2183 = vunpack.c.l.b16 %v1891
        %v2184 = vunpack.c.l.b16 %v1892
        %v2185 = vunpack.c.l.b16 %v1893
        %v2186 = vunpack.c.l.b16 %v1894
        %v2187 = vunpack.c.l.b16 %v1895
        %v2188 = vunpack.c.l.b16 %v1896
        %v2189 = vunpack.c.l.b16 %v1897
        %v2190 = vunpack.c.l.b16 %v1898
        %v2191 = vunpack.c.l.b16 %v1899
        %v2192 = vunpack.c.l.b16 %v1900
        %v2193 = vunpack.c.l.b16 %v1901
        %v2194 = vunpack.c.l.b16 %v1902
        %v2195 = vunpack.c.l.b16 %v1903
        %v2196 = vunpack.c.l.b16 %v1904
        %v2197 = vunpack.c.l.b16 %v1905
        %v2198 = vunpack.c.l.b16 %v1906
        %v2199 = vunpack.c.l.b16 %v1907
        %v2200 = vunpack.c.l.b16 %v1908
        %v2201 = vunpack.c.l.b16 %v1909
        %v2202 = vunpack.c.l.b16 %v1910
        %v2203 = vunpack.c.l.b16 %v1911
        %v2204 = vunpack.c.l.b16 %v1912
        %v2205 = vunpack.c.l.b16 %v1913
        %v2206 = vunpack.c.l.b16 %v1914
        %v2207 = vunpack.c.l.b16 %v1915
        %v2208 = vunpack.c.l.b16 %v1916
        %v2209 = vunpack.c.l.b16 %v1917
        %v2210 = vunpack.c.l.b16 %v1918
        %v2211 = vunpack.c.l.b16 %v1919
        %v2212 = vunpack.c.l.b16 %v1920
        %v2213 = vunpack.c.l.b16 %v1921
        %v2214 = vunpack.c.l.b16 %v1922
        %v2215 = vunpack.c.l.b16 %v1923
        %v2216 = vunpack.c.l.b16 %v1924
        %v2217 = vunpack.c.l.b16 %v1925
        %v2218 = vunpack.c.l.b16 %v1926
        %v2219 = vunpack.c.l.b16 %v1927
        %v2220 = vunpack.c.l.b16 %v1928
        %v2221 = vunpack.c.l.b16 %v1929
        %v2222 = vunpack.c.l.b16 %v1930
        %v2223 = vunpack.c.l.b16 %v1931
        %v2224 = vunpack.c.l.b16 %v1932
        %v2225 = vunpack.c.l.b16 %v1933
        %v2226 = vunpack.c.l.b16 %v1934
        %v2227 = vunpack.c.l.b16 %v1935
        %v2228 = vunpack.c.l.b16 %v1936
        %v2229 = vunpack.c.l.b16 %v1937
        %v2230 = vunpack.c.l.b16 %v1938
        %v2231 = vunpack.c.l.b16 %v1939
        %v2232 = vunpack.c.l.b16 %v1940
        %v2233 = vunpack.c.l.b16 %v1941
        %v2234 = vunpack.c.l.b16 %v1942
        %v2235 = vunpack.c.l.b16 %v1943
        %v2236 = vunpack.c.l.b16 %v1944
        %v2237 = vunpack.c.l.b16 %v1945
        %v2238 = vunpack.c.l.b16 %v1946
        %v2239 = vunpack.c.l.b16 %v1947
        %v2240 = vunpack.c.l.b16 %v1948
        %v2241 = vunpack.c.l.b16 %v1949
        %v2242 = vunpack.c.l.b16 %v1950
        %v2243 = vunpack.c.l.b16 %v1951
        %v2244 = vunpack.c.l.b16 %v1952
        %v2245 = vunpack.c.l.b16 %v1953
        %v2246 = vunpack.c.l.b16 %v1954
        %v2247 = vunpack.c.l.b16 %v1955
        %v2248 = vunpack.c.l.b16 %v1956
        %v2249 = vunpack.c.l.b16 %v1957
        %v2250 = vunpack.c.l.b16 %v1958
        %v2251 = vunpack.c.l.b16 %v1959
        %v2252 = vunpack.c.l.b16 %v1960
        %v2253 = vunpack.c.l.b16 %v1961
        %v2254 = vunpack.c.l.b16 %v1962
        %v2255 = vunpack.c.l.b16 %v1963
        %v2256 = vunpack.c.l.b16 %v1964
        %v2257 = vunpack.c.l.b16 %v1965
        %v2258 = vunpack.c.l.b16 %v1966
        %v2259 = vunpack.c.l.b16 %v1967
        %v2260 = vunpack.c.l.b16 %v1968
        %v2261 = vunpack.c.l.b16 %v1969
        %v2262 = vunpack.c.l.b16 %v1970
        %v2263 = vunpack.c.l.b16 %v1971
        %v2264 = vunpack.c.l.b16 %v1972
        %v2265 = vunpack.c.l.b16 %v1973
        %v2266 = vunpack.c.l.b16 %v1974
        %v2267 = vpack.c.b16 %v2124, %v2123
        %v2268 = vpack.c.b16 %v2126, %v2125
        %v2269 = vpack.c.b16 %v2128, %v2127
        %v2270 = vpack.c.b16 %v2130, %v2129
        %v2271 = vpack.c.b16 %v2132, %v2131
        %v2272 = vpack.c.b16 %v2134, %v2133
        %v2273 = vpack.c.b16 %v2136, %v2135
        %v2274 = vpack.c.b16 %v2138, %v2137
        %v2275 = vpack.c.b16 %v2140, %v2139
        %v2276 = vpack.c.b16 %v2142, %v2141
        %v2277 = vpack.c.b16 %v2144, %v2143
        %v2278 = vpack.c.b16 %v2146, %v2145
        %v2279 = vpack.c.b16 %v2148, %v2147
        %v2280 = vpack.c.b16 %v2150, %v2149
        %v2281 = vpack.c.b16 %v2152, %v2151
        %v2282 = vpack.c.b16 %v2154, %v2153
        %v2283 = vpack.c.b16 %v2156, %v2155
        %v2284 = vpack.c.b16 %v2158, %v2157
        %v2285 = vpack.c.b16 %v2160, %v2159
        %v2286 = vpack.c.b16 %v2162, %v2161
        %v2287 = vpack.c.b16 %v2164, %v2163
        %v2288 = vpack.c.b16 %v2166, %v2165
        %v2289 = vpack.c.b16 %v2168, %v2167
        %v2290 = vpack.c.b16 %v2170, %v2169
        %v2291 = vpack.c.b16 %v2172, %v2171
        %v2292 = vpack.c.b16 %v2174, %v2173
        %v2293 = vpack.c.b16 %v2176, %v2175
        %v2294 = vpack.c.b16 %v2178, %v2177
        %v2295 = vpack.c.b16 %v2180, %v2179
        %v2296 = vpack.c.b16 %v2182, %v2181
        %v2297 = vpack.c.b16 %v2184, %v2183
        %v2298 = vpack.c.b16 %v2186, %v2185
        %v2299 = vpack.c.b16 %v2188, %v2187
        %v2300 = vpack.c.b16 %v2190, %v2189
        %v2301 = vpack.c.b16 %v2192, %v2191
        %v2302 = vpack.c.b16 %v2194, %v2193
        %v2303 = vpack.c.b16 %v2196, %v2195
        %v2304 = vpack.c.b16 %v2198, %v2197
        %v2305 = vpack.c.b16 %v2200, %v2199
        %v2306 = vpack.c.b16 %v2202, %v2201
        %v2307 = vpack.c.b16 %v2204, %v2203
        %v2308 = vpack.c.b16 %v2206, %v2205
        %v2309 = vpack.c.b16 %v2208, %v2207
        %v2310 = vpack.c.b16 %v2210, %v2209
        %v2311 = vpack.c.b16 %v2212, %v2211
        %v2312 = vpack.c.b16 %v2214, %v2213
        %v2313 = vpack.c.b16 %v2216, %v2215
        %v2314 = vpack.c.b16 %v2218, %v2217
        %v2315 = vpack.c.b16 %v2220, %v2219
        %v2316 = vpack.c.b16 %v2222, %v2221
        %v2317 = vpack.c.b16 %v2224, %v2223
        %v2318 = vpack.c.b16 %v2226, %v2225
        %v2319 = vpack.c.b16 %v2228, %v2227
        %v2320 = vpack.c.b16 %v2230, %v2229
        %v2321 = vpack.c.b16 %v2232, %v2231
        %v2322 = vpack.c.b16 %v2234, %v2233
        %v2323 = vpack.c.b16 %v2236, %v2235
        %v2324 = vpack.c.b16 %v2238, %v2237
        %v2325 = vpack.c.b16 %v2240, %v2239
        %v2326 = vpack.c.b16 %v2242, %v2241
        %v2327 = vpack.c.b16 %v2244, %v2243
        %v2328 = vpack.c.b16 %v2246, %v2245
        %v2329 = vpack.c.b16 %v2248, %v2247
        %v2330 = vpack.c.b16 %v2250, %v2249
        %v2331 = vpack.c.b16 %v2252, %v2251
        %v2332 = vpack.c.b16 %v2254, %v2253
        %v2333 = vpack.c.b16 %v2256, %v2255
        %v2334 = vpack.c.b16 %v2258, %v2257
        %v2335 = vpack.c.b16 %v2260, %v2259
        %v2336 = vpack.c.b16 %v2262, %v2261
        %v2337 = vpack.c.b16 %v2264, %v2263
        %v2338 = vpack.c.b16 %v2266, %v2265
        %2411 = vmatpush.bf16.msra.mxu0 %v2274
        %2412 = vmatpush.bf16.msra.mxu0 %v2273
        %2413 = vmatpush.bf16.msra.mxu0 %v2272
        %2414 = vmatpush.bf16.msra.mxu0 %v2271
        %2415 = vmatpush.bf16.msra.mxu0 %v2270
        %2416 = vmatpush.bf16.msra.mxu0 %v2269
        %2417 = vmatpush.bf16.msra.mxu0 %v2268
        %2418 = vmatpush.bf16.msra.mxu0 %v2267
        %2419 = vmatmul.bf16.gmra.mxu0 %v1687
        %v2420 = vpop.f32.mrf.mxu0
        %v2421 = vadd.f32 %v1977, %v2420
        %v2422 = vpop.f32.mrf.mxu0
        %v2423 = vadd.f32 %v1977, %v2422
        %2424 = vmatmul.bf16.gmra.mxu0 %v1696
        %v2425 = vpop.f32.mrf.mxu0
        %v2426 = vadd.f32 %v1977, %v2425
        %v2427 = vpop.f32.mrf.mxu0
        %v2428 = vadd.f32 %v1977, %v2427
        %2429 = vmatmul.bf16.gmra.mxu0 %v1705
        %v2430 = vpop.f32.mrf.mxu0
        %v2431 = vadd.f32 %v1977, %v2430
        %v2432 = vpop.f32.mrf.mxu0
        %v2433 = vadd.f32 %v1977, %v2432
        %2434 = vmatmul.bf16.gmra.mxu0 %v1714
        %v2435 = vpop.f32.mrf.mxu0
        %v2436 = vadd.f32 %v1977, %v2435
        %v2437 = vpop.f32.mrf.mxu0
        %v2438 = vadd.f32 %v1977, %v2437
        %2439 = vmatmul.bf16.gmra.mxu0 %v1723
        %v2440 = vpop.f32.mrf.mxu0
        %v2441 = vadd.f32 %v1977, %v2440
        %v2442 = vpop.f32.mrf.mxu0
        %v2443 = vadd.f32 %v1977, %v2442
        %2444 = vmatmul.bf16.gmra.mxu0 %v1732
        %v2445 = vpop.f32.mrf.mxu0
        %v2446 = vadd.f32 %v1977, %v2445
        %v2447 = vpop.f32.mrf.mxu0
        %v2448 = vadd.f32 %v1977, %v2447
        %2449 = vmatmul.bf16.gmra.mxu0 %v1741
        %v2450 = vpop.f32.mrf.mxu0
        %v2451 = vadd.f32 %v1977, %v2450
        %v2452 = vpop.f32.mrf.mxu0
        %v2453 = vadd.f32 %v1977, %v2452
        %2454 = vmatmul.bf16.gmra.mxu0 %v1750
        %v2455 = vpop.f32.mrf.mxu0
        %v2456 = vadd.f32 %v1977, %v2455
        %v2457 = vpop.f32.mrf.mxu0
        %v2458 = vadd.f32 %v1977, %v2457
        %2459 = vmatmul.bf16.gmra.mxu0 %v1759
        %v2460 = vpop.f32.mrf.mxu0
        %v2461 = vadd.f32 %v1977, %v2460
        %v2462 = vpop.f32.mrf.mxu0
        %v2463 = vadd.f32 %v1977, %v2462
        %2464 = vmatmul.bf16.gmra.mxu0 %v1768
        %v2465 = vpop.f32.mrf.mxu0
        %v2466 = vadd.f32 %v1977, %v2465
        %v2467 = vpop.f32.mrf.mxu0
        %v2468 = vadd.f32 %v1977, %v2467
        %2469 = vmatmul.bf16.gmra.mxu0 %v1777
        %v2470 = vpop.f32.mrf.mxu0
        %v2471 = vadd.f32 %v1977, %v2470
        %v2472 = vpop.f32.mrf.mxu0
        %v2473 = vadd.f32 %v1977, %v2472
        %2474 = vmatmul.bf16.gmra.mxu0 %v1786
        %v2475 = vpop.f32.mrf.mxu0
        %v2476 = vadd.f32 %v1977, %v2475
        %v2477 = vpop.f32.mrf.mxu0
        %v2478 = vadd.f32 %v1977, %v2477
        %2479 = vmatmul.bf16.gmra.mxu0 %v1795
        %v2480 = vpop.f32.mrf.mxu0
        %v2481 = vadd.f32 %v1977, %v2480
        %v2482 = vpop.f32.mrf.mxu0
        %v2483 = vadd.f32 %v1977, %v2482
        %2484 = vmatmul.bf16.gmra.mxu0 %v1804
        %v2485 = vpop.f32.mrf.mxu0
        %v2486 = vadd.f32 %v1977, %v2485
        %v2487 = vpop.f32.mrf.mxu0
        %v2488 = vadd.f32 %v1977, %v2487
        %2489 = vmatmul.bf16.gmra.mxu0 %v1813
        %v2490 = vpop.f32.mrf.mxu0
        %v2491 = vadd.f32 %v1977, %v2490
        %v2492 = vpop.f32.mrf.mxu0
        %v2493 = vadd.f32 %v1977, %v2492
        %2494 = vmatmul.bf16.gmra.mxu0 %v1822
        %v2495 = vpop.f32.mrf.mxu0
        %v2496 = vadd.f32 %v1977, %v2495
        %v2497 = vpop.f32.mrf.mxu0
        %v2498 = vadd.f32 %v1977, %v2497
        %2499 = vdwg.mxu0
        %2500 = vmatpush.bf16.msra.mxu0 %v2282
        %2501 = vmatpush.bf16.msra.mxu0 %v2281
        %2502 = vmatpush.bf16.msra.mxu0 %v2280
        %2503 = vmatpush.bf16.msra.mxu0 %v2279
        %2504 = vmatpush.bf16.msra.mxu0 %v2278
        %2505 = vmatpush.bf16.msra.mxu0 %v2277
        %2506 = vmatpush.bf16.msra.mxu0 %v2276
        %2507 = vmatpush.bf16.msra.mxu0 %v2275
        %2508 = vmatmul.bf16.gmra.mxu0 %v1688
        %v2509 = vpop.f32.mrf.mxu0
        %v2510 = vadd.f32 %v2421, %v2509
        %v2511 = vpop.f32.mrf.mxu0
        %v2512 = vadd.f32 %v2423, %v2511
        %2513 = vmatmul.bf16.gmra.mxu0 %v1697
        %v2514 = vpop.f32.mrf.mxu0
        %v2515 = vadd.f32 %v2426, %v2514
        %v2516 = vpop.f32.mrf.mxu0
        %v2517 = vadd.f32 %v2428, %v2516
        %2518 = vmatmul.bf16.gmra.mxu0 %v1706
        %v2519 = vpop.f32.mrf.mxu0
        %v2520 = vadd.f32 %v2431, %v2519
        %v2521 = vpop.f32.mrf.mxu0
        %v2522 = vadd.f32 %v2433, %v2521
        %2523 = vmatmul.bf16.gmra.mxu0 %v1715
        %v2524 = vpop.f32.mrf.mxu0
        %v2525 = vadd.f32 %v2436, %v2524
        %v2526 = vpop.f32.mrf.mxu0
        %v2527 = vadd.f32 %v2438, %v2526
        %2528 = vmatmul.bf16.gmra.mxu0 %v1724
        %v2529 = vpop.f32.mrf.mxu0
        %v2530 = vadd.f32 %v2441, %v2529
        %v2531 = vpop.f32.mrf.mxu0
        %v2532 = vadd.f32 %v2443, %v2531
        %2533 = vmatmul.bf16.gmra.mxu0 %v1733
        %v2534 = vpop.f32.mrf.mxu0
        %v2535 = vadd.f32 %v2446, %v2534
        %v2536 = vpop.f32.mrf.mxu0
        %v2537 = vadd.f32 %v2448, %v2536
        %2538 = vmatmul.bf16.gmra.mxu0 %v1742
        %v2539 = vpop.f32.mrf.mxu0
        %v2540 = vadd.f32 %v2451, %v2539
        %v2541 = vpop.f32.mrf.mxu0
        %v2542 = vadd.f32 %v2453, %v2541
        %2543 = vmatmul.bf16.gmra.mxu0 %v1751
        %v2544 = vpop.f32.mrf.mxu0
        %v2545 = vadd.f32 %v2456, %v2544
        %v2546 = vpop.f32.mrf.mxu0
        %v2547 = vadd.f32 %v2458, %v2546
        %2548 = vmatmul.bf16.gmra.mxu0 %v1760
        %v2549 = vpop.f32.mrf.mxu0
        %v2550 = vadd.f32 %v2461, %v2549
        %v2551 = vpop.f32.mrf.mxu0
        %v2552 = vadd.f32 %v2463, %v2551
        %2553 = vmatmul.bf16.gmra.mxu0 %v1769
        %v2554 = vpop.f32.mrf.mxu0
        %v2555 = vadd.f32 %v2466, %v2554
        %v2556 = vpop.f32.mrf.mxu0
        %v2557 = vadd.f32 %v2468, %v2556
        %2558 = vmatmul.bf16.gmra.mxu0 %v1778
        %v2559 = vpop.f32.mrf.mxu0
        %v2560 = vadd.f32 %v2471, %v2559
        %v2561 = vpop.f32.mrf.mxu0
        %v2562 = vadd.f32 %v2473, %v2561
        %2563 = vmatmul.bf16.gmra.mxu0 %v1787
        %v2564 = vpop.f32.mrf.mxu0
        %v2565 = vadd.f32 %v2476, %v2564
        %v2566 = vpop.f32.mrf.mxu0
        %v2567 = vadd.f32 %v2478, %v2566
        %2568 = vmatmul.bf16.gmra.mxu0 %v1796
        %v2569 = vpop.f32.mrf.mxu0
        %v2570 = vadd.f32 %v2481, %v2569
        %v2571 = vpop.f32.mrf.mxu0
        %v2572 = vadd.f32 %v2483, %v2571
        %2573 = vmatmul.bf16.gmra.mxu0 %v1805
        %v2574 = vpop.f32.mrf.mxu0
        %v2575 = vadd.f32 %v2486, %v2574
        %v2576 = vpop.f32.mrf.mxu0
        %v2577 = vadd.f32 %v2488, %v2576
        %2578 = vmatmul.bf16.gmra.mxu0 %v1814
        %v2579 = vpop.f32.mrf.mxu0
        %v2580 = vadd.f32 %v2491, %v2579
        %v2581 = vpop.f32.mrf.mxu0
        %v2582 = vadd.f32 %v2493, %v2581
        %2583 = vmatmul.bf16.gmra.mxu0 %v1823
        %v2584 = vpop.f32.mrf.mxu0
        %v2585 = vadd.f32 %v2496, %v2584
        %v2586 = vpop.f32.mrf.mxu0
        %v2587 = vadd.f32 %v2498, %v2586
        %2588 = vdwg.mxu0
        %2589 = vmatpush.bf16.msra.mxu0 %v2290
        %2590 = vmatpush.bf16.msra.mxu0 %v2289
        %2591 = vmatpush.bf16.msra.mxu0 %v2288
        %2592 = vmatpush.bf16.msra.mxu0 %v2287
        %2593 = vmatpush.bf16.msra.mxu0 %v2286
        %2594 = vmatpush.bf16.msra.mxu0 %v2285
        %2595 = vmatpush.bf16.msra.mxu0 %v2284
        %2596 = vmatpush.bf16.msra.mxu0 %v2283
        %2597 = vmatmul.bf16.gmra.mxu0 %v1689
        %v2598 = vpop.f32.mrf.mxu0
        %v2599 = vadd.f32 %v2510, %v2598
        %v2600 = vpop.f32.mrf.mxu0
        %v2601 = vadd.f32 %v2512, %v2600
        %2602 = vmatmul.bf16.gmra.mxu0 %v1698
        %v2603 = vpop.f32.mrf.mxu0
        %v2604 = vadd.f32 %v2515, %v2603
        %v2605 = vpop.f32.mrf.mxu0
        %v2606 = vadd.f32 %v2517, %v2605
        %2607 = vmatmul.bf16.gmra.mxu0 %v1707
        %v2608 = vpop.f32.mrf.mxu0
        %v2609 = vadd.f32 %v2520, %v2608
        %v2610 = vpop.f32.mrf.mxu0
        %v2611 = vadd.f32 %v2522, %v2610
        %2612 = vmatmul.bf16.gmra.mxu0 %v1716
        %v2613 = vpop.f32.mrf.mxu0
        %v2614 = vadd.f32 %v2525, %v2613
        %v2615 = vpop.f32.mrf.mxu0
        %v2616 = vadd.f32 %v2527, %v2615
        %2617 = vmatmul.bf16.gmra.mxu0 %v1725
        %v2618 = vpop.f32.mrf.mxu0
        %v2619 = vadd.f32 %v2530, %v2618
        %v2620 = vpop.f32.mrf.mxu0
        %v2621 = vadd.f32 %v2532, %v2620
        %2622 = vmatmul.bf16.gmra.mxu0 %v1734
        %v2623 = vpop.f32.mrf.mxu0
        %v2624 = vadd.f32 %v2535, %v2623
        %v2625 = vpop.f32.mrf.mxu0
        %v2626 = vadd.f32 %v2537, %v2625
        %2627 = vmatmul.bf16.gmra.mxu0 %v1743
        %v2628 = vpop.f32.mrf.mxu0
        %v2629 = vadd.f32 %v2540, %v2628
        %v2630 = vpop.f32.mrf.mxu0
        %v2631 = vadd.f32 %v2542, %v2630
        %2632 = vmatmul.bf16.gmra.mxu0 %v1752
        %v2633 = vpop.f32.mrf.mxu0
        %v2634 = vadd.f32 %v2545, %v2633
        %v2635 = vpop.f32.mrf.mxu0
        %v2636 = vadd.f32 %v2547, %v2635
        %2637 = vmatmul.bf16.gmra.mxu0 %v1761
        %v2638 = vpop.f32.mrf.mxu0
        %v2639 = vadd.f32 %v2550, %v2638
        %v2640 = vpop.f32.mrf.mxu0
        %v2641 = vadd.f32 %v2552, %v2640
        %2642 = vmatmul.bf16.gmra.mxu0 %v1770
        %v2643 = vpop.f32.mrf.mxu0
        %v2644 = vadd.f32 %v2555, %v2643
        %v2645 = vpop.f32.mrf.mxu0
        %v2646 = vadd.f32 %v2557, %v2645
        %2647 = vmatmul.bf16.gmra.mxu0 %v1779
        %v2648 = vpop.f32.mrf.mxu0
        %v2649 = vadd.f32 %v2560, %v2648
        %v2650 = vpop.f32.mrf.mxu0
        %v2651 = vadd.f32 %v2562, %v2650
        %2652 = vmatmul.bf16.gmra.mxu0 %v1788
        %v2653 = vpop.f32.mrf.mxu0
        %v2654 = vadd.f32 %v2565, %v2653
        %v2655 = vpop.f32.mrf.mxu0
        %v2656 = vadd.f32 %v2567, %v2655
        %2657 = vmatmul.bf16.gmra.mxu0 %v1797
        %v2658 = vpop.f32.mrf.mxu0
        %v2659 = vadd.f32 %v2570, %v2658
        %v2660 = vpop.f32.mrf.mxu0
        %v2661 = vadd.f32 %v2572, %v2660
        %2662 = vmatmul.bf16.gmra.mxu0 %v1806
        %v2663 = vpop.f32.mrf.mxu0
        %v2664 = vadd.f32 %v2575, %v2663
        %v2665 = vpop.f32.mrf.mxu0
        %v2666 = vadd.f32 %v2577, %v2665
        %2667 = vmatmul.bf16.gmra.mxu0 %v1815
        %v2668 = vpop.f32.mrf.mxu0
        %v2669 = vadd.f32 %v2580, %v2668
        %v2670 = vpop.f32.mrf.mxu0
        %v2671 = vadd.f32 %v2582, %v2670
        %2672 = vmatmul.bf16.gmra.mxu0 %v1824
        %v2673 = vpop.f32.mrf.mxu0
        %v2674 = vadd.f32 %v2585, %v2673
        %v2675 = vpop.f32.mrf.mxu0
        %v2676 = vadd.f32 %v2587, %v2675
        %2677 = vdwg.mxu0
        %2678 = vmatpush.bf16.msra.mxu0 %v2298
        %2679 = vmatpush.bf16.msra.mxu0 %v2297
        %2680 = vmatpush.bf16.msra.mxu0 %v2296
        %2681 = vmatpush.bf16.msra.mxu0 %v2295
        %2682 = vmatpush.bf16.msra.mxu0 %v2294
        %2683 = vmatpush.bf16.msra.mxu0 %v2293
        %2684 = vmatpush.bf16.msra.mxu0 %v2292
        %2685 = vmatpush.bf16.msra.mxu0 %v2291
        %2686 = vmatmul.bf16.gmra.mxu0 %v1690
        %v2687 = vpop.f32.mrf.mxu0
        %v2688 = vadd.f32 %v2599, %v2687
        %v2689 = vpop.f32.mrf.mxu0
        %v2690 = vadd.f32 %v2601, %v2689
        %2691 = vmatmul.bf16.gmra.mxu0 %v1699
        %v2692 = vpop.f32.mrf.mxu0
        %v2693 = vadd.f32 %v2604, %v2692
        %v2694 = vpop.f32.mrf.mxu0
        %v2695 = vadd.f32 %v2606, %v2694
        %2696 = vmatmul.bf16.gmra.mxu0 %v1708
        %v2697 = vpop.f32.mrf.mxu0
        %v2698 = vadd.f32 %v2609, %v2697
        %v2699 = vpop.f32.mrf.mxu0
        %v2700 = vadd.f32 %v2611, %v2699
        %2701 = vmatmul.bf16.gmra.mxu0 %v1717
        %v2702 = vpop.f32.mrf.mxu0
        %v2703 = vadd.f32 %v2614, %v2702
        %v2704 = vpop.f32.mrf.mxu0
        %v2705 = vadd.f32 %v2616, %v2704
        %2706 = vmatmul.bf16.gmra.mxu0 %v1726
        %v2707 = vpop.f32.mrf.mxu0
        %v2708 = vadd.f32 %v2619, %v2707
        %v2709 = vpop.f32.mrf.mxu0
        %v2710 = vadd.f32 %v2621, %v2709
        %2711 = vmatmul.bf16.gmra.mxu0 %v1735
        %v2712 = vpop.f32.mrf.mxu0
        %v2713 = vadd.f32 %v2624, %v2712
        %v2714 = vpop.f32.mrf.mxu0
        %v2715 = vadd.f32 %v2626, %v2714
        %2716 = vmatmul.bf16.gmra.mxu0 %v1744
        %v2717 = vpop.f32.mrf.mxu0
        %v2718 = vadd.f32 %v2629, %v2717
        %v2719 = vpop.f32.mrf.mxu0
        %v2720 = vadd.f32 %v2631, %v2719
        %2721 = vmatmul.bf16.gmra.mxu0 %v1753
        %v2722 = vpop.f32.mrf.mxu0
        %v2723 = vadd.f32 %v2634, %v2722
        %v2724 = vpop.f32.mrf.mxu0
        %v2725 = vadd.f32 %v2636, %v2724
        %2726 = vmatmul.bf16.gmra.mxu0 %v1762
        %v2727 = vpop.f32.mrf.mxu0
        %v2728 = vadd.f32 %v2639, %v2727
        %v2729 = vpop.f32.mrf.mxu0
        %v2730 = vadd.f32 %v2641, %v2729
        %2731 = vmatmul.bf16.gmra.mxu0 %v1771
        %v2732 = vpop.f32.mrf.mxu0
        %v2733 = vadd.f32 %v2644, %v2732
        %v2734 = vpop.f32.mrf.mxu0
        %v2735 = vadd.f32 %v2646, %v2734
        %2736 = vmatmul.bf16.gmra.mxu0 %v1780
        %v2737 = vpop.f32.mrf.mxu0
        %v2738 = vadd.f32 %v2649, %v2737
        %v2739 = vpop.f32.mrf.mxu0
        %v2740 = vadd.f32 %v2651, %v2739
        %2741 = vmatmul.bf16.gmra.mxu0 %v1789
        %v2742 = vpop.f32.mrf.mxu0
        %v2743 = vadd.f32 %v2654, %v2742
        %v2744 = vpop.f32.mrf.mxu0
        %v2745 = vadd.f32 %v2656, %v2744
        %2746 = vmatmul.bf16.gmra.mxu0 %v1798
        %v2747 = vpop.f32.mrf.mxu0
        %v2748 = vadd.f32 %v2659, %v2747
        %v2749 = vpop.f32.mrf.mxu0
        %v2750 = vadd.f32 %v2661, %v2749
        %2751 = vmatmul.bf16.gmra.mxu0 %v1807
        %v2752 = vpop.f32.mrf.mxu0
        %v2753 = vadd.f32 %v2664, %v2752
        %v2754 = vpop.f32.mrf.mxu0
        %v2755 = vadd.f32 %v2666, %v2754
        %2756 = vmatmul.bf16.gmra.mxu0 %v1816
        %v2757 = vpop.f32.mrf.mxu0
        %v2758 = vadd.f32 %v2669, %v2757
        %v2759 = vpop.f32.mrf.mxu0
        %v2760 = vadd.f32 %v2671, %v2759
        %2761 = vmatmul.bf16.gmra.mxu0 %v1825
        %v2762 = vpop.f32.mrf.mxu0
        %v2763 = vadd.f32 %v2674, %v2762
        %v2764 = vpop.f32.mrf.mxu0
        %v2765 = vadd.f32 %v2676, %v2764
        %2766 = vdwg.mxu0
        %2767 = vmatpush.bf16.msra.mxu0 %v2306
        %2768 = vmatpush.bf16.msra.mxu0 %v2305
        %2769 = vmatpush.bf16.msra.mxu0 %v2304
        %2770 = vmatpush.bf16.msra.mxu0 %v2303
        %2771 = vmatpush.bf16.msra.mxu0 %v2302
        %2772 = vmatpush.bf16.msra.mxu0 %v2301
        %2773 = vmatpush.bf16.msra.mxu0 %v2300
        %2774 = vmatpush.bf16.msra.mxu0 %v2299
        %2775 = vmatmul.bf16.gmra.mxu0 %v1691
        %v2776 = vpop.f32.mrf.mxu0
        %v2777 = vadd.f32 %v2688, %v2776
        %v2778 = vpop.f32.mrf.mxu0
        %v2779 = vadd.f32 %v2690, %v2778
        %2780 = vmatmul.bf16.gmra.mxu0 %v1700
        %v2781 = vpop.f32.mrf.mxu0
        %v2782 = vadd.f32 %v2693, %v2781
        %v2783 = vpop.f32.mrf.mxu0
        %v2784 = vadd.f32 %v2695, %v2783
        %2785 = vmatmul.bf16.gmra.mxu0 %v1709
        %v2786 = vpop.f32.mrf.mxu0
        %v2787 = vadd.f32 %v2698, %v2786
        %v2788 = vpop.f32.mrf.mxu0
        %v2789 = vadd.f32 %v2700, %v2788
        %2790 = vmatmul.bf16.gmra.mxu0 %v1718
        %v2791 = vpop.f32.mrf.mxu0
        %v2792 = vadd.f32 %v2703, %v2791
        %v2793 = vpop.f32.mrf.mxu0
        %v2794 = vadd.f32 %v2705, %v2793
        %2795 = vmatmul.bf16.gmra.mxu0 %v1727
        %v2796 = vpop.f32.mrf.mxu0
        %v2797 = vadd.f32 %v2708, %v2796
        %v2798 = vpop.f32.mrf.mxu0
        %v2799 = vadd.f32 %v2710, %v2798
        %2800 = vmatmul.bf16.gmra.mxu0 %v1736
        %v2801 = vpop.f32.mrf.mxu0
        %v2802 = vadd.f32 %v2713, %v2801
        %v2803 = vpop.f32.mrf.mxu0
        %v2804 = vadd.f32 %v2715, %v2803
        %2805 = vmatmul.bf16.gmra.mxu0 %v1745
        %v2806 = vpop.f32.mrf.mxu0
        %v2807 = vadd.f32 %v2718, %v2806
        %v2808 = vpop.f32.mrf.mxu0
        %v2809 = vadd.f32 %v2720, %v2808
        %2810 = vmatmul.bf16.gmra.mxu0 %v1754
        %v2811 = vpop.f32.mrf.mxu0
        %v2812 = vadd.f32 %v2723, %v2811
        %v2813 = vpop.f32.mrf.mxu0
        %v2814 = vadd.f32 %v2725, %v2813
        %2815 = vmatmul.bf16.gmra.mxu0 %v1763
        %v2816 = vpop.f32.mrf.mxu0
        %v2817 = vadd.f32 %v2728, %v2816
        %v2818 = vpop.f32.mrf.mxu0
        %v2819 = vadd.f32 %v2730, %v2818
        %2820 = vmatmul.bf16.gmra.mxu0 %v1772
        %v2821 = vpop.f32.mrf.mxu0
        %v2822 = vadd.f32 %v2733, %v2821
        %v2823 = vpop.f32.mrf.mxu0
        %v2824 = vadd.f32 %v2735, %v2823
        %2825 = vmatmul.bf16.gmra.mxu0 %v1781
        %v2826 = vpop.f32.mrf.mxu0
        %v2827 = vadd.f32 %v2738, %v2826
        %v2828 = vpop.f32.mrf.mxu0
        %v2829 = vadd.f32 %v2740, %v2828
        %2830 = vmatmul.bf16.gmra.mxu0 %v1790
        %v2831 = vpop.f32.mrf.mxu0
        %v2832 = vadd.f32 %v2743, %v2831
        %v2833 = vpop.f32.mrf.mxu0
        %v2834 = vadd.f32 %v2745, %v2833
        %2835 = vmatmul.bf16.gmra.mxu0 %v1799
        %v2836 = vpop.f32.mrf.mxu0
        %v2837 = vadd.f32 %v2748, %v2836
        %v2838 = vpop.f32.mrf.mxu0
        %v2839 = vadd.f32 %v2750, %v2838
        %2840 = vmatmul.bf16.gmra.mxu0 %v1808
        %v2841 = vpop.f32.mrf.mxu0
        %v2842 = vadd.f32 %v2753, %v2841
        %v2843 = vpop.f32.mrf.mxu0
        %v2844 = vadd.f32 %v2755, %v2843
        %2845 = vmatmul.bf16.gmra.mxu0 %v1817
        %v2846 = vpop.f32.mrf.mxu0
        %v2847 = vadd.f32 %v2758, %v2846
        %v2848 = vpop.f32.mrf.mxu0
        %v2849 = vadd.f32 %v2760, %v2848
        %2850 = vmatmul.bf16.gmra.mxu0 %v1826
        %v2851 = vpop.f32.mrf.mxu0
        %v2852 = vadd.f32 %v2763, %v2851
        %v2853 = vpop.f32.mrf.mxu0
        %v2854 = vadd.f32 %v2765, %v2853
        %2855 = vdwg.mxu0
        %2856 = vmatpush.bf16.msra.mxu0 %v2314
        %2857 = vmatpush.bf16.msra.mxu0 %v2313
        %2858 = vmatpush.bf16.msra.mxu0 %v2312
        %2859 = vmatpush.bf16.msra.mxu0 %v2311
        %2860 = vmatpush.bf16.msra.mxu0 %v2310
        %2861 = vmatpush.bf16.msra.mxu0 %v2309
        %2862 = vmatpush.bf16.msra.mxu0 %v2308
        %2863 = vmatpush.bf16.msra.mxu0 %v2307
        %2864 = vmatmul.bf16.gmra.mxu0 %v1692
        %v2865 = vpop.f32.mrf.mxu0
        %v2866 = vadd.f32 %v2777, %v2865
        %v2867 = vpop.f32.mrf.mxu0
        %v2868 = vadd.f32 %v2779, %v2867
        %2869 = vmatmul.bf16.gmra.mxu0 %v1701
        %v2870 = vpop.f32.mrf.mxu0
        %v2871 = vadd.f32 %v2782, %v2870
        %v2872 = vpop.f32.mrf.mxu0
        %v2873 = vadd.f32 %v2784, %v2872
        %2874 = vmatmul.bf16.gmra.mxu0 %v1710
        %v2875 = vpop.f32.mrf.mxu0
        %v2876 = vadd.f32 %v2787, %v2875
        %v2877 = vpop.f32.mrf.mxu0
        %v2878 = vadd.f32 %v2789, %v2877
        %2879 = vmatmul.bf16.gmra.mxu0 %v1719
        %v2880 = vpop.f32.mrf.mxu0
        %v2881 = vadd.f32 %v2792, %v2880
        %v2882 = vpop.f32.mrf.mxu0
        %v2883 = vadd.f32 %v2794, %v2882
        %2884 = vmatmul.bf16.gmra.mxu0 %v1728
        %v2885 = vpop.f32.mrf.mxu0
        %v2886 = vadd.f32 %v2797, %v2885
        %v2887 = vpop.f32.mrf.mxu0
        %v2888 = vadd.f32 %v2799, %v2887
        %2889 = vmatmul.bf16.gmra.mxu0 %v1737
        %v2890 = vpop.f32.mrf.mxu0
        %v2891 = vadd.f32 %v2802, %v2890
        %v2892 = vpop.f32.mrf.mxu0
        %v2893 = vadd.f32 %v2804, %v2892
        %2894 = vmatmul.bf16.gmra.mxu0 %v1746
        %v2895 = vpop.f32.mrf.mxu0
        %v2896 = vadd.f32 %v2807, %v2895
        %v2897 = vpop.f32.mrf.mxu0
        %v2898 = vadd.f32 %v2809, %v2897
        %2899 = vmatmul.bf16.gmra.mxu0 %v1755
        %v2900 = vpop.f32.mrf.mxu0
        %v2901 = vadd.f32 %v2812, %v2900
        %v2902 = vpop.f32.mrf.mxu0
        %v2903 = vadd.f32 %v2814, %v2902
        %2904 = vmatmul.bf16.gmra.mxu0 %v1764
        %v2905 = vpop.f32.mrf.mxu0
        %v2906 = vadd.f32 %v2817, %v2905
        %v2907 = vpop.f32.mrf.mxu0
        %v2908 = vadd.f32 %v2819, %v2907
        %2909 = vmatmul.bf16.gmra.mxu0 %v1773
        %v2910 = vpop.f32.mrf.mxu0
        %v2911 = vadd.f32 %v2822, %v2910
        %v2912 = vpop.f32.mrf.mxu0
        %v2913 = vadd.f32 %v2824, %v2912
        %2914 = vmatmul.bf16.gmra.mxu0 %v1782
        %v2915 = vpop.f32.mrf.mxu0
        %v2916 = vadd.f32 %v2827, %v2915
        %v2917 = vpop.f32.mrf.mxu0
        %v2918 = vadd.f32 %v2829, %v2917
        %2919 = vmatmul.bf16.gmra.mxu0 %v1791
        %v2920 = vpop.f32.mrf.mxu0
        %v2921 = vadd.f32 %v2832, %v2920
        %v2922 = vpop.f32.mrf.mxu0
        %v2923 = vadd.f32 %v2834, %v2922
        %2924 = vmatmul.bf16.gmra.mxu0 %v1800
        %v2925 = vpop.f32.mrf.mxu0
        %v2926 = vadd.f32 %v2837, %v2925
        %v2927 = vpop.f32.mrf.mxu0
        %v2928 = vadd.f32 %v2839, %v2927
        %2929 = vmatmul.bf16.gmra.mxu0 %v1809
        %v2930 = vpop.f32.mrf.mxu0
        %v2931 = vadd.f32 %v2842, %v2930
        %v2932 = vpop.f32.mrf.mxu0
        %v2933 = vadd.f32 %v2844, %v2932
        %2934 = vmatmul.bf16.gmra.mxu0 %v1818
        %v2935 = vpop.f32.mrf.mxu0
        %v2936 = vadd.f32 %v2847, %v2935
        %v2937 = vpop.f32.mrf.mxu0
        %v2938 = vadd.f32 %v2849, %v2937
        %2939 = vmatmul.bf16.gmra.mxu0 %v1827
        %v2940 = vpop.f32.mrf.mxu0
        %v2941 = vadd.f32 %v2852, %v2940
        %v2942 = vpop.f32.mrf.mxu0
        %v2943 = vadd.f32 %v2854, %v2942
        %2944 = vdwg.mxu0
        %2945 = vmatpush.bf16.msra.mxu0 %v2322
        %2946 = vmatpush.bf16.msra.mxu0 %v2321
        %2947 = vmatpush.bf16.msra.mxu0 %v2320
        %2948 = vmatpush.bf16.msra.mxu0 %v2319
        %2949 = vmatpush.bf16.msra.mxu0 %v2318
        %2950 = vmatpush.bf16.msra.mxu0 %v2317
        %2951 = vmatpush.bf16.msra.mxu0 %v2316
        %2952 = vmatpush.bf16.msra.mxu0 %v2315
        %2953 = vmatmul.bf16.gmra.mxu0 %v1693
        %v2954 = vpop.f32.mrf.mxu0
        %v2955 = vadd.f32 %v2866, %v2954
        %v2956 = vpop.f32.mrf.mxu0
        %v2957 = vadd.f32 %v2868, %v2956
        %2958 = vmatmul.bf16.gmra.mxu0 %v1702
        %v2959 = vpop.f32.mrf.mxu0
        %v2960 = vadd.f32 %v2871, %v2959
        %v2961 = vpop.f32.mrf.mxu0
        %v2962 = vadd.f32 %v2873, %v2961
        %2963 = vmatmul.bf16.gmra.mxu0 %v1711
        %v2964 = vpop.f32.mrf.mxu0
        %v2965 = vadd.f32 %v2876, %v2964
        %v2966 = vpop.f32.mrf.mxu0
        %v2967 = vadd.f32 %v2878, %v2966
        %2968 = vmatmul.bf16.gmra.mxu0 %v1720
        %v2969 = vpop.f32.mrf.mxu0
        %v2970 = vadd.f32 %v2881, %v2969
        %v2971 = vpop.f32.mrf.mxu0
        %v2972 = vadd.f32 %v2883, %v2971
        %2973 = vmatmul.bf16.gmra.mxu0 %v1729
        %v2974 = vpop.f32.mrf.mxu0
        %v2975 = vadd.f32 %v2886, %v2974
        %v2976 = vpop.f32.mrf.mxu0
        %v2977 = vadd.f32 %v2888, %v2976
        %2978 = vmatmul.bf16.gmra.mxu0 %v1738
        %v2979 = vpop.f32.mrf.mxu0
        %v2980 = vadd.f32 %v2891, %v2979
        %v2981 = vpop.f32.mrf.mxu0
        %v2982 = vadd.f32 %v2893, %v2981
        %2983 = vmatmul.bf16.gmra.mxu0 %v1747
        %v2984 = vpop.f32.mrf.mxu0
        %v2985 = vadd.f32 %v2896, %v2984
        %v2986 = vpop.f32.mrf.mxu0
        %v2987 = vadd.f32 %v2898, %v2986
        %2988 = vmatmul.bf16.gmra.mxu0 %v1756
        %v2989 = vpop.f32.mrf.mxu0
        %v2990 = vadd.f32 %v2901, %v2989
        %v2991 = vpop.f32.mrf.mxu0
        %v2992 = vadd.f32 %v2903, %v2991
        %2993 = vmatmul.bf16.gmra.mxu0 %v1765
        %v2994 = vpop.f32.mrf.mxu0
        %v2995 = vadd.f32 %v2906, %v2994
        %v2996 = vpop.f32.mrf.mxu0
        %v2997 = vadd.f32 %v2908, %v2996
        %2998 = vmatmul.bf16.gmra.mxu0 %v1774
        %v2999 = vpop.f32.mrf.mxu0
        %v3000 = vadd.f32 %v2911, %v2999
        %v3001 = vpop.f32.mrf.mxu0
        %v3002 = vadd.f32 %v2913, %v3001
        %3003 = vmatmul.bf16.gmra.mxu0 %v1783
        %v3004 = vpop.f32.mrf.mxu0
        %v3005 = vadd.f32 %v2916, %v3004
        %v3006 = vpop.f32.mrf.mxu0
        %v3007 = vadd.f32 %v2918, %v3006
        %3008 = vmatmul.bf16.gmra.mxu0 %v1792
        %v3009 = vpop.f32.mrf.mxu0
        %v3010 = vadd.f32 %v2921, %v3009
        %v3011 = vpop.f32.mrf.mxu0
        %v3012 = vadd.f32 %v2923, %v3011
        %3013 = vmatmul.bf16.gmra.mxu0 %v1801
        %v3014 = vpop.f32.mrf.mxu0
        %v3015 = vadd.f32 %v2926, %v3014
        %v3016 = vpop.f32.mrf.mxu0
        %v3017 = vadd.f32 %v2928, %v3016
        %3018 = vmatmul.bf16.gmra.mxu0 %v1810
        %v3019 = vpop.f32.mrf.mxu0
        %v3020 = vadd.f32 %v2931, %v3019
        %v3021 = vpop.f32.mrf.mxu0
        %v3022 = vadd.f32 %v2933, %v3021
        %3023 = vmatmul.bf16.gmra.mxu0 %v1819
        %v3024 = vpop.f32.mrf.mxu0
        %v3025 = vadd.f32 %v2936, %v3024
        %v3026 = vpop.f32.mrf.mxu0
        %v3027 = vadd.f32 %v2938, %v3026
        %3028 = vmatmul.bf16.gmra.mxu0 %v1828
        %v3029 = vpop.f32.mrf.mxu0
        %v3030 = vadd.f32 %v2941, %v3029
        %v3031 = vpop.f32.mrf.mxu0
        %v3032 = vadd.f32 %v2943, %v3031
        %3033 = vdwg.mxu0
        %3034 = vmatpush.bf16.msra.mxu0 %v2330
        %3035 = vmatpush.bf16.msra.mxu0 %v2329
        %3036 = vmatpush.bf16.msra.mxu0 %v2328
        %3037 = vmatpush.bf16.msra.mxu0 %v2327
        %3038 = vmatpush.bf16.msra.mxu0 %v2326
        %3039 = vmatpush.bf16.msra.mxu0 %v2325
        %3040 = vmatpush.bf16.msra.mxu0 %v2324
        %3041 = vmatpush.bf16.msra.mxu0 %v2323
        %3042 = vmatmul.bf16.gmra.mxu0 %v1694
        %v3043 = vpop.f32.mrf.mxu0
        %v3044 = vadd.f32 %v2955, %v3043
        %v3045 = vpop.f32.mrf.mxu0
        %v3046 = vadd.f32 %v2957, %v3045
        %3047 = vmatmul.bf16.gmra.mxu0 %v1703
        %v3048 = vpop.f32.mrf.mxu0
        %v3049 = vadd.f32 %v2960, %v3048
        %v3050 = vpop.f32.mrf.mxu0
        %v3051 = vadd.f32 %v2962, %v3050
        %3052 = vmatmul.bf16.gmra.mxu0 %v1712
        %v3053 = vpop.f32.mrf.mxu0
        %v3054 = vadd.f32 %v2965, %v3053
        %v3055 = vpop.f32.mrf.mxu0
        %v3056 = vadd.f32 %v2967, %v3055
        %3057 = vmatmul.bf16.gmra.mxu0 %v1721
        %v3058 = vpop.f32.mrf.mxu0
        %v3059 = vadd.f32 %v2970, %v3058
        %v3060 = vpop.f32.mrf.mxu0
        %v3061 = vadd.f32 %v2972, %v3060
        %3062 = vmatmul.bf16.gmra.mxu0 %v1730
        %v3063 = vpop.f32.mrf.mxu0
        %v3064 = vadd.f32 %v2975, %v3063
        %v3065 = vpop.f32.mrf.mxu0
        %v3066 = vadd.f32 %v2977, %v3065
        %3067 = vmatmul.bf16.gmra.mxu0 %v1739
        %v3068 = vpop.f32.mrf.mxu0
        %v3069 = vadd.f32 %v2980, %v3068
        %v3070 = vpop.f32.mrf.mxu0
        %v3071 = vadd.f32 %v2982, %v3070
        %3072 = vmatmul.bf16.gmra.mxu0 %v1748
        %v3073 = vpop.f32.mrf.mxu0
        %v3074 = vadd.f32 %v2985, %v3073
        %v3075 = vpop.f32.mrf.mxu0
        %v3076 = vadd.f32 %v2987, %v3075
        %3077 = vmatmul.bf16.gmra.mxu0 %v1757
        %v3078 = vpop.f32.mrf.mxu0
        %v3079 = vadd.f32 %v2990, %v3078
        %v3080 = vpop.f32.mrf.mxu0
        %v3081 = vadd.f32 %v2992, %v3080
        %3082 = vmatmul.bf16.gmra.mxu0 %v1766
        %v3083 = vpop.f32.mrf.mxu0
        %v3084 = vadd.f32 %v2995, %v3083
        %v3085 = vpop.f32.mrf.mxu0
        %v3086 = vadd.f32 %v2997, %v3085
        %3087 = vmatmul.bf16.gmra.mxu0 %v1775
        %v3088 = vpop.f32.mrf.mxu0
        %v3089 = vadd.f32 %v3000, %v3088
        %v3090 = vpop.f32.mrf.mxu0
        %v3091 = vadd.f32 %v3002, %v3090
        %3092 = vmatmul.bf16.gmra.mxu0 %v1784
        %v3093 = vpop.f32.mrf.mxu0
        %v3094 = vadd.f32 %v3005, %v3093
        %v3095 = vpop.f32.mrf.mxu0
        %v3096 = vadd.f32 %v3007, %v3095
        %3097 = vmatmul.bf16.gmra.mxu0 %v1793
        %v3098 = vpop.f32.mrf.mxu0
        %v3099 = vadd.f32 %v3010, %v3098
        %v3100 = vpop.f32.mrf.mxu0
        %v3101 = vadd.f32 %v3012, %v3100
        %3102 = vmatmul.bf16.gmra.mxu0 %v1802
        %v3103 = vpop.f32.mrf.mxu0
        %v3104 = vadd.f32 %v3015, %v3103
        %v3105 = vpop.f32.mrf.mxu0
        %v3106 = vadd.f32 %v3017, %v3105
        %3107 = vmatmul.bf16.gmra.mxu0 %v1811
        %v3108 = vpop.f32.mrf.mxu0
        %v3109 = vadd.f32 %v3020, %v3108
        %v3110 = vpop.f32.mrf.mxu0
        %v3111 = vadd.f32 %v3022, %v3110
        %3112 = vmatmul.bf16.gmra.mxu0 %v1820
        %v3113 = vpop.f32.mrf.mxu0
        %v3114 = vadd.f32 %v3025, %v3113
        %v3115 = vpop.f32.mrf.mxu0
        %v3116 = vadd.f32 %v3027, %v3115
        %3117 = vmatmul.bf16.gmra.mxu0 %v1829
        %v3118 = vpop.f32.mrf.mxu0
        %v3119 = vadd.f32 %v3030, %v3118
        %v3120 = vpop.f32.mrf.mxu0
        %v3121 = vadd.f32 %v3032, %v3120
        %3122 = vdwg.mxu0
        %3123 = vmatpush.bf16.msra.mxu0 %v2338
        %3124 = vmatpush.bf16.msra.mxu0 %v2337
        %3125 = vmatpush.bf16.msra.mxu0 %v2336
        %3126 = vmatpush.bf16.msra.mxu0 %v2335
        %3127 = vmatpush.bf16.msra.mxu0 %v2334
        %3128 = vmatpush.bf16.msra.mxu0 %v2333
        %3129 = vmatpush.bf16.msra.mxu0 %v2332
        %3130 = vmatpush.bf16.msra.mxu0 %v2331
        %3131 = vmatmul.bf16.gmra.mxu0 %v1695
        %v3132 = vpop.f32.mrf.mxu0
        %v3133 = vadd.f32 %v3044, %v3132
        %v3134 = vpop.f32.mrf.mxu0
        %v3135 = vadd.f32 %v3046, %v3134
        %3136 = vmatmul.bf16.gmra.mxu0 %v1704
        %v3137 = vpop.f32.mrf.mxu0
        %v3138 = vadd.f32 %v3049, %v3137
        %v3139 = vpop.f32.mrf.mxu0
        %v3140 = vadd.f32 %v3051, %v3139
        %3141 = vmatmul.bf16.gmra.mxu0 %v1713
        %v3142 = vpop.f32.mrf.mxu0
        %v3143 = vadd.f32 %v3054, %v3142
        %v3144 = vpop.f32.mrf.mxu0
        %v3145 = vadd.f32 %v3056, %v3144
        %3146 = vmatmul.bf16.gmra.mxu0 %v1722
        %v3147 = vpop.f32.mrf.mxu0
        %v3148 = vadd.f32 %v3059, %v3147
        %v3149 = vpop.f32.mrf.mxu0
        %v3150 = vadd.f32 %v3061, %v3149
        %3151 = vmatmul.bf16.gmra.mxu0 %v1731
        %v3152 = vpop.f32.mrf.mxu0
        %v3153 = vadd.f32 %v3064, %v3152
        %v3154 = vpop.f32.mrf.mxu0
        %v3155 = vadd.f32 %v3066, %v3154
        %3156 = vmatmul.bf16.gmra.mxu0 %v1740
        %v3157 = vpop.f32.mrf.mxu0
        %v3158 = vadd.f32 %v3069, %v3157
        %v3159 = vpop.f32.mrf.mxu0
        %v3160 = vadd.f32 %v3071, %v3159
        %3161 = vmatmul.bf16.gmra.mxu0 %v1749
        %v3162 = vpop.f32.mrf.mxu0
        %v3163 = vadd.f32 %v3074, %v3162
        %v3164 = vpop.f32.mrf.mxu0
        %v3165 = vadd.f32 %v3076, %v3164
        %3166 = vmatmul.bf16.gmra.mxu0 %v1758
        %v3167 = vpop.f32.mrf.mxu0
        %v3168 = vadd.f32 %v3079, %v3167
        %v3169 = vpop.f32.mrf.mxu0
        %v3170 = vadd.f32 %v3081, %v3169
        %3171 = vmatmul.bf16.gmra.mxu0 %v1767
        %v3172 = vpop.f32.mrf.mxu0
        %v3173 = vadd.f32 %v3084, %v3172
        %v3174 = vpop.f32.mrf.mxu0
        %v3175 = vadd.f32 %v3086, %v3174
        %3176 = vmatmul.bf16.gmra.mxu0 %v1776
        %v3177 = vpop.f32.mrf.mxu0
        %v3178 = vadd.f32 %v3089, %v3177
        %v3179 = vpop.f32.mrf.mxu0
        %v3180 = vadd.f32 %v3091, %v3179
        %3181 = vmatmul.bf16.gmra.mxu0 %v1785
        %v3182 = vpop.f32.mrf.mxu0
        %v3183 = vadd.f32 %v3094, %v3182
        %v3184 = vpop.f32.mrf.mxu0
        %v3185 = vadd.f32 %v3096, %v3184
        %3186 = vmatmul.bf16.gmra.mxu0 %v1794
        %v3187 = vpop.f32.mrf.mxu0
        %v3188 = vadd.f32 %v3099, %v3187
        %v3189 = vpop.f32.mrf.mxu0
        %v3190 = vadd.f32 %v3101, %v3189
        %3191 = vmatmul.bf16.gmra.mxu0 %v1803
        %v3192 = vpop.f32.mrf.mxu0
        %v3193 = vadd.f32 %v3104, %v3192
        %v3194 = vpop.f32.mrf.mxu0
        %v3195 = vadd.f32 %v3106, %v3194
        %3196 = vmatmul.bf16.gmra.mxu0 %v1812
        %v3197 = vpop.f32.mrf.mxu0
        %v3198 = vadd.f32 %v3109, %v3197
        %v3199 = vpop.f32.mrf.mxu0
        %v3200 = vadd.f32 %v3111, %v3199
        %3201 = vmatmul.bf16.gmra.mxu0 %v1821
        %v3202 = vpop.f32.mrf.mxu0
        %v3203 = vadd.f32 %v3114, %v3202
        %v3204 = vpop.f32.mrf.mxu0
        %v3205 = vadd.f32 %v3116, %v3204
        %3206 = vmatmul.bf16.gmra.mxu0 %v1830
        %v3207 = vpop.f32.mrf.mxu0
        %v3208 = vadd.f32 %v3119, %v3207
        %v3209 = vpop.f32.mrf.mxu0
        %v3210 = vadd.f32 %v3121, %v3209
        %3211 = vdwg.mxu0
        %v3212 = vmax.f32 %v3133, 0.0
        %v3213 = vmax.f32 %v3135, 0.0
        %v3214 = vmax.f32 %v3138, 0.0
        %v3215 = vmax.f32 %v3140, 0.0
        %v3216 = vmax.f32 %v3143, 0.0
        %v3217 = vmax.f32 %v3145, 0.0
        %v3218 = vmax.f32 %v3148, 0.0
        %v3219 = vmax.f32 %v3150, 0.0
        %v3220 = vmax.f32 %v3153, 0.0
        %v3221 = vmax.f32 %v3155, 0.0
        %v3222 = vmax.f32 %v3158, 0.0
        %v3223 = vmax.f32 %v3160, 0.0
        %v3224 = vmax.f32 %v3163, 0.0
        %v3225 = vmax.f32 %v3165, 0.0
        %v3226 = vmax.f32 %v3168, 0.0
        %v3227 = vmax.f32 %v3170, 0.0
        %v3228 = vmax.f32 %v3173, 0.0
        %v3229 = vmax.f32 %v3175, 0.0
        %v3230 = vmax.f32 %v3178, 0.0
        %v3231 = vmax.f32 %v3180, 0.0
        %v3232 = vmax.f32 %v3183, 0.0
        %v3233 = vmax.f32 %v3185, 0.0
        %v3234 = vmax.f32 %v3188, 0.0
        %v3235 = vmax.f32 %v3190, 0.0
        %v3236 = vmax.f32 %v3193, 0.0
        %v3237 = vmax.f32 %v3195, 0.0
        %v3238 = vmax.f32 %v3198, 0.0
        %v3239 = vmax.f32 %v3200, 0.0
        %v3240 = vmax.f32 %v3203, 0.0
        %v3241 = vmax.f32 %v3205, 0.0
        %v3242 = vmax.f32 %v3208, 0.0
        %v3243 = vmax.f32 %v3210, 0.0
        %v3244 = vsel %vm440, %v3212, -inf
        %v3245 = vsel %vm440, %v3214, -inf
        %v3246 = vmax.f32 %v3244, %v3245
        %v3247 = vsel %vm440, %v3213, -inf
        %v3248 = vsel %vm440, %v3215, -inf
        %v3249 = vmax.f32 %v3247, %v3248
        %v3250 = vsel %vm440, %v3216, -inf
        %v3251 = vsel %vm440, %v3218, -inf
        %v3252 = vmax.f32 %v3250, %v3251
        %v3253 = vsel %vm440, %v3217, -inf
        %v3254 = vsel %vm440, %v3219, -inf
        %v3255 = vmax.f32 %v3253, %v3254
        %v3256 = vsel %vm440, %v3220, -inf
        %v3257 = vsel %vm440, %v3222, -inf
        %v3258 = vmax.f32 %v3256, %v3257
        %v3259 = vsel %vm440, %v3221, -inf
        %v3260 = vsel %vm440, %v3223, -inf
        %v3261 = vmax.f32 %v3259, %v3260
        %v3262 = vsel %vm440, %v3224, -inf
        %v3263 = vsel %vm440, %v3226, -inf
        %v3264 = vmax.f32 %v3262, %v3263
        %v3265 = vsel %vm440, %v3225, -inf
        %v3266 = vsel %vm440, %v3227, -inf
        %v3267 = vmax.f32 %v3265, %v3266
        %v3268 = vsel %vm440, %v3228, -inf
        %v3269 = vsel %vm440, %v3230, -inf
        %v3270 = vmax.f32 %v3268, %v3269
        %v3271 = vsel %vm440, %v3229, -inf
        %v3272 = vsel %vm440, %v3231, -inf
        %v3273 = vmax.f32 %v3271, %v3272
        %v3274 = vsel %vm440, %v3232, -inf
        %v3275 = vsel %vm440, %v3234, -inf
        %v3276 = vmax.f32 %v3274, %v3275
        %v3277 = vsel %vm440, %v3233, -inf
        %v3278 = vsel %vm440, %v3235, -inf
        %v3279 = vmax.f32 %v3277, %v3278
        %v3280 = vsel %vm440, %v3236, -inf
        %v3281 = vsel %vm440, %v3238, -inf
        %v3282 = vmax.f32 %v3280, %v3281
        %v3283 = vsel %vm440, %v3237, -inf
        %v3284 = vsel %vm440, %v3239, -inf
        %v3285 = vmax.f32 %v3283, %v3284
        %v3286 = vsel %vm440, %v3240, -inf
        %v3287 = vsel %vm440, %v3242, -inf
        %v3288 = vmax.f32 %v3286, %v3287
        %v3289 = vsel %vm440, %v3241, -inf
        %v3290 = vsel %vm440, %v3243, -inf
        %v3291 = vmax.f32 %v3289, %v3290
        %v3308 = vrot.slane %v3246, 2
        %v3309 = vrot.slane %v3246, 4
        %v3310 = vrot.slane %v3246, 6
        %v3311 = vrot.slane %v3249, 2
        %v3312 = vrot.slane %v3249, 4
        %v3313 = vrot.slane %v3249, 6
        %v3314 = vrot.slane %v3252, 2
        %v3315 = vrot.slane %v3252, 4
        %v3316 = vrot.slane %v3252, 6
        %v3317 = vrot.slane %v3255, 2
        %v3318 = vrot.slane %v3255, 4
        %v3319 = vrot.slane %v3255, 6
        %v3320 = vrot.slane %v3258, 2
        %v3321 = vrot.slane %v3258, 4
        %v3322 = vrot.slane %v3258, 6
        %v3323 = vrot.slane %v3261, 2
        %v3324 = vrot.slane %v3261, 4
        %v3325 = vrot.slane %v3261, 6
        %v3326 = vrot.slane %v3264, 2
        %v3327 = vrot.slane %v3264, 4
        %v3328 = vrot.slane %v3264, 6
        %v3329 = vrot.slane %v3267, 2
        %v3330 = vrot.slane %v3267, 4
        %v3331 = vrot.slane %v3267, 6
        %v3332 = vrot.slane %v3270, 2
        %v3333 = vrot.slane %v3270, 4
        %v3334 = vrot.slane %v3270, 6
        %v3335 = vrot.slane %v3273, 2
        %v3336 = vrot.slane %v3273, 4
        %v3337 = vrot.slane %v3273, 6
        %v3338 = vrot.slane %v3276, 2
        %v3339 = vrot.slane %v3276, 4
        %v3340 = vrot.slane %v3276, 6
        %v3341 = vrot.slane %v3279, 2
        %v3342 = vrot.slane %v3279, 4
        %v3343 = vrot.slane %v3279, 6
        %v3344 = vrot.slane %v3282, 2
        %v3345 = vrot.slane %v3282, 4
        %v3346 = vrot.slane %v3282, 6
        %v3347 = vrot.slane %v3285, 2
        %v3348 = vrot.slane %v3285, 4
        %v3349 = vrot.slane %v3285, 6
        %v3350 = vrot.slane %v3288, 2
        %v3351 = vrot.slane %v3288, 4
        %v3352 = vrot.slane %v3288, 6
        %v3353 = vrot.slane %v3291, 2
        %v3354 = vrot.slane %v3291, 4
        %v3355 = vrot.slane %v3291, 6
        %v3404 = vsel %vm442, %v3246, -inf
        %v3405 = vrot.slane %v3404, 4
        %v3406 = vmax.f32 %v3404, %v3405
        %v3407 = vrot.slane %v3406, 2
        %v3408 = vmax.f32 %v3406, %v3407
        %v3409 = vrot.slane %v3408, 1
        %v3410 = vmax.f32 %v3408, %v3409
        %v3411 = vsel %vm442, %v3308, -inf
        %v3412 = vrot.slane %v3411, 4
        %v3413 = vmax.f32 %v3411, %v3412
        %v3414 = vrot.slane %v3413, 2
        %v3415 = vmax.f32 %v3413, %v3414
        %v3416 = vrot.slane %v3415, 1
        %v3417 = vmax.f32 %v3415, %v3416
        %v3418 = vsel %vm442, %v3309, -inf
        %v3419 = vrot.slane %v3418, 4
        %v3420 = vmax.f32 %v3418, %v3419
        %v3421 = vrot.slane %v3420, 2
        %v3422 = vmax.f32 %v3420, %v3421
        %v3423 = vrot.slane %v3422, 1
        %v3424 = vmax.f32 %v3422, %v3423
        %v3425 = vsel %vm442, %v3310, -inf
        %v3426 = vrot.slane %v3425, 4
        %v3427 = vmax.f32 %v3425, %v3426
        %v3428 = vrot.slane %v3427, 2
        %v3429 = vmax.f32 %v3427, %v3428
        %v3430 = vrot.slane %v3429, 1
        %v3431 = vmax.f32 %v3429, %v3430
        %v3432 = vsel %vm442, %v3249, -inf
        %v3433 = vrot.slane %v3432, 4
        %v3434 = vmax.f32 %v3432, %v3433
        %v3435 = vrot.slane %v3434, 2
        %v3436 = vmax.f32 %v3434, %v3435
        %v3437 = vrot.slane %v3436, 1
        %v3438 = vmax.f32 %v3436, %v3437
        %v3439 = vsel %vm442, %v3311, -inf
        %v3440 = vrot.slane %v3439, 4
        %v3441 = vmax.f32 %v3439, %v3440
        %v3442 = vrot.slane %v3441, 2
        %v3443 = vmax.f32 %v3441, %v3442
        %v3444 = vrot.slane %v3443, 1
        %v3445 = vmax.f32 %v3443, %v3444
        %v3446 = vsel %vm442, %v3312, -inf
        %v3447 = vrot.slane %v3446, 4
        %v3448 = vmax.f32 %v3446, %v3447
        %v3449 = vrot.slane %v3448, 2
        %v3450 = vmax.f32 %v3448, %v3449
        %v3451 = vrot.slane %v3450, 1
        %v3452 = vmax.f32 %v3450, %v3451
        %v3453 = vsel %vm442, %v3313, -inf
        %v3454 = vrot.slane %v3453, 4
        %v3455 = vmax.f32 %v3453, %v3454
        %v3456 = vrot.slane %v3455, 2
        %v3457 = vmax.f32 %v3455, %v3456
        %v3458 = vrot.slane %v3457, 1
        %v3459 = vmax.f32 %v3457, %v3458
        %v3460 = vsel %vm442, %v3252, -inf
        %v3461 = vrot.slane %v3460, 4
        %v3462 = vmax.f32 %v3460, %v3461
        %v3463 = vrot.slane %v3462, 2
        %v3464 = vmax.f32 %v3462, %v3463
        %v3465 = vrot.slane %v3464, 1
        %v3466 = vmax.f32 %v3464, %v3465
        %v3467 = vsel %vm442, %v3314, -inf
        %v3468 = vrot.slane %v3467, 4
        %v3469 = vmax.f32 %v3467, %v3468
        %v3470 = vrot.slane %v3469, 2
        %v3471 = vmax.f32 %v3469, %v3470
        %v3472 = vrot.slane %v3471, 1
        %v3473 = vmax.f32 %v3471, %v3472
        %v3474 = vsel %vm442, %v3315, -inf
        %v3475 = vrot.slane %v3474, 4
        %v3476 = vmax.f32 %v3474, %v3475
        %v3477 = vrot.slane %v3476, 2
        %v3478 = vmax.f32 %v3476, %v3477
        %v3479 = vrot.slane %v3478, 1
        %v3480 = vmax.f32 %v3478, %v3479
        %v3481 = vsel %vm442, %v3316, -inf
        %v3482 = vrot.slane %v3481, 4
        %v3483 = vmax.f32 %v3481, %v3482
        %v3484 = vrot.slane %v3483, 2
        %v3485 = vmax.f32 %v3483, %v3484
        %v3486 = vrot.slane %v3485, 1
        %v3487 = vmax.f32 %v3485, %v3486
        %v3488 = vsel %vm442, %v3255, -inf
        %v3489 = vrot.slane %v3488, 4
        %v3490 = vmax.f32 %v3488, %v3489
        %v3491 = vrot.slane %v3490, 2
        %v3492 = vmax.f32 %v3490, %v3491
        %v3493 = vrot.slane %v3492, 1
        %v3494 = vmax.f32 %v3492, %v3493
        %v3495 = vsel %vm442, %v3317, -inf
        %v3496 = vrot.slane %v3495, 4
        %v3497 = vmax.f32 %v3495, %v3496
        %v3498 = vrot.slane %v3497, 2
        %v3499 = vmax.f32 %v3497, %v3498
        %v3500 = vrot.slane %v3499, 1
        %v3501 = vmax.f32 %v3499, %v3500
        %v3502 = vsel %vm442, %v3318, -inf
        %v3503 = vrot.slane %v3502, 4
        %v3504 = vmax.f32 %v3502, %v3503
        %v3505 = vrot.slane %v3504, 2
        %v3506 = vmax.f32 %v3504, %v3505
        %v3507 = vrot.slane %v3506, 1
        %v3508 = vmax.f32 %v3506, %v3507
        %v3509 = vsel %vm442, %v3319, -inf
        %v3510 = vrot.slane %v3509, 4
        %v3511 = vmax.f32 %v3509, %v3510
        %v3512 = vrot.slane %v3511, 2
        %v3513 = vmax.f32 %v3511, %v3512
        %v3514 = vrot.slane %v3513, 1
        %v3515 = vmax.f32 %v3513, %v3514
        %v3516 = vsel %vm442, %v3258, -inf
        %v3517 = vrot.slane %v3516, 4
        %v3518 = vmax.f32 %v3516, %v3517
        %v3519 = vrot.slane %v3518, 2
        %v3520 = vmax.f32 %v3518, %v3519
        %v3521 = vrot.slane %v3520, 1
        %v3522 = vmax.f32 %v3520, %v3521
        %v3523 = vsel %vm442, %v3320, -inf
        %v3524 = vrot.slane %v3523, 4
        %v3525 = vmax.f32 %v3523, %v3524
        %v3526 = vrot.slane %v3525, 2
        %v3527 = vmax.f32 %v3525, %v3526
        %v3528 = vrot.slane %v3527, 1
        %v3529 = vmax.f32 %v3527, %v3528
        %v3530 = vsel %vm442, %v3321, -inf
        %v3531 = vrot.slane %v3530, 4
        %v3532 = vmax.f32 %v3530, %v3531
        %v3533 = vrot.slane %v3532, 2
        %v3534 = vmax.f32 %v3532, %v3533
        %v3535 = vrot.slane %v3534, 1
        %v3536 = vmax.f32 %v3534, %v3535
        %v3537 = vsel %vm442, %v3322, -inf
        %v3538 = vrot.slane %v3537, 4
        %v3539 = vmax.f32 %v3537, %v3538
        %v3540 = vrot.slane %v3539, 2
        %v3541 = vmax.f32 %v3539, %v3540
        %v3542 = vrot.slane %v3541, 1
        %v3543 = vmax.f32 %v3541, %v3542
        %v3544 = vsel %vm442, %v3261, -inf
        %v3545 = vrot.slane %v3544, 4
        %v3546 = vmax.f32 %v3544, %v3545
        %v3547 = vrot.slane %v3546, 2
        %v3548 = vmax.f32 %v3546, %v3547
        %v3549 = vrot.slane %v3548, 1
        %v3550 = vmax.f32 %v3548, %v3549
        %v3551 = vsel %vm442, %v3323, -inf
        %v3552 = vrot.slane %v3551, 4
        %v3553 = vmax.f32 %v3551, %v3552
        %v3554 = vrot.slane %v3553, 2
        %v3555 = vmax.f32 %v3553, %v3554
        %v3556 = vrot.slane %v3555, 1
        %v3557 = vmax.f32 %v3555, %v3556
        %v3558 = vsel %vm442, %v3324, -inf
        %v3559 = vrot.slane %v3558, 4
        %v3560 = vmax.f32 %v3558, %v3559
        %v3561 = vrot.slane %v3560, 2
        %v3562 = vmax.f32 %v3560, %v3561
        %v3563 = vrot.slane %v3562, 1
        %v3564 = vmax.f32 %v3562, %v3563
        %v3565 = vsel %vm442, %v3325, -inf
        %v3566 = vrot.slane %v3565, 4
        %v3567 = vmax.f32 %v3565, %v3566
        %v3568 = vrot.slane %v3567, 2
        %v3569 = vmax.f32 %v3567, %v3568
        %v3570 = vrot.slane %v3569, 1
        %v3571 = vmax.f32 %v3569, %v3570
        %v3572 = vsel %vm442, %v3264, -inf
        %v3573 = vrot.slane %v3572, 4
        %v3574 = vmax.f32 %v3572, %v3573
        %v3575 = vrot.slane %v3574, 2
        %v3576 = vmax.f32 %v3574, %v3575
        %v3577 = vrot.slane %v3576, 1
        %v3578 = vmax.f32 %v3576, %v3577
        %v3579 = vsel %vm442, %v3326, -inf
        %v3580 = vrot.slane %v3579, 4
        %v3581 = vmax.f32 %v3579, %v3580
        %v3582 = vrot.slane %v3581, 2
        %v3583 = vmax.f32 %v3581, %v3582
        %v3584 = vrot.slane %v3583, 1
        %v3585 = vmax.f32 %v3583, %v3584
        %v3586 = vsel %vm442, %v3327, -inf
        %v3587 = vrot.slane %v3586, 4
        %v3588 = vmax.f32 %v3586, %v3587
        %v3589 = vrot.slane %v3588, 2
        %v3590 = vmax.f32 %v3588, %v3589
        %v3591 = vrot.slane %v3590, 1
        %v3592 = vmax.f32 %v3590, %v3591
        %v3593 = vsel %vm442, %v3328, -inf
        %v3594 = vrot.slane %v3593, 4
        %v3595 = vmax.f32 %v3593, %v3594
        %v3596 = vrot.slane %v3595, 2
        %v3597 = vmax.f32 %v3595, %v3596
        %v3598 = vrot.slane %v3597, 1
        %v3599 = vmax.f32 %v3597, %v3598
        %v3600 = vsel %vm442, %v3267, -inf
        %v3601 = vrot.slane %v3600, 4
        %v3602 = vmax.f32 %v3600, %v3601
        %v3603 = vrot.slane %v3602, 2
        %v3604 = vmax.f32 %v3602, %v3603
        %v3605 = vrot.slane %v3604, 1
        %v3606 = vmax.f32 %v3604, %v3605
        %v3607 = vsel %vm442, %v3329, -inf
        %v3608 = vrot.slane %v3607, 4
        %v3609 = vmax.f32 %v3607, %v3608
        %v3610 = vrot.slane %v3609, 2
        %v3611 = vmax.f32 %v3609, %v3610
        %v3612 = vrot.slane %v3611, 1
        %v3613 = vmax.f32 %v3611, %v3612
        %v3614 = vsel %vm442, %v3330, -inf
        %v3615 = vrot.slane %v3614, 4
        %v3616 = vmax.f32 %v3614, %v3615
        %v3617 = vrot.slane %v3616, 2
        %v3618 = vmax.f32 %v3616, %v3617
        %v3619 = vrot.slane %v3618, 1
        %v3620 = vmax.f32 %v3618, %v3619
        %v3621 = vsel %vm442, %v3331, -inf
        %v3622 = vrot.slane %v3621, 4
        %v3623 = vmax.f32 %v3621, %v3622
        %v3624 = vrot.slane %v3623, 2
        %v3625 = vmax.f32 %v3623, %v3624
        %v3626 = vrot.slane %v3625, 1
        %v3627 = vmax.f32 %v3625, %v3626
        %v3628 = vsel %vm442, %v3270, -inf
        %v3629 = vrot.slane %v3628, 4
        %v3630 = vmax.f32 %v3628, %v3629
        %v3631 = vrot.slane %v3630, 2
        %v3632 = vmax.f32 %v3630, %v3631
        %v3633 = vrot.slane %v3632, 1
        %v3634 = vmax.f32 %v3632, %v3633
        %v3635 = vsel %vm442, %v3332, -inf
        %v3636 = vrot.slane %v3635, 4
        %v3637 = vmax.f32 %v3635, %v3636
        %v3638 = vrot.slane %v3637, 2
        %v3639 = vmax.f32 %v3637, %v3638
        %v3640 = vrot.slane %v3639, 1
        %v3641 = vmax.f32 %v3639, %v3640
        %v3642 = vsel %vm442, %v3333, -inf
        %v3643 = vrot.slane %v3642, 4
        %v3644 = vmax.f32 %v3642, %v3643
        %v3645 = vrot.slane %v3644, 2
        %v3646 = vmax.f32 %v3644, %v3645
        %v3647 = vrot.slane %v3646, 1
        %v3648 = vmax.f32 %v3646, %v3647
        %v3649 = vsel %vm442, %v3334, -inf
        %v3650 = vrot.slane %v3649, 4
        %v3651 = vmax.f32 %v3649, %v3650
        %v3652 = vrot.slane %v3651, 2
        %v3653 = vmax.f32 %v3651, %v3652
        %v3654 = vrot.slane %v3653, 1
        %v3655 = vmax.f32 %v3653, %v3654
        %v3656 = vsel %vm442, %v3273, -inf
        %v3657 = vrot.slane %v3656, 4
        %v3658 = vmax.f32 %v3656, %v3657
        %v3659 = vrot.slane %v3658, 2
        %v3660 = vmax.f32 %v3658, %v3659
        %v3661 = vrot.slane %v3660, 1
        %v3662 = vmax.f32 %v3660, %v3661
        %v3663 = vsel %vm442, %v3335, -inf
        %v3664 = vrot.slane %v3663, 4
        %v3665 = vmax.f32 %v3663, %v3664
        %v3666 = vrot.slane %v3665, 2
        %v3667 = vmax.f32 %v3665, %v3666
        %v3668 = vrot.slane %v3667, 1
        %v3669 = vmax.f32 %v3667, %v3668
        %v3670 = vsel %vm442, %v3336, -inf
        %v3671 = vrot.slane %v3670, 4
        %v3672 = vmax.f32 %v3670, %v3671
        %v3673 = vrot.slane %v3672, 2
        %v3674 = vmax.f32 %v3672, %v3673
        %v3675 = vrot.slane %v3674, 1
        %v3676 = vmax.f32 %v3674, %v3675
        %v3677 = vsel %vm442, %v3337, -inf
        %v3678 = vrot.slane %v3677, 4
        %v3679 = vmax.f32 %v3677, %v3678
        %v3680 = vrot.slane %v3679, 2
        %v3681 = vmax.f32 %v3679, %v3680
        %v3682 = vrot.slane %v3681, 1
        %v3683 = vmax.f32 %v3681, %v3682
        %v3684 = vsel %vm442, %v3276, -inf
        %v3685 = vrot.slane %v3684, 4
        %v3686 = vmax.f32 %v3684, %v3685
        %v3687 = vrot.slane %v3686, 2
        %v3688 = vmax.f32 %v3686, %v3687
        %v3689 = vrot.slane %v3688, 1
        %v3690 = vmax.f32 %v3688, %v3689
        %v3691 = vsel %vm442, %v3338, -inf
        %v3692 = vrot.slane %v3691, 4
        %v3693 = vmax.f32 %v3691, %v3692
        %v3694 = vrot.slane %v3693, 2
        %v3695 = vmax.f32 %v3693, %v3694
        %v3696 = vrot.slane %v3695, 1
        %v3697 = vmax.f32 %v3695, %v3696
        %v3698 = vsel %vm442, %v3339, -inf
        %v3699 = vrot.slane %v3698, 4
        %v3700 = vmax.f32 %v3698, %v3699
        %v3701 = vrot.slane %v3700, 2
        %v3702 = vmax.f32 %v3700, %v3701
        %v3703 = vrot.slane %v3702, 1
        %v3704 = vmax.f32 %v3702, %v3703
        %v3705 = vsel %vm442, %v3340, -inf
        %v3706 = vrot.slane %v3705, 4
        %v3707 = vmax.f32 %v3705, %v3706
        %v3708 = vrot.slane %v3707, 2
        %v3709 = vmax.f32 %v3707, %v3708
        %v3710 = vrot.slane %v3709, 1
        %v3711 = vmax.f32 %v3709, %v3710
        %v3712 = vsel %vm442, %v3279, -inf
        %v3713 = vrot.slane %v3712, 4
        %v3714 = vmax.f32 %v3712, %v3713
        %v3715 = vrot.slane %v3714, 2
        %v3716 = vmax.f32 %v3714, %v3715
        %v3717 = vrot.slane %v3716, 1
        %v3718 = vmax.f32 %v3716, %v3717
        %v3719 = vsel %vm442, %v3341, -inf
        %v3720 = vrot.slane %v3719, 4
        %v3721 = vmax.f32 %v3719, %v3720
        %v3722 = vrot.slane %v3721, 2
        %v3723 = vmax.f32 %v3721, %v3722
        %v3724 = vrot.slane %v3723, 1
        %v3725 = vmax.f32 %v3723, %v3724
        %v3726 = vsel %vm442, %v3342, -inf
        %v3727 = vrot.slane %v3726, 4
        %v3728 = vmax.f32 %v3726, %v3727
        %v3729 = vrot.slane %v3728, 2
        %v3730 = vmax.f32 %v3728, %v3729
        %v3731 = vrot.slane %v3730, 1
        %v3732 = vmax.f32 %v3730, %v3731
        %v3733 = vsel %vm442, %v3343, -inf
        %v3734 = vrot.slane %v3733, 4
        %v3735 = vmax.f32 %v3733, %v3734
        %v3736 = vrot.slane %v3735, 2
        %v3737 = vmax.f32 %v3735, %v3736
        %v3738 = vrot.slane %v3737, 1
        %v3739 = vmax.f32 %v3737, %v3738
        %v3740 = vsel %vm442, %v3282, -inf
        %v3741 = vrot.slane %v3740, 4
        %v3742 = vmax.f32 %v3740, %v3741
        %v3743 = vrot.slane %v3742, 2
        %v3744 = vmax.f32 %v3742, %v3743
        %v3745 = vrot.slane %v3744, 1
        %v3746 = vmax.f32 %v3744, %v3745
        %v3747 = vsel %vm442, %v3344, -inf
        %v3748 = vrot.slane %v3747, 4
        %v3749 = vmax.f32 %v3747, %v3748
        %v3750 = vrot.slane %v3749, 2
        %v3751 = vmax.f32 %v3749, %v3750
        %v3752 = vrot.slane %v3751, 1
        %v3753 = vmax.f32 %v3751, %v3752
        %v3754 = vsel %vm442, %v3345, -inf
        %v3755 = vrot.slane %v3754, 4
        %v3756 = vmax.f32 %v3754, %v3755
        %v3757 = vrot.slane %v3756, 2
        %v3758 = vmax.f32 %v3756, %v3757
        %v3759 = vrot.slane %v3758, 1
        %v3760 = vmax.f32 %v3758, %v3759
        %v3761 = vsel %vm442, %v3346, -inf
        %v3762 = vrot.slane %v3761, 4
        %v3763 = vmax.f32 %v3761, %v3762
        %v3764 = vrot.slane %v3763, 2
        %v3765 = vmax.f32 %v3763, %v3764
        %v3766 = vrot.slane %v3765, 1
        %v3767 = vmax.f32 %v3765, %v3766
        %v3768 = vsel %vm442, %v3285, -inf
        %v3769 = vrot.slane %v3768, 4
        %v3770 = vmax.f32 %v3768, %v3769
        %v3771 = vrot.slane %v3770, 2
        %v3772 = vmax.f32 %v3770, %v3771
        %v3773 = vrot.slane %v3772, 1
        %v3774 = vmax.f32 %v3772, %v3773
        %v3775 = vsel %vm442, %v3347, -inf
        %v3776 = vrot.slane %v3775, 4
        %v3777 = vmax.f32 %v3775, %v3776
        %v3778 = vrot.slane %v3777, 2
        %v3779 = vmax.f32 %v3777, %v3778
        %v3780 = vrot.slane %v3779, 1
        %v3781 = vmax.f32 %v3779, %v3780
        %v3782 = vsel %vm442, %v3348, -inf
        %v3783 = vrot.slane %v3782, 4
        %v3784 = vmax.f32 %v3782, %v3783
        %v3785 = vrot.slane %v3784, 2
        %v3786 = vmax.f32 %v3784, %v3785
        %v3787 = vrot.slane %v3786, 1
        %v3788 = vmax.f32 %v3786, %v3787
        %v3789 = vsel %vm442, %v3349, -inf
        %v3790 = vrot.slane %v3789, 4
        %v3791 = vmax.f32 %v3789, %v3790
        %v3792 = vrot.slane %v3791, 2
        %v3793 = vmax.f32 %v3791, %v3792
        %v3794 = vrot.slane %v3793, 1
        %v3795 = vmax.f32 %v3793, %v3794
        %v3796 = vsel %vm442, %v3288, -inf
        %v3797 = vrot.slane %v3796, 4
        %v3798 = vmax.f32 %v3796, %v3797
        %v3799 = vrot.slane %v3798, 2
        %v3800 = vmax.f32 %v3798, %v3799
        %v3801 = vrot.slane %v3800, 1
        %v3802 = vmax.f32 %v3800, %v3801
        %v3803 = vsel %vm442, %v3350, -inf
        %v3804 = vrot.slane %v3803, 4
        %v3805 = vmax.f32 %v3803, %v3804
        %v3806 = vrot.slane %v3805, 2
        %v3807 = vmax.f32 %v3805, %v3806
        %v3808 = vrot.slane %v3807, 1
        %v3809 = vmax.f32 %v3807, %v3808
        %v3810 = vsel %vm442, %v3351, -inf
        %v3811 = vrot.slane %v3810, 4
        %v3812 = vmax.f32 %v3810, %v3811
        %v3813 = vrot.slane %v3812, 2
        %v3814 = vmax.f32 %v3812, %v3813
        %v3815 = vrot.slane %v3814, 1
        %v3816 = vmax.f32 %v3814, %v3815
        %v3817 = vsel %vm442, %v3352, -inf
        %v3818 = vrot.slane %v3817, 4
        %v3819 = vmax.f32 %v3817, %v3818
        %v3820 = vrot.slane %v3819, 2
        %v3821 = vmax.f32 %v3819, %v3820
        %v3822 = vrot.slane %v3821, 1
        %v3823 = vmax.f32 %v3821, %v3822
        %v3824 = vsel %vm442, %v3291, -inf
        %v3825 = vrot.slane %v3824, 4
        %v3826 = vmax.f32 %v3824, %v3825
        %v3827 = vrot.slane %v3826, 2
        %v3828 = vmax.f32 %v3826, %v3827
        %v3829 = vrot.slane %v3828, 1
        %v3830 = vmax.f32 %v3828, %v3829
        %v3831 = vsel %vm442, %v3353, -inf
        %v3832 = vrot.slane %v3831, 4
        %v3833 = vmax.f32 %v3831, %v3832
        %v3834 = vrot.slane %v3833, 2
        %v3835 = vmax.f32 %v3833, %v3834
        %v3836 = vrot.slane %v3835, 1
        %v3837 = vmax.f32 %v3835, %v3836
        %v3838 = vsel %vm442, %v3354, -inf
        %v3839 = vrot.slane %v3838, 4
        %v3840 = vmax.f32 %v3838, %v3839
        %v3841 = vrot.slane %v3840, 2
        %v3842 = vmax.f32 %v3840, %v3841
        %v3843 = vrot.slane %v3842, 1
        %v3844 = vmax.f32 %v3842, %v3843
        %v3845 = vsel %vm442, %v3355, -inf
        %v3846 = vrot.slane %v3845, 4
        %v3847 = vmax.f32 %v3845, %v3846
        %v3848 = vrot.slane %v3847, 2
        %v3849 = vmax.f32 %v3847, %v3848
        %v3850 = vrot.slane %v3849, 1
        %v3851 = vmax.f32 %v3849, %v3850
        %vm3916 = vcmask 1041409
        %v3917 = vsel %vm3916, %v3417, %v3410
        %vm3918 = vcmask 1042434
        %v3919 = vsel %vm3918, %v3424, %v3917
        %vm3920 = vcmask 1043459
        %v3921 = vsel %vm3920, %v3431, %v3919
        %vm3922 = vcmask 1044484
        %v3923 = vsel %vm3922, %v3438, %v3921
        %vm3924 = vcmask 1045509
        %v3925 = vsel %vm3924, %v3445, %v3923
        %vm3926 = vcmask 1046534
        %v3927 = vsel %vm3926, %v3452, %v3925
        %vm3928 = vcmask 1047559
        %v3929 = vsel %vm3928, %v3459, %v3927
        %v3930 = vsel %vm3916, %v3473, %v3466
        %v3931 = vsel %vm3918, %v3480, %v3930
        %v3932 = vsel %vm3920, %v3487, %v3931
        %v3933 = vsel %vm3922, %v3494, %v3932
        %v3934 = vsel %vm3924, %v3501, %v3933
        %v3935 = vsel %vm3926, %v3508, %v3934
        %v3936 = vsel %vm3928, %v3515, %v3935
        %v3937 = vsel %vm3916, %v3529, %v3522
        %v3938 = vsel %vm3918, %v3536, %v3937
        %v3939 = vsel %vm3920, %v3543, %v3938
        %v3940 = vsel %vm3922, %v3550, %v3939
        %v3941 = vsel %vm3924, %v3557, %v3940
        %v3942 = vsel %vm3926, %v3564, %v3941
        %v3943 = vsel %vm3928, %v3571, %v3942
        %v3944 = vsel %vm3916, %v3585, %v3578
        %v3945 = vsel %vm3918, %v3592, %v3944
        %v3946 = vsel %vm3920, %v3599, %v3945
        %v3947 = vsel %vm3922, %v3606, %v3946
        %v3948 = vsel %vm3924, %v3613, %v3947
        %v3949 = vsel %vm3926, %v3620, %v3948
        %v3950 = vsel %vm3928, %v3627, %v3949
        %v3951 = vsel %vm3916, %v3641, %v3634
        %v3952 = vsel %vm3918, %v3648, %v3951
        %v3953 = vsel %vm3920, %v3655, %v3952
        %v3954 = vsel %vm3922, %v3662, %v3953
        %v3955 = vsel %vm3924, %v3669, %v3954
        %v3956 = vsel %vm3926, %v3676, %v3955
        %v3957 = vsel %vm3928, %v3683, %v3956
        %v3958 = vsel %vm3916, %v3697, %v3690
        %v3959 = vsel %vm3918, %v3704, %v3958
        %v3960 = vsel %vm3920, %v3711, %v3959
        %v3961 = vsel %vm3922, %v3718, %v3960
        %v3962 = vsel %vm3924, %v3725, %v3961
        %v3963 = vsel %vm3926, %v3732, %v3962
        %v3964 = vsel %vm3928, %v3739, %v3963
        %v3965 = vsel %vm3916, %v3753, %v3746
        %v3966 = vsel %vm3918, %v3760, %v3965
        %v3967 = vsel %vm3920, %v3767, %v3966
        %v3968 = vsel %vm3922, %v3774, %v3967
        %v3969 = vsel %vm3924, %v3781, %v3968
        %v3970 = vsel %vm3926, %v3788, %v3969
        %v3971 = vsel %vm3928, %v3795, %v3970
        %v3972 = vsel %vm3916, %v3809, %v3802
        %v3973 = vsel %vm3918, %v3816, %v3972
        %v3974 = vsel %vm3920, %v3823, %v3973
        %v3975 = vsel %vm3922, %v3830, %v3974
        %v3976 = vsel %vm3924, %v3837, %v3975
        %v3977 = vsel %vm3926, %v3844, %v3976
        %v3978 = vsel %vm3928, %v3851, %v3977
        %s3987 = scalar_lea.vmem [#allocation3], 16
        %3988 = vst.msk [vmem:[%s3987 + $0x1] sm:$0xff] %vm440, %v3929
        %3989 = vst.msk [vmem:[%s3987 + $0x11] sm:$0xff] %vm440, %v3936
        %3990 = vst.msk [vmem:[%s3987 + $0x21] sm:$0xff] %vm440, %v3943
        %3991 = vst.msk [vmem:[%s3987 + $0x31] sm:$0xff] %vm440, %v3950
        %3992 = vst.msk [vmem:[%s3987 + $0x41] sm:$0xff] %vm440, %v3957
        %3993 = vst.msk [vmem:[%s3987 + $0x51] sm:$0xff] %vm440, %v3964
        %3994 = vst.msk [vmem:[%s3987 + $0x61] sm:$0xff] %vm440, %v3971
        %3995 = vst.msk [vmem:[%s3987 + $0x71] sm:$0xff] %vm440, %v3978
        %v3996 = vld [vmem:[#allocation3] sm:$0xff]
        %v3997 = vld [vmem:[#allocation3 + $0x10] sm:$0xff]
        %v3998 = vld [vmem:[#allocation3 + $0x20] sm:$0xff]
        %v3999 = vld [vmem:[#allocation3 + $0x30] sm:$0xff]
        %v4000 = vld [vmem:[#allocation3 + $0x40] sm:$0xff]
        %v4001 = vld [vmem:[#allocation3 + $0x50] sm:$0xff]
        %v4002 = vld [vmem:[#allocation3 + $0x60] sm:$0xff]
        %v4003 = vld [vmem:[#allocation3 + $0x70] sm:$0xff]
        %4004 = vst.msk [vmem:[#allocation5] sm:$0xff] %vm440, %v3996
        %4005 = vst.msk [vmem:[#allocation5 + $0x48] sm:$0xff] %vm440, %v3997
        %4006 = vst.msk [vmem:[#allocation5 + $0x90] sm:$0xff] %vm440, %v3998
        %4007 = vst.msk [vmem:[#allocation5 + $0xd8] sm:$0xff] %vm440, %v3999
        %4008 = vst.msk [vmem:[#allocation5 + $0x120] sm:$0xff] %vm440, %v4000
        %4009 = vst.msk [vmem:[#allocation5 + $0x168] sm:$0xff] %vm440, %v4001
        %4010 = vst.msk [vmem:[#allocation5 + $0x1b0] sm:$0xff] %vm440, %v4002
        %4011 = vst.msk [vmem:[#allocation5 + $0x1f8] sm:$0xff] %vm440, %v4003
        %v4012 = vld [vmem:[#allocation3 + $0x1] sm:$0xff]
        %v4013 = vld [vmem:[#allocation3 + $0x11] sm:$0xff]
        %v4014 = vld [vmem:[#allocation3 + $0x21] sm:$0xff]
        %v4015 = vld [vmem:[#allocation3 + $0x31] sm:$0xff]
        %v4016 = vld [vmem:[#allocation3 + $0x41] sm:$0xff]
        %v4017 = vld [vmem:[#allocation3 + $0x51] sm:$0xff]
        %v4018 = vld [vmem:[#allocation3 + $0x61] sm:$0xff]
        %v4019 = vld [vmem:[#allocation3 + $0x71] sm:$0xff]
        %4020 = vst.msk [vmem:[#allocation5 + $0x8] sm:$0xff] %vm440, %v4012
        %4021 = vst.msk [vmem:[#allocation5 + $0x50] sm:$0xff] %vm440, %v4013
        %4022 = vst.msk [vmem:[#allocation5 + $0x98] sm:$0xff] %vm440, %v4014
        %4023 = vst.msk [vmem:[#allocation5 + $0xe0] sm:$0xff] %vm440, %v4015
        %4024 = vst.msk [vmem:[#allocation5 + $0x128] sm:$0xff] %vm440, %v4016
        %4025 = vst.msk [vmem:[#allocation5 + $0x170] sm:$0xff] %vm440, %v4017
        %4026 = vst.msk [vmem:[#allocation5 + $0x1b8] sm:$0xff] %vm440, %v4018
        %4027 = vst.msk [vmem:[#allocation5 + $0x200] sm:$0xff] %vm440, %v4019
        %v4028 = vld [vmem:[#allocation3 + $0x2] sm:$0xff]
        %v4029 = vld [vmem:[#allocation3 + $0x12] sm:$0xff]
        %v4030 = vld [vmem:[#allocation3 + $0x22] sm:$0xff]
        %v4031 = vld [vmem:[#allocation3 + $0x32] sm:$0xff]
        %v4032 = vld [vmem:[#allocation3 + $0x42] sm:$0xff]
        %v4033 = vld [vmem:[#allocation3 + $0x52] sm:$0xff]
        %v4034 = vld [vmem:[#allocation3 + $0x62] sm:$0xff]
        %v4035 = vld [vmem:[#allocation3 + $0x72] sm:$0xff]
        %4036 = vst.msk [vmem:[#allocation5 + $0x10] sm:$0xff] %vm440, %v4028
        %4037 = vst.msk [vmem:[#allocation5 + $0x58] sm:$0xff] %vm440, %v4029
        %4038 = vst.msk [vmem:[#allocation5 + $0xa0] sm:$0xff] %vm440, %v4030
        %4039 = vst.msk [vmem:[#allocation5 + $0xe8] sm:$0xff] %vm440, %v4031
        %4040 = vst.msk [vmem:[#allocation5 + $0x130] sm:$0xff] %vm440, %v4032
        %4041 = vst.msk [vmem:[#allocation5 + $0x178] sm:$0xff] %vm440, %v4033
        %4042 = vst.msk [vmem:[#allocation5 + $0x1c0] sm:$0xff] %vm440, %v4034
        %4043 = vst.msk [vmem:[#allocation5 + $0x208] sm:$0xff] %vm440, %v4035
        %v4044 = vld [vmem:[%s3987] sm:$0xff]
        %v4045 = vld [vmem:[%s3987 + $0x10] sm:$0xff]
        %v4046 = vld [vmem:[%s3987 + $0x20] sm:$0xff]
        %v4047 = vld [vmem:[%s3987 + $0x30] sm:$0xff]
        %v4048 = vld [vmem:[%s3987 + $0x40] sm:$0xff]
        %v4049 = vld [vmem:[%s3987 + $0x50] sm:$0xff]
        %v4050 = vld [vmem:[%s3987 + $0x60] sm:$0xff]
        %v4051 = vld [vmem:[%s3987 + $0x70] sm:$0xff]
        %4052 = vst.msk [vmem:[#allocation5 + $0x18] sm:$0xff] %vm440, %v4044
        %4053 = vst.msk [vmem:[#allocation5 + $0x60] sm:$0xff] %vm440, %v4045
        %4054 = vst.msk [vmem:[#allocation5 + $0xa8] sm:$0xff] %vm440, %v4046
        %4055 = vst.msk [vmem:[#allocation5 + $0xf0] sm:$0xff] %vm440, %v4047
        %4056 = vst.msk [vmem:[#allocation5 + $0x138] sm:$0xff] %vm440, %v4048
        %4057 = vst.msk [vmem:[#allocation5 + $0x180] sm:$0xff] %vm440, %v4049
        %4058 = vst.msk [vmem:[#allocation5 + $0x1c8] sm:$0xff] %vm440, %v4050
        %4059 = vst.msk [vmem:[#allocation5 + $0x210] sm:$0xff] %vm440, %v4051
        %v4060 = vld [vmem:[%s3987 + $0x1] sm:$0xff]
        %v4061 = vld [vmem:[%s3987 + $0x11] sm:$0xff]
        %v4062 = vld [vmem:[%s3987 + $0x21] sm:$0xff]
        %v4063 = vld [vmem:[%s3987 + $0x31] sm:$0xff]
        %v4064 = vld [vmem:[%s3987 + $0x41] sm:$0xff]
        %v4065 = vld [vmem:[%s3987 + $0x51] sm:$0xff]
        %v4066 = vld [vmem:[%s3987 + $0x61] sm:$0xff]
        %v4067 = vld [vmem:[%s3987 + $0x71] sm:$0xff]
        %4068 = vst.msk [vmem:[#allocation5 + $0x20] sm:$0xff] %vm440, %v4060
        %4069 = vst.msk [vmem:[#allocation5 + $0x68] sm:$0xff] %vm440, %v4061
        %4070 = vst.msk [vmem:[#allocation5 + $0xb0] sm:$0xff] %vm440, %v4062
        %4071 = vst.msk [vmem:[#allocation5 + $0xf8] sm:$0xff] %vm440, %v4063
        %4072 = vst.msk [vmem:[#allocation5 + $0x140] sm:$0xff] %vm440, %v4064
        %4073 = vst.msk [vmem:[#allocation5 + $0x188] sm:$0xff] %vm440, %v4065
        %4074 = vst.msk [vmem:[#allocation5 + $0x1d0] sm:$0xff] %vm440, %v4066
        %4075 = vst.msk [vmem:[#allocation5 + $0x218] sm:$0xff] %vm440, %v4067
        %v4076 = vld [vmem:[%s3987 + $0x2] sm:$0xff]
        %v4077 = vld [vmem:[%s3987 + $0x12] sm:$0xff]
        %v4078 = vld [vmem:[%s3987 + $0x22] sm:$0xff]
        %v4079 = vld [vmem:[%s3987 + $0x32] sm:$0xff]
        %v4080 = vld [vmem:[%s3987 + $0x42] sm:$0xff]
        %v4081 = vld [vmem:[%s3987 + $0x52] sm:$0xff]
        %v4082 = vld [vmem:[%s3987 + $0x62] sm:$0xff]
        %v4083 = vld [vmem:[%s3987 + $0x72] sm:$0xff]
        %4084 = vst.msk [vmem:[#allocation5 + $0x28] sm:$0xff] %vm440, %v4076
        %4085 = vst.msk [vmem:[#allocation5 + $0x70] sm:$0xff] %vm440, %v4077
        %4086 = vst.msk [vmem:[#allocation5 + $0xb8] sm:$0xff] %vm440, %v4078
        %4087 = vst.msk [vmem:[#allocation5 + $0x100] sm:$0xff] %vm440, %v4079
        %4088 = vst.msk [vmem:[#allocation5 + $0x148] sm:$0xff] %vm440, %v4080
        %4089 = vst.msk [vmem:[#allocation5 + $0x190] sm:$0xff] %vm440, %v4081
        %4090 = vst.msk [vmem:[#allocation5 + $0x1d8] sm:$0xff] %vm440, %v4082
        %4091 = vst.msk [vmem:[#allocation5 + $0x220] sm:$0xff] %vm440, %v4083
        %s4092 = scalar_lea.vmem [#allocation3], 32
        %v4093 = vld [vmem:[%s4092] sm:$0xff]
        %v4094 = vld [vmem:[%s4092 + $0x10] sm:$0xff]
        %v4095 = vld [vmem:[%s4092 + $0x20] sm:$0xff]
        %v4096 = vld [vmem:[%s4092 + $0x30] sm:$0xff]
        %v4097 = vld [vmem:[%s4092 + $0x40] sm:$0xff]
        %v4098 = vld [vmem:[%s4092 + $0x50] sm:$0xff]
        %v4099 = vld [vmem:[%s4092 + $0x60] sm:$0xff]
        %v4100 = vld [vmem:[%s4092 + $0x70] sm:$0xff]
        %4101 = vst.msk [vmem:[#allocation5 + $0x30] sm:$0xff] %vm440, %v4093
        %4102 = vst.msk [vmem:[#allocation5 + $0x78] sm:$0xff] %vm440, %v4094
        %4103 = vst.msk [vmem:[#allocation5 + $0xc0] sm:$0xff] %vm440, %v4095
        %4104 = vst.msk [vmem:[#allocation5 + $0x108] sm:$0xff] %vm440, %v4096
        %4105 = vst.msk [vmem:[#allocation5 + $0x150] sm:$0xff] %vm440, %v4097
        %4106 = vst.msk [vmem:[#allocation5 + $0x198] sm:$0xff] %vm440, %v4098
        %4107 = vst.msk [vmem:[#allocation5 + $0x1e0] sm:$0xff] %vm440, %v4099
        %4108 = vst.msk [vmem:[#allocation5 + $0x228] sm:$0xff] %vm440, %v4100
        %v4109 = vld [vmem:[%s4092 + $0x1] sm:$0xff]
        %v4110 = vld [vmem:[%s4092 + $0x11] sm:$0xff]
        %v4111 = vld [vmem:[%s4092 + $0x21] sm:$0xff]
        %v4112 = vld [vmem:[%s4092 + $0x31] sm:$0xff]
        %v4113 = vld [vmem:[%s4092 + $0x41] sm:$0xff]
        %v4114 = vld [vmem:[%s4092 + $0x51] sm:$0xff]
        %v4115 = vld [vmem:[%s4092 + $0x61] sm:$0xff]
        %v4116 = vld [vmem:[%s4092 + $0x71] sm:$0xff]
        %4117 = vst.msk [vmem:[#allocation5 + $0x38] sm:$0xff] %vm440, %v4109
        %4118 = vst.msk [vmem:[#allocation5 + $0x80] sm:$0xff] %vm440, %v4110
        %4119 = vst.msk [vmem:[#allocation5 + $0xc8] sm:$0xff] %vm440, %v4111
        %4120 = vst.msk [vmem:[#allocation5 + $0x110] sm:$0xff] %vm440, %v4112
        %4121 = vst.msk [vmem:[#allocation5 + $0x158] sm:$0xff] %vm440, %v4113
        %4122 = vst.msk [vmem:[#allocation5 + $0x1a0] sm:$0xff] %vm440, %v4114
        %4123 = vst.msk [vmem:[#allocation5 + $0x1e8] sm:$0xff] %vm440, %v4115
        %4124 = vst.msk [vmem:[#allocation5 + $0x230] sm:$0xff] %vm440, %v4116
        %v4125 = vld [vmem:[%s4092 + $0x2] sm:$0xff]
        %v4126 = vld [vmem:[%s4092 + $0x12] sm:$0xff]
        %v4127 = vld [vmem:[%s4092 + $0x22] sm:$0xff]
        %v4128 = vld [vmem:[%s4092 + $0x32] sm:$0xff]
        %v4129 = vld [vmem:[%s4092 + $0x42] sm:$0xff]
        %v4130 = vld [vmem:[%s4092 + $0x52] sm:$0xff]
        %v4131 = vld [vmem:[%s4092 + $0x62] sm:$0xff]
        %v4132 = vld [vmem:[%s4092 + $0x72] sm:$0xff]
        %4133 = vst.msk [vmem:[#allocation5 + $0x40] sm:$0xff] %vm440, %v4125
        %4134 = vst.msk [vmem:[#allocation5 + $0x88] sm:$0xff] %vm440, %v4126
        %4135 = vst.msk [vmem:[#allocation5 + $0xd0] sm:$0xff] %vm440, %v4127
        %4136 = vst.msk [vmem:[#allocation5 + $0x118] sm:$0xff] %vm440, %v4128
        %4137 = vst.msk [vmem:[#allocation5 + $0x160] sm:$0xff] %vm440, %v4129
        %4138 = vst.msk [vmem:[#allocation5 + $0x1a8] sm:$0xff] %vm440, %v4130
        %4139 = vst.msk [vmem:[#allocation5 + $0x1f0] sm:$0xff] %vm440, %v4131
        %4140 = vst.msk [vmem:[#allocation5 + $0x238] sm:$0xff] %vm440, %v4132
        %v4141 = vld [vmem:[#allocation5] sm:$0xff]
        %v4142 = vld [vmem:[#allocation5 + $0x8] sm:$0xff]
        %v4143 = vld [vmem:[#allocation5 + $0x10] sm:$0xff]
        %v4144 = vld [vmem:[#allocation5 + $0x18] sm:$0xff]
        %v4145 = vld [vmem:[#allocation5 + $0x20] sm:$0xff]
        %v4146 = vld [vmem:[#allocation5 + $0x28] sm:$0xff]
        %v4147 = vld [vmem:[#allocation5 + $0x30] sm:$0xff]
        %v4148 = vld [vmem:[#allocation5 + $0x38] sm:$0xff]
        %v4149 = vld [vmem:[#allocation5 + $0x40] sm:$0xff]
        %v4150 = vld [vmem:[#allocation5 + $0x48] sm:$0xff]
        %v4151 = vld [vmem:[#allocation5 + $0x50] sm:$0xff]
        %v4152 = vld [vmem:[#allocation5 + $0x58] sm:$0xff]
        %v4153 = vld [vmem:[#allocation5 + $0x60] sm:$0xff]
        %v4154 = vld [vmem:[#allocation5 + $0x68] sm:$0xff]
        %v4155 = vld [vmem:[#allocation5 + $0x70] sm:$0xff]
        %v4156 = vld [vmem:[#allocation5 + $0x78] sm:$0xff]
        %v4157 = vld [vmem:[#allocation5 + $0x80] sm:$0xff]
        %v4158 = vld [vmem:[#allocation5 + $0x88] sm:$0xff]
        %v4159 = vld [vmem:[#allocation5 + $0x90] sm:$0xff]
        %v4160 = vld [vmem:[#allocation5 + $0x98] sm:$0xff]
        %v4161 = vld [vmem:[#allocation5 + $0xa0] sm:$0xff]
        %v4162 = vld [vmem:[#allocation5 + $0xa8] sm:$0xff]
        %v4163 = vld [vmem:[#allocation5 + $0xb0] sm:$0xff]
        %v4164 = vld [vmem:[#allocation5 + $0xb8] sm:$0xff]
        %v4165 = vld [vmem:[#allocation5 + $0xc0] sm:$0xff]
        %v4166 = vld [vmem:[#allocation5 + $0xc8] sm:$0xff]
        %v4167 = vld [vmem:[#allocation5 + $0xd0] sm:$0xff]
        %v4168 = vld [vmem:[#allocation5 + $0xd8] sm:$0xff]
        %v4169 = vld [vmem:[#allocation5 + $0xe0] sm:$0xff]
        %v4170 = vld [vmem:[#allocation5 + $0xe8] sm:$0xff]
        %v4171 = vld [vmem:[#allocation5 + $0xf0] sm:$0xff]
        %v4172 = vld [vmem:[#allocation5 + $0xf8] sm:$0xff]
        %v4173 = vld [vmem:[#allocation5 + $0x100] sm:$0xff]
        %v4174 = vld [vmem:[#allocation5 + $0x108] sm:$0xff]
        %v4175 = vld [vmem:[#allocation5 + $0x110] sm:$0xff]
        %v4176 = vld [vmem:[#allocation5 + $0x118] sm:$0xff]
        %v4177 = vld [vmem:[#allocation5 + $0x120] sm:$0xff]
        %v4178 = vld [vmem:[#allocation5 + $0x128] sm:$0xff]
        %v4179 = vld [vmem:[#allocation5 + $0x130] sm:$0xff]
        %v4180 = vld [vmem:[#allocation5 + $0x138] sm:$0xff]
        %v4181 = vld [vmem:[#allocation5 + $0x140] sm:$0xff]
        %v4182 = vld [vmem:[#allocation5 + $0x148] sm:$0xff]
        %v4183 = vld [vmem:[#allocation5 + $0x150] sm:$0xff]
        %v4184 = vld [vmem:[#allocation5 + $0x158] sm:$0xff]
        %v4185 = vld [vmem:[#allocation5 + $0x160] sm:$0xff]
        %v4186 = vld [vmem:[#allocation5 + $0x168] sm:$0xff]
        %v4187 = vld [vmem:[#allocation5 + $0x170] sm:$0xff]
        %v4188 = vld [vmem:[#allocation5 + $0x178] sm:$0xff]
        %v4189 = vld [vmem:[#allocation5 + $0x180] sm:$0xff]
        %v4190 = vld [vmem:[#allocation5 + $0x188] sm:$0xff]
        %v4191 = vld [vmem:[#allocation5 + $0x190] sm:$0xff]
        %v4192 = vld [vmem:[#allocation5 + $0x198] sm:$0xff]
        %v4193 = vld [vmem:[#allocation5 + $0x1a0] sm:$0xff]
        %v4194 = vld [vmem:[#allocation5 + $0x1a8] sm:$0xff]
        %v4195 = vld [vmem:[#allocation5 + $0x1b0] sm:$0xff]
        %v4196 = vld [vmem:[#allocation5 + $0x1b8] sm:$0xff]
        %v4197 = vld [vmem:[#allocation5 + $0x1c0] sm:$0xff]
        %v4198 = vld [vmem:[#allocation5 + $0x1c8] sm:$0xff]
        %v4199 = vld [vmem:[#allocation5 + $0x1d0] sm:$0xff]
        %v4200 = vld [vmem:[#allocation5 + $0x1d8] sm:$0xff]
        %v4201 = vld [vmem:[#allocation5 + $0x1e0] sm:$0xff]
        %v4202 = vld [vmem:[#allocation5 + $0x1e8] sm:$0xff]
        %v4203 = vld [vmem:[#allocation5 + $0x1f0] sm:$0xff]
        %v4204 = vld [vmem:[#allocation5 + $0x1f8] sm:$0xff]
        %v4205 = vld [vmem:[#allocation5 + $0x200] sm:$0xff]
        %v4206 = vld [vmem:[#allocation5 + $0x208] sm:$0xff]
        %v4207 = vld [vmem:[#allocation5 + $0x210] sm:$0xff]
        %v4208 = vld [vmem:[#allocation5 + $0x218] sm:$0xff]
        %v4209 = vld [vmem:[#allocation5 + $0x220] sm:$0xff]
        %v4210 = vld [vmem:[#allocation5 + $0x228] sm:$0xff]
        %v4211 = vld [vmem:[#allocation5 + $0x230] sm:$0xff]
        %v4212 = vld [vmem:[#allocation5 + $0x238] sm:$0xff]
        %v4213 = vpack.c.bf16 %v4150, %v4141
        %v4214 = vpack.c.bf16 %v4151, %v4142
        %v4215 = vpack.c.bf16 %v4152, %v4143
        %v4216 = vpack.c.bf16 %v4153, %v4144
        %v4217 = vpack.c.bf16 %v4154, %v4145
        %v4218 = vpack.c.bf16 %v4155, %v4146
        %v4219 = vpack.c.bf16 %v4156, %v4147
        %v4220 = vpack.c.bf16 %v4157, %v4148
        %v4221 = vpack.c.bf16 %v4158, %v4149
        %v4222 = vpack.c.bf16 %v4168, %v4159
        %v4223 = vpack.c.bf16 %v4169, %v4160
        %v4224 = vpack.c.bf16 %v4170, %v4161
        %v4225 = vpack.c.bf16 %v4171, %v4162
        %v4226 = vpack.c.bf16 %v4172, %v4163
        %v4227 = vpack.c.bf16 %v4173, %v4164
        %v4228 = vpack.c.bf16 %v4174, %v4165
        %v4229 = vpack.c.bf16 %v4175, %v4166
        %v4230 = vpack.c.bf16 %v4176, %v4167
        %v4231 = vpack.c.bf16 %v4186, %v4177
        %v4232 = vpack.c.bf16 %v4187, %v4178
        %v4233 = vpack.c.bf16 %v4188, %v4179
        %v4234 = vpack.c.bf16 %v4189, %v4180
        %v4235 = vpack.c.bf16 %v4190, %v4181
        %v4236 = vpack.c.bf16 %v4191, %v4182
        %v4237 = vpack.c.bf16 %v4192, %v4183
        %v4238 = vpack.c.bf16 %v4193, %v4184
        %v4239 = vpack.c.bf16 %v4194, %v4185
        %v4240 = vpack.c.bf16 %v4204, %v4195
        %v4241 = vpack.c.bf16 %v4205, %v4196
        %v4242 = vpack.c.bf16 %v4206, %v4197
        %v4243 = vpack.c.bf16 %v4207, %v4198
        %v4244 = vpack.c.bf16 %v4208, %v4199
        %v4245 = vpack.c.bf16 %v4209, %v4200
        %v4246 = vpack.c.bf16 %v4210, %v4201
        %v4247 = vpack.c.bf16 %v4211, %v4202
        %v4248 = vpack.c.bf16 %v4212, %v4203
        %v4249 = vld [vmem:[%s3] sm:$0xf]
        %v4250 = vld [vmem:[%s3 + $0x4] sm:$0xf]
        %v4251 = vld [vmem:[%s3 + $0x8] sm:$0xf]
        %v4252 = vld [vmem:[%s3 + $0xc] sm:$0xf]
        %v4253 = vld [vmem:[%s3 + $0x10] sm:$0xf]
        %v4254 = vld [vmem:[%s3 + $0x14] sm:$0xf]
        %v4255 = vld [vmem:[%s3 + $0x18] sm:$0xf]
        %v4256 = vld [vmem:[%s3 + $0x1c] sm:$0xf]
        %v4257 = vld [vmem:[%s3 + $0x20] sm:$0xf]
        %v4258 = vld [vmem:[%s3 + $0x24] sm:$0xf]
        %v4259 = vld [vmem:[%s3 + $0x28] sm:$0xf]
        %v4260 = vld [vmem:[%s3 + $0x2c] sm:$0xf]
        %v4261 = vld [vmem:[%s3 + $0x30] sm:$0xf]
        %v4262 = vld [vmem:[%s3 + $0x34] sm:$0xf]
        %v4263 = vld [vmem:[%s3 + $0x38] sm:$0xf]
        %v4264 = vld [vmem:[%s3 + $0x3c] sm:$0xf]
        %v4265 = vld [vmem:[%s3 + $0x40] sm:$0xf]
        %v4266 = vld [vmem:[%s3 + $0x44] sm:$0xf]
        %v4267 = vld [vmem:[%s3 + $0x48] sm:$0xf]
        %v4268 = vld [vmem:[%s3 + $0x4c] sm:$0xf]
        %v4269 = vld [vmem:[%s3 + $0x50] sm:$0xf]
        %v4270 = vld [vmem:[%s3 + $0x54] sm:$0xf]
        %v4271 = vld [vmem:[%s3 + $0x58] sm:$0xf]
        %v4272 = vld [vmem:[%s3 + $0x5c] sm:$0xf]
        %v4273 = vld [vmem:[%s3 + $0x60] sm:$0xf]
        %v4274 = vld [vmem:[%s3 + $0x64] sm:$0xf]
        %v4275 = vld [vmem:[%s3 + $0x68] sm:$0xf]
        %v4276 = vld [vmem:[%s3 + $0x6c] sm:$0xf]
        %v4277 = vld [vmem:[%s3 + $0x70] sm:$0xf]
        %v4278 = vld [vmem:[%s3 + $0x74] sm:$0xf]
        %v4279 = vld [vmem:[%s3 + $0x78] sm:$0xf]
        %v4280 = vld [vmem:[%s3 + $0x7c] sm:$0xf]
        %v4281 = vld [vmem:[%s3 + $0x80] sm:$0xf]
        %v4282 = vld [vmem:[%s3 + $0x84] sm:$0xf]
        %v4283 = vld [vmem:[%s3 + $0x88] sm:$0xf]
        %v4284 = vld [vmem:[%s3 + $0x8c] sm:$0xf]
        %v4285 = vld [vmem:[%s3 + $0x90] sm:$0xf]
        %v4286 = vld [vmem:[%s3 + $0x94] sm:$0xf]
        %v4287 = vld [vmem:[%s3 + $0x98] sm:$0xf]
        %v4288 = vld [vmem:[%s3 + $0x9c] sm:$0xf]
        %v4289 = vld [vmem:[%s3 + $0xa0] sm:$0xf]
        %v4290 = vld [vmem:[%s3 + $0xa4] sm:$0xf]
        %v4291 = vld [vmem:[%s3 + $0xa8] sm:$0xf]
        %v4292 = vld [vmem:[%s3 + $0xac] sm:$0xf]
        %v4293 = vld [vmem:[%s3 + $0xb0] sm:$0xf]
        %v4294 = vld [vmem:[%s3 + $0xb4] sm:$0xf]
        %v4295 = vld [vmem:[%s3 + $0xb8] sm:$0xf]
        %v4296 = vld [vmem:[%s3 + $0xbc] sm:$0xf]
        %v4297 = vld [vmem:[%s3 + $0xc0] sm:$0xf]
        %v4298 = vld [vmem:[%s3 + $0xc4] sm:$0xf]
        %v4299 = vld [vmem:[%s3 + $0xc8] sm:$0xf]
        %v4300 = vld [vmem:[%s3 + $0xcc] sm:$0xf]
        %v4301 = vld [vmem:[%s3 + $0xd0] sm:$0xf]
        %v4302 = vld [vmem:[%s3 + $0xd4] sm:$0xf]
        %v4303 = vld [vmem:[%s3 + $0xd8] sm:$0xf]
        %v4304 = vld [vmem:[%s3 + $0xdc] sm:$0xf]
        %v4305 = vld [vmem:[%s3 + $0xe0] sm:$0xf]
        %v4306 = vld [vmem:[%s3 + $0xe4] sm:$0xf]
        %v4307 = vld [vmem:[%s3 + $0xe8] sm:$0xf]
        %v4308 = vld [vmem:[%s3 + $0xec] sm:$0xf]
        %v4309 = vld [vmem:[%s3 + $0xf0] sm:$0xf]
        %v4310 = vld [vmem:[%s3 + $0xf4] sm:$0xf]
        %v4311 = vld [vmem:[%s3 + $0xf8] sm:$0xf]
        %v4312 = vld [vmem:[%s3 + $0xfc] sm:$0xf]
        %v4313 = vld [vmem:[%s3 + $0x100] sm:$0xf]
        %v4314 = vld [vmem:[%s3 + $0x104] sm:$0xf]
        %v4315 = vld [vmem:[%s3 + $0x108] sm:$0xf]
        %v4316 = vld [vmem:[%s3 + $0x10c] sm:$0xf]
        %v4317 = vld [vmem:[%s3 + $0x110] sm:$0xf]
        %v4318 = vld [vmem:[%s3 + $0x114] sm:$0xf]
        %v4319 = vld [vmem:[%s3 + $0x118] sm:$0xf]
        %v4320 = vld [vmem:[%s3 + $0x11c] sm:$0xf]
        %v4321 = vld [vmem:[%s3 + $0x120] sm:$0xf]
        %v4322 = vld [vmem:[%s3 + $0x124] sm:$0xf]
        %v4323 = vld [vmem:[%s3 + $0x128] sm:$0xf]
        %v4324 = vld [vmem:[%s3 + $0x12c] sm:$0xf]
        %v4325 = vld [vmem:[%s3 + $0x130] sm:$0xf]
        %v4326 = vld [vmem:[%s3 + $0x134] sm:$0xf]
        %v4327 = vld [vmem:[%s3 + $0x138] sm:$0xf]
        %v4328 = vld [vmem:[%s3 + $0x13c] sm:$0xf]
        %v4329 = vld [vmem:[%s3 + $0x140] sm:$0xf]
        %v4330 = vld [vmem:[%s3 + $0x144] sm:$0xf]
        %v4331 = vld [vmem:[%s3 + $0x148] sm:$0xf]
        %v4332 = vld [vmem:[%s3 + $0x14c] sm:$0xf]
        %v4333 = vld [vmem:[%s3 + $0x150] sm:$0xf]
        %v4334 = vld [vmem:[%s3 + $0x154] sm:$0xf]
        %v4335 = vld [vmem:[%s3 + $0x158] sm:$0xf]
        %v4336 = vld [vmem:[%s3 + $0x15c] sm:$0xf]
        %v4337 = vld [vmem:[%s3 + $0x160] sm:$0xf]
        %v4338 = vld [vmem:[%s3 + $0x164] sm:$0xf]
        %v4339 = vld [vmem:[%s3 + $0x168] sm:$0xf]
        %v4340 = vld [vmem:[%s3 + $0x16c] sm:$0xf]
        %v4341 = vld [vmem:[%s3 + $0x170] sm:$0xf]
        %v4342 = vld [vmem:[%s3 + $0x174] sm:$0xf]
        %v4343 = vld [vmem:[%s3 + $0x178] sm:$0xf]
        %v4344 = vld [vmem:[%s3 + $0x17c] sm:$0xf]
        %v4345 = vld [vmem:[%s3 + $0x180] sm:$0xf]
        %v4346 = vld [vmem:[%s3 + $0x184] sm:$0xf]
        %v4347 = vld [vmem:[%s3 + $0x188] sm:$0xf]
        %v4348 = vld [vmem:[%s3 + $0x18c] sm:$0xf]
        %v4349 = vld [vmem:[%s3 + $0x190] sm:$0xf]
        %v4350 = vld [vmem:[%s3 + $0x194] sm:$0xf]
        %v4351 = vld [vmem:[%s3 + $0x198] sm:$0xf]
        %v4352 = vld [vmem:[%s3 + $0x19c] sm:$0xf]
        %v4353 = vld [vmem:[%s3 + $0x1a0] sm:$0xf]
        %v4354 = vld [vmem:[%s3 + $0x1a4] sm:$0xf]
        %v4355 = vld [vmem:[%s3 + $0x1a8] sm:$0xf]
        %v4356 = vld [vmem:[%s3 + $0x1ac] sm:$0xf]
        %v4357 = vld [vmem:[%s3 + $0x1b0] sm:$0xf]
        %v4358 = vld [vmem:[%s3 + $0x1b4] sm:$0xf]
        %v4359 = vld [vmem:[%s3 + $0x1b8] sm:$0xf]
        %v4360 = vld [vmem:[%s3 + $0x1bc] sm:$0xf]
        %v4361 = vld [vmem:[%s3 + $0x1c0] sm:$0xf]
        %v4362 = vld [vmem:[%s3 + $0x1c4] sm:$0xf]
        %v4363 = vld [vmem:[%s3 + $0x1c8] sm:$0xf]
        %v4364 = vld [vmem:[%s3 + $0x1cc] sm:$0xf]
        %v4365 = vld [vmem:[%s3 + $0x1d0] sm:$0xf]
        %v4366 = vld [vmem:[%s3 + $0x1d4] sm:$0xf]
        %v4367 = vld [vmem:[%s3 + $0x1d8] sm:$0xf]
        %v4368 = vld [vmem:[%s3 + $0x1dc] sm:$0xf]
        %v4369 = vld [vmem:[%s3 + $0x1e0] sm:$0xf]
        %v4370 = vld [vmem:[%s3 + $0x1e4] sm:$0xf]
        %v4371 = vld [vmem:[%s3 + $0x1e8] sm:$0xf]
        %v4372 = vld [vmem:[%s3 + $0x1ec] sm:$0xf]
        %v4373 = vld [vmem:[%s3 + $0x1f0] sm:$0xf]
        %v4374 = vld [vmem:[%s3 + $0x1f4] sm:$0xf]
        %v4375 = vld [vmem:[%s3 + $0x1f8] sm:$0xf]
        %v4376 = vld [vmem:[%s3 + $0x1fc] sm:$0xf]
        %v4377 = vld [vmem:[%s3 + $0x200] sm:$0xf]
        %v4378 = vld [vmem:[%s3 + $0x204] sm:$0xf]
        %v4379 = vld [vmem:[%s3 + $0x208] sm:$0xf]
        %v4380 = vld [vmem:[%s3 + $0x20c] sm:$0xf]
        %v4381 = vld [vmem:[%s3 + $0x210] sm:$0xf]
        %v4382 = vld [vmem:[%s3 + $0x214] sm:$0xf]
        %v4383 = vld [vmem:[%s3 + $0x218] sm:$0xf]
        %v4384 = vld [vmem:[%s3 + $0x21c] sm:$0xf]
        %v4385 = vld [vmem:[%s3 + $0x220] sm:$0xf]
        %v4386 = vld [vmem:[%s3 + $0x224] sm:$0xf]
        %v4387 = vld [vmem:[%s3 + $0x228] sm:$0xf]
        %v4388 = vld [vmem:[%s3 + $0x22c] sm:$0xf]
        %v4389 = vld [vmem:[%s3 + $0x230] sm:$0xf]
        %v4390 = vld [vmem:[%s3 + $0x234] sm:$0xf]
        %v4391 = vld [vmem:[%s3 + $0x238] sm:$0xf]
        %v4392 = vld [vmem:[%s3 + $0x23c] sm:$0xf]
        %v4393 = vld [vmem:[%s4] sm:$0x1]
        %v4395 = vperm.slane %v4393, 0
        %v4541 = vunpack.c.l.b16 %v4249
        %v4542 = vunpack.c.l.b16 %v4250
        %v4543 = vunpack.c.l.b16 %v4251
        %v4544 = vunpack.c.l.b16 %v4252
        %v4545 = vunpack.c.l.b16 %v4253
        %v4546 = vunpack.c.l.b16 %v4254
        %v4547 = vunpack.c.l.b16 %v4255
        %v4548 = vunpack.c.l.b16 %v4256
        %v4549 = vunpack.c.l.b16 %v4257
        %v4550 = vunpack.c.l.b16 %v4258
        %v4551 = vunpack.c.l.b16 %v4259
        %v4552 = vunpack.c.l.b16 %v4260
        %v4553 = vunpack.c.l.b16 %v4261
        %v4554 = vunpack.c.l.b16 %v4262
        %v4555 = vunpack.c.l.b16 %v4263
        %v4556 = vunpack.c.l.b16 %v4264
        %v4557 = vunpack.c.l.b16 %v4265
        %v4558 = vunpack.c.l.b16 %v4266
        %v4559 = vunpack.c.l.b16 %v4267
        %v4560 = vunpack.c.l.b16 %v4268
        %v4561 = vunpack.c.l.b16 %v4269
        %v4562 = vunpack.c.l.b16 %v4270
        %v4563 = vunpack.c.l.b16 %v4271
        %v4564 = vunpack.c.l.b16 %v4272
        %v4565 = vunpack.c.l.b16 %v4273
        %v4566 = vunpack.c.l.b16 %v4274
        %v4567 = vunpack.c.l.b16 %v4275
        %v4568 = vunpack.c.l.b16 %v4276
        %v4569 = vunpack.c.l.b16 %v4277
        %v4570 = vunpack.c.l.b16 %v4278
        %v4571 = vunpack.c.l.b16 %v4279
        %v4572 = vunpack.c.l.b16 %v4280
        %v4573 = vunpack.c.l.b16 %v4281
        %v4574 = vunpack.c.l.b16 %v4282
        %v4575 = vunpack.c.l.b16 %v4283
        %v4576 = vunpack.c.l.b16 %v4284
        %v4577 = vunpack.c.l.b16 %v4285
        %v4578 = vunpack.c.l.b16 %v4286
        %v4579 = vunpack.c.l.b16 %v4287
        %v4580 = vunpack.c.l.b16 %v4288
        %v4581 = vunpack.c.l.b16 %v4289
        %v4582 = vunpack.c.l.b16 %v4290
        %v4583 = vunpack.c.l.b16 %v4291
        %v4584 = vunpack.c.l.b16 %v4292
        %v4585 = vunpack.c.l.b16 %v4293
        %v4586 = vunpack.c.l.b16 %v4294
        %v4587 = vunpack.c.l.b16 %v4295
        %v4588 = vunpack.c.l.b16 %v4296
        %v4589 = vunpack.c.l.b16 %v4297
        %v4590 = vunpack.c.l.b16 %v4298
        %v4591 = vunpack.c.l.b16 %v4299
        %v4592 = vunpack.c.l.b16 %v4300
        %v4593 = vunpack.c.l.b16 %v4301
        %v4594 = vunpack.c.l.b16 %v4302
        %v4595 = vunpack.c.l.b16 %v4303
        %v4596 = vunpack.c.l.b16 %v4304
        %v4597 = vunpack.c.l.b16 %v4305
        %v4598 = vunpack.c.l.b16 %v4306
        %v4599 = vunpack.c.l.b16 %v4307
        %v4600 = vunpack.c.l.b16 %v4308
        %v4601 = vunpack.c.l.b16 %v4309
        %v4602 = vunpack.c.l.b16 %v4310
        %v4603 = vunpack.c.l.b16 %v4311
        %v4604 = vunpack.c.l.b16 %v4312
        %v4605 = vunpack.c.l.b16 %v4313
        %v4606 = vunpack.c.l.b16 %v4314
        %v4607 = vunpack.c.l.b16 %v4315
        %v4608 = vunpack.c.l.b16 %v4316
        %v4609 = vunpack.c.l.b16 %v4317
        %v4610 = vunpack.c.l.b16 %v4318
        %v4611 = vunpack.c.l.b16 %v4319
        %v4612 = vunpack.c.l.b16 %v4320
        %v4613 = vunpack.c.l.b16 %v4321
        %v4614 = vunpack.c.l.b16 %v4322
        %v4615 = vunpack.c.l.b16 %v4323
        %v4616 = vunpack.c.l.b16 %v4324
        %v4617 = vunpack.c.l.b16 %v4325
        %v4618 = vunpack.c.l.b16 %v4326
        %v4619 = vunpack.c.l.b16 %v4327
        %v4620 = vunpack.c.l.b16 %v4328
        %v4621 = vunpack.c.l.b16 %v4329
        %v4622 = vunpack.c.l.b16 %v4330
        %v4623 = vunpack.c.l.b16 %v4331
        %v4624 = vunpack.c.l.b16 %v4332
        %v4625 = vunpack.c.l.b16 %v4333
        %v4626 = vunpack.c.l.b16 %v4334
        %v4627 = vunpack.c.l.b16 %v4335
        %v4628 = vunpack.c.l.b16 %v4336
        %v4629 = vunpack.c.l.b16 %v4337
        %v4630 = vunpack.c.l.b16 %v4338
        %v4631 = vunpack.c.l.b16 %v4339
        %v4632 = vunpack.c.l.b16 %v4340
        %v4633 = vunpack.c.l.b16 %v4341
        %v4634 = vunpack.c.l.b16 %v4342
        %v4635 = vunpack.c.l.b16 %v4343
        %v4636 = vunpack.c.l.b16 %v4344
        %v4637 = vunpack.c.l.b16 %v4345
        %v4638 = vunpack.c.l.b16 %v4346
        %v4639 = vunpack.c.l.b16 %v4347
        %v4640 = vunpack.c.l.b16 %v4348
        %v4641 = vunpack.c.l.b16 %v4349
        %v4642 = vunpack.c.l.b16 %v4350
        %v4643 = vunpack.c.l.b16 %v4351
        %v4644 = vunpack.c.l.b16 %v4352
        %v4645 = vunpack.c.l.b16 %v4353
        %v4646 = vunpack.c.l.b16 %v4354
        %v4647 = vunpack.c.l.b16 %v4355
        %v4648 = vunpack.c.l.b16 %v4356
        %v4649 = vunpack.c.l.b16 %v4357
        %v4650 = vunpack.c.l.b16 %v4358
        %v4651 = vunpack.c.l.b16 %v4359
        %v4652 = vunpack.c.l.b16 %v4360
        %v4653 = vunpack.c.l.b16 %v4361
        %v4654 = vunpack.c.l.b16 %v4362
        %v4655 = vunpack.c.l.b16 %v4363
        %v4656 = vunpack.c.l.b16 %v4364
        %v4657 = vunpack.c.l.b16 %v4365
        %v4658 = vunpack.c.l.b16 %v4366
        %v4659 = vunpack.c.l.b16 %v4367
        %v4660 = vunpack.c.l.b16 %v4368
        %v4661 = vunpack.c.l.b16 %v4369
        %v4662 = vunpack.c.l.b16 %v4370
        %v4663 = vunpack.c.l.b16 %v4371
        %v4664 = vunpack.c.l.b16 %v4372
        %v4665 = vunpack.c.l.b16 %v4373
        %v4666 = vunpack.c.l.b16 %v4374
        %v4667 = vunpack.c.l.b16 %v4375
        %v4668 = vunpack.c.l.b16 %v4376
        %v4669 = vunpack.c.l.b16 %v4377
        %v4670 = vunpack.c.l.b16 %v4378
        %v4671 = vunpack.c.l.b16 %v4379
        %v4672 = vunpack.c.l.b16 %v4380
        %v4673 = vunpack.c.l.b16 %v4381
        %v4674 = vunpack.c.l.b16 %v4382
        %v4675 = vunpack.c.l.b16 %v4383
        %v4676 = vunpack.c.l.b16 %v4384
        %v4677 = vunpack.c.l.b16 %v4385
        %v4678 = vunpack.c.l.b16 %v4386
        %v4679 = vunpack.c.l.b16 %v4387
        %v4680 = vunpack.c.l.b16 %v4388
        %v4681 = vunpack.c.l.b16 %v4389
        %v4682 = vunpack.c.l.b16 %v4390
        %v4683 = vunpack.c.l.b16 %v4391
        %v4684 = vunpack.c.l.b16 %v4392
        %v4685 = vpack.c.b16 %v4542, %v4541
        %v4686 = vpack.c.b16 %v4544, %v4543
        %v4687 = vpack.c.b16 %v4546, %v4545
        %v4688 = vpack.c.b16 %v4548, %v4547
        %v4689 = vpack.c.b16 %v4550, %v4549
        %v4690 = vpack.c.b16 %v4552, %v4551
        %v4691 = vpack.c.b16 %v4554, %v4553
        %v4692 = vpack.c.b16 %v4556, %v4555
        %v4693 = vpack.c.b16 %v4558, %v4557
        %v4694 = vpack.c.b16 %v4560, %v4559
        %v4695 = vpack.c.b16 %v4562, %v4561
        %v4696 = vpack.c.b16 %v4564, %v4563
        %v4697 = vpack.c.b16 %v4566, %v4565
        %v4698 = vpack.c.b16 %v4568, %v4567
        %v4699 = vpack.c.b16 %v4570, %v4569
        %v4700 = vpack.c.b16 %v4572, %v4571
        %v4701 = vpack.c.b16 %v4574, %v4573
        %v4702 = vpack.c.b16 %v4576, %v4575
        %v4703 = vpack.c.b16 %v4578, %v4577
        %v4704 = vpack.c.b16 %v4580, %v4579
        %v4705 = vpack.c.b16 %v4582, %v4581
        %v4706 = vpack.c.b16 %v4584, %v4583
        %v4707 = vpack.c.b16 %v4586, %v4585
        %v4708 = vpack.c.b16 %v4588, %v4587
        %v4709 = vpack.c.b16 %v4590, %v4589
        %v4710 = vpack.c.b16 %v4592, %v4591
        %v4711 = vpack.c.b16 %v4594, %v4593
        %v4712 = vpack.c.b16 %v4596, %v4595
        %v4713 = vpack.c.b16 %v4598, %v4597
        %v4714 = vpack.c.b16 %v4600, %v4599
        %v4715 = vpack.c.b16 %v4602, %v4601
        %v4716 = vpack.c.b16 %v4604, %v4603
        %v4717 = vpack.c.b16 %v4606, %v4605
        %v4718 = vpack.c.b16 %v4608, %v4607
        %v4719 = vpack.c.b16 %v4610, %v4609
        %v4720 = vpack.c.b16 %v4612, %v4611
        %v4721 = vpack.c.b16 %v4614, %v4613
        %v4722 = vpack.c.b16 %v4616, %v4615
        %v4723 = vpack.c.b16 %v4618, %v4617
        %v4724 = vpack.c.b16 %v4620, %v4619
        %v4725 = vpack.c.b16 %v4622, %v4621
        %v4726 = vpack.c.b16 %v4624, %v4623
        %v4727 = vpack.c.b16 %v4626, %v4625
        %v4728 = vpack.c.b16 %v4628, %v4627
        %v4729 = vpack.c.b16 %v4630, %v4629
        %v4730 = vpack.c.b16 %v4632, %v4631
        %v4731 = vpack.c.b16 %v4634, %v4633
        %v4732 = vpack.c.b16 %v4636, %v4635
        %v4733 = vpack.c.b16 %v4638, %v4637
        %v4734 = vpack.c.b16 %v4640, %v4639
        %v4735 = vpack.c.b16 %v4642, %v4641
        %v4736 = vpack.c.b16 %v4644, %v4643
        %v4737 = vpack.c.b16 %v4646, %v4645
        %v4738 = vpack.c.b16 %v4648, %v4647
        %v4739 = vpack.c.b16 %v4650, %v4649
        %v4740 = vpack.c.b16 %v4652, %v4651
        %v4741 = vpack.c.b16 %v4654, %v4653
        %v4742 = vpack.c.b16 %v4656, %v4655
        %v4743 = vpack.c.b16 %v4658, %v4657
        %v4744 = vpack.c.b16 %v4660, %v4659
        %v4745 = vpack.c.b16 %v4662, %v4661
        %v4746 = vpack.c.b16 %v4664, %v4663
        %v4747 = vpack.c.b16 %v4666, %v4665
        %v4748 = vpack.c.b16 %v4668, %v4667
        %v4749 = vpack.c.b16 %v4670, %v4669
        %v4750 = vpack.c.b16 %v4672, %v4671
        %v4751 = vpack.c.b16 %v4674, %v4673
        %v4752 = vpack.c.b16 %v4676, %v4675
        %v4753 = vpack.c.b16 %v4678, %v4677
        %v4754 = vpack.c.b16 %v4680, %v4679
        %v4755 = vpack.c.b16 %v4682, %v4681
        %v4756 = vpack.c.b16 %v4684, %v4683
        %4829 = vmatpush.bf16.msra.mxu0 %v4692
        %4830 = vmatpush.bf16.msra.mxu0 %v4691
        %4831 = vmatpush.bf16.msra.mxu0 %v4690
        %4832 = vmatpush.bf16.msra.mxu0 %v4689
        %4833 = vmatpush.bf16.msra.mxu0 %v4688
        %4834 = vmatpush.bf16.msra.mxu0 %v4687
        %4835 = vmatpush.bf16.msra.mxu0 %v4686
        %4836 = vmatpush.bf16.msra.mxu0 %v4685
        %4837 = vmatmul.bf16.gmra.mxu0 %v4213
        %v4838 = vpop.f32.mrf.mxu0
        %v4839 = vadd.f32 %v4395, %v4838
        %v4840 = vpop.f32.mrf.mxu0
        %v4841 = vadd.f32 %v4395, %v4840
        %4842 = vmatmul.bf16.gmra.mxu0 %v4222
        %v4843 = vpop.f32.mrf.mxu0
        %v4844 = vadd.f32 %v4395, %v4843
        %v4845 = vpop.f32.mrf.mxu0
        %v4846 = vadd.f32 %v4395, %v4845
        %4847 = vmatmul.bf16.gmra.mxu0 %v4231
        %v4848 = vpop.f32.mrf.mxu0
        %v4849 = vadd.f32 %v4395, %v4848
        %v4850 = vpop.f32.mrf.mxu0
        %v4851 = vadd.f32 %v4395, %v4850
        %4852 = vmatmul.bf16.gmra.mxu0 %v4240
        %v4853 = vpop.f32.mrf.mxu0
        %v4854 = vadd.f32 %v4395, %v4853
        %v4855 = vpop.f32.mrf.mxu0
        %v4856 = vadd.f32 %v4395, %v4855
        %4857 = vdwg.mxu0
        %4858 = vmatpush.bf16.msra.mxu0 %v4700
        %4859 = vmatpush.bf16.msra.mxu0 %v4699
        %4860 = vmatpush.bf16.msra.mxu0 %v4698
        %4861 = vmatpush.bf16.msra.mxu0 %v4697
        %4862 = vmatpush.bf16.msra.mxu0 %v4696
        %4863 = vmatpush.bf16.msra.mxu0 %v4695
        %4864 = vmatpush.bf16.msra.mxu0 %v4694
        %4865 = vmatpush.bf16.msra.mxu0 %v4693
        %4866 = vmatmul.bf16.gmra.mxu0 %v4214
        %v4867 = vpop.f32.mrf.mxu0
        %v4868 = vadd.f32 %v4839, %v4867
        %v4869 = vpop.f32.mrf.mxu0
        %v4870 = vadd.f32 %v4841, %v4869
        %4871 = vmatmul.bf16.gmra.mxu0 %v4223
        %v4872 = vpop.f32.mrf.mxu0
        %v4873 = vadd.f32 %v4844, %v4872
        %v4874 = vpop.f32.mrf.mxu0
        %v4875 = vadd.f32 %v4846, %v4874
        %4876 = vmatmul.bf16.gmra.mxu0 %v4232
        %v4877 = vpop.f32.mrf.mxu0
        %v4878 = vadd.f32 %v4849, %v4877
        %v4879 = vpop.f32.mrf.mxu0
        %v4880 = vadd.f32 %v4851, %v4879
        %4881 = vmatmul.bf16.gmra.mxu0 %v4241
        %v4882 = vpop.f32.mrf.mxu0
        %v4883 = vadd.f32 %v4854, %v4882
        %v4884 = vpop.f32.mrf.mxu0
        %v4885 = vadd.f32 %v4856, %v4884
        %4886 = vdwg.mxu0
        %4887 = vmatpush.bf16.msra.mxu0 %v4708
        %4888 = vmatpush.bf16.msra.mxu0 %v4707
        %4889 = vmatpush.bf16.msra.mxu0 %v4706
        %4890 = vmatpush.bf16.msra.mxu0 %v4705
        %4891 = vmatpush.bf16.msra.mxu0 %v4704
        %4892 = vmatpush.bf16.msra.mxu0 %v4703
        %4893 = vmatpush.bf16.msra.mxu0 %v4702
        %4894 = vmatpush.bf16.msra.mxu0 %v4701
        %4895 = vmatmul.bf16.gmra.mxu0 %v4215
        %v4896 = vpop.f32.mrf.mxu0
        %v4897 = vadd.f32 %v4868, %v4896
        %v4898 = vpop.f32.mrf.mxu0
        %v4899 = vadd.f32 %v4870, %v4898
        %4900 = vmatmul.bf16.gmra.mxu0 %v4224
        %v4901 = vpop.f32.mrf.mxu0
        %v4902 = vadd.f32 %v4873, %v4901
        %v4903 = vpop.f32.mrf.mxu0
        %v4904 = vadd.f32 %v4875, %v4903
        %4905 = vmatmul.bf16.gmra.mxu0 %v4233
        %v4906 = vpop.f32.mrf.mxu0
        %v4907 = vadd.f32 %v4878, %v4906
        %v4908 = vpop.f32.mrf.mxu0
        %v4909 = vadd.f32 %v4880, %v4908
        %4910 = vmatmul.bf16.gmra.mxu0 %v4242
        %v4911 = vpop.f32.mrf.mxu0
        %v4912 = vadd.f32 %v4883, %v4911
        %v4913 = vpop.f32.mrf.mxu0
        %v4914 = vadd.f32 %v4885, %v4913
        %4915 = vdwg.mxu0
        %4916 = vmatpush.bf16.msra.mxu0 %v4716
        %4917 = vmatpush.bf16.msra.mxu0 %v4715
        %4918 = vmatpush.bf16.msra.mxu0 %v4714
        %4919 = vmatpush.bf16.msra.mxu0 %v4713
        %4920 = vmatpush.bf16.msra.mxu0 %v4712
        %4921 = vmatpush.bf16.msra.mxu0 %v4711
        %4922 = vmatpush.bf16.msra.mxu0 %v4710
        %4923 = vmatpush.bf16.msra.mxu0 %v4709
        %4924 = vmatmul.bf16.gmra.mxu0 %v4216
        %v4925 = vpop.f32.mrf.mxu0
        %v4926 = vadd.f32 %v4897, %v4925
        %v4927 = vpop.f32.mrf.mxu0
        %v4928 = vadd.f32 %v4899, %v4927
        %4929 = vmatmul.bf16.gmra.mxu0 %v4225
        %v4930 = vpop.f32.mrf.mxu0
        %v4931 = vadd.f32 %v4902, %v4930
        %v4932 = vpop.f32.mrf.mxu0
        %v4933 = vadd.f32 %v4904, %v4932
        %4934 = vmatmul.bf16.gmra.mxu0 %v4234
        %v4935 = vpop.f32.mrf.mxu0
        %v4936 = vadd.f32 %v4907, %v4935
        %v4937 = vpop.f32.mrf.mxu0
        %v4938 = vadd.f32 %v4909, %v4937
        %4939 = vmatmul.bf16.gmra.mxu0 %v4243
        %v4940 = vpop.f32.mrf.mxu0
        %v4941 = vadd.f32 %v4912, %v4940
        %v4942 = vpop.f32.mrf.mxu0
        %v4943 = vadd.f32 %v4914, %v4942
        %4944 = vdwg.mxu0
        %4945 = vmatpush.bf16.msra.mxu0 %v4724
        %4946 = vmatpush.bf16.msra.mxu0 %v4723
        %4947 = vmatpush.bf16.msra.mxu0 %v4722
        %4948 = vmatpush.bf16.msra.mxu0 %v4721
        %4949 = vmatpush.bf16.msra.mxu0 %v4720
        %4950 = vmatpush.bf16.msra.mxu0 %v4719
        %4951 = vmatpush.bf16.msra.mxu0 %v4718
        %4952 = vmatpush.bf16.msra.mxu0 %v4717
        %4953 = vmatmul.bf16.gmra.mxu0 %v4217
        %v4954 = vpop.f32.mrf.mxu0
        %v4955 = vadd.f32 %v4926, %v4954
        %v4956 = vpop.f32.mrf.mxu0
        %v4957 = vadd.f32 %v4928, %v4956
        %4958 = vmatmul.bf16.gmra.mxu0 %v4226
        %v4959 = vpop.f32.mrf.mxu0
        %v4960 = vadd.f32 %v4931, %v4959
        %v4961 = vpop.f32.mrf.mxu0
        %v4962 = vadd.f32 %v4933, %v4961
        %4963 = vmatmul.bf16.gmra.mxu0 %v4235
        %v4964 = vpop.f32.mrf.mxu0
        %v4965 = vadd.f32 %v4936, %v4964
        %v4966 = vpop.f32.mrf.mxu0
        %v4967 = vadd.f32 %v4938, %v4966
        %4968 = vmatmul.bf16.gmra.mxu0 %v4244
        %v4969 = vpop.f32.mrf.mxu0
        %v4970 = vadd.f32 %v4941, %v4969
        %v4971 = vpop.f32.mrf.mxu0
        %v4972 = vadd.f32 %v4943, %v4971
        %4973 = vdwg.mxu0
        %4974 = vmatpush.bf16.msra.mxu0 %v4732
        %4975 = vmatpush.bf16.msra.mxu0 %v4731
        %4976 = vmatpush.bf16.msra.mxu0 %v4730
        %4977 = vmatpush.bf16.msra.mxu0 %v4729
        %4978 = vmatpush.bf16.msra.mxu0 %v4728
        %4979 = vmatpush.bf16.msra.mxu0 %v4727
        %4980 = vmatpush.bf16.msra.mxu0 %v4726
        %4981 = vmatpush.bf16.msra.mxu0 %v4725
        %4982 = vmatmul.bf16.gmra.mxu0 %v4218
        %v4983 = vpop.f32.mrf.mxu0
        %v4984 = vadd.f32 %v4955, %v4983
        %v4985 = vpop.f32.mrf.mxu0
        %v4986 = vadd.f32 %v4957, %v4985
        %4987 = vmatmul.bf16.gmra.mxu0 %v4227
        %v4988 = vpop.f32.mrf.mxu0
        %v4989 = vadd.f32 %v4960, %v4988
        %v4990 = vpop.f32.mrf.mxu0
        %v4991 = vadd.f32 %v4962, %v4990
        %4992 = vmatmul.bf16.gmra.mxu0 %v4236
        %v4993 = vpop.f32.mrf.mxu0
        %v4994 = vadd.f32 %v4965, %v4993
        %v4995 = vpop.f32.mrf.mxu0
        %v4996 = vadd.f32 %v4967, %v4995
        %4997 = vmatmul.bf16.gmra.mxu0 %v4245
        %v4998 = vpop.f32.mrf.mxu0
        %v4999 = vadd.f32 %v4970, %v4998
        %v5000 = vpop.f32.mrf.mxu0
        %v5001 = vadd.f32 %v4972, %v5000
        %5002 = vdwg.mxu0
        %5003 = vmatpush.bf16.msra.mxu0 %v4740
        %5004 = vmatpush.bf16.msra.mxu0 %v4739
        %5005 = vmatpush.bf16.msra.mxu0 %v4738
        %5006 = vmatpush.bf16.msra.mxu0 %v4737
        %5007 = vmatpush.bf16.msra.mxu0 %v4736
        %5008 = vmatpush.bf16.msra.mxu0 %v4735
        %5009 = vmatpush.bf16.msra.mxu0 %v4734
        %5010 = vmatpush.bf16.msra.mxu0 %v4733
        %5011 = vmatmul.bf16.gmra.mxu0 %v4219
        %v5012 = vpop.f32.mrf.mxu0
        %v5013 = vadd.f32 %v4984, %v5012
        %v5014 = vpop.f32.mrf.mxu0
        %v5015 = vadd.f32 %v4986, %v5014
        %5016 = vmatmul.bf16.gmra.mxu0 %v4228
        %v5017 = vpop.f32.mrf.mxu0
        %v5018 = vadd.f32 %v4989, %v5017
        %v5019 = vpop.f32.mrf.mxu0
        %v5020 = vadd.f32 %v4991, %v5019
        %5021 = vmatmul.bf16.gmra.mxu0 %v4237
        %v5022 = vpop.f32.mrf.mxu0
        %v5023 = vadd.f32 %v4994, %v5022
        %v5024 = vpop.f32.mrf.mxu0
        %v5025 = vadd.f32 %v4996, %v5024
        %5026 = vmatmul.bf16.gmra.mxu0 %v4246
        %v5027 = vpop.f32.mrf.mxu0
        %v5028 = vadd.f32 %v4999, %v5027
        %v5029 = vpop.f32.mrf.mxu0
        %v5030 = vadd.f32 %v5001, %v5029
        %5031 = vdwg.mxu0
        %5032 = vmatpush.bf16.msra.mxu0 %v4748
        %5033 = vmatpush.bf16.msra.mxu0 %v4747
        %5034 = vmatpush.bf16.msra.mxu0 %v4746
        %5035 = vmatpush.bf16.msra.mxu0 %v4745
        %5036 = vmatpush.bf16.msra.mxu0 %v4744
        %5037 = vmatpush.bf16.msra.mxu0 %v4743
        %5038 = vmatpush.bf16.msra.mxu0 %v4742
        %5039 = vmatpush.bf16.msra.mxu0 %v4741
        %5040 = vmatmul.bf16.gmra.mxu0 %v4220
        %v5041 = vpop.f32.mrf.mxu0
        %v5042 = vadd.f32 %v5013, %v5041
        %v5043 = vpop.f32.mrf.mxu0
        %v5044 = vadd.f32 %v5015, %v5043
        %5045 = vmatmul.bf16.gmra.mxu0 %v4229
        %v5046 = vpop.f32.mrf.mxu0
        %v5047 = vadd.f32 %v5018, %v5046
        %v5048 = vpop.f32.mrf.mxu0
        %v5049 = vadd.f32 %v5020, %v5048
        %5050 = vmatmul.bf16.gmra.mxu0 %v4238
        %v5051 = vpop.f32.mrf.mxu0
        %v5052 = vadd.f32 %v5023, %v5051
        %v5053 = vpop.f32.mrf.mxu0
        %v5054 = vadd.f32 %v5025, %v5053
        %5055 = vmatmul.bf16.gmra.mxu0 %v4247
        %v5056 = vpop.f32.mrf.mxu0
        %v5057 = vadd.f32 %v5028, %v5056
        %v5058 = vpop.f32.mrf.mxu0
        %v5059 = vadd.f32 %v5030, %v5058
        %5060 = vdwg.mxu0
        %5061 = vmatpush.bf16.msra.mxu0 %v4756
        %5062 = vmatpush.bf16.msra.mxu0 %v4755
        %5063 = vmatpush.bf16.msra.mxu0 %v4754
        %5064 = vmatpush.bf16.msra.mxu0 %v4753
        %5065 = vmatpush.bf16.msra.mxu0 %v4752
        %5066 = vmatpush.bf16.msra.mxu0 %v4751
        %5067 = vmatpush.bf16.msra.mxu0 %v4750
        %5068 = vmatpush.bf16.msra.mxu0 %v4749
        %5069 = vmatmul.bf16.gmra.mxu0 %v4221
        %v5070 = vpop.f32.mrf.mxu0
        %v5071 = vadd.f32 %v5042, %v5070
        %v5072 = vpop.f32.mrf.mxu0
        %v5073 = vadd.f32 %v5044, %v5072
        %5074 = vmatmul.bf16.gmra.mxu0 %v4230
        %v5075 = vpop.f32.mrf.mxu0
        %v5076 = vadd.f32 %v5047, %v5075
        %v5077 = vpop.f32.mrf.mxu0
        %v5078 = vadd.f32 %v5049, %v5077
        %5079 = vmatmul.bf16.gmra.mxu0 %v4239
        %v5080 = vpop.f32.mrf.mxu0
        %v5081 = vadd.f32 %v5052, %v5080
        %v5082 = vpop.f32.mrf.mxu0
        %v5083 = vadd.f32 %v5054, %v5082
        %5084 = vmatmul.bf16.gmra.mxu0 %v4248
        %v5085 = vpop.f32.mrf.mxu0
        %v5086 = vadd.f32 %v5057, %v5085
        %v5087 = vpop.f32.mrf.mxu0
        %v5088 = vadd.f32 %v5059, %v5087
        %5089 = vdwg.mxu0
        %v5090 = vmax.f32 %v5071, 0.0
        %v5091 = vmax.f32 %v5073, 0.0
        %v5092 = vmax.f32 %v5076, 0.0
        %v5093 = vmax.f32 %v5078, 0.0
        %v5094 = vmax.f32 %v5081, 0.0
        %v5095 = vmax.f32 %v5083, 0.0
        %v5096 = vmax.f32 %v5086, 0.0
        %v5097 = vmax.f32 %v5088, 0.0
        %vm5098 = vcmask 523264
        %v5099 = vsel %vm5098, %v5090, -inf
        %v5100 = vsel %vm5098, %v5091, -inf
        %v5101 = vmax.f32 %v5099, %v5100
        %v5102 = vsel %vm5098, %v5092, -inf
        %v5103 = vsel %vm5098, %v5093, -inf
        %v5104 = vmax.f32 %v5102, %v5103
        %v5105 = vsel %vm5098, %v5094, -inf
        %v5106 = vsel %vm5098, %v5095, -inf
        %v5107 = vmax.f32 %v5105, %v5106
        %v5108 = vsel %vm5098, %v5096, -inf
        %v5109 = vsel %vm5098, %v5097, -inf
        %v5110 = vmax.f32 %v5108, %v5109
        %v5115 = vrot.slane %v5101, 2
        %v5116 = vrot.slane %v5101, 4
        %v5117 = vrot.slane %v5101, 6
        %v5118 = vrot.slane %v5104, 2
        %v5119 = vrot.slane %v5104, 4
        %v5120 = vrot.slane %v5104, 6
        %v5121 = vrot.slane %v5107, 2
        %v5122 = vrot.slane %v5107, 4
        %v5123 = vrot.slane %v5107, 6
        %v5124 = vrot.slane %v5110, 2
        %v5125 = vrot.slane %v5110, 4
        %v5126 = vrot.slane %v5110, 6
        %vm5139 = vcmask 517120
        %v5140 = vsel %vm5139, %v5101, -inf
        %v5141 = vrot.slane %v5140, 4
        %v5142 = vmax.f32 %v5140, %v5141
        %v5143 = vrot.slane %v5142, 2
        %v5144 = vmax.f32 %v5142, %v5143
        %v5145 = vrot.slane %v5144, 1
        %v5146 = vmax.f32 %v5144, %v5145
        %v5147 = vsel %vm5139, %v5115, -inf
        %v5148 = vrot.slane %v5147, 4
        %v5149 = vmax.f32 %v5147, %v5148
        %v5150 = vrot.slane %v5149, 2
        %v5151 = vmax.f32 %v5149, %v5150
        %v5152 = vrot.slane %v5151, 1
        %v5153 = vmax.f32 %v5151, %v5152
        %v5154 = vsel %vm5139, %v5116, -inf
        %v5155 = vrot.slane %v5154, 4
        %v5156 = vmax.f32 %v5154, %v5155
        %v5157 = vrot.slane %v5156, 2
        %v5158 = vmax.f32 %v5156, %v5157
        %v5159 = vrot.slane %v5158, 1
        %v5160 = vmax.f32 %v5158, %v5159
        %v5161 = vsel %vm5139, %v5117, -inf
        %v5162 = vrot.slane %v5161, 4
        %v5163 = vmax.f32 %v5161, %v5162
        %v5164 = vrot.slane %v5163, 2
        %v5165 = vmax.f32 %v5163, %v5164
        %v5166 = vrot.slane %v5165, 1
        %v5167 = vmax.f32 %v5165, %v5166
        %v5168 = vsel %vm5139, %v5104, -inf
        %v5169 = vrot.slane %v5168, 4
        %v5170 = vmax.f32 %v5168, %v5169
        %v5171 = vrot.slane %v5170, 2
        %v5172 = vmax.f32 %v5170, %v5171
        %v5173 = vrot.slane %v5172, 1
        %v5174 = vmax.f32 %v5172, %v5173
        %v5175 = vsel %vm5139, %v5118, -inf
        %v5176 = vrot.slane %v5175, 4
        %v5177 = vmax.f32 %v5175, %v5176
        %v5178 = vrot.slane %v5177, 2
        %v5179 = vmax.f32 %v5177, %v5178
        %v5180 = vrot.slane %v5179, 1
        %v5181 = vmax.f32 %v5179, %v5180
        %v5182 = vsel %vm5139, %v5119, -inf
        %v5183 = vrot.slane %v5182, 4
        %v5184 = vmax.f32 %v5182, %v5183
        %v5185 = vrot.slane %v5184, 2
        %v5186 = vmax.f32 %v5184, %v5185
        %v5187 = vrot.slane %v5186, 1
        %v5188 = vmax.f32 %v5186, %v5187
        %v5189 = vsel %vm5139, %v5120, -inf
        %v5190 = vrot.slane %v5189, 4
        %v5191 = vmax.f32 %v5189, %v5190
        %v5192 = vrot.slane %v5191, 2
        %v5193 = vmax.f32 %v5191, %v5192
        %v5194 = vrot.slane %v5193, 1
        %v5195 = vmax.f32 %v5193, %v5194
        %v5196 = vsel %vm5139, %v5107, -inf
        %v5197 = vrot.slane %v5196, 4
        %v5198 = vmax.f32 %v5196, %v5197
        %v5199 = vrot.slane %v5198, 2
        %v5200 = vmax.f32 %v5198, %v5199
        %v5201 = vrot.slane %v5200, 1
        %v5202 = vmax.f32 %v5200, %v5201
        %v5203 = vsel %vm5139, %v5121, -inf
        %v5204 = vrot.slane %v5203, 4
        %v5205 = vmax.f32 %v5203, %v5204
        %v5206 = vrot.slane %v5205, 2
        %v5207 = vmax.f32 %v5205, %v5206
        %v5208 = vrot.slane %v5207, 1
        %v5209 = vmax.f32 %v5207, %v5208
        %v5210 = vsel %vm5139, %v5122, -inf
        %v5211 = vrot.slane %v5210, 4
        %v5212 = vmax.f32 %v5210, %v5211
        %v5213 = vrot.slane %v5212, 2
        %v5214 = vmax.f32 %v5212, %v5213
        %v5215 = vrot.slane %v5214, 1
        %v5216 = vmax.f32 %v5214, %v5215
        %v5217 = vsel %vm5139, %v5123, -inf
        %v5218 = vrot.slane %v5217, 4
        %v5219 = vmax.f32 %v5217, %v5218
        %v5220 = vrot.slane %v5219, 2
        %v5221 = vmax.f32 %v5219, %v5220
        %v5222 = vrot.slane %v5221, 1
        %v5223 = vmax.f32 %v5221, %v5222
        %v5224 = vsel %vm5139, %v5110, -inf
        %v5225 = vrot.slane %v5224, 4
        %v5226 = vmax.f32 %v5224, %v5225
        %v5227 = vrot.slane %v5226, 2
        %v5228 = vmax.f32 %v5226, %v5227
        %v5229 = vrot.slane %v5228, 1
        %v5230 = vmax.f32 %v5228, %v5229
        %v5231 = vsel %vm5139, %v5124, -inf
        %v5232 = vrot.slane %v5231, 4
        %v5233 = vmax.f32 %v5231, %v5232
        %v5234 = vrot.slane %v5233, 2
        %v5235 = vmax.f32 %v5233, %v5234
        %v5236 = vrot.slane %v5235, 1
        %v5237 = vmax.f32 %v5235, %v5236
        %v5238 = vsel %vm5139, %v5125, -inf
        %v5239 = vrot.slane %v5238, 4
        %v5240 = vmax.f32 %v5238, %v5239
        %v5241 = vrot.slane %v5240, 2
        %v5242 = vmax.f32 %v5240, %v5241
        %v5243 = vrot.slane %v5242, 1
        %v5244 = vmax.f32 %v5242, %v5243
        %v5245 = vsel %vm5139, %v5126, -inf
        %v5246 = vrot.slane %v5245, 4
        %v5247 = vmax.f32 %v5245, %v5246
        %v5248 = vrot.slane %v5247, 2
        %v5249 = vmax.f32 %v5247, %v5248
        %v5250 = vrot.slane %v5249, 1
        %v5251 = vmax.f32 %v5249, %v5250
        %v5268 = vsel %vm3916, %v5153, %v5146
        %v5269 = vsel %vm3918, %v5160, %v5268
        %v5270 = vsel %vm3920, %v5167, %v5269
        %v5271 = vsel %vm3916, %v5181, %v5174
        %v5272 = vsel %vm3918, %v5188, %v5271
        %v5273 = vsel %vm3920, %v5195, %v5272
        %v5274 = vsel %vm3916, %v5209, %v5202
        %v5275 = vsel %vm3918, %v5216, %v5274
        %v5276 = vsel %vm3920, %v5223, %v5275
        %v5277 = vsel %vm3916, %v5237, %v5230
        %v5278 = vsel %vm3918, %v5244, %v5277
        %v5279 = vsel %vm3920, %v5251, %v5278
        %s5284 = scalar_lea.vmem [#allocation4], 8
        %vm5285 = vcmask 519168
        %5286 = vst.msk [vmem:[%s5284 + $0x1] sm:$0xf] %vm5285, %v5270
        %5287 = vst.msk [vmem:[%s5284 + $0x9] sm:$0xf] %vm5285, %v5273
        %5288 = vst.msk [vmem:[%s5284 + $0x11] sm:$0xf] %vm5285, %v5276
        %5289 = vst.msk [vmem:[%s5284 + $0x19] sm:$0xf] %vm5285, %v5279
        %v5290 = vld [vmem:[#allocation4] sm:$0xf]
        %v5291 = vld [vmem:[#allocation4 + $0x8] sm:$0xf]
        %v5292 = vld [vmem:[#allocation4 + $0x10] sm:$0xf]
        %v5293 = vld [vmem:[#allocation4 + $0x18] sm:$0xf]
        %5298 = vst [vmem:[#allocation1] ss:$2 sm:$0xff] %v5290
        %s5299 = scalar_lea.vmem [#allocation1], 1
        %5300 = vst [vmem:[%s5299] ss:$2 sm:$0xff] %v5291
        %s5301 = scalar_lea.vmem [#allocation1], 16
        %5302 = vst [vmem:[%s5301] ss:$2 sm:$0xff] %v5292
        %s5303 = scalar_lea.vmem [#allocation1], 17
        %5304 = vst [vmem:[%s5303] ss:$2 sm:$0xff] %v5293
        %v5305 = vld.sshfl [vmem:[#allocation1] sm:$0xff pattern:$0x75316420]
        %v5306 = vld.sshfl [vmem:[#allocation1 + $0x10] sm:$0xff pattern:$0x75316420]
        %5309 = vst.msk [vmem:[#allocation5] sm:$0xff] %vm5098, %v5305
        %5310 = vst.msk [vmem:[#allocation5 + $0x48] sm:$0xff] %vm5098, %v5306
        %v5311 = vld [vmem:[#allocation4 + $0x1] sm:$0xf]
        %v5312 = vld [vmem:[#allocation4 + $0x9] sm:$0xf]
        %v5313 = vld [vmem:[#allocation4 + $0x11] sm:$0xf]
        %v5314 = vld [vmem:[#allocation4 + $0x19] sm:$0xf]
        %5319 = vst [vmem:[#allocation1] ss:$2 sm:$0xff] %v5311
        %s5320 = scalar_lea.vmem [#allocation1], 1
        %5321 = vst [vmem:[%s5320] ss:$2 sm:$0xff] %v5312
        %s5322 = scalar_lea.vmem [#allocation1], 16
        %5323 = vst [vmem:[%s5322] ss:$2 sm:$0xff] %v5313
        %s5324 = scalar_lea.vmem [#allocation1], 17
        %5325 = vst [vmem:[%s5324] ss:$2 sm:$0xff] %v5314
        %v5326 = vld.sshfl [vmem:[#allocation1] sm:$0xff pattern:$0x75316420]
        %v5327 = vld.sshfl [vmem:[#allocation1 + $0x10] sm:$0xff pattern:$0x75316420]
        %5330 = vst.msk [vmem:[#allocation5 + $0x8] sm:$0xff] %vm5098, %v5326
        %5331 = vst.msk [vmem:[#allocation5 + $0x50] sm:$0xff] %vm5098, %v5327
        %v5332 = vld [vmem:[#allocation4 + $0x2] sm:$0xf]
        %v5333 = vld [vmem:[#allocation4 + $0xa] sm:$0xf]
        %v5334 = vld [vmem:[#allocation4 + $0x12] sm:$0xf]
        %v5335 = vld [vmem:[#allocation4 + $0x1a] sm:$0xf]
        %5340 = vst [vmem:[#allocation1] ss:$2 sm:$0xff] %v5332
        %s5341 = scalar_lea.vmem [#allocation1], 1
        %5342 = vst [vmem:[%s5341] ss:$2 sm:$0xff] %v5333
        %s5343 = scalar_lea.vmem [#allocation1], 16
        %5344 = vst [vmem:[%s5343] ss:$2 sm:$0xff] %v5334
        %s5345 = scalar_lea.vmem [#allocation1], 17
        %5346 = vst [vmem:[%s5345] ss:$2 sm:$0xff] %v5335
        %v5347 = vld.sshfl [vmem:[#allocation1] sm:$0xff pattern:$0x75316420]
        %v5348 = vld.sshfl [vmem:[#allocation1 + $0x10] sm:$0xff pattern:$0x75316420]
        %5351 = vst.msk [vmem:[#allocation5 + $0x10] sm:$0xff] %vm5098, %v5347
        %5352 = vst.msk [vmem:[#allocation5 + $0x58] sm:$0xff] %vm5098, %v5348
        %v5353 = vld [vmem:[%s5284] sm:$0xf]
        %v5354 = vld [vmem:[%s5284 + $0x8] sm:$0xf]
        %v5355 = vld [vmem:[%s5284 + $0x10] sm:$0xf]
        %v5356 = vld [vmem:[%s5284 + $0x18] sm:$0xf]
        %5361 = vst [vmem:[#allocation1] ss:$2 sm:$0xff] %v5353
        %s5362 = scalar_lea.vmem [#allocation1], 1
        %5363 = vst [vmem:[%s5362] ss:$2 sm:$0xff] %v5354
        %s5364 = scalar_lea.vmem [#allocation1], 16
        %5365 = vst [vmem:[%s5364] ss:$2 sm:$0xff] %v5355
        %s5366 = scalar_lea.vmem [#allocation1], 17
        %5367 = vst [vmem:[%s5366] ss:$2 sm:$0xff] %v5356
        %v5368 = vld.sshfl [vmem:[#allocation1] sm:$0xff pattern:$0x75316420]
        %v5369 = vld.sshfl [vmem:[#allocation1 + $0x10] sm:$0xff pattern:$0x75316420]
        %5372 = vst.msk [vmem:[#allocation5 + $0x18] sm:$0xff] %vm5098, %v5368
        %5373 = vst.msk [vmem:[#allocation5 + $0x60] sm:$0xff] %vm5098, %v5369
        %v5374 = vld [vmem:[%s5284 + $0x1] sm:$0xf]
        %v5375 = vld [vmem:[%s5284 + $0x9] sm:$0xf]
        %v5376 = vld [vmem:[%s5284 + $0x11] sm:$0xf]
        %v5377 = vld [vmem:[%s5284 + $0x19] sm:$0xf]
        %5382 = vst [vmem:[#allocation1] ss:$2 sm:$0xff] %v5374
        %s5383 = scalar_lea.vmem [#allocation1], 1
        %5384 = vst [vmem:[%s5383] ss:$2 sm:$0xff] %v5375
        %s5385 = scalar_lea.vmem [#allocation1], 16
        %5386 = vst [vmem:[%s5385] ss:$2 sm:$0xff] %v5376
        %s5387 = scalar_lea.vmem [#allocation1], 17
        %5388 = vst [vmem:[%s5387] ss:$2 sm:$0xff] %v5377
        %v5389 = vld.sshfl [vmem:[#allocation1] sm:$0xff pattern:$0x75316420]
        %v5390 = vld.sshfl [vmem:[#allocation1 + $0x10] sm:$0xff pattern:$0x75316420]
        %5393 = vst.msk [vmem:[#allocation5 + $0x20] sm:$0xff] %vm5098, %v5389
        %5394 = vst.msk [vmem:[#allocation5 + $0x68] sm:$0xff] %vm5098, %v5390
        %v5395 = vld [vmem:[%s5284 + $0x2] sm:$0xf]
        %v5396 = vld [vmem:[%s5284 + $0xa] sm:$0xf]
        %v5397 = vld [vmem:[%s5284 + $0x12] sm:$0xf]
        %v5398 = vld [vmem:[%s5284 + $0x1a] sm:$0xf]
        %5403 = vst [vmem:[#allocation1] ss:$2 sm:$0xff] %v5395
        %s5404 = scalar_lea.vmem [#allocation1], 1
        %5405 = vst [vmem:[%s5404] ss:$2 sm:$0xff] %v5396
        %s5406 = scalar_lea.vmem [#allocation1], 16
        %5407 = vst [vmem:[%s5406] ss:$2 sm:$0xff] %v5397
        %s5408 = scalar_lea.vmem [#allocation1], 17
        %5409 = vst [vmem:[%s5408] ss:$2 sm:$0xff] %v5398
        %v5410 = vld.sshfl [vmem:[#allocation1] sm:$0xff pattern:$0x75316420]
        %v5411 = vld.sshfl [vmem:[#allocation1 + $0x10] sm:$0xff pattern:$0x75316420]
        %5414 = vst.msk [vmem:[#allocation5 + $0x28] sm:$0xff] %vm5098, %v5410
        %5415 = vst.msk [vmem:[#allocation5 + $0x70] sm:$0xff] %vm5098, %v5411
        %s5416 = scalar_lea.vmem [#allocation4], 16
        %v5417 = vld [vmem:[%s5416] sm:$0xf]
        %v5418 = vld [vmem:[%s5416 + $0x8] sm:$0xf]
        %v5419 = vld [vmem:[%s5416 + $0x10] sm:$0xf]
        %v5420 = vld [vmem:[%s5416 + $0x18] sm:$0xf]
        %5425 = vst [vmem:[#allocation1] ss:$2 sm:$0xff] %v5417
        %s5426 = scalar_lea.vmem [#allocation1], 1
        %5427 = vst [vmem:[%s5426] ss:$2 sm:$0xff] %v5418
        %s5428 = scalar_lea.vmem [#allocation1], 16
        %5429 = vst [vmem:[%s5428] ss:$2 sm:$0xff] %v5419
        %s5430 = scalar_lea.vmem [#allocation1], 17
        %5431 = vst [vmem:[%s5430] ss:$2 sm:$0xff] %v5420
        %v5432 = vld.sshfl [vmem:[#allocation1] sm:$0xff pattern:$0x75316420]
        %v5433 = vld.sshfl [vmem:[#allocation1 + $0x10] sm:$0xff pattern:$0x75316420]
        %5436 = vst.msk [vmem:[#allocation5 + $0x30] sm:$0xff] %vm5098, %v5432
        %5437 = vst.msk [vmem:[#allocation5 + $0x78] sm:$0xff] %vm5098, %v5433
        %v5438 = vld [vmem:[%s5416 + $0x1] sm:$0xf]
        %v5439 = vld [vmem:[%s5416 + $0x9] sm:$0xf]
        %v5440 = vld [vmem:[%s5416 + $0x11] sm:$0xf]
        %v5441 = vld [vmem:[%s5416 + $0x19] sm:$0xf]
        %5446 = vst [vmem:[#allocation1] ss:$2 sm:$0xff] %v5438
        %s5447 = scalar_lea.vmem [#allocation1], 1
        %5448 = vst [vmem:[%s5447] ss:$2 sm:$0xff] %v5439
        %s5449 = scalar_lea.vmem [#allocation1], 16
        %5450 = vst [vmem:[%s5449] ss:$2 sm:$0xff] %v5440
        %s5451 = scalar_lea.vmem [#allocation1], 17
        %5452 = vst [vmem:[%s5451] ss:$2 sm:$0xff] %v5441
        %v5453 = vld.sshfl [vmem:[#allocation1] sm:$0xff pattern:$0x75316420]
        %v5454 = vld.sshfl [vmem:[#allocation1 + $0x10] sm:$0xff pattern:$0x75316420]
        %5457 = vst.msk [vmem:[#allocation5 + $0x38] sm:$0xff] %vm5098, %v5453
        %5458 = vst.msk [vmem:[#allocation5 + $0x80] sm:$0xff] %vm5098, %v5454
        %v5459 = vld [vmem:[%s5416 + $0x2] sm:$0xf]
        %v5460 = vld [vmem:[%s5416 + $0xa] sm:$0xf]
        %v5461 = vld [vmem:[%s5416 + $0x12] sm:$0xf]
        %v5462 = vld [vmem:[%s5416 + $0x1a] sm:$0xf]
        %5467 = vst [vmem:[#allocation1] ss:$2 sm:$0xff] %v5459
        %s5468 = scalar_lea.vmem [#allocation1], 1
        %5469 = vst [vmem:[%s5468] ss:$2 sm:$0xff] %v5460
        %s5470 = scalar_lea.vmem [#allocation1], 16
        %5471 = vst [vmem:[%s5470] ss:$2 sm:$0xff] %v5461
        %s5472 = scalar_lea.vmem [#allocation1], 17
        %5473 = vst [vmem:[%s5472] ss:$2 sm:$0xff] %v5462
        %v5474 = vld.sshfl [vmem:[#allocation1] sm:$0xff pattern:$0x75316420]
        %v5475 = vld.sshfl [vmem:[#allocation1 + $0x10] sm:$0xff pattern:$0x75316420]
        %5478 = vst.msk [vmem:[#allocation5 + $0x40] sm:$0xff] %vm5098, %v5474
        %5479 = vst.msk [vmem:[#allocation5 + $0x88] sm:$0xff] %vm5098, %v5475
        %v5480 = vld [vmem:[#allocation5] sm:$0xff]
        %v5481 = vld [vmem:[#allocation5 + $0x8] sm:$0xff]
        %v5482 = vld [vmem:[#allocation5 + $0x10] sm:$0xff]
        %v5483 = vld [vmem:[#allocation5 + $0x18] sm:$0xff]
        %v5484 = vld [vmem:[#allocation5 + $0x20] sm:$0xff]
        %v5485 = vld [vmem:[#allocation5 + $0x28] sm:$0xff]
        %v5486 = vld [vmem:[#allocation5 + $0x30] sm:$0xff]
        %v5487 = vld [vmem:[#allocation5 + $0x38] sm:$0xff]
        %v5488 = vld [vmem:[#allocation5 + $0x40] sm:$0xff]
        %v5489 = vld [vmem:[#allocation5 + $0x48] sm:$0xff]
        %v5490 = vld [vmem:[#allocation5 + $0x50] sm:$0xff]
        %v5491 = vld [vmem:[#allocation5 + $0x58] sm:$0xff]
        %v5492 = vld [vmem:[#allocation5 + $0x60] sm:$0xff]
        %v5493 = vld [vmem:[#allocation5 + $0x68] sm:$0xff]
        %v5494 = vld [vmem:[#allocation5 + $0x70] sm:$0xff]
        %v5495 = vld [vmem:[#allocation5 + $0x78] sm:$0xff]
        %v5496 = vld [vmem:[#allocation5 + $0x80] sm:$0xff]
        %v5497 = vld [vmem:[#allocation5 + $0x88] sm:$0xff]
        %v5498 = vpack.c.bf16 %v5489, %v5480
        %v5499 = vpack.c.bf16 %v5490, %v5481
        %v5500 = vpack.c.bf16 %v5491, %v5482
        %v5501 = vpack.c.bf16 %v5492, %v5483
        %v5502 = vpack.c.bf16 %v5493, %v5484
        %v5503 = vpack.c.bf16 %v5494, %v5485
        %v5504 = vpack.c.bf16 %v5495, %v5486
        %v5505 = vpack.c.bf16 %v5496, %v5487
        %v5506 = vpack.c.bf16 %v5497, %v5488
        %v5507 = vld [vmem:[%s5] sm:$0xf]
        %v5508 = vld [vmem:[%s5 + $0x4] sm:$0xf]
        %v5509 = vld [vmem:[%s5 + $0x8] sm:$0xf]
        %v5510 = vld [vmem:[%s5 + $0xc] sm:$0xf]
        %v5511 = vld [vmem:[%s5 + $0x10] sm:$0xf]
        %v5512 = vld [vmem:[%s5 + $0x14] sm:$0xf]
        %v5513 = vld [vmem:[%s5 + $0x18] sm:$0xf]
        %v5514 = vld [vmem:[%s5 + $0x1c] sm:$0xf]
        %v5515 = vld [vmem:[%s5 + $0x20] sm:$0xf]
        %v5516 = vld [vmem:[%s5 + $0x24] sm:$0xf]
        %v5517 = vld [vmem:[%s5 + $0x28] sm:$0xf]
        %v5518 = vld [vmem:[%s5 + $0x2c] sm:$0xf]
        %v5519 = vld [vmem:[%s5 + $0x30] sm:$0xf]
        %v5520 = vld [vmem:[%s5 + $0x34] sm:$0xf]
        %v5521 = vld [vmem:[%s5 + $0x38] sm:$0xf]
        %v5522 = vld [vmem:[%s5 + $0x3c] sm:$0xf]
        %v5523 = vld [vmem:[%s5 + $0x40] sm:$0xf]
        %v5524 = vld [vmem:[%s5 + $0x44] sm:$0xf]
        %v5525 = vld [vmem:[%s5 + $0x48] sm:$0xf]
        %v5526 = vld [vmem:[%s5 + $0x4c] sm:$0xf]
        %v5527 = vld [vmem:[%s5 + $0x50] sm:$0xf]
        %v5528 = vld [vmem:[%s5 + $0x54] sm:$0xf]
        %v5529 = vld [vmem:[%s5 + $0x58] sm:$0xf]
        %v5530 = vld [vmem:[%s5 + $0x5c] sm:$0xf]
        %v5531 = vld [vmem:[%s5 + $0x60] sm:$0xf]
        %v5532 = vld [vmem:[%s5 + $0x64] sm:$0xf]
        %v5533 = vld [vmem:[%s5 + $0x68] sm:$0xf]
        %v5534 = vld [vmem:[%s5 + $0x6c] sm:$0xf]
        %v5535 = vld [vmem:[%s5 + $0x70] sm:$0xf]
        %v5536 = vld [vmem:[%s5 + $0x74] sm:$0xf]
        %v5537 = vld [vmem:[%s5 + $0x78] sm:$0xf]
        %v5538 = vld [vmem:[%s5 + $0x7c] sm:$0xf]
        %v5539 = vld [vmem:[%s5 + $0x80] sm:$0xf]
        %v5540 = vld [vmem:[%s5 + $0x84] sm:$0xf]
        %v5541 = vld [vmem:[%s5 + $0x88] sm:$0xf]
        %v5542 = vld [vmem:[%s5 + $0x8c] sm:$0xf]
        %v5543 = vld [vmem:[%s5 + $0x90] sm:$0xf]
        %v5544 = vld [vmem:[%s5 + $0x94] sm:$0xf]
        %v5545 = vld [vmem:[%s5 + $0x98] sm:$0xf]
        %v5546 = vld [vmem:[%s5 + $0x9c] sm:$0xf]
        %v5547 = vld [vmem:[%s5 + $0xa0] sm:$0xf]
        %v5548 = vld [vmem:[%s5 + $0xa4] sm:$0xf]
        %v5549 = vld [vmem:[%s5 + $0xa8] sm:$0xf]
        %v5550 = vld [vmem:[%s5 + $0xac] sm:$0xf]
        %v5551 = vld [vmem:[%s5 + $0xb0] sm:$0xf]
        %v5552 = vld [vmem:[%s5 + $0xb4] sm:$0xf]
        %v5553 = vld [vmem:[%s5 + $0xb8] sm:$0xf]
        %v5554 = vld [vmem:[%s5 + $0xbc] sm:$0xf]
        %v5555 = vld [vmem:[%s5 + $0xc0] sm:$0xf]
        %v5556 = vld [vmem:[%s5 + $0xc4] sm:$0xf]
        %v5557 = vld [vmem:[%s5 + $0xc8] sm:$0xf]
        %v5558 = vld [vmem:[%s5 + $0xcc] sm:$0xf]
        %v5559 = vld [vmem:[%s5 + $0xd0] sm:$0xf]
        %v5560 = vld [vmem:[%s5 + $0xd4] sm:$0xf]
        %v5561 = vld [vmem:[%s5 + $0xd8] sm:$0xf]
        %v5562 = vld [vmem:[%s5 + $0xdc] sm:$0xf]
        %v5563 = vld [vmem:[%s5 + $0xe0] sm:$0xf]
        %v5564 = vld [vmem:[%s5 + $0xe4] sm:$0xf]
        %v5565 = vld [vmem:[%s5 + $0xe8] sm:$0xf]
        %v5566 = vld [vmem:[%s5 + $0xec] sm:$0xf]
        %v5567 = vld [vmem:[%s5 + $0xf0] sm:$0xf]
        %v5568 = vld [vmem:[%s5 + $0xf4] sm:$0xf]
        %v5569 = vld [vmem:[%s5 + $0xf8] sm:$0xf]
        %v5570 = vld [vmem:[%s5 + $0xfc] sm:$0xf]
        %v5571 = vld [vmem:[%s5 + $0x100] sm:$0xf]
        %v5572 = vld [vmem:[%s5 + $0x104] sm:$0xf]
        %v5573 = vld [vmem:[%s5 + $0x108] sm:$0xf]
        %v5574 = vld [vmem:[%s5 + $0x10c] sm:$0xf]
        %v5575 = vld [vmem:[%s5 + $0x110] sm:$0xf]
        %v5576 = vld [vmem:[%s5 + $0x114] sm:$0xf]
        %v5577 = vld [vmem:[%s5 + $0x118] sm:$0xf]
        %v5578 = vld [vmem:[%s5 + $0x11c] sm:$0xf]
        %v5579 = vld [vmem:[%s5 + $0x120] sm:$0xf]
        %v5580 = vld [vmem:[%s5 + $0x124] sm:$0xf]
        %v5581 = vld [vmem:[%s5 + $0x128] sm:$0xf]
        %v5582 = vld [vmem:[%s5 + $0x12c] sm:$0xf]
        %v5583 = vld [vmem:[%s5 + $0x130] sm:$0xf]
        %v5584 = vld [vmem:[%s5 + $0x134] sm:$0xf]
        %v5585 = vld [vmem:[%s5 + $0x138] sm:$0xf]
        %v5586 = vld [vmem:[%s5 + $0x13c] sm:$0xf]
        %v5587 = vld [vmem:[%s5 + $0x140] sm:$0xf]
        %v5588 = vld [vmem:[%s5 + $0x144] sm:$0xf]
        %v5589 = vld [vmem:[%s5 + $0x148] sm:$0xf]
        %v5590 = vld [vmem:[%s5 + $0x14c] sm:$0xf]
        %v5591 = vld [vmem:[%s5 + $0x150] sm:$0xf]
        %v5592 = vld [vmem:[%s5 + $0x154] sm:$0xf]
        %v5593 = vld [vmem:[%s5 + $0x158] sm:$0xf]
        %v5594 = vld [vmem:[%s5 + $0x15c] sm:$0xf]
        %v5595 = vld [vmem:[%s5 + $0x160] sm:$0xf]
        %v5596 = vld [vmem:[%s5 + $0x164] sm:$0xf]
        %v5597 = vld [vmem:[%s5 + $0x168] sm:$0xf]
        %v5598 = vld [vmem:[%s5 + $0x16c] sm:$0xf]
        %v5599 = vld [vmem:[%s5 + $0x170] sm:$0xf]
        %v5600 = vld [vmem:[%s5 + $0x174] sm:$0xf]
        %v5601 = vld [vmem:[%s5 + $0x178] sm:$0xf]
        %v5602 = vld [vmem:[%s5 + $0x17c] sm:$0xf]
        %v5603 = vld [vmem:[%s5 + $0x180] sm:$0xf]
        %v5604 = vld [vmem:[%s5 + $0x184] sm:$0xf]
        %v5605 = vld [vmem:[%s5 + $0x188] sm:$0xf]
        %v5606 = vld [vmem:[%s5 + $0x18c] sm:$0xf]
        %v5607 = vld [vmem:[%s5 + $0x190] sm:$0xf]
        %v5608 = vld [vmem:[%s5 + $0x194] sm:$0xf]
        %v5609 = vld [vmem:[%s5 + $0x198] sm:$0xf]
        %v5610 = vld [vmem:[%s5 + $0x19c] sm:$0xf]
        %v5611 = vld [vmem:[%s5 + $0x1a0] sm:$0xf]
        %v5612 = vld [vmem:[%s5 + $0x1a4] sm:$0xf]
        %v5613 = vld [vmem:[%s5 + $0x1a8] sm:$0xf]
        %v5614 = vld [vmem:[%s5 + $0x1ac] sm:$0xf]
        %v5615 = vld [vmem:[%s5 + $0x1b0] sm:$0xf]
        %v5616 = vld [vmem:[%s5 + $0x1b4] sm:$0xf]
        %v5617 = vld [vmem:[%s5 + $0x1b8] sm:$0xf]
        %v5618 = vld [vmem:[%s5 + $0x1bc] sm:$0xf]
        %v5619 = vld [vmem:[%s5 + $0x1c0] sm:$0xf]
        %v5620 = vld [vmem:[%s5 + $0x1c4] sm:$0xf]
        %v5621 = vld [vmem:[%s5 + $0x1c8] sm:$0xf]
        %v5622 = vld [vmem:[%s5 + $0x1cc] sm:$0xf]
        %v5623 = vld [vmem:[%s5 + $0x1d0] sm:$0xf]
        %v5624 = vld [vmem:[%s5 + $0x1d4] sm:$0xf]
        %v5625 = vld [vmem:[%s5 + $0x1d8] sm:$0xf]
        %v5626 = vld [vmem:[%s5 + $0x1dc] sm:$0xf]
        %v5627 = vld [vmem:[%s5 + $0x1e0] sm:$0xf]
        %v5628 = vld [vmem:[%s5 + $0x1e4] sm:$0xf]
        %v5629 = vld [vmem:[%s5 + $0x1e8] sm:$0xf]
        %v5630 = vld [vmem:[%s5 + $0x1ec] sm:$0xf]
        %v5631 = vld [vmem:[%s5 + $0x1f0] sm:$0xf]
        %v5632 = vld [vmem:[%s5 + $0x1f4] sm:$0xf]
        %v5633 = vld [vmem:[%s5 + $0x1f8] sm:$0xf]
        %v5634 = vld [vmem:[%s5 + $0x1fc] sm:$0xf]
        %v5635 = vld [vmem:[%s5 + $0x200] sm:$0xf]
        %v5636 = vld [vmem:[%s5 + $0x204] sm:$0xf]
        %v5637 = vld [vmem:[%s5 + $0x208] sm:$0xf]
        %v5638 = vld [vmem:[%s5 + $0x20c] sm:$0xf]
        %v5639 = vld [vmem:[%s5 + $0x210] sm:$0xf]
        %v5640 = vld [vmem:[%s5 + $0x214] sm:$0xf]
        %v5641 = vld [vmem:[%s5 + $0x218] sm:$0xf]
        %v5642 = vld [vmem:[%s5 + $0x21c] sm:$0xf]
        %v5643 = vld [vmem:[%s5 + $0x220] sm:$0xf]
        %v5644 = vld [vmem:[%s5 + $0x224] sm:$0xf]
        %v5645 = vld [vmem:[%s5 + $0x228] sm:$0xf]
        %v5646 = vld [vmem:[%s5 + $0x22c] sm:$0xf]
        %v5647 = vld [vmem:[%s5 + $0x230] sm:$0xf]
        %v5648 = vld [vmem:[%s5 + $0x234] sm:$0xf]
        %v5649 = vld [vmem:[%s5 + $0x238] sm:$0xf]
        %v5650 = vld [vmem:[%s5 + $0x23c] sm:$0xf]
        %v5651 = vld [vmem:[%s6] sm:$0x1]
        %v5653 = vperm.slane %v5651, 0
        %v5799 = vunpack.c.l.b16 %v5507
        %v5800 = vunpack.c.l.b16 %v5508
        %v5801 = vunpack.c.l.b16 %v5509
        %v5802 = vunpack.c.l.b16 %v5510
        %v5803 = vunpack.c.l.b16 %v5511
        %v5804 = vunpack.c.l.b16 %v5512
        %v5805 = vunpack.c.l.b16 %v5513
        %v5806 = vunpack.c.l.b16 %v5514
        %v5807 = vunpack.c.l.b16 %v5515
        %v5808 = vunpack.c.l.b16 %v5516
        %v5809 = vunpack.c.l.b16 %v5517
        %v5810 = vunpack.c.l.b16 %v5518
        %v5811 = vunpack.c.l.b16 %v5519
        %v5812 = vunpack.c.l.b16 %v5520
        %v5813 = vunpack.c.l.b16 %v5521
        %v5814 = vunpack.c.l.b16 %v5522
        %v5815 = vunpack.c.l.b16 %v5523
        %v5816 = vunpack.c.l.b16 %v5524
        %v5817 = vunpack.c.l.b16 %v5525
        %v5818 = vunpack.c.l.b16 %v5526
        %v5819 = vunpack.c.l.b16 %v5527
        %v5820 = vunpack.c.l.b16 %v5528
        %v5821 = vunpack.c.l.b16 %v5529
        %v5822 = vunpack.c.l.b16 %v5530
        %v5823 = vunpack.c.l.b16 %v5531
        %v5824 = vunpack.c.l.b16 %v5532
        %v5825 = vunpack.c.l.b16 %v5533
        %v5826 = vunpack.c.l.b16 %v5534
        %v5827 = vunpack.c.l.b16 %v5535
        %v5828 = vunpack.c.l.b16 %v5536
        %v5829 = vunpack.c.l.b16 %v5537
        %v5830 = vunpack.c.l.b16 %v5538
        %v5831 = vunpack.c.l.b16 %v5539
        %v5832 = vunpack.c.l.b16 %v5540
        %v5833 = vunpack.c.l.b16 %v5541
        %v5834 = vunpack.c.l.b16 %v5542
        %v5835 = vunpack.c.l.b16 %v5543
        %v5836 = vunpack.c.l.b16 %v5544
        %v5837 = vunpack.c.l.b16 %v5545
        %v5838 = vunpack.c.l.b16 %v5546
        %v5839 = vunpack.c.l.b16 %v5547
        %v5840 = vunpack.c.l.b16 %v5548
        %v5841 = vunpack.c.l.b16 %v5549
        %v5842 = vunpack.c.l.b16 %v5550
        %v5843 = vunpack.c.l.b16 %v5551
        %v5844 = vunpack.c.l.b16 %v5552
        %v5845 = vunpack.c.l.b16 %v5553
        %v5846 = vunpack.c.l.b16 %v5554
        %v5847 = vunpack.c.l.b16 %v5555
        %v5848 = vunpack.c.l.b16 %v5556
        %v5849 = vunpack.c.l.b16 %v5557
        %v5850 = vunpack.c.l.b16 %v5558
        %v5851 = vunpack.c.l.b16 %v5559
        %v5852 = vunpack.c.l.b16 %v5560
        %v5853 = vunpack.c.l.b16 %v5561
        %v5854 = vunpack.c.l.b16 %v5562
        %v5855 = vunpack.c.l.b16 %v5563
        %v5856 = vunpack.c.l.b16 %v5564
        %v5857 = vunpack.c.l.b16 %v5565
        %v5858 = vunpack.c.l.b16 %v5566
        %v5859 = vunpack.c.l.b16 %v5567
        %v5860 = vunpack.c.l.b16 %v5568
        %v5861 = vunpack.c.l.b16 %v5569
        %v5862 = vunpack.c.l.b16 %v5570
        %v5863 = vunpack.c.l.b16 %v5571
        %v5864 = vunpack.c.l.b16 %v5572
        %v5865 = vunpack.c.l.b16 %v5573
        %v5866 = vunpack.c.l.b16 %v5574
        %v5867 = vunpack.c.l.b16 %v5575
        %v5868 = vunpack.c.l.b16 %v5576
        %v5869 = vunpack.c.l.b16 %v5577
        %v5870 = vunpack.c.l.b16 %v5578
        %v5871 = vunpack.c.l.b16 %v5579
        %v5872 = vunpack.c.l.b16 %v5580
        %v5873 = vunpack.c.l.b16 %v5581
        %v5874 = vunpack.c.l.b16 %v5582
        %v5875 = vunpack.c.l.b16 %v5583
        %v5876 = vunpack.c.l.b16 %v5584
        %v5877 = vunpack.c.l.b16 %v5585
        %v5878 = vunpack.c.l.b16 %v5586
        %v5879 = vunpack.c.l.b16 %v5587
        %v5880 = vunpack.c.l.b16 %v5588
        %v5881 = vunpack.c.l.b16 %v5589
        %v5882 = vunpack.c.l.b16 %v5590
        %v5883 = vunpack.c.l.b16 %v5591
        %v5884 = vunpack.c.l.b16 %v5592
        %v5885 = vunpack.c.l.b16 %v5593
        %v5886 = vunpack.c.l.b16 %v5594
        %v5887 = vunpack.c.l.b16 %v5595
        %v5888 = vunpack.c.l.b16 %v5596
        %v5889 = vunpack.c.l.b16 %v5597
        %v5890 = vunpack.c.l.b16 %v5598
        %v5891 = vunpack.c.l.b16 %v5599
        %v5892 = vunpack.c.l.b16 %v5600
        %v5893 = vunpack.c.l.b16 %v5601
        %v5894 = vunpack.c.l.b16 %v5602
        %v5895 = vunpack.c.l.b16 %v5603
        %v5896 = vunpack.c.l.b16 %v5604
        %v5897 = vunpack.c.l.b16 %v5605
        %v5898 = vunpack.c.l.b16 %v5606
        %v5899 = vunpack.c.l.b16 %v5607
        %v5900 = vunpack.c.l.b16 %v5608
        %v5901 = vunpack.c.l.b16 %v5609
        %v5902 = vunpack.c.l.b16 %v5610
        %v5903 = vunpack.c.l.b16 %v5611
        %v5904 = vunpack.c.l.b16 %v5612
        %v5905 = vunpack.c.l.b16 %v5613
        %v5906 = vunpack.c.l.b16 %v5614
        %v5907 = vunpack.c.l.b16 %v5615
        %v5908 = vunpack.c.l.b16 %v5616
        %v5909 = vunpack.c.l.b16 %v5617
        %v5910 = vunpack.c.l.b16 %v5618
        %v5911 = vunpack.c.l.b16 %v5619
        %v5912 = vunpack.c.l.b16 %v5620
        %v5913 = vunpack.c.l.b16 %v5621
        %v5914 = vunpack.c.l.b16 %v5622
        %v5915 = vunpack.c.l.b16 %v5623
        %v5916 = vunpack.c.l.b16 %v5624
        %v5917 = vunpack.c.l.b16 %v5625
        %v5918 = vunpack.c.l.b16 %v5626
        %v5919 = vunpack.c.l.b16 %v5627
        %v5920 = vunpack.c.l.b16 %v5628
        %v5921 = vunpack.c.l.b16 %v5629
        %v5922 = vunpack.c.l.b16 %v5630
        %v5923 = vunpack.c.l.b16 %v5631
        %v5924 = vunpack.c.l.b16 %v5632
        %v5925 = vunpack.c.l.b16 %v5633
        %v5926 = vunpack.c.l.b16 %v5634
        %v5927 = vunpack.c.l.b16 %v5635
        %v5928 = vunpack.c.l.b16 %v5636
        %v5929 = vunpack.c.l.b16 %v5637
        %v5930 = vunpack.c.l.b16 %v5638
        %v5931 = vunpack.c.l.b16 %v5639
        %v5932 = vunpack.c.l.b16 %v5640
        %v5933 = vunpack.c.l.b16 %v5641
        %v5934 = vunpack.c.l.b16 %v5642
        %v5935 = vunpack.c.l.b16 %v5643
        %v5936 = vunpack.c.l.b16 %v5644
        %v5937 = vunpack.c.l.b16 %v5645
        %v5938 = vunpack.c.l.b16 %v5646
        %v5939 = vunpack.c.l.b16 %v5647
        %v5940 = vunpack.c.l.b16 %v5648
        %v5941 = vunpack.c.l.b16 %v5649
        %v5942 = vunpack.c.l.b16 %v5650
        %v5943 = vpack.c.b16 %v5800, %v5799
        %v5944 = vpack.c.b16 %v5802, %v5801
        %v5945 = vpack.c.b16 %v5804, %v5803
        %v5946 = vpack.c.b16 %v5806, %v5805
        %v5947 = vpack.c.b16 %v5808, %v5807
        %v5948 = vpack.c.b16 %v5810, %v5809
        %v5949 = vpack.c.b16 %v5812, %v5811
        %v5950 = vpack.c.b16 %v5814, %v5813
        %v5951 = vpack.c.b16 %v5816, %v5815
        %v5952 = vpack.c.b16 %v5818, %v5817
        %v5953 = vpack.c.b16 %v5820, %v5819
        %v5954 = vpack.c.b16 %v5822, %v5821
        %v5955 = vpack.c.b16 %v5824, %v5823
        %v5956 = vpack.c.b16 %v5826, %v5825
        %v5957 = vpack.c.b16 %v5828, %v5827
        %v5958 = vpack.c.b16 %v5830, %v5829
        %v5959 = vpack.c.b16 %v5832, %v5831
        %v5960 = vpack.c.b16 %v5834, %v5833
        %v5961 = vpack.c.b16 %v5836, %v5835
        %v5962 = vpack.c.b16 %v5838, %v5837
        %v5963 = vpack.c.b16 %v5840, %v5839
        %v5964 = vpack.c.b16 %v5842, %v5841
        %v5965 = vpack.c.b16 %v5844, %v5843
        %v5966 = vpack.c.b16 %v5846, %v5845
        %v5967 = vpack.c.b16 %v5848, %v5847
        %v5968 = vpack.c.b16 %v5850, %v5849
        %v5969 = vpack.c.b16 %v5852, %v5851
        %v5970 = vpack.c.b16 %v5854, %v5853
        %v5971 = vpack.c.b16 %v5856, %v5855
        %v5972 = vpack.c.b16 %v5858, %v5857
        %v5973 = vpack.c.b16 %v5860, %v5859
        %v5974 = vpack.c.b16 %v5862, %v5861
        %v5975 = vpack.c.b16 %v5864, %v5863
        %v5976 = vpack.c.b16 %v5866, %v5865
        %v5977 = vpack.c.b16 %v5868, %v5867
        %v5978 = vpack.c.b16 %v5870, %v5869
        %v5979 = vpack.c.b16 %v5872, %v5871
        %v5980 = vpack.c.b16 %v5874, %v5873
        %v5981 = vpack.c.b16 %v5876, %v5875
        %v5982 = vpack.c.b16 %v5878, %v5877
        %v5983 = vpack.c.b16 %v5880, %v5879
        %v5984 = vpack.c.b16 %v5882, %v5881
        %v5985 = vpack.c.b16 %v5884, %v5883
        %v5986 = vpack.c.b16 %v5886, %v5885
        %v5987 = vpack.c.b16 %v5888, %v5887
        %v5988 = vpack.c.b16 %v5890, %v5889
        %v5989 = vpack.c.b16 %v5892, %v5891
        %v5990 = vpack.c.b16 %v5894, %v5893
        %v5991 = vpack.c.b16 %v5896, %v5895
        %v5992 = vpack.c.b16 %v5898, %v5897
        %v5993 = vpack.c.b16 %v5900, %v5899
        %v5994 = vpack.c.b16 %v5902, %v5901
        %v5995 = vpack.c.b16 %v5904, %v5903
        %v5996 = vpack.c.b16 %v5906, %v5905
        %v5997 = vpack.c.b16 %v5908, %v5907
        %v5998 = vpack.c.b16 %v5910, %v5909
        %v5999 = vpack.c.b16 %v5912, %v5911
        %v6000 = vpack.c.b16 %v5914, %v5913
        %v6001 = vpack.c.b16 %v5916, %v5915
        %v6002 = vpack.c.b16 %v5918, %v5917
        %v6003 = vpack.c.b16 %v5920, %v5919
        %v6004 = vpack.c.b16 %v5922, %v5921
        %v6005 = vpack.c.b16 %v5924, %v5923
        %v6006 = vpack.c.b16 %v5926, %v5925
        %v6007 = vpack.c.b16 %v5928, %v5927
        %v6008 = vpack.c.b16 %v5930, %v5929
        %v6009 = vpack.c.b16 %v5932, %v5931
        %v6010 = vpack.c.b16 %v5934, %v5933
        %v6011 = vpack.c.b16 %v5936, %v5935
        %v6012 = vpack.c.b16 %v5938, %v5937
        %v6013 = vpack.c.b16 %v5940, %v5939
        %v6014 = vpack.c.b16 %v5942, %v5941
        %6087 = vmatpush.bf16.msra.mxu0 %v5950
        %6088 = vmatpush.bf16.msra.mxu0 %v5949
        %6089 = vmatpush.bf16.msra.mxu0 %v5948
        %6090 = vmatpush.bf16.msra.mxu0 %v5947
        %6091 = vmatpush.bf16.msra.mxu0 %v5946
        %6092 = vmatpush.bf16.msra.mxu0 %v5945
        %6093 = vmatpush.bf16.msra.mxu0 %v5944
        %6094 = vmatpush.bf16.msra.mxu0 %v5943
        %6095 = vmatmul.bf16.gmra.mxu0 %v5498
        %v6096 = vpop.f32.mrf.mxu0
        %v6097 = vadd.f32 %v5653, %v6096
        %v6098 = vpop.f32.mrf.mxu0
        %v6099 = vadd.f32 %v5653, %v6098
        %6100 = vdwg.mxu0
        %6101 = vmatpush.bf16.msra.mxu0 %v5958
        %6102 = vmatpush.bf16.msra.mxu0 %v5957
        %6103 = vmatpush.bf16.msra.mxu0 %v5956
        %6104 = vmatpush.bf16.msra.mxu0 %v5955
        %6105 = vmatpush.bf16.msra.mxu0 %v5954
        %6106 = vmatpush.bf16.msra.mxu0 %v5953
        %6107 = vmatpush.bf16.msra.mxu0 %v5952
        %6108 = vmatpush.bf16.msra.mxu0 %v5951
        %6109 = vmatmul.bf16.gmra.mxu0 %v5499
        %v6110 = vpop.f32.mrf.mxu0
        %v6111 = vadd.f32 %v6097, %v6110
        %v6112 = vpop.f32.mrf.mxu0
        %v6113 = vadd.f32 %v6099, %v6112
        %6114 = vdwg.mxu0
        %6115 = vmatpush.bf16.msra.mxu0 %v5966
        %6116 = vmatpush.bf16.msra.mxu0 %v5965
        %6117 = vmatpush.bf16.msra.mxu0 %v5964
        %6118 = vmatpush.bf16.msra.mxu0 %v5963
        %6119 = vmatpush.bf16.msra.mxu0 %v5962
        %6120 = vmatpush.bf16.msra.mxu0 %v5961
        %6121 = vmatpush.bf16.msra.mxu0 %v5960
        %6122 = vmatpush.bf16.msra.mxu0 %v5959
        %6123 = vmatmul.bf16.gmra.mxu0 %v5500
        %v6124 = vpop.f32.mrf.mxu0
        %v6125 = vadd.f32 %v6111, %v6124
        %v6126 = vpop.f32.mrf.mxu0
        %v6127 = vadd.f32 %v6113, %v6126
        %6128 = vdwg.mxu0
        %6129 = vmatpush.bf16.msra.mxu0 %v5974
        %6130 = vmatpush.bf16.msra.mxu0 %v5973
        %6131 = vmatpush.bf16.msra.mxu0 %v5972
        %6132 = vmatpush.bf16.msra.mxu0 %v5971
        %6133 = vmatpush.bf16.msra.mxu0 %v5970
        %6134 = vmatpush.bf16.msra.mxu0 %v5969
        %6135 = vmatpush.bf16.msra.mxu0 %v5968
        %6136 = vmatpush.bf16.msra.mxu0 %v5967
        %6137 = vmatmul.bf16.gmra.mxu0 %v5501
        %v6138 = vpop.f32.mrf.mxu0
        %v6139 = vadd.f32 %v6125, %v6138
        %v6140 = vpop.f32.mrf.mxu0
        %v6141 = vadd.f32 %v6127, %v6140
        %6142 = vdwg.mxu0
        %6143 = vmatpush.bf16.msra.mxu0 %v5982
        %6144 = vmatpush.bf16.msra.mxu0 %v5981
        %6145 = vmatpush.bf16.msra.mxu0 %v5980
        %6146 = vmatpush.bf16.msra.mxu0 %v5979
        %6147 = vmatpush.bf16.msra.mxu0 %v5978
        %6148 = vmatpush.bf16.msra.mxu0 %v5977
        %6149 = vmatpush.bf16.msra.mxu0 %v5976
        %6150 = vmatpush.bf16.msra.mxu0 %v5975
        %6151 = vmatmul.bf16.gmra.mxu0 %v5502
        %v6152 = vpop.f32.mrf.mxu0
        %v6153 = vadd.f32 %v6139, %v6152
        %v6154 = vpop.f32.mrf.mxu0
        %v6155 = vadd.f32 %v6141, %v6154
        %6156 = vdwg.mxu0
        %6157 = vmatpush.bf16.msra.mxu0 %v5990
        %6158 = vmatpush.bf16.msra.mxu0 %v5989
        %6159 = vmatpush.bf16.msra.mxu0 %v5988
        %6160 = vmatpush.bf16.msra.mxu0 %v5987
        %6161 = vmatpush.bf16.msra.mxu0 %v5986
        %6162 = vmatpush.bf16.msra.mxu0 %v5985
        %6163 = vmatpush.bf16.msra.mxu0 %v5984
        %6164 = vmatpush.bf16.msra.mxu0 %v5983
        %6165 = vmatmul.bf16.gmra.mxu0 %v5503
        %v6166 = vpop.f32.mrf.mxu0
        %v6167 = vadd.f32 %v6153, %v6166
        %v6168 = vpop.f32.mrf.mxu0
        %v6169 = vadd.f32 %v6155, %v6168
        %6170 = vdwg.mxu0
        %6171 = vmatpush.bf16.msra.mxu0 %v5998
        %6172 = vmatpush.bf16.msra.mxu0 %v5997
        %6173 = vmatpush.bf16.msra.mxu0 %v5996
        %6174 = vmatpush.bf16.msra.mxu0 %v5995
        %6175 = vmatpush.bf16.msra.mxu0 %v5994
        %6176 = vmatpush.bf16.msra.mxu0 %v5993
        %6177 = vmatpush.bf16.msra.mxu0 %v5992
        %6178 = vmatpush.bf16.msra.mxu0 %v5991
        %6179 = vmatmul.bf16.gmra.mxu0 %v5504
        %v6180 = vpop.f32.mrf.mxu0
        %v6181 = vadd.f32 %v6167, %v6180
        %v6182 = vpop.f32.mrf.mxu0
        %v6183 = vadd.f32 %v6169, %v6182
        %6184 = vdwg.mxu0
        %6185 = vmatpush.bf16.msra.mxu0 %v6006
        %6186 = vmatpush.bf16.msra.mxu0 %v6005
        %6187 = vmatpush.bf16.msra.mxu0 %v6004
        %6188 = vmatpush.bf16.msra.mxu0 %v6003
        %6189 = vmatpush.bf16.msra.mxu0 %v6002
        %6190 = vmatpush.bf16.msra.mxu0 %v6001
        %6191 = vmatpush.bf16.msra.mxu0 %v6000
        %6192 = vmatpush.bf16.msra.mxu0 %v5999
        %6193 = vmatmul.bf16.gmra.mxu0 %v5505
        %v6194 = vpop.f32.mrf.mxu0
        %v6195 = vadd.f32 %v6181, %v6194
        %v6196 = vpop.f32.mrf.mxu0
        %v6197 = vadd.f32 %v6183, %v6196
        %6198 = vdwg.mxu0
        %6199 = vmatpush.bf16.msra.mxu0 %v6014
        %6200 = vmatpush.bf16.msra.mxu0 %v6013
        %6201 = vmatpush.bf16.msra.mxu0 %v6012
        %6202 = vmatpush.bf16.msra.mxu0 %v6011
        %6203 = vmatpush.bf16.msra.mxu0 %v6010
        %6204 = vmatpush.bf16.msra.mxu0 %v6009
        %6205 = vmatpush.bf16.msra.mxu0 %v6008
        %6206 = vmatpush.bf16.msra.mxu0 %v6007
        %6207 = vmatmul.bf16.gmra.mxu0 %v5506
        %v6208 = vpop.f32.mrf.mxu0
        %v6209 = vadd.f32 %v6195, %v6208
        %v6210 = vpop.f32.mrf.mxu0
        %v6211 = vadd.f32 %v6197, %v6210
        %6212 = vdwg.mxu0
        %v6213 = vmax.f32 %v6209, 0.0
        %v6214 = vmax.f32 %v6211, 0.0
        %v6217 = vrot.slane %v6213, 4
        %v6218 = vrot.slane %v6214, 4
        %vm6221 = vcmask 1043456
        %v6222 = vsel %vm6221, %v6213, -inf
        %v6223 = vsel %vm6221, %v6217, -inf
        %v6224 = vmax.f32 %v6222, %v6223
        %v6225 = vsel %vm6221, %v6214, -inf
        %v6226 = vsel %vm6221, %v6218, -inf
        %v6227 = vmax.f32 %v6225, %v6226
        %v6230 = vrot.slane %v6224, 2
        %v6231 = vrot.slane %v6227, 2
        %vm6232 = vcmask 1041408
        %v6233 = vsel %vm6232, %v6224, %v6230
        %vm6234 = vcmask 1043458
        %v6235 = vsel %vm6234, %v6224, %v6230
        %v6236 = vrot.slane %v6235, 2
        %v6237 = vsel %vm6232, %v6227, %v6231
        %v6238 = vsel %vm6234, %v6227, %v6231
        %v6239 = vrot.slane %v6238, 2
        %v6244 = vsel %vm6232, %v6233, -inf
        %v6245 = vrot.slane %v6244, 4
        %v6246 = vmax.f32 %v6244, %v6245
        %v6247 = vrot.slane %v6246, 2
        %v6248 = vmax.f32 %v6246, %v6247
        %v6249 = vrot.slane %v6248, 1
        %v6250 = vmax.f32 %v6248, %v6249
        %v6251 = vsel %vm6232, %v6236, -inf
        %v6252 = vrot.slane %v6251, 4
        %v6253 = vmax.f32 %v6251, %v6252
        %v6254 = vrot.slane %v6253, 2
        %v6255 = vmax.f32 %v6253, %v6254
        %v6256 = vrot.slane %v6255, 1
        %v6257 = vmax.f32 %v6255, %v6256
        %v6258 = vsel %vm6232, %v6237, -inf
        %v6259 = vrot.slane %v6258, 4
        %v6260 = vmax.f32 %v6258, %v6259
        %v6261 = vrot.slane %v6260, 2
        %v6262 = vmax.f32 %v6260, %v6261
        %v6263 = vrot.slane %v6262, 1
        %v6264 = vmax.f32 %v6262, %v6263
        %v6265 = vsel %vm6232, %v6239, -inf
        %v6266 = vrot.slane %v6265, 4
        %v6267 = vmax.f32 %v6265, %v6266
        %v6268 = vrot.slane %v6267, 2
        %v6269 = vmax.f32 %v6267, %v6268
        %v6270 = vrot.slane %v6269, 1
        %v6271 = vmax.f32 %v6269, %v6270
        %v6272 = vld [vmem:[%s8] sm:$0x1]
        %v6273 = vpack.c.bf16 %v6250, %v6250
        %v6274 = vld [vmem:[%s7] sm:$0xf]
        %v6275 = vld [vmem:[%s7 + $0x4] sm:$0xf]
        %v6276 = vld [vmem:[%s7 + $0x8] sm:$0xf]
        %v6277 = vld [vmem:[%s7 + $0xc] sm:$0xf]
        %v6278 = vld [vmem:[%s7 + $0x10] sm:$0xf]
        %v6279 = vld [vmem:[%s7 + $0x14] sm:$0xf]
        %v6280 = vld [vmem:[%s7 + $0x18] sm:$0xf]
        %v6281 = vld [vmem:[%s7 + $0x1c] sm:$0xf]
        %v6282 = vld [vmem:[%s7 + $0x20] sm:$0xf]
        %v6283 = vld [vmem:[%s7 + $0x24] sm:$0xf]
        %v6284 = vld [vmem:[%s7 + $0x28] sm:$0xf]
        %v6285 = vld [vmem:[%s7 + $0x2c] sm:$0xf]
        %v6286 = vld [vmem:[%s7 + $0x30] sm:$0xf]
        %v6287 = vld [vmem:[%s7 + $0x34] sm:$0xf]
        %v6288 = vld [vmem:[%s7 + $0x38] sm:$0xf]
        %v6289 = vld [vmem:[%s7 + $0x3c] sm:$0xf]
        %v6306 = vunpack.c.l.b16 %v6274
        %v6307 = vunpack.c.l.b16 %v6275
        %v6308 = vunpack.c.l.b16 %v6276
        %v6309 = vunpack.c.l.b16 %v6277
        %v6310 = vunpack.c.l.b16 %v6278
        %v6311 = vunpack.c.l.b16 %v6279
        %v6312 = vunpack.c.l.b16 %v6280
        %v6313 = vunpack.c.l.b16 %v6281
        %v6314 = vunpack.c.l.b16 %v6282
        %v6315 = vunpack.c.l.b16 %v6283
        %v6316 = vunpack.c.l.b16 %v6284
        %v6317 = vunpack.c.l.b16 %v6285
        %v6318 = vunpack.c.l.b16 %v6286
        %v6319 = vunpack.c.l.b16 %v6287
        %v6320 = vunpack.c.l.b16 %v6288
        %v6321 = vunpack.c.l.b16 %v6289
        %v6322 = vpack.c.b16 %v6307, %v6306
        %v6323 = vpack.c.b16 %v6309, %v6308
        %v6324 = vpack.c.b16 %v6311, %v6310
        %v6325 = vpack.c.b16 %v6313, %v6312
        %v6326 = vpack.c.b16 %v6315, %v6314
        %v6327 = vpack.c.b16 %v6317, %v6316
        %v6328 = vpack.c.b16 %v6319, %v6318
        %v6329 = vpack.c.b16 %v6321, %v6320
        %6338 = vmatpush.bf16.msra.mxu0 %v6329
        %6339 = vmatpush.bf16.msra.mxu0 %v6328
        %6340 = vmatpush.bf16.msra.mxu0 %v6327
        %6341 = vmatpush.bf16.msra.mxu0 %v6326
        %6342 = vmatpush.bf16.msra.mxu0 %v6325
        %6343 = vmatpush.bf16.msra.mxu0 %v6324
        %6344 = vmatpush.bf16.msra.mxu0 %v6323
        %6345 = vmatpush.bf16.msra.mxu0 %v6322
        %6346 = vmatmul.bf16.gmra.mxu0 %v6273
        %v6347 = vpop.f32.mrf.mxu0
        %v6348 = vadd.f32 0.0, %v6347
        %v6349 = vpop.f32.mrf.mxu0
        %6350 = vdwg.mxu0
        %v6351 = vadd.f32 %v6272, %v6348
        %v6352 = vpack.c.bf16 %v6257, %v6257
        %s6353 = scalar_lea.vmem %s7, 64
        %v6354 = vld [vmem:[%s6353] sm:$0xf]
        %v6355 = vld [vmem:[%s6353 + $0x4] sm:$0xf]
        %v6356 = vld [vmem:[%s6353 + $0x8] sm:$0xf]
        %v6357 = vld [vmem:[%s6353 + $0xc] sm:$0xf]
        %v6358 = vld [vmem:[%s6353 + $0x10] sm:$0xf]
        %v6359 = vld [vmem:[%s6353 + $0x14] sm:$0xf]
        %v6360 = vld [vmem:[%s6353 + $0x18] sm:$0xf]
        %v6361 = vld [vmem:[%s6353 + $0x1c] sm:$0xf]
        %v6362 = vld [vmem:[%s6353 + $0x20] sm:$0xf]
        %v6363 = vld [vmem:[%s6353 + $0x24] sm:$0xf]
        %v6364 = vld [vmem:[%s6353 + $0x28] sm:$0xf]
        %v6365 = vld [vmem:[%s6353 + $0x2c] sm:$0xf]
        %v6366 = vld [vmem:[%s6353 + $0x30] sm:$0xf]
        %v6367 = vld [vmem:[%s6353 + $0x34] sm:$0xf]
        %v6368 = vld [vmem:[%s6353 + $0x38] sm:$0xf]
        %v6369 = vld [vmem:[%s6353 + $0x3c] sm:$0xf]
        %v6386 = vunpack.c.l.b16 %v6354
        %v6387 = vunpack.c.l.b16 %v6355
        %v6388 = vunpack.c.l.b16 %v6356
        %v6389 = vunpack.c.l.b16 %v6357
        %v6390 = vunpack.c.l.b16 %v6358
        %v6391 = vunpack.c.l.b16 %v6359
        %v6392 = vunpack.c.l.b16 %v6360
        %v6393 = vunpack.c.l.b16 %v6361
        %v6394 = vunpack.c.l.b16 %v6362
        %v6395 = vunpack.c.l.b16 %v6363
        %v6396 = vunpack.c.l.b16 %v6364
        %v6397 = vunpack.c.l.b16 %v6365
        %v6398 = vunpack.c.l.b16 %v6366
        %v6399 = vunpack.c.l.b16 %v6367
        %v6400 = vunpack.c.l.b16 %v6368
        %v6401 = vunpack.c.l.b16 %v6369
        %v6402 = vpack.c.b16 %v6387, %v6386
        %v6403 = vpack.c.b16 %v6389, %v6388
        %v6404 = vpack.c.b16 %v6391, %v6390
        %v6405 = vpack.c.b16 %v6393, %v6392
        %v6406 = vpack.c.b16 %v6395, %v6394
        %v6407 = vpack.c.b16 %v6397, %v6396
        %v6408 = vpack.c.b16 %v6399, %v6398
        %v6409 = vpack.c.b16 %v6401, %v6400
        %6418 = vmatpush.bf16.msra.mxu0 %v6409
        %6419 = vmatpush.bf16.msra.mxu0 %v6408
        %6420 = vmatpush.bf16.msra.mxu0 %v6407
        %6421 = vmatpush.bf16.msra.mxu0 %v6406
        %6422 = vmatpush.bf16.msra.mxu0 %v6405
        %6423 = vmatpush.bf16.msra.mxu0 %v6404
        %6424 = vmatpush.bf16.msra.mxu0 %v6403
        %6425 = vmatpush.bf16.msra.mxu0 %v6402
        %6426 = vmatmul.bf16.gmra.mxu0 %v6352
        %v6427 = vpop.f32.mrf.mxu0
        %v6428 = vadd.f32 0.0, %v6427
        %v6429 = vpop.f32.mrf.mxu0
        %6430 = vdwg.mxu0
        %v6431 = vadd.f32 %v6351, %v6428
        %v6432 = vpack.c.bf16 %v6264, %v6264
        %s6433 = scalar_lea.vmem %s7, 128
        %v6434 = vld [vmem:[%s6433] sm:$0xf]
        %v6435 = vld [vmem:[%s6433 + $0x4] sm:$0xf]
        %v6436 = vld [vmem:[%s6433 + $0x8] sm:$0xf]
        %v6437 = vld [vmem:[%s6433 + $0xc] sm:$0xf]
        %v6438 = vld [vmem:[%s6433 + $0x10] sm:$0xf]
        %v6439 = vld [vmem:[%s6433 + $0x14] sm:$0xf]
        %v6440 = vld [vmem:[%s6433 + $0x18] sm:$0xf]
        %v6441 = vld [vmem:[%s6433 + $0x1c] sm:$0xf]
        %v6442 = vld [vmem:[%s6433 + $0x20] sm:$0xf]
        %v6443 = vld [vmem:[%s6433 + $0x24] sm:$0xf]
        %v6444 = vld [vmem:[%s6433 + $0x28] sm:$0xf]
        %v6445 = vld [vmem:[%s6433 + $0x2c] sm:$0xf]
        %v6446 = vld [vmem:[%s6433 + $0x30] sm:$0xf]
        %v6447 = vld [vmem:[%s6433 + $0x34] sm:$0xf]
        %v6448 = vld [vmem:[%s6433 + $0x38] sm:$0xf]
        %v6449 = vld [vmem:[%s6433 + $0x3c] sm:$0xf]
        %v6466 = vunpack.c.l.b16 %v6434
        %v6467 = vunpack.c.l.b16 %v6435
        %v6468 = vunpack.c.l.b16 %v6436
        %v6469 = vunpack.c.l.b16 %v6437
        %v6470 = vunpack.c.l.b16 %v6438
        %v6471 = vunpack.c.l.b16 %v6439
        %v6472 = vunpack.c.l.b16 %v6440
        %v6473 = vunpack.c.l.b16 %v6441
        %v6474 = vunpack.c.l.b16 %v6442
        %v6475 = vunpack.c.l.b16 %v6443
        %v6476 = vunpack.c.l.b16 %v6444
        %v6477 = vunpack.c.l.b16 %v6445
        %v6478 = vunpack.c.l.b16 %v6446
        %v6479 = vunpack.c.l.b16 %v6447
        %v6480 = vunpack.c.l.b16 %v6448
        %v6481 = vunpack.c.l.b16 %v6449
        %v6482 = vpack.c.b16 %v6467, %v6466
        %v6483 = vpack.c.b16 %v6469, %v6468
        %v6484 = vpack.c.b16 %v6471, %v6470
        %v6485 = vpack.c.b16 %v6473, %v6472
        %v6486 = vpack.c.b16 %v6475, %v6474
        %v6487 = vpack.c.b16 %v6477, %v6476
        %v6488 = vpack.c.b16 %v6479, %v6478
        %v6489 = vpack.c.b16 %v6481, %v6480
        %6498 = vmatpush.bf16.msra.mxu0 %v6489
        %6499 = vmatpush.bf16.msra.mxu0 %v6488
        %6500 = vmatpush.bf16.msra.mxu0 %v6487
        %6501 = vmatpush.bf16.msra.mxu0 %v6486
        %6502 = vmatpush.bf16.msra.mxu0 %v6485
        %6503 = vmatpush.bf16.msra.mxu0 %v6484
        %6504 = vmatpush.bf16.msra.mxu0 %v6483
        %6505 = vmatpush.bf16.msra.mxu0 %v6482
        %6506 = vmatmul.bf16.gmra.mxu0 %v6432
        %v6507 = vpop.f32.mrf.mxu0
        %v6508 = vadd.f32 0.0, %v6507
        %v6509 = vpop.f32.mrf.mxu0
        %6510 = vdwg.mxu0
        %v6511 = vadd.f32 %v6431, %v6508
        %v6512 = vpack.c.bf16 %v6271, %v6271
        %s6513 = scalar_lea.vmem %s7, 192
        %v6514 = vld [vmem:[%s6513] sm:$0xf]
        %v6515 = vld [vmem:[%s6513 + $0x4] sm:$0xf]
        %v6516 = vld [vmem:[%s6513 + $0x8] sm:$0xf]
        %v6517 = vld [vmem:[%s6513 + $0xc] sm:$0xf]
        %v6518 = vld [vmem:[%s6513 + $0x10] sm:$0xf]
        %v6519 = vld [vmem:[%s6513 + $0x14] sm:$0xf]
        %v6520 = vld [vmem:[%s6513 + $0x18] sm:$0xf]
        %v6521 = vld [vmem:[%s6513 + $0x1c] sm:$0xf]
        %v6522 = vld [vmem:[%s6513 + $0x20] sm:$0xf]
        %v6523 = vld [vmem:[%s6513 + $0x24] sm:$0xf]
        %v6524 = vld [vmem:[%s6513 + $0x28] sm:$0xf]
        %v6525 = vld [vmem:[%s6513 + $0x2c] sm:$0xf]
        %v6526 = vld [vmem:[%s6513 + $0x30] sm:$0xf]
        %v6527 = vld [vmem:[%s6513 + $0x34] sm:$0xf]
        %v6528 = vld [vmem:[%s6513 + $0x38] sm:$0xf]
        %v6529 = vld [vmem:[%s6513 + $0x3c] sm:$0xf]
        %v6546 = vunpack.c.l.b16 %v6514
        %v6547 = vunpack.c.l.b16 %v6515
        %v6548 = vunpack.c.l.b16 %v6516
        %v6549 = vunpack.c.l.b16 %v6517
        %v6550 = vunpack.c.l.b16 %v6518
        %v6551 = vunpack.c.l.b16 %v6519
        %v6552 = vunpack.c.l.b16 %v6520
        %v6553 = vunpack.c.l.b16 %v6521
        %v6554 = vunpack.c.l.b16 %v6522
        %v6555 = vunpack.c.l.b16 %v6523
        %v6556 = vunpack.c.l.b16 %v6524
        %v6557 = vunpack.c.l.b16 %v6525
        %v6558 = vunpack.c.l.b16 %v6526
        %v6559 = vunpack.c.l.b16 %v6527
        %v6560 = vunpack.c.l.b16 %v6528
        %v6561 = vunpack.c.l.b16 %v6529
        %v6562 = vpack.c.b16 %v6547, %v6546
        %v6563 = vpack.c.b16 %v6549, %v6548
        %v6564 = vpack.c.b16 %v6551, %v6550
        %v6565 = vpack.c.b16 %v6553, %v6552
        %v6566 = vpack.c.b16 %v6555, %v6554
        %v6567 = vpack.c.b16 %v6557, %v6556
        %v6568 = vpack.c.b16 %v6559, %v6558
        %v6569 = vpack.c.b16 %v6561, %v6560
        %6578 = vmatpush.bf16.msra.mxu0 %v6569
        %6579 = vmatpush.bf16.msra.mxu0 %v6568
        %6580 = vmatpush.bf16.msra.mxu0 %v6567
        %6581 = vmatpush.bf16.msra.mxu0 %v6566
        %6582 = vmatpush.bf16.msra.mxu0 %v6565
        %6583 = vmatpush.bf16.msra.mxu0 %v6564
        %6584 = vmatpush.bf16.msra.mxu0 %v6563
        %6585 = vmatpush.bf16.msra.mxu0 %v6562
        %6586 = vmatmul.bf16.gmra.mxu0 %v6512
        %v6587 = vpop.f32.mrf.mxu0
        %v6588 = vadd.f32 0.0, %v6587
        %v6589 = vpop.f32.mrf.mxu0
        %6590 = vdwg.mxu0
        %v6591 = vadd.f32 %v6511, %v6588
        %v6592 = vmax.f32 %v6591, 0.0
        %v6593 = vpack.c.bf16 %v6592, %v6592
        %v6594 = vld [vmem:[%s9] sm:$0xf]
        %v6595 = vld [vmem:[%s9 + $0x4] sm:$0xf]
        %v6596 = vld [vmem:[%s9 + $0x8] sm:$0xf]
        %v6597 = vld [vmem:[%s9 + $0xc] sm:$0xf]
        %v6598 = vld [vmem:[%s9 + $0x10] sm:$0xf]
        %v6599 = vld [vmem:[%s9 + $0x14] sm:$0xf]
        %v6600 = vld [vmem:[%s9 + $0x18] sm:$0xf]
        %v6601 = vld [vmem:[%s9 + $0x1c] sm:$0xf]
        %v6602 = vld [vmem:[%s9 + $0x20] sm:$0xf]
        %v6603 = vld [vmem:[%s9 + $0x24] sm:$0xf]
        %v6604 = vld [vmem:[%s9 + $0x28] sm:$0xf]
        %v6605 = vld [vmem:[%s9 + $0x2c] sm:$0xf]
        %v6606 = vld [vmem:[%s9 + $0x30] sm:$0xf]
        %v6607 = vld [vmem:[%s9 + $0x34] sm:$0xf]
        %v6608 = vld [vmem:[%s9 + $0x38] sm:$0xf]
        %v6609 = vld [vmem:[%s9 + $0x3c] sm:$0xf]
        %v6610 = vld [vmem:[%s10] sm:$0x1]
        %v6627 = vunpack.c.l.b16 %v6594
        %v6628 = vunpack.c.l.b16 %v6595
        %v6629 = vunpack.c.l.b16 %v6596
        %v6630 = vunpack.c.l.b16 %v6597
        %v6631 = vunpack.c.l.b16 %v6598
        %v6632 = vunpack.c.l.b16 %v6599
        %v6633 = vunpack.c.l.b16 %v6600
        %v6634 = vunpack.c.l.b16 %v6601
        %v6635 = vunpack.c.l.b16 %v6602
        %v6636 = vunpack.c.l.b16 %v6603
        %v6637 = vunpack.c.l.b16 %v6604
        %v6638 = vunpack.c.l.b16 %v6605
        %v6639 = vunpack.c.l.b16 %v6606
        %v6640 = vunpack.c.l.b16 %v6607
        %v6641 = vunpack.c.l.b16 %v6608
        %v6642 = vunpack.c.l.b16 %v6609
        %v6643 = vpack.c.b16 %v6628, %v6627
        %v6644 = vpack.c.b16 %v6630, %v6629
        %v6645 = vpack.c.b16 %v6632, %v6631
        %v6646 = vpack.c.b16 %v6634, %v6633
        %v6647 = vpack.c.b16 %v6636, %v6635
        %v6648 = vpack.c.b16 %v6638, %v6637
        %v6649 = vpack.c.b16 %v6640, %v6639
        %v6650 = vpack.c.b16 %v6642, %v6641
        %6659 = vmatpush.bf16.msra.mxu0 %v6650
        %6660 = vmatpush.bf16.msra.mxu0 %v6649
        %6661 = vmatpush.bf16.msra.mxu0 %v6648
        %6662 = vmatpush.bf16.msra.mxu0 %v6647
        %6663 = vmatpush.bf16.msra.mxu0 %v6646
        %6664 = vmatpush.bf16.msra.mxu0 %v6645
        %6665 = vmatpush.bf16.msra.mxu0 %v6644
        %6666 = vmatpush.bf16.msra.mxu0 %v6643
        %6667 = vmatmul.bf16.gmra.mxu0 %v6593
        %v6668 = vpop.f32.mrf.mxu0
        %v6669 = vadd.f32 %v6610, %v6668
        %v6670 = vpop.f32.mrf.mxu0
        %6671 = vdwg.mxu0
        %vm6672 = vcmask 32768
        %6673 = vst.msk [vmem:[%s378] sm:$0x1] %vm6672, %v6669
        %s6674 = sand.u32 %s269, 1
        %s6675 = scalar_lea.sflag [#allocation7], %s6674
        %s6676 = sand.u32 %s269, 1
        %s6677 = scalar_lea.vmem [#allocation6], %s6676
        // Predicated region
        $region65: #{simple_cnn_forward.1} parent=63 // pred_check
          %p6678 = pneg %p279
        $region66: #{simple_cnn_forward.1} parent=63 // pred_check_branch
          %6680 = sbr.rel (%p6678) target = $region68
        $region67: #{simple_cnn_forward.1} parent=63 // pred_region
          %6682 = vsyncadd %s6675, 0
          %s6683 = scalar_lea.hbm %s11, %s25
          %s6685 = sshll.u32 %s6677, 4
          %s6686 = int_to_ptr.vmem [resolvable:$true] %s6685
          %s6687 = sshll.u32 %s6683, 4
          %s6688 = int_to_ptr.hbm [resolvable:$true] %s6687
          %6690 = dma.vmem_to_hbm [thread:$0]  %s6686, 16, %s6688, %s6675
        $region68: #{simple_cnn_forward.1} parent=63 // pred_fallthru
          _
      $region64: #{simple_cnn_forward.1} parent=5 // pred_fallthru
        _
      %p6691 = scmp.le.s32.totalorder 2, %s20
      // Predicated region
      $region69: #{simple_cnn_forward.1} parent=5 // pred_check
        %p6692 = pneg %p6691
      $region70: #{simple_cnn_forward.1} parent=5 // pred_check_branch
        %6694 = sbr.rel (%p6692) target = $region72
      $region71: #{simple_cnn_forward.1} parent=5 // pred_region
        %s6695 = ssub.s32 %s20, 2
        // Predicated region
        $region73: #{simple_cnn_forward.1} parent=71 // pred_check
          %p6696 = pneg %p285
        $region74: #{simple_cnn_forward.1} parent=71 // pred_check_branch
          %6698 = sbr.rel (%p6696) target = $region76
        $region75: #{simple_cnn_forward.1} parent=71 // pred_region
          %s6699 = sand.u32 %s270, 1
          %s6700 = scalar_lea.sflag [#allocation7], %s6699
          %s6701 = sand.u32 %s270, 1
          %s6702 = scalar_lea.vmem [#allocation6], %s6701
          %6704 = dma.done %s6700, 16
        $region76: #{simple_cnn_forward.1} parent=71 // pred_fallthru
          _
      $region72: #{simple_cnn_forward.1} parent=5 // pred_fallthru
        _
    $region6: #{simple_cnn_forward.1} parent=1 // loop_footer
      %s24 = sadd.s32 1, %s20
    $region7: #{simple_cnn_forward.1} parent=1 // loop_footer_branch
      %19 = sbr.rel target = $region3
    $region8: #{simple_cnn_forward.1} parent=1 // loop_exit
      _
    %6705 = vsyncpa [#allocation7], 1
    %s6706 = scalar_lea.sflag [#allocation7], 1
    %6707 = vsyncpa %s6706, 1

</llo_original>
